<compile_context>
chip_gen: v5e
topology: v5e:2x2
jax: 0.10.0
libtpu: 0.0.40
codegen_flags: <defaults>
</compile_context>

<pallas_src>
import functools

import jax
import jax.numpy as jnp
from jax import lax
from jax.experimental import pallas as pl
from jax.experimental.pallas import tpu as pltpu


# ------------------------------------------------------------------
# Fused bidirectional LSTM kernel (gate order reordered to [i, f, o, g]).
# x_ref is time-major (S, nb, Din) bf16; both directions run in ONE
# recurrence with batch NB = 2*nb: rows [0:nb] forward, rows [nb:NB] backward
# (the backward rows consume the projected input at time S-1-t).
# Output o_ref: (S, 2, nb, H) f32  with o[:,0]=fwd hidden, o[:,1]=bwd hidden.
# ------------------------------------------------------------------
def bilstm_kernel(x_ref, wih_f_ref, wih_b_ref, bias_f_ref, bias_b_ref, whh_ref,
                  o_ref, xwf_ref, xwb_ref, *, unroll):
    S, nb, Din = x_ref.shape
    H = o_ref.shape[3]
    NB = 2 * nb

    # ---- Hoisted input projection: one big MXU matmul per direction ----
    xf = x_ref[...].reshape(S * nb, Din)                        # bf16, time-major rows
    xwf_ref[...] = (jnp.dot(xf, wih_f_ref[...],
                            preferred_element_type=jnp.float32)
                    + bias_f_ref[...]).reshape(S, nb, 4 * H)
    xwb_ref[...] = (jnp.dot(xf, wih_b_ref[...],
                            preferred_element_type=jnp.float32)
                    + bias_b_ref[...]).reshape(S, nb, 4 * H)
    # TODO(synk): for very tight v7x VMEM budgets the xw scratch could be bf16.

    # Recurrent weights block-stacked [whh_f; whh_b] so one matmul serves both
    # directions; correctness relies on the complementary lanes of h_state
    # being exactly zero each step (enforced by dir_mask below).
    whh = whh_ref[...]                                          # (2H, 4H) bf16

    row = lax.broadcasted_iota(jnp.int32, (NB, 2 * H), 0)
    lane = lax.broadcasted_iota(jnp.int32, (NB, 2 * H), 1)
    # fwd rows keep h in lanes [0:H], bwd rows in lanes [H:2H]
    dir_mask = jnp.where((row < nb) == (lane < H), 1.0, 0.0)

    def step(t, carry):
        h_state, c = carry                                      # (NB,2H), (NB,H) f32
        pre = jnp.concatenate([xwf_ref[t], xwb_ref[S - 1 - t]], axis=0)   # (NB,4H)
        gates = pre + jnp.dot(h_state.astype(jnp.bfloat16), whh,
                              preferred_element_type=jnp.float32)
        # gate order [i,f,o,g]: one sigmoid over 3H lanes, one tanh over H lanes
        sig = jax.nn.sigmoid(gates[:, 0:3 * H])
        g_g = jnp.tanh(gates[:, 3 * H:4 * H])
        i_g = sig[:, 0:H]
        f_g = sig[:, H:2 * H]
        o_g = sig[:, 2 * H:3 * H]
        c = f_g * c + i_g * g_g
        h = o_g * jnp.tanh(c)                                   # (NB, H)

        o_ref[t, 0] = h[0:nb]                                   # fwd hidden at time t
        o_ref[S - 1 - t, 1] = h[nb:NB]                          # bwd hidden at time S-1-t

        h_state = jnp.concatenate([h, h], axis=-1) * dir_mask
        return (h_state, c)

    h0 = jnp.zeros((NB, 2 * H), jnp.float32)
    c0 = jnp.zeros((NB, H), jnp.float32)
    lax.fori_loop(0, S, step, (h0, c0), unroll=unroll)


def lstm_layer(x_bsd, p, *, block_b=16, vmem_limit=48 * 1024 * 1024):
    """Bidirectional LSTM (batch_first semantics); x_bsd: (B2, S, Din) -> (B2, S, 2H)."""
    B2, S, Din = x_bsd.shape
    H = p["whh"].shape[0] // 2

    # TODO(synk): the time-major conversion could move inside the kernel to
    # drop this HBM transpose; kept in JAX to stay on well-supported lowerings.
    x_sbd = jnp.transpose(x_bsd.astype(jnp.bfloat16), (1, 0, 2))  # (S, B2, Din)

    # batch tile: multiple of 16 (bf16 sublane tile) or the full batch
    bb = block_b if (block_b % 16 == 0 and B2 % block_b == 0) else B2
    grid = (B2 // bb,)

    unroll = 1
    for u in (8, 4, 2):
        if S % u == 0:
            unroll = u
            break

    out = pl.pallas_call(
        functools.partial(bilstm_kernel, unroll=unroll),
        out_shape=jax.ShapeDtypeStruct((S, 2, B2, H), jnp.float32),
        grid=grid,
        in_specs=[
            pl.BlockSpec((S, bb, Din), lambda i: (0, i, 0)),
            pl.BlockSpec((Din, 4 * H), lambda i: (0, 0)),
            pl.BlockSpec((Din, 4 * H), lambda i: (0, 0)),
            pl.BlockSpec((1, 4 * H), lambda i: (0, 0)),
            pl.BlockSpec((1, 4 * H), lambda i: (0, 0)),
            pl.BlockSpec((2 * H, 4 * H), lambda i: (0, 0)),
        ],
        out_specs=pl.BlockSpec((S, 2, bb, H), lambda i: (0, 0, i, 0)),
        scratch_shapes=[pltpu.VMEM((S, bb, 4 * H), jnp.float32),
                        pltpu.VMEM((S, bb, 4 * H), jnp.float32)],
        compiler_params=pltpu.CompilerParams(
            dimension_semantics=("parallel",),
            vmem_limit_bytes=vmem_limit),
    )(x_sbd, p["wih_f"], p["wih_b"], p["b_f"], p["b_b"], p["whh"])

    # (S, 2, B2, H) -> (B2, S, 2H): single transpose, trailing reshape is free.
    return jnp.transpose(out, (2, 0, 1, 3)).reshape(B2, S, 2 * H)


# ------------------------------------------------------------------
# Fused soft_attention_align + [o, align, o-align, o*align] combination.
# Tiled over sentence pairs: o_ref (pb, 2, S, 2H), m_ref (pb, 2, S).
# Output comb (pb, 2, S, 8H) in bf16 (consumed only by lstm2's bf16 matmul).
# ------------------------------------------------------------------
def align_combine_kernel(o_ref, m_ref, comb_ref):
    o1 = o_ref[:, 0]                                   # (pb, S, 2H) f32
    o2 = o_ref[:, 1]
    m1 = m_ref[:, 0]                                   # (pb, S) f32 (0 / -inf)
    m2 = m_ref[:, 1]
    o1b = o1.astype(jnp.bfloat16)
    o2b = o2.astype(jnp.bfloat16)

    att = jnp.einsum("bid,bjd->bij", o1b, o2b, preferred_element_type=jnp.float32)
    attT = jnp.einsum("bid,bjd->bij", o2b, o1b, preferred_element_type=jnp.float32)

    def masked_softmax(x, m):
        # NOTE: matches the PyTorch reference (-inf mask); a fully padded
        # sentence would NaN there too.
        x = x + m[:, None, :]
        mx = jnp.max(x, axis=-1, keepdims=True)
        ex = jnp.exp(x - mx)
        return ex * pl.reciprocal(jnp.sum(ex, axis=-1, keepdims=True), approx=True)

    w1 = masked_softmax(att, m2)
    w2 = masked_softmax(attT, m1)

    a1 = jnp.einsum("bij,bjd->bid", w1.astype(jnp.bfloat16), o2b,
                    preferred_element_type=jnp.float32)
    a2 = jnp.einsum("bij,bjd->bid", w2.astype(jnp.bfloat16), o1b,
                    preferred_element_type=jnp.float32)

    comb_ref[:, 0] = jnp.concatenate([o1, a1, o1 - a1, o1 * a1],
                                     axis=-1).astype(jnp.bfloat16)
    comb_ref[:, 1] = jnp.concatenate([o2, a2, o2 - a2, o2 * a2],
                                     axis=-1).astype(jnp.bfloat16)


def align_combine(o_pairs, mask_pairs, *, block_p=8, vmem_limit=48 * 1024 * 1024):
    # TODO(synk): for very long S also tile the query dim with online softmax.
    B, _, S, D2 = o_pairs.shape
    pb = block_p if B % block_p == 0 else B
    grid = (B // pb,)
    return pl.pallas_call(
        align_combine_kernel,
        out_shape=jax.ShapeDtypeStruct((B, 2, S, 4 * D2), jnp.bfloat16),
        grid=grid,
        in_specs=[pl.BlockSpec((pb, 2, S, D2), lambda i: (i, 0, 0, 0)),
                  pl.BlockSpec((pb, 2, S), lambda i: (i, 0, 0))],
        out_specs=pl.BlockSpec((pb, 2, S, 4 * D2), lambda i: (i, 0, 0, 0)),
        compiler_params=pltpu.CompilerParams(
            dimension_semantics=("parallel",),
            vmem_limit_bytes=vmem_limit),
    )(o_pairs, mask_pairs)


# ------------------------------------------------------------------
# Fused SelfAttention (Linear-ReLU-Linear + softmax over seq) + avg/max
# pooling + (BN-folded) FC head, tiled over sentence pairs.
# q_ref: (pb, 2, S, 2H) f32 -> out_ref: (pb, 1, num_labels) f32.
# ------------------------------------------------------------------
def attn_head_kernel(q_ref, aw1_ref, ab1_ref, aw2_ref, ab2_ref,
                     fw1_ref, fb1_ref, fw2_ref, fb2_ref, fw3_ref, fb3_ref,
                     out_ref):
    pb, _, S, D2 = q_ref.shape
    x4 = q_ref[...]                                             # (pb, 2, S, 2H) f32
    xb = x4.reshape(pb * 2 * S, D2).astype(jnp.bfloat16)

    h = jnp.maximum(
        jnp.dot(xb, aw1_ref[...], preferred_element_type=jnp.float32)
        + ab1_ref[...], 0.0)
    e = (jnp.dot(h.astype(jnp.bfloat16), aw2_ref[...],
                 preferred_element_type=jnp.float32) + ab2_ref[...])
    e = e.reshape(pb, 2, S, D2)

    m = jnp.max(e, axis=2, keepdims=True)                       # softmax over seq
    ex = jnp.exp(e - m)
    w = ex * pl.reciprocal(jnp.sum(ex, axis=2, keepdims=True), approx=True)
    xo = x4 * w                                                 # (pb, 2, S, 2H)

    mean_p = jnp.mean(xo, axis=2)                               # (pb, 2, 2H)
    max_p = jnp.max(xo, axis=2)
    pooled = jnp.concatenate(
        [mean_p[:, 0], max_p[:, 0], mean_p[:, 1], max_p[:, 1]], axis=-1)  # (pb, 8H)

    def elu(v):
        return jnp.where(v > 0, v, jnp.exp(v) - 1.0)

    # BN layers are folded into fw*/fb*; Dropout is identity in eval mode.
    t = elu(jnp.dot(pooled.astype(jnp.bfloat16), fw1_ref[...],
                    preferred_element_type=jnp.float32) + fb1_ref[...])
    t = elu(jnp.dot(t.astype(jnp.bfloat16), fw2_ref[...],
                    preferred_element_type=jnp.float32) + fb2_ref[...])
    logits = (jnp.dot(t.astype(jnp.bfloat16), fw3_ref[...],
                      preferred_element_type=jnp.float32) + fb3_ref[...])
    out_ref[:, 0, :] = logits


def attn_head(q_pairs, attn_p, fc_p, num_labels, *, block_p=8,
              vmem_limit=32 * 1024 * 1024):
    B, _, S, D2 = q_pairs.shape
    pb = block_p if B % block_p == 0 else B
    grid = (B // pb,)
    out = pl.pallas_call(
        attn_head_kernel,
        out_shape=jax.ShapeDtypeStruct((B, 1, num_labels), jnp.float32),
        grid=grid,
        in_specs=[
            pl.BlockSpec((pb, 2, S, D2), lambda i: (i, 0, 0, 0)),
            pl.BlockSpec(attn_p["w1"].shape, lambda i: (0, 0)),
            pl.BlockSpec(attn_p["b1"].shape, lambda i: (0, 0)),
            pl.BlockSpec(attn_p["w2"].shape, lambda i: (0, 0)),
            pl.BlockSpec(attn_p["b2"].shape, lambda i: (0, 0)),
            pl.BlockSpec(fc_p["w1"].shape, lambda i: (0, 0)),
            pl.BlockSpec(fc_p["b1"].shape, lambda i: (0, 0)),
            pl.BlockSpec(fc_p["w2"].shape, lambda i: (0, 0)),
            pl.BlockSpec(fc_p["b2"].shape, lambda i: (0, 0)),
            pl.BlockSpec(fc_p["w3"].shape, lambda i: (0, 0)),
            pl.BlockSpec(fc_p["b3"].shape, lambda i: (0, 0)),
        ],
        out_specs=pl.BlockSpec((pb, 1, num_labels), lambda i: (i, 0, 0)),
        compiler_params=pltpu.CompilerParams(
            dimension_semantics=("parallel",),
            vmem_limit_bytes=vmem_limit),
    )(q_pairs, attn_p["w1"], attn_p["b1"], attn_p["w2"], attn_p["b2"],
      fc_p["w1"], fc_p["b1"], fc_p["w2"], fc_p["b2"], fc_p["w3"], fc_p["b3"])
    return out.reshape(B, num_labels)


# ------------------------------------------------------------------
# Full ESIM forward (glue in plain JAX, jit-fused around the 4 pallas_calls)
# ------------------------------------------------------------------
@functools.partial(jax.jit, static_argnames=("padding_length", "num_labels"))
def esim_forward(params, input_ids, labels, *, padding_length, num_labels=2):
    B = input_ids.shape[0]
    S = padding_length
    sent1 = input_ids[:, :S]
    sent2 = input_ids[:, S:]

    # Pair-interleaved stacking: row 2b = sentence1 of pair b, row 2b+1 = sentence2.
    sent_pairs = jnp.stack([sent1, sent2], axis=1)                    # (B, 2, S)
    mask_pairs = jnp.where(sent_pairs == 0, -jnp.inf, 0.0).astype(jnp.float32)

    sent_all = sent_pairs.reshape(2 * B, S)
    emb = jnp.take(params["embed"], sent_all, axis=0)                 # (2B, S, E)
    # eval-mode bn_embeds is folded into lstm1's input projection weights/bias.
    x_all = emb.astype(jnp.bfloat16)

    o_all = lstm_layer(x_all, params["lstm1"])                        # (2B, S, 2H) f32
    o_pairs = o_all.reshape(B, 2, S, -1)
    comb = align_combine(o_pairs, mask_pairs)                         # (B, 2, S, 8H) bf16
    comb_all = comb.reshape(2 * B, S, -1)
    q_all = lstm_layer(comb_all, params["lstm2"])                     # (2B, S, 2H) f32
    q_pairs = q_all.reshape(B, 2, S, -1)
    logits = attn_head(q_pairs, params["attn"], params["fc"], num_labels)  # (B, L)

    # compute_loss: fct_loss='MSELoss', num_labels==2 branch
    p = jax.nn.softmax(logits, axis=-1)
    pred_prob = p[:, 1]
    loss = jnp.mean((pred_prob - labels.astype(jnp.float32)) ** 2)
    preds = jnp.argmax(logits, axis=1)
    return {"loss": loss, "logits": logits[:, 1], "preds": preds}


# ------------------------------------------------------------------
# Parameter init (PyTorch-like layout, gate order i,f,g,o) + one-time prep:
# gate reorder to [i,f,o,g], eval-mode BN folding, bf16 pre-cast of
# matmul-only operands.
# ------------------------------------------------------------------
def init_params(key, num_word, E, H, L, num_labels):
    keys = iter(jax.random.split(key, 32))

    def nrm(shape, scale=0.1):
        return scale * jax.random.normal(next(keys), shape, jnp.float32)

    def lstm_raw(din, h):
        return {
            "wih_f": nrm((din, 4 * h)), "whh_f": nrm((h, 4 * h)),
            "b_f": nrm((1, 4 * h)),          # = b_ih + b_hh
            "wih_b": nrm((din, 4 * h)), "whh_b": nrm((h, 4 * h)),
            "b_b": nrm((1, 4 * h)),
        }

    eps = 1e-5
    bn_scale = 1.0 / jnp.sqrt(jnp.float32(1.0 + eps))  # gamma=1, beta=0, mean=0, var=1

    return {
        "embed": nrm((num_word, E), scale=1.0),
        "bn_emb_scale": jnp.full((1, E), bn_scale, jnp.float32),
        "bn_emb_shift": jnp.zeros((1, E), jnp.float32),
        "lstm1": lstm_raw(E, H),
        "lstm2": lstm_raw(8 * H, H),
        "attn": {"w1": nrm((2 * H, 2 * H)), "b1": nrm((1, 2 * H)),
                 "w2": nrm((2 * H, 2 * H)), "b2": nrm((1, 2 * H))},
        "fc": {
            "bn0_scale": jnp.full((1, 8 * H), bn_scale, jnp.float32),
            "bn0_shift": jnp.zeros((1, 8 * H), jnp.float32),
            "w1": nrm((8 * H, L)), "b1": nrm((1, L)),
            "bn1_scale": jnp.full((1, L), bn_scale, jnp.float32),
            "bn1_shift": jnp.zeros((1, L), jnp.float32),
            "w2": nrm((L, L)), "b2": nrm((1, L)),
            "bn2_scale": jnp.full((1, L), bn_scale, jnp.float32),
            "bn2_shift": jnp.zeros((1, L), jnp.float32),
            "w3": nrm((L, num_labels)), "b3": nrm((1, num_labels)),
        },
    }


def prepare_params(p):
    def reorder(w, h):
        # columns [i, f, g, o] -> [i, f, o, g]
        return jnp.concatenate([w[:, :2 * h], w[:, 3 * h:], w[:, 2 * h:3 * h]],
                               axis=-1)

    def prep_lstm(lp, in_scale=None, in_shift=None):
        h = lp["whh_f"].shape[0]
        wih_f, wih_b = lp["wih_f"], lp["wih_b"]
        b_f, b_b = lp["b_f"], lp["b_b"]
        if in_scale is not None:  # fold preceding eval-mode BN (y = x*s + t)
            b_f = b_f + in_shift @ wih_f
            b_b = b_b + in_shift @ wih_b
            wih_f = in_scale.reshape(-1, 1) * wih_f
            wih_b = in_scale.reshape(-1, 1) * wih_b
        return {
            "wih_f": reorder(wih_f, h).astype(jnp.bfloat16),
            "wih_b": reorder(wih_b, h).astype(jnp.bfloat16),
            "b_f": reorder(b_f, h),
            "b_b": reorder(b_b, h),
            "whh": jnp.concatenate(
                [reorder(lp["whh_f"], h), reorder(lp["whh_b"], h)],
                axis=0).astype(jnp.bfloat16),
        }

    fc = p["fc"]

    def fold_bn_linear(scale, shift, w, b):
        return scale.reshape(-1, 1) * w, b + shift @ w

    fw1, fb1 = fold_bn_linear(fc["bn0_scale"], fc["bn0_shift"], fc["w1"], fc["b1"])
    fw2, fb2 = fold_bn_linear(fc["bn1_scale"], fc["bn1_shift"], fc["w2"], fc["b2"])
    fw3, fb3 = fold_bn_linear(fc["bn2_scale"], fc["bn2_shift"], fc["w3"], fc["b3"])

    return {
        "embed": p["embed"],
        "lstm1": prep_lstm(p["lstm1"], p["bn_emb_scale"], p["bn_emb_shift"]),
        "lstm2": prep_lstm(p["lstm2"]),
        "attn": {"w1": p["attn"]["w1"].astype(jnp.bfloat16), "b1": p["attn"]["b1"],
                 "w2": p["attn"]["w2"].astype(jnp.bfloat16), "b2": p["attn"]["b2"]},
        "fc": {"w1": fw1.astype(jnp.bfloat16), "b1": fb1,
               "w2": fw2.astype(jnp.bfloat16), "b2": fb2,
               "w3": fw3.astype(jnp.bfloat16), "b3": fb3},
    }


if __name__ == "__main__":
    # Small shapes consistent with the module's forward:
    # batch=16, padding_length(seq)=8, embeds_dim=hidden_size=32, linear_size=32
    # (batch chosen so every kernel exercises a >1 grid with parallel semantics)
    B, S = 16, 8
    E = H = 32
    L = 32
    NUM_WORD = 100
    NUM_LABELS = 2

    key = jax.random.PRNGKey(0)
    pkey, dkey, lkey = jax.random.split(key, 3)

    raw_params = init_params(pkey, NUM_WORD, E, H, L, NUM_LABELS)
    params = prepare_params(raw_params)

    input_ids = jax.random.randint(dkey, (B, 2 * S), 1, NUM_WORD, dtype=jnp.int32)
    # a few padding (0) tokens, but no fully-padded sentence
    input_ids = input_ids.at[0, 3].set(0).at[1, S + 5].set(0).at[5, 7].set(0)
    labels = jax.random.randint(lkey, (B,), 0, 2, dtype=jnp.int32)

    out = esim_forward(params, input_ids, labels,
                       padding_length=S, num_labels=NUM_LABELS)
    out = jax.block_until_ready(out)

    assert out["loss"].shape == ()
    assert out["logits"].shape == (B,)
    assert out["preds"].shape == (B,)
    assert bool(jnp.all(jnp.isfinite(out["logits"])))
    assert bool(jnp.isfinite(out["loss"]))

    print("KERNEL_OK")
</pallas_src>

<mosaic_0001>
module attributes {stable_mosaic.version = 11 : i64} {
  func.func @bilstm_kernel(%arg0: i32, %arg1: memref<8x16x32xbf16, #tpu.memory_space<vmem>>, %arg2: memref<32x128xbf16, #tpu.memory_space<vmem>>, %arg3: memref<32x128xbf16, #tpu.memory_space<vmem>>, %arg4: memref<1x128xf32, #tpu.memory_space<vmem>>, %arg5: memref<1x128xf32, #tpu.memory_space<vmem>>, %arg6: memref<64x128xbf16, #tpu.memory_space<vmem>>, %arg7: memref<8x2x16x32xf32, #tpu.memory_space<vmem>>, %arg8: memref<8x16x128xf32, #tpu.memory_space<vmem>>, %arg9: memref<8x16x128xf32, #tpu.memory_space<vmem>>) attributes {dimension_semantics = [#tpu.dimension_semantics<parallel>], iteration_bounds = array<i64: 2>, scalar_prefetch = 0 : i64, scratch_operands = 2 : i64, tpu.core_type = #tpu.core_type<tc>, window_params = [{transform_indices = @transform_0, window_bounds = array<i64: 8, 16, 32>}, {pipeline_mode = #tpu.pipeline_mode<synchronous>, transform_indices = @transform_1, window_bounds = array<i64: 32, 128>}, {pipeline_mode = #tpu.pipeline_mode<synchronous>, transform_indices = @transform_2, window_bounds = array<i64: 32, 128>}, {pipeline_mode = #tpu.pipeline_mode<synchronous>, transform_indices = @transform_3, window_bounds = array<i64: 1, 128>}, {pipeline_mode = #tpu.pipeline_mode<synchronous>, transform_indices = @transform_4, window_bounds = array<i64: 1, 128>}, {pipeline_mode = #tpu.pipeline_mode<synchronous>, transform_indices = @transform_5, window_bounds = array<i64: 64, 128>}, {transform_indices = @transform_6, window_bounds = array<i64: 8, 2, 16, 32>}]} {
    %c0 = arith.constant 0 : index
    %c0_0 = arith.constant 0 : index
    %c0_1 = arith.constant 0 : index
    %0 = vector.load %arg1[%c0, %c0_0, %c0_1] : memref<8x16x32xbf16, #tpu.memory_space<vmem>>, vector<8x16x32xbf16>
    %1 = vector.shape_cast %0 : vector<8x16x32xbf16> to vector<128x32xbf16>
    %c0_2 = arith.constant 0 : index
    %c0_3 = arith.constant 0 : index
    %2 = vector.load %arg2[%c0_2, %c0_3] : memref<32x128xbf16, #tpu.memory_space<vmem>>, vector<32x128xbf16>
    %cst = arith.constant dense<0.000000e+00> : vector<128x128xf32>
    %3 = tpu.matmul %1, %2, %cst {dimension_numbers = #tpu.dot_dimension_numbers<[1], [0], [0], [1], [0, 0, 1, 1], [], []>} : vector<128x32xbf16>, vector<32x128xbf16>, vector<128x128xf32> -> vector<128x128xf32>
    %c0_4 = arith.constant 0 : index
    %c0_5 = arith.constant 0 : index
    %4 = vector.load %arg4[%c0_4, %c0_5] : memref<1x128xf32, #tpu.memory_space<vmem>>, vector<1x128xf32>
    %5 = vector.broadcast %4 : vector<1x128xf32> to vector<128x128xf32>
    %6 = arith.addf %3, %5 : vector<128x128xf32>
    %7 = vector.shape_cast %6 : vector<128x128xf32> to vector<8x16x128xf32>
    %c0_6 = arith.constant 0 : index
    %c0_7 = arith.constant 0 : index
    %c0_8 = arith.constant 0 : index
    %8 = vector.load %arg8[%c0_6, %c0_7, %c0_8] : memref<8x16x128xf32, #tpu.memory_space<vmem>>, vector<8x16x128xf32>
    tpu.vector_store %arg8[%c0_6, %c0_7, %c0_8], %7 {strides = array<i32>} : memref<8x16x128xf32, #tpu.memory_space<vmem>>, vector<8x16x128xf32>,
    %c0_9 = arith.constant 0 : index
    %c0_10 = arith.constant 0 : index
    %9 = vector.load %arg3[%c0_9, %c0_10] : memref<32x128xbf16, #tpu.memory_space<vmem>>, vector<32x128xbf16>
    %cst_11 = arith.constant dense<0.000000e+00> : vector<128x128xf32>
    %10 = tpu.matmul %1, %9, %cst_11 {dimension_numbers = #tpu.dot_dimension_numbers<[1], [0], [0], [1], [0, 0, 1, 1], [], []>} : vector<128x32xbf16>, vector<32x128xbf16>, vector<128x128xf32> -> vector<128x128xf32>
    %c0_12 = arith.constant 0 : index
    %c0_13 = arith.constant 0 : index
    %11 = vector.load %arg5[%c0_12, %c0_13] : memref<1x128xf32, #tpu.memory_space<vmem>>, vector<1x128xf32>
    %12 = vector.broadcast %11 : vector<1x128xf32> to vector<128x128xf32>
    %13 = arith.addf %10, %12 : vector<128x128xf32>
    %14 = vector.shape_cast %13 : vector<128x128xf32> to vector<8x16x128xf32>
    %c0_14 = arith.constant 0 : index
    %c0_15 = arith.constant 0 : index
    %c0_16 = arith.constant 0 : index
    %15 = vector.load %arg9[%c0_14, %c0_15, %c0_16] : memref<8x16x128xf32, #tpu.memory_space<vmem>>, vector<8x16x128xf32>
    tpu.vector_store %arg9[%c0_14, %c0_15, %c0_16], %14 {strides = array<i32>} : memref<8x16x128xf32, #tpu.memory_space<vmem>>, vector<8x16x128xf32>,
    %c0_17 = arith.constant 0 : index
    %c0_18 = arith.constant 0 : index
    %16 = vector.load %arg6[%c0_17, %c0_18] : memref<64x128xbf16, #tpu.memory_space<vmem>>, vector<64x128xbf16>
    %17 = tpu.iota {dimensions = array<i32: 0>} : vector<32x64xi32>
    %18 = tpu.iota {dimensions = array<i32: 1>} : vector<32x64xi32>
    %c16_i32 = arith.constant 16 : i32
    %19 = vector.broadcast %c16_i32 : i32 to vector<32x64xi32>
    %20 = arith.cmpi slt, %17, %19 : vector<32x64xi32>
    %c32_i32 = arith.constant 32 : i32
    %21 = vector.broadcast %c32_i32 : i32 to vector<32x64xi32>
    %22 = arith.cmpi slt, %18, %21 : vector<32x64xi32>
    %23 = arith.xori %20, %22 : vector<32x64xi1>
    %cst_19 = arith.constant dense<true> : vector<32x64xi1>
    %24 = arith.xori %23, %cst_19 : vector<32x64xi1>
    %cst_20 = arith.constant 1.000000e+00 : f32
    %cst_21 = arith.constant 0.000000e+00 : f32
    %25 = vector.broadcast %cst_20 : f32 to vector<32x64xf32>
    %26 = vector.broadcast %cst_21 : f32 to vector<32x64xf32>
    %27 = arith.select %24, %25, %26 : vector<32x64xi1>, vector<32x64xf32>
    %cst_22 = arith.constant 0.000000e+00 : f32
    %28 = vector.broadcast %cst_22 : f32 to vector<32x64xf32>
    %cst_23 = arith.constant 0.000000e+00 : f32
    %29 = vector.broadcast %cst_23 : f32 to vector<32x32xf32>
    %c0_i32 = arith.constant 0 : i32
    %30 = arith.index_cast %c0_i32 : i32 to index
    %c0_24 = arith.constant 0 : index
    %c0_25 = arith.constant 0 : index
    %31 = vector.load %arg8[%30, %c0_24, %c0_25] : memref<8x16x128xf32, #tpu.memory_space<vmem>>, vector<1x16x128xf32>
    %32 = vector.shape_cast %31 : vector<1x16x128xf32> to vector<16x128xf32>
    %c7_i32 = arith.constant 7 : i32
    %33 = arith.subi %c7_i32, %c0_i32 : i32
    %34 = arith.index_cast %33 : i32 to index
    %c0_26 = arith.constant 0 : index
    %c0_27 = arith.constant 0 : index
    %35 = vector.load %arg9[%34, %c0_26, %c0_27] : memref<8x16x128xf32, #tpu.memory_space<vmem>>, vector<1x16x128xf32>
    %36 = vector.shape_cast %35 : vector<1x16x128xf32> to vector<16x128xf32>
    %37 = tpu.concatenate %32, %36 in 0 : vector<16x128xf32>, vector<16x128xf32> -> vector<32x128xf32>
    %38 = arith.truncf %28 : vector<32x64xf32> to vector<32x64xbf16>
    %cst_28 = arith.constant dense<0.000000e+00> : vector<32x128xf32>
    %39 = tpu.matmul %38, %16, %cst_28 {dimension_numbers = #tpu.dot_dimension_numbers<[1], [0], [0], [1], [0, 0, 1, 1], [], []>} : vector<32x64xbf16>, vector<64x128xbf16>, vector<32x128xf32> -> vector<32x128xf32>
    %40 = arith.addf %37, %39 : vector<32x128xf32>
    %41 = vector.extract_strided_slice %40 {offsets = [0, 0], sizes = [32, 96], strides = [1, 1]} : vector<32x128xf32> to vector<32x96xf32>
    %42 = arith.negf %41 : vector<32x96xf32>
    %43 = math.exp %42 : vector<32x96xf32>
    %cst_29 = arith.constant 1.000000e+00 : f32
    %44 = vector.broadcast %cst_29 : f32 to vector<32x96xf32>
    %45 = arith.addf %44, %43 : vector<32x96xf32>
    %46 = arith.divf %44, %45 : vector<32x96xf32>
    %47 = vector.extract_strided_slice %40 {offsets = [0, 96], sizes = [32, 32], strides = [1, 1]} : vector<32x128xf32> to vector<32x32xf32>
    %48 = math.tanh %47 : vector<32x32xf32>
    %49 = vector.extract_strided_slice %46 {offsets = [0, 0], sizes = [32, 32], strides = [1, 1]} : vector<32x96xf32> to vector<32x32xf32>
    %50 = vector.extract_strided_slice %46 {offsets = [0, 32], sizes = [32, 32], strides = [1, 1]} : vector<32x96xf32> to vector<32x32xf32>
    %51 = vector.extract_strided_slice %46 {offsets = [0, 64], sizes = [32, 32], strides = [1, 1]} : vector<32x96xf32> to vector<32x32xf32>
    %52 = arith.mulf %50, %29 : vector<32x32xf32>
    %53 = arith.mulf %49, %48 : vector<32x32xf32>
    %54 = arith.addf %52, %53 : vector<32x32xf32>
    %55 = math.tanh %54 : vector<32x32xf32>
    %56 = arith.mulf %51, %55 : vector<32x32xf32>
    %57 = vector.extract_strided_slice %56 {offsets = [0, 0], sizes = [16, 32], strides = [1, 1]} : vector<32x32xf32> to vector<16x32xf32>
    %58 = arith.index_cast %c0_i32 : i32 to index
    %c0_30 = arith.constant 0 : index
    %c0_31 = arith.constant 0 : index
    %c0_32 = arith.constant 0 : index
    %59 = vector.load %arg7[%58, %c0_30, %c0_31, %c0_32] : memref<8x2x16x32xf32, #tpu.memory_space<vmem>>, vector<1x1x16x32xf32>
    %60 = vector.shape_cast %59 : vector<1x1x16x32xf32> to vector<16x32xf32>
    %61 = vector.shape_cast %57 : vector<16x32xf32> to vector<1x1x16x32xf32>
    tpu.vector_store %arg7[%58, %c0_30, %c0_31, %c0_32], %61 {strides = array<i32>} : memref<8x2x16x32xf32, #tpu.memory_space<vmem>>, vector<1x1x16x32xf32>,
    %62 = vector.extract_strided_slice %56 {offsets = [16, 0], sizes = [16, 32], strides = [1, 1]} : vector<32x32xf32> to vector<16x32xf32>
    %c7_i32_33 = arith.constant 7 : i32
    %63 = arith.subi %c7_i32_33, %c0_i32 : i32
    %64 = arith.index_cast %63 : i32 to index
    %c1 = arith.constant 1 : index
    %c0_34 = arith.constant 0 : index
    %c0_35 = arith.constant 0 : index
    %65 = vector.load %arg7[%64, %c1, %c0_34, %c0_35] : memref<8x2x16x32xf32, #tpu.memory_space<vmem>>, vector<1x1x16x32xf32>
    %66 = vector.shape_cast %65 : vector<1x1x16x32xf32> to vector<16x32xf32>
    %67 = vector.shape_cast %62 : vector<16x32xf32> to vector<1x1x16x32xf32>
    tpu.vector_store %arg7[%64, %c1, %c0_34, %c0_35], %67 {strides = array<i32>} : memref<8x2x16x32xf32, #tpu.memory_space<vmem>>, vector<1x1x16x32xf32>,
    %68 = tpu.concatenate %56, %56 in 1 : vector<32x32xf32>, vector<32x32xf32> -> vector<32x64xf32>
    %69 = arith.mulf %68, %27 : vector<32x64xf32>
    %c1_i32 = arith.constant 1 : i32
    %70 = arith.index_cast %c1_i32 : i32 to index
    %c0_36 = arith.constant 0 : index
    %c0_37 = arith.constant 0 : index
    %71 = vector.load %arg8[%70, %c0_36, %c0_37] : memref<8x16x128xf32, #tpu.memory_space<vmem>>, vector<1x16x128xf32>
    %72 = vector.shape_cast %71 : vector<1x16x128xf32> to vector<16x128xf32>
    %c7_i32_38 = arith.constant 7 : i32
    %73 = arith.subi %c7_i32_38, %c1_i32 : i32
    %74 = arith.index_cast %73 : i32 to index
    %c0_39 = arith.constant 0 : index
    %c0_40 = arith.constant 0 : index
    %75 = vector.load %arg9[%74, %c0_39, %c0_40] : memref<8x16x128xf32, #tpu.memory_space<vmem>>, vector<1x16x128xf32>
    %76 = vector.shape_cast %75 : vector<1x16x128xf32> to vector<16x128xf32>
    %77 = tpu.concatenate %72, %76 in 0 : vector<16x128xf32>, vector<16x128xf32> -> vector<32x128xf32>
    %78 = arith.truncf %69 : vector<32x64xf32> to vector<32x64xbf16>
    %cst_41 = arith.constant dense<0.000000e+00> : vector<32x128xf32>
    %79 = tpu.matmul %78, %16, %cst_41 {dimension_numbers = #tpu.dot_dimension_numbers<[1], [0], [0], [1], [0, 0, 1, 1], [], []>} : vector<32x64xbf16>, vector<64x128xbf16>, vector<32x128xf32> -> vector<32x128xf32>
    %80 = arith.addf %77, %79 : vector<32x128xf32>
    %81 = vector.extract_strided_slice %80 {offsets = [0, 0], sizes = [32, 96], strides = [1, 1]} : vector<32x128xf32> to vector<32x96xf32>
    %82 = arith.negf %81 : vector<32x96xf32>
    %83 = math.exp %82 : vector<32x96xf32>
    %cst_42 = arith.constant 1.000000e+00 : f32
    %84 = vector.broadcast %cst_42 : f32 to vector<32x96xf32>
    %85 = arith.addf %84, %83 : vector<32x96xf32>
    %86 = arith.divf %84, %85 : vector<32x96xf32>
    %87 = vector.extract_strided_slice %80 {offsets = [0, 96], sizes = [32, 32], strides = [1, 1]} : vector<32x128xf32> to vector<32x32xf32>
    %88 = math.tanh %87 : vector<32x32xf32>
    %89 = vector.extract_strided_slice %86 {offsets = [0, 0], sizes = [32, 32], strides = [1, 1]} : vector<32x96xf32> to vector<32x32xf32>
    %90 = vector.extract_strided_slice %86 {offsets = [0, 32], sizes = [32, 32], strides = [1, 1]} : vector<32x96xf32> to vector<32x32xf32>
    %91 = vector.extract_strided_slice %86 {offsets = [0, 64], sizes = [32, 32], strides = [1, 1]} : vector<32x96xf32> to vector<32x32xf32>
    %92 = arith.mulf %90, %54 : vector<32x32xf32>
    %93 = arith.mulf %89, %88 : vector<32x32xf32>
    %94 = arith.addf %92, %93 : vector<32x32xf32>
    %95 = math.tanh %94 : vector<32x32xf32>
    %96 = arith.mulf %91, %95 : vector<32x32xf32>
    %97 = vector.extract_strided_slice %96 {offsets = [0, 0], sizes = [16, 32], strides = [1, 1]} : vector<32x32xf32> to vector<16x32xf32>
    %98 = arith.index_cast %c1_i32 : i32 to index
    %c0_43 = arith.constant 0 : index
    %c0_44 = arith.constant 0 : index
    %c0_45 = arith.constant 0 : index
    %99 = vector.load %arg7[%98, %c0_43, %c0_44, %c0_45] : memref<8x2x16x32xf32, #tpu.memory_space<vmem>>, vector<1x1x16x32xf32>
    %100 = vector.shape_cast %99 : vector<1x1x16x32xf32> to vector<16x32xf32>
    %101 = vector.shape_cast %97 : vector<16x32xf32> to vector<1x1x16x32xf32>
    tpu.vector_store %arg7[%98, %c0_43, %c0_44, %c0_45], %101 {strides = array<i32>} : memref<8x2x16x32xf32, #tpu.memory_space<vmem>>, vector<1x1x16x32xf32>,
    %102 = vector.extract_strided_slice %96 {offsets = [16, 0], sizes = [16, 32], strides = [1, 1]} : vector<32x32xf32> to vector<16x32xf32>
    %c7_i32_46 = arith.constant 7 : i32
    %103 = arith.subi %c7_i32_46, %c1_i32 : i32
    %104 = arith.index_cast %103 : i32 to index
    %c1_47 = arith.constant 1 : index
    %c0_48 = arith.constant 0 : index
    %c0_49 = arith.constant 0 : index
    %105 = vector.load %arg7[%104, %c1_47, %c0_48, %c0_49] : memref<8x2x16x32xf32, #tpu.memory_space<vmem>>, vector<1x1x16x32xf32>
    %106 = vector.shape_cast %105 : vector<1x1x16x32xf32> to vector<16x32xf32>
    %107 = vector.shape_cast %102 : vector<16x32xf32> to vector<1x1x16x32xf32>
    tpu.vector_store %arg7[%104, %c1_47, %c0_48, %c0_49], %107 {strides = array<i32>} : memref<8x2x16x32xf32, #tpu.memory_space<vmem>>, vector<1x1x16x32xf32>,
    %108 = tpu.concatenate %96, %96 in 1 : vector<32x32xf32>, vector<32x32xf32> -> vector<32x64xf32>
    %109 = arith.mulf %108, %27 : vector<32x64xf32>
    %c2_i32 = arith.constant 2 : i32
    %110 = arith.index_cast %c2_i32 : i32 to index
    %c0_50 = arith.constant 0 : index
    %c0_51 = arith.constant 0 : index
    %111 = vector.load %arg8[%110, %c0_50, %c0_51] : memref<8x16x128xf32, #tpu.memory_space<vmem>>, vector<1x16x128xf32>
    %112 = vector.shape_cast %111 : vector<1x16x128xf32> to vector<16x128xf32>
    %c7_i32_52 = arith.constant 7 : i32
    %113 = arith.subi %c7_i32_52, %c2_i32 : i32
    %114 = arith.index_cast %113 : i32 to index
    %c0_53 = arith.constant 0 : index
    %c0_54 = arith.constant 0 : index
    %115 = vector.load %arg9[%114, %c0_53, %c0_54] : memref<8x16x128xf32, #tpu.memory_space<vmem>>, vector<1x16x128xf32>
    %116 = vector.shape_cast %115 : vector<1x16x128xf32> to vector<16x128xf32>
    %117 = tpu.concatenate %112, %116 in 0 : vector<16x128xf32>, vector<16x128xf32> -> vector<32x128xf32>
    %118 = arith.truncf %109 : vector<32x64xf32> to vector<32x64xbf16>
    %cst_55 = arith.constant dense<0.000000e+00> : vector<32x128xf32>
    %119 = tpu.matmul %118, %16, %cst_55 {dimension_numbers = #tpu.dot_dimension_numbers<[1], [0], [0], [1], [0, 0, 1, 1], [], []>} : vector<32x64xbf16>, vector<64x128xbf16>, vector<32x128xf32> -> vector<32x128xf32>
    %120 = arith.addf %117, %119 : vector<32x128xf32>
    %121 = vector.extract_strided_slice %120 {offsets = [0, 0], sizes = [32, 96], strides = [1, 1]} : vector<32x128xf32> to vector<32x96xf32>
    %122 = arith.negf %121 : vector<32x96xf32>
    %123 = math.exp %122 : vector<32x96xf32>
    %cst_56 = arith.constant 1.000000e+00 : f32
    %124 = vector.broadcast %cst_56 : f32 to vector<32x96xf32>
    %125 = arith.addf %124, %123 : vector<32x96xf32>
    %126 = arith.divf %124, %125 : vector<32x96xf32>
    %127 = vector.extract_strided_slice %120 {offsets = [0, 96], sizes = [32, 32], strides = [1, 1]} : vector<32x128xf32> to vector<32x32xf32>
    %128 = math.tanh %127 : vector<32x32xf32>
    %129 = vector.extract_strided_slice %126 {offsets = [0, 0], sizes = [32, 32], strides = [1, 1]} : vector<32x96xf32> to vector<32x32xf32>
    %130 = vector.extract_strided_slice %126 {offsets = [0, 32], sizes = [32, 32], strides = [1, 1]} : vector<32x96xf32> to vector<32x32xf32>
    %131 = vector.extract_strided_slice %126 {offsets = [0, 64], sizes = [32, 32], strides = [1, 1]} : vector<32x96xf32> to vector<32x32xf32>
    %132 = arith.mulf %130, %94 : vector<32x32xf32>
    %133 = arith.mulf %129, %128 : vector<32x32xf32>
    %134 = arith.addf %132, %133 : vector<32x32xf32>
    %135 = math.tanh %134 : vector<32x32xf32>
    %136 = arith.mulf %131, %135 : vector<32x32xf32>
    %137 = vector.extract_strided_slice %136 {offsets = [0, 0], sizes = [16, 32], strides = [1, 1]} : vector<32x32xf32> to vector<16x32xf32>
    %138 = arith.index_cast %c2_i32 : i32 to index
    %c0_57 = arith.constant 0 : index
    %c0_58 = arith.constant 0 : index
    %c0_59 = arith.constant 0 : index
    %139 = vector.load %arg7[%138, %c0_57, %c0_58, %c0_59] : memref<8x2x16x32xf32, #tpu.memory_space<vmem>>, vector<1x1x16x32xf32>
    %140 = vector.shape_cast %139 : vector<1x1x16x32xf32> to vector<16x32xf32>
    %141 = vector.shape_cast %137 : vector<16x32xf32> to vector<1x1x16x32xf32>
    tpu.vector_store %arg7[%138, %c0_57, %c0_58, %c0_59], %141 {strides = array<i32>} : memref<8x2x16x32xf32, #tpu.memory_space<vmem>>, vector<1x1x16x32xf32>,
    %142 = vector.extract_strided_slice %136 {offsets = [16, 0], sizes = [16, 32], strides = [1, 1]} : vector<32x32xf32> to vector<16x32xf32>
    %c7_i32_60 = arith.constant 7 : i32
    %143 = arith.subi %c7_i32_60, %c2_i32 : i32
    %144 = arith.index_cast %143 : i32 to index
    %c1_61 = arith.constant 1 : index
    %c0_62 = arith.constant 0 : index
    %c0_63 = arith.constant 0 : index
    %145 = vector.load %arg7[%144, %c1_61, %c0_62, %c0_63] : memref<8x2x16x32xf32, #tpu.memory_space<vmem>>, vector<1x1x16x32xf32>
    %146 = vector.shape_cast %145 : vector<1x1x16x32xf32> to vector<16x32xf32>
    %147 = vector.shape_cast %142 : vector<16x32xf32> to vector<1x1x16x32xf32>
    tpu.vector_store %arg7[%144, %c1_61, %c0_62, %c0_63], %147 {strides = array<i32>} : memref<8x2x16x32xf32, #tpu.memory_space<vmem>>, vector<1x1x16x32xf32>,
    %148 = tpu.concatenate %136, %136 in 1 : vector<32x32xf32>, vector<32x32xf32> -> vector<32x64xf32>
    %149 = arith.mulf %148, %27 : vector<32x64xf32>
    %c3_i32 = arith.constant 3 : i32
    %150 = arith.index_cast %c3_i32 : i32 to index
    %c0_64 = arith.constant 0 : index
    %c0_65 = arith.constant 0 : index
    %151 = vector.load %arg8[%150, %c0_64, %c0_65] : memref<8x16x128xf32, #tpu.memory_space<vmem>>, vector<1x16x128xf32>
    %152 = vector.shape_cast %151 : vector<1x16x128xf32> to vector<16x128xf32>
    %c7_i32_66 = arith.constant 7 : i32
    %153 = arith.subi %c7_i32_66, %c3_i32 : i32
    %154 = arith.index_cast %153 : i32 to index
    %c0_67 = arith.constant 0 : index
    %c0_68 = arith.constant 0 : index
    %155 = vector.load %arg9[%154, %c0_67, %c0_68] : memref<8x16x128xf32, #tpu.memory_space<vmem>>, vector<1x16x128xf32>
    %156 = vector.shape_cast %155 : vector<1x16x128xf32> to vector<16x128xf32>
    %157 = tpu.concatenate %152, %156 in 0 : vector<16x128xf32>, vector<16x128xf32> -> vector<32x128xf32>
    %158 = arith.truncf %149 : vector<32x64xf32> to vector<32x64xbf16>
    %cst_69 = arith.constant dense<0.000000e+00> : vector<32x128xf32>
    %159 = tpu.matmul %158, %16, %cst_69 {dimension_numbers = #tpu.dot_dimension_numbers<[1], [0], [0], [1], [0, 0, 1, 1], [], []>} : vector<32x64xbf16>, vector<64x128xbf16>, vector<32x128xf32> -> vector<32x128xf32>
    %160 = arith.addf %157, %159 : vector<32x128xf32>
    %161 = vector.extract_strided_slice %160 {offsets = [0, 0], sizes = [32, 96], strides = [1, 1]} : vector<32x128xf32> to vector<32x96xf32>
    %162 = arith.negf %161 : vector<32x96xf32>
    %163 = math.exp %162 : vector<32x96xf32>
    %cst_70 = arith.constant 1.000000e+00 : f32
    %164 = vector.broadcast %cst_70 : f32 to vector<32x96xf32>
    %165 = arith.addf %164, %163 : vector<32x96xf32>
    %166 = arith.divf %164, %165 : vector<32x96xf32>
    %167 = vector.extract_strided_slice %160 {offsets = [0, 96], sizes = [32, 32], strides = [1, 1]} : vector<32x128xf32> to vector<32x32xf32>
    %168 = math.tanh %167 : vector<32x32xf32>
    %169 = vector.extract_strided_slice %166 {offsets = [0, 0], sizes = [32, 32], strides = [1, 1]} : vector<32x96xf32> to vector<32x32xf32>
    %170 = vector.extract_strided_slice %166 {offsets = [0, 32], sizes = [32, 32], strides = [1, 1]} : vector<32x96xf32> to vector<32x32xf32>
    %171 = vector.extract_strided_slice %166 {offsets = [0, 64], sizes = [32, 32], strides = [1, 1]} : vector<32x96xf32> to vector<32x32xf32>
    %172 = arith.mulf %170, %134 : vector<32x32xf32>
    %173 = arith.mulf %169, %168 : vector<32x32xf32>
    %174 = arith.addf %172, %173 : vector<32x32xf32>
    %175 = math.tanh %174 : vector<32x32xf32>
    %176 = arith.mulf %171, %175 : vector<32x32xf32>
    %177 = vector.extract_strided_slice %176 {offsets = [0, 0], sizes = [16, 32], strides = [1, 1]} : vector<32x32xf32> to vector<16x32xf32>
    %178 = arith.index_cast %c3_i32 : i32 to index
    %c0_71 = arith.constant 0 : index
    %c0_72 = arith.constant 0 : index
    %c0_73 = arith.constant 0 : index
    %179 = vector.load %arg7[%178, %c0_71, %c0_72, %c0_73] : memref<8x2x16x32xf32, #tpu.memory_space<vmem>>, vector<1x1x16x32xf32>
    %180 = vector.shape_cast %179 : vector<1x1x16x32xf32> to vector<16x32xf32>
    %181 = vector.shape_cast %177 : vector<16x32xf32> to vector<1x1x16x32xf32>
    tpu.vector_store %arg7[%178, %c0_71, %c0_72, %c0_73], %181 {strides = array<i32>} : memref<8x2x16x32xf32, #tpu.memory_space<vmem>>, vector<1x1x16x32xf32>,
    %182 = vector.extract_strided_slice %176 {offsets = [16, 0], sizes = [16, 32], strides = [1, 1]} : vector<32x32xf32> to vector<16x32xf32>
    %c7_i32_74 = arith.constant 7 : i32
    %183 = arith.subi %c7_i32_74, %c3_i32 : i32
    %184 = arith.index_cast %183 : i32 to index
    %c1_75 = arith.constant 1 : index
    %c0_76 = arith.constant 0 : index
    %c0_77 = arith.constant 0 : index
    %185 = vector.load %arg7[%184, %c1_75, %c0_76, %c0_77] : memref<8x2x16x32xf32, #tpu.memory_space<vmem>>, vector<1x1x16x32xf32>
    %186 = vector.shape_cast %185 : vector<1x1x16x32xf32> to vector<16x32xf32>
    %187 = vector.shape_cast %182 : vector<16x32xf32> to vector<1x1x16x32xf32>
    tpu.vector_store %arg7[%184, %c1_75, %c0_76, %c0_77], %187 {strides = array<i32>} : memref<8x2x16x32xf32, #tpu.memory_space<vmem>>, vector<1x1x16x32xf32>,
    %188 = tpu.concatenate %176, %176 in 1 : vector<32x32xf32>, vector<32x32xf32> -> vector<32x64xf32>
    %189 = arith.mulf %188, %27 : vector<32x64xf32>
    %c4_i32 = arith.constant 4 : i32
    %190 = arith.index_cast %c4_i32 : i32 to index
    %c0_78 = arith.constant 0 : index
    %c0_79 = arith.constant 0 : index
    %191 = vector.load %arg8[%190, %c0_78, %c0_79] : memref<8x16x128xf32, #tpu.memory_space<vmem>>, vector<1x16x128xf32>
    %192 = vector.shape_cast %191 : vector<1x16x128xf32> to vector<16x128xf32>
    %c7_i32_80 = arith.constant 7 : i32
    %193 = arith.subi %c7_i32_80, %c4_i32 : i32
    %194 = arith.index_cast %193 : i32 to index
    %c0_81 = arith.constant 0 : index
    %c0_82 = arith.constant 0 : index
    %195 = vector.load %arg9[%194, %c0_81, %c0_82] : memref<8x16x128xf32, #tpu.memory_space<vmem>>, vector<1x16x128xf32>
    %196 = vector.shape_cast %195 : vector<1x16x128xf32> to vector<16x128xf32>
    %197 = tpu.concatenate %192, %196 in 0 : vector<16x128xf32>, vector<16x128xf32> -> vector<32x128xf32>
    %198 = arith.truncf %189 : vector<32x64xf32> to vector<32x64xbf16>
    %cst_83 = arith.constant dense<0.000000e+00> : vector<32x128xf32>
    %199 = tpu.matmul %198, %16, %cst_83 {dimension_numbers = #tpu.dot_dimension_numbers<[1], [0], [0], [1], [0, 0, 1, 1], [], []>} : vector<32x64xbf16>, vector<64x128xbf16>, vector<32x128xf32> -> vector<32x128xf32>
    %200 = arith.addf %197, %199 : vector<32x128xf32>
    %201 = vector.extract_strided_slice %200 {offsets = [0, 0], sizes = [32, 96], strides = [1, 1]} : vector<32x128xf32> to vector<32x96xf32>
    %202 = arith.negf %201 : vector<32x96xf32>
    %203 = math.exp %202 : vector<32x96xf32>
    %cst_84 = arith.constant 1.000000e+00 : f32
    %204 = vector.broadcast %cst_84 : f32 to vector<32x96xf32>
    %205 = arith.addf %204, %203 : vector<32x96xf32>
    %206 = arith.divf %204, %205 : vector<32x96xf32>
    %207 = vector.extract_strided_slice %200 {offsets = [0, 96], sizes = [32, 32], strides = [1, 1]} : vector<32x128xf32> to vector<32x32xf32>
    %208 = math.tanh %207 : vector<32x32xf32>
    %209 = vector.extract_strided_slice %206 {offsets = [0, 0], sizes = [32, 32], strides = [1, 1]} : vector<32x96xf32> to vector<32x32xf32>
    %210 = vector.extract_strided_slice %206 {offsets = [0, 32], sizes = [32, 32], strides = [1, 1]} : vector<32x96xf32> to vector<32x32xf32>
    %211 = vector.extract_strided_slice %206 {offsets = [0, 64], sizes = [32, 32], strides = [1, 1]} : vector<32x96xf32> to vector<32x32xf32>
    %212 = arith.mulf %210, %174 : vector<32x32xf32>
    %213 = arith.mulf %209, %208 : vector<32x32xf32>
    %214 = arith.addf %212, %213 : vector<32x32xf32>
    %215 = math.tanh %214 : vector<32x32xf32>
    %216 = arith.mulf %211, %215 : vector<32x32xf32>
    %217 = vector.extract_strided_slice %216 {offsets = [0, 0], sizes = [16, 32], strides = [1, 1]} : vector<32x32xf32> to vector<16x32xf32>
    %218 = arith.index_cast %c4_i32 : i32 to index
    %c0_85 = arith.constant 0 : index
    %c0_86 = arith.constant 0 : index
    %c0_87 = arith.constant 0 : index
    %219 = vector.load %arg7[%218, %c0_85, %c0_86, %c0_87] : memref<8x2x16x32xf32, #tpu.memory_space<vmem>>, vector<1x1x16x32xf32>
    %220 = vector.shape_cast %219 : vector<1x1x16x32xf32> to vector<16x32xf32>
    %221 = vector.shape_cast %217 : vector<16x32xf32> to vector<1x1x16x32xf32>
    tpu.vector_store %arg7[%218, %c0_85, %c0_86, %c0_87], %221 {strides = array<i32>} : memref<8x2x16x32xf32, #tpu.memory_space<vmem>>, vector<1x1x16x32xf32>,
    %222 = vector.extract_strided_slice %216 {offsets = [16, 0], sizes = [16, 32], strides = [1, 1]} : vector<32x32xf32> to vector<16x32xf32>
    %c7_i32_88 = arith.constant 7 : i32
    %223 = arith.subi %c7_i32_88, %c4_i32 : i32
    %224 = arith.index_cast %223 : i32 to index
    %c1_89 = arith.constant 1 : index
    %c0_90 = arith.constant 0 : index
    %c0_91 = arith.constant 0 : index
    %225 = vector.load %arg7[%224, %c1_89, %c0_90, %c0_91] : memref<8x2x16x32xf32, #tpu.memory_space<vmem>>, vector<1x1x16x32xf32>
    %226 = vector.shape_cast %225 : vector<1x1x16x32xf32> to vector<16x32xf32>
    %227 = vector.shape_cast %222 : vector<16x32xf32> to vector<1x1x16x32xf32>
    tpu.vector_store %arg7[%224, %c1_89, %c0_90, %c0_91], %227 {strides = array<i32>} : memref<8x2x16x32xf32, #tpu.memory_space<vmem>>, vector<1x1x16x32xf32>,
    %228 = tpu.concatenate %216, %216 in 1 : vector<32x32xf32>, vector<32x32xf32> -> vector<32x64xf32>
    %229 = arith.mulf %228, %27 : vector<32x64xf32>
    %c5_i32 = arith.constant 5 : i32
    %230 = arith.index_cast %c5_i32 : i32 to index
    %c0_92 = arith.constant 0 : index
    %c0_93 = arith.constant 0 : index
    %231 = vector.load %arg8[%230, %c0_92, %c0_93] : memref<8x16x128xf32, #tpu.memory_space<vmem>>, vector<1x16x128xf32>
    %232 = vector.shape_cast %231 : vector<1x16x128xf32> to vector<16x128xf32>
    %c7_i32_94 = arith.constant 7 : i32
    %233 = arith.subi %c7_i32_94, %c5_i32 : i32
    %234 = arith.index_cast %233 : i32 to index
    %c0_95 = arith.constant 0 : index
    %c0_96 = arith.constant 0 : index
    %235 = vector.load %arg9[%234, %c0_95, %c0_96] : memref<8x16x128xf32, #tpu.memory_space<vmem>>, vector<1x16x128xf32>
    %236 = vector.shape_cast %235 : vector<1x16x128xf32> to vector<16x128xf32>
    %237 = tpu.concatenate %232, %236 in 0 : vector<16x128xf32>, vector<16x128xf32> -> vector<32x128xf32>
    %238 = arith.truncf %229 : vector<32x64xf32> to vector<32x64xbf16>
    %cst_97 = arith.constant dense<0.000000e+00> : vector<32x128xf32>
    %239 = tpu.matmul %238, %16, %cst_97 {dimension_numbers = #tpu.dot_dimension_numbers<[1], [0], [0], [1], [0, 0, 1, 1], [], []>} : vector<32x64xbf16>, vector<64x128xbf16>, vector<32x128xf32> -> vector<32x128xf32>
    %240 = arith.addf %237, %239 : vector<32x128xf32>
    %241 = vector.extract_strided_slice %240 {offsets = [0, 0], sizes = [32, 96], strides = [1, 1]} : vector<32x128xf32> to vector<32x96xf32>
    %242 = arith.negf %241 : vector<32x96xf32>
    %243 = math.exp %242 : vector<32x96xf32>
    %cst_98 = arith.constant 1.000000e+00 : f32
    %244 = vector.broadcast %cst_98 : f32 to vector<32x96xf32>
    %245 = arith.addf %244, %243 : vector<32x96xf32>
    %246 = arith.divf %244, %245 : vector<32x96xf32>
    %247 = vector.extract_strided_slice %240 {offsets = [0, 96], sizes = [32, 32], strides = [1, 1]} : vector<32x128xf32> to vector<32x32xf32>
    %248 = math.tanh %247 : vector<32x32xf32>
    %249 = vector.extract_strided_slice %246 {offsets = [0, 0], sizes = [32, 32], strides = [1, 1]} : vector<32x96xf32> to vector<32x32xf32>
    %250 = vector.extract_strided_slice %246 {offsets = [0, 32], sizes = [32, 32], strides = [1, 1]} : vector<32x96xf32> to vector<32x32xf32>
    %251 = vector.extract_strided_slice %246 {offsets = [0, 64], sizes = [32, 32], strides = [1, 1]} : vector<32x96xf32> to vector<32x32xf32>
    %252 = arith.mulf %250, %214 : vector<32x32xf32>
    %253 = arith.mulf %249, %248 : vector<32x32xf32>
    %254 = arith.addf %252, %253 : vector<32x32xf32>
    %255 = math.tanh %254 : vector<32x32xf32>
    %256 = arith.mulf %251, %255 : vector<32x32xf32>
    %257 = vector.extract_strided_slice %256 {offsets = [0, 0], sizes = [16, 32], strides = [1, 1]} : vector<32x32xf32> to vector<16x32xf32>
    %258 = arith.index_cast %c5_i32 : i32 to index
    %c0_99 = arith.constant 0 : index
    %c0_100 = arith.constant 0 : index
    %c0_101 = arith.constant 0 : index
    %259 = vector.load %arg7[%258, %c0_99, %c0_100, %c0_101] : memref<8x2x16x32xf32, #tpu.memory_space<vmem>>, vector<1x1x16x32xf32>
    %260 = vector.shape_cast %259 : vector<1x1x16x32xf32> to vector<16x32xf32>
    %261 = vector.shape_cast %257 : vector<16x32xf32> to vector<1x1x16x32xf32>
    tpu.vector_store %arg7[%258, %c0_99, %c0_100, %c0_101], %261 {strides = array<i32>} : memref<8x2x16x32xf32, #tpu.memory_space<vmem>>, vector<1x1x16x32xf32>,
    %262 = vector.extract_strided_slice %256 {offsets = [16, 0], sizes = [16, 32], strides = [1, 1]} : vector<32x32xf32> to vector<16x32xf32>
    %c7_i32_102 = arith.constant 7 : i32
    %263 = arith.subi %c7_i32_102, %c5_i32 : i32
    %264 = arith.index_cast %263 : i32 to index
    %c1_103 = arith.constant 1 : index
    %c0_104 = arith.constant 0 : index
    %c0_105 = arith.constant 0 : index
    %265 = vector.load %arg7[%264, %c1_103, %c0_104, %c0_105] : memref<8x2x16x32xf32, #tpu.memory_space<vmem>>, vector<1x1x16x32xf32>
    %266 = vector.shape_cast %265 : vector<1x1x16x32xf32> to vector<16x32xf32>
    %267 = vector.shape_cast %262 : vector<16x32xf32> to vector<1x1x16x32xf32>
    tpu.vector_store %arg7[%264, %c1_103, %c0_104, %c0_105], %267 {strides = array<i32>} : memref<8x2x16x32xf32, #tpu.memory_space<vmem>>, vector<1x1x16x32xf32>,
    %268 = tpu.concatenate %256, %256 in 1 : vector<32x32xf32>, vector<32x32xf32> -> vector<32x64xf32>
    %269 = arith.mulf %268, %27 : vector<32x64xf32>
    %c6_i32 = arith.constant 6 : i32
    %270 = arith.index_cast %c6_i32 : i32 to index
    %c0_106 = arith.constant 0 : index
    %c0_107 = arith.constant 0 : index
    %271 = vector.load %arg8[%270, %c0_106, %c0_107] : memref<8x16x128xf32, #tpu.memory_space<vmem>>, vector<1x16x128xf32>
    %272 = vector.shape_cast %271 : vector<1x16x128xf32> to vector<16x128xf32>
    %c7_i32_108 = arith.constant 7 : i32
    %273 = arith.subi %c7_i32_108, %c6_i32 : i32
    %274 = arith.index_cast %273 : i32 to index
    %c0_109 = arith.constant 0 : index
    %c0_110 = arith.constant 0 : index
    %275 = vector.load %arg9[%274, %c0_109, %c0_110] : memref<8x16x128xf32, #tpu.memory_space<vmem>>, vector<1x16x128xf32>
    %276 = vector.shape_cast %275 : vector<1x16x128xf32> to vector<16x128xf32>
    %277 = tpu.concatenate %272, %276 in 0 : vector<16x128xf32>, vector<16x128xf32> -> vector<32x128xf32>
    %278 = arith.truncf %269 : vector<32x64xf32> to vector<32x64xbf16>
    %cst_111 = arith.constant dense<0.000000e+00> : vector<32x128xf32>
    %279 = tpu.matmul %278, %16, %cst_111 {dimension_numbers = #tpu.dot_dimension_numbers<[1], [0], [0], [1], [0, 0, 1, 1], [], []>} : vector<32x64xbf16>, vector<64x128xbf16>, vector<32x128xf32> -> vector<32x128xf32>
    %280 = arith.addf %277, %279 : vector<32x128xf32>
    %281 = vector.extract_strided_slice %280 {offsets = [0, 0], sizes = [32, 96], strides = [1, 1]} : vector<32x128xf32> to vector<32x96xf32>
    %282 = arith.negf %281 : vector<32x96xf32>
    %283 = math.exp %282 : vector<32x96xf32>
    %cst_112 = arith.constant 1.000000e+00 : f32
    %284 = vector.broadcast %cst_112 : f32 to vector<32x96xf32>
    %285 = arith.addf %284, %283 : vector<32x96xf32>
    %286 = arith.divf %284, %285 : vector<32x96xf32>
    %287 = vector.extract_strided_slice %280 {offsets = [0, 96], sizes = [32, 32], strides = [1, 1]} : vector<32x128xf32> to vector<32x32xf32>
    %288 = math.tanh %287 : vector<32x32xf32>
    %289 = vector.extract_strided_slice %286 {offsets = [0, 0], sizes = [32, 32], strides = [1, 1]} : vector<32x96xf32> to vector<32x32xf32>
    %290 = vector.extract_strided_slice %286 {offsets = [0, 32], sizes = [32, 32], strides = [1, 1]} : vector<32x96xf32> to vector<32x32xf32>
    %291 = vector.extract_strided_slice %286 {offsets = [0, 64], sizes = [32, 32], strides = [1, 1]} : vector<32x96xf32> to vector<32x32xf32>
    %292 = arith.mulf %290, %254 : vector<32x32xf32>
    %293 = arith.mulf %289, %288 : vector<32x32xf32>
    %294 = arith.addf %292, %293 : vector<32x32xf32>
    %295 = math.tanh %294 : vector<32x32xf32>
    %296 = arith.mulf %291, %295 : vector<32x32xf32>
    %297 = vector.extract_strided_slice %296 {offsets = [0, 0], sizes = [16, 32], strides = [1, 1]} : vector<32x32xf32> to vector<16x32xf32>
    %298 = arith.index_cast %c6_i32 : i32 to index
    %c0_113 = arith.constant 0 : index
    %c0_114 = arith.constant 0 : index
    %c0_115 = arith.constant 0 : index
    %299 = vector.load %arg7[%298, %c0_113, %c0_114, %c0_115] : memref<8x2x16x32xf32, #tpu.memory_space<vmem>>, vector<1x1x16x32xf32>
    %300 = vector.shape_cast %299 : vector<1x1x16x32xf32> to vector<16x32xf32>
    %301 = vector.shape_cast %297 : vector<16x32xf32> to vector<1x1x16x32xf32>
    tpu.vector_store %arg7[%298, %c0_113, %c0_114, %c0_115], %301 {strides = array<i32>} : memref<8x2x16x32xf32, #tpu.memory_space<vmem>>, vector<1x1x16x32xf32>,
    %302 = vector.extract_strided_slice %296 {offsets = [16, 0], sizes = [16, 32], strides = [1, 1]} : vector<32x32xf32> to vector<16x32xf32>
    %c7_i32_116 = arith.constant 7 : i32
    %303 = arith.subi %c7_i32_116, %c6_i32 : i32
    %304 = arith.index_cast %303 : i32 to index
    %c1_117 = arith.constant 1 : index
    %c0_118 = arith.constant 0 : index
    %c0_119 = arith.constant 0 : index
    %305 = vector.load %arg7[%304, %c1_117, %c0_118, %c0_119] : memref<8x2x16x32xf32, #tpu.memory_space<vmem>>, vector<1x1x16x32xf32>
    %306 = vector.shape_cast %305 : vector<1x1x16x32xf32> to vector<16x32xf32>
    %307 = vector.shape_cast %302 : vector<16x32xf32> to vector<1x1x16x32xf32>
    tpu.vector_store %arg7[%304, %c1_117, %c0_118, %c0_119], %307 {strides = array<i32>} : memref<8x2x16x32xf32, #tpu.memory_space<vmem>>, vector<1x1x16x32xf32>,
    %308 = tpu.concatenate %296, %296 in 1 : vector<32x32xf32>, vector<32x32xf32> -> vector<32x64xf32>
    %309 = arith.mulf %308, %27 : vector<32x64xf32>
    %c7_i32_120 = arith.constant 7 : i32
    %310 = arith.index_cast %c7_i32_120 : i32 to index
    %c0_121 = arith.constant 0 : index
    %c0_122 = arith.constant 0 : index
    %311 = vector.load %arg8[%310, %c0_121, %c0_122] : memref<8x16x128xf32, #tpu.memory_space<vmem>>, vector<1x16x128xf32>
    %312 = vector.shape_cast %311 : vector<1x16x128xf32> to vector<16x128xf32>
    %c7_i32_123 = arith.constant 7 : i32
    %313 = arith.subi %c7_i32_123, %c7_i32_120 : i32
    %314 = arith.index_cast %313 : i32 to index
    %c0_124 = arith.constant 0 : index
    %c0_125 = arith.constant 0 : index
    %315 = vector.load %arg9[%314, %c0_124, %c0_125] : memref<8x16x128xf32, #tpu.memory_space<vmem>>, vector<1x16x128xf32>
    %316 = vector.shape_cast %315 : vector<1x16x128xf32> to vector<16x128xf32>
    %317 = tpu.concatenate %312, %316 in 0 : vector<16x128xf32>, vector<16x128xf32> -> vector<32x128xf32>
    %318 = arith.truncf %309 : vector<32x64xf32> to vector<32x64xbf16>
    %cst_126 = arith.constant dense<0.000000e+00> : vector<32x128xf32>
    %319 = tpu.matmul %318, %16, %cst_126 {dimension_numbers = #tpu.dot_dimension_numbers<[1], [0], [0], [1], [0, 0, 1, 1], [], []>} : vector<32x64xbf16>, vector<64x128xbf16>, vector<32x128xf32> -> vector<32x128xf32>
    %320 = arith.addf %317, %319 : vector<32x128xf32>
    %321 = vector.extract_strided_slice %320 {offsets = [0, 0], sizes = [32, 96], strides = [1, 1]} : vector<32x128xf32> to vector<32x96xf32>
    %322 = arith.negf %321 : vector<32x96xf32>
    %323 = math.exp %322 : vector<32x96xf32>
    %cst_127 = arith.constant 1.000000e+00 : f32
    %324 = vector.broadcast %cst_127 : f32 to vector<32x96xf32>
    %325 = arith.addf %324, %323 : vector<32x96xf32>
    %326 = arith.divf %324, %325 : vector<32x96xf32>
    %327 = vector.extract_strided_slice %320 {offsets = [0, 96], sizes = [32, 32], strides = [1, 1]} : vector<32x128xf32> to vector<32x32xf32>
    %328 = math.tanh %327 : vector<32x32xf32>
    %329 = vector.extract_strided_slice %326 {offsets = [0, 0], sizes = [32, 32], strides = [1, 1]} : vector<32x96xf32> to vector<32x32xf32>
    %330 = vector.extract_strided_slice %326 {offsets = [0, 32], sizes = [32, 32], strides = [1, 1]} : vector<32x96xf32> to vector<32x32xf32>
    %331 = vector.extract_strided_slice %326 {offsets = [0, 64], sizes = [32, 32], strides = [1, 1]} : vector<32x96xf32> to vector<32x32xf32>
    %332 = arith.mulf %330, %294 : vector<32x32xf32>
    %333 = arith.mulf %329, %328 : vector<32x32xf32>
    %334 = arith.addf %332, %333 : vector<32x32xf32>
    %335 = math.tanh %334 : vector<32x32xf32>
    %336 = arith.mulf %331, %335 : vector<32x32xf32>
    %337 = vector.extract_strided_slice %336 {offsets = [0, 0], sizes = [16, 32], strides = [1, 1]} : vector<32x32xf32> to vector<16x32xf32>
    %338 = arith.index_cast %c7_i32_120 : i32 to index
    %c0_128 = arith.constant 0 : index
    %c0_129 = arith.constant 0 : index
    %c0_130 = arith.constant 0 : index
    %339 = vector.load %arg7[%338, %c0_128, %c0_129, %c0_130] : memref<8x2x16x32xf32, #tpu.memory_space<vmem>>, vector<1x1x16x32xf32>
    %340 = vector.shape_cast %339 : vector<1x1x16x32xf32> to vector<16x32xf32>
    %341 = vector.shape_cast %337 : vector<16x32xf32> to vector<1x1x16x32xf32>
    tpu.vector_store %arg7[%338, %c0_128, %c0_129, %c0_130], %341 {strides = array<i32>} : memref<8x2x16x32xf32, #tpu.memory_space<vmem>>, vector<1x1x16x32xf32>,
    %342 = vector.extract_strided_slice %336 {offsets = [16, 0], sizes = [16, 32], strides = [1, 1]} : vector<32x32xf32> to vector<16x32xf32>
    %c7_i32_131 = arith.constant 7 : i32
    %343 = arith.subi %c7_i32_131, %c7_i32_120 : i32
    %344 = arith.index_cast %343 : i32 to index
    %c1_132 = arith.constant 1 : index
    %c0_133 = arith.constant 0 : index
    %c0_134 = arith.constant 0 : index
    %345 = vector.load %arg7[%344, %c1_132, %c0_133, %c0_134] : memref<8x2x16x32xf32, #tpu.memory_space<vmem>>, vector<1x1x16x32xf32>
    %346 = vector.shape_cast %345 : vector<1x1x16x32xf32> to vector<16x32xf32>
    %347 = vector.shape_cast %342 : vector<16x32xf32> to vector<1x1x16x32xf32>
    tpu.vector_store %arg7[%344, %c1_132, %c0_133, %c0_134], %347 {strides = array<i32>} : memref<8x2x16x32xf32, #tpu.memory_space<vmem>>, vector<1x1x16x32xf32>,
    %348 = tpu.concatenate %336, %336 in 1 : vector<32x32xf32>, vector<32x32xf32> -> vector<32x64xf32>
    %349 = arith.mulf %348, %27 : vector<32x64xf32>
    %c8_i32 = arith.constant 8 : i32
    return
  }
  func.func @transform_0(%arg0: i32) -> (i32, i32, i32) {
    %c0_i32 = arith.constant 0 : i32
    %c0_i32_0 = arith.constant 0 : i32
    %c0_i32_1 = arith.constant 0 : i32
    return %c0_i32, %arg0, %c0_i32_0 : i32, i32, i32
  }
  func.func @transform_1(%arg0: i32) -> (i32, i32) {
    %c0_i32 = arith.constant 0 : i32
    %c0_i32_0 = arith.constant 0 : i32
    %c0_i32_1 = arith.constant 0 : i32
    return %c0_i32, %c0_i32_0 : i32, i32
  }
  func.func @transform_2(%arg0: i32) -> (i32, i32) {
    %c0_i32 = arith.constant 0 : i32
    %c0_i32_0 = arith.constant 0 : i32
    %c0_i32_1 = arith.constant 0 : i32
    return %c0_i32, %c0_i32_0 : i32, i32
  }
  func.func @transform_3(%arg0: i32) -> (i32, i32) {
    %c0_i32 = arith.constant 0 : i32
    %c0_i32_0 = arith.constant 0 : i32
    %c0_i32_1 = arith.constant 0 : i32
    return %c0_i32, %c0_i32_0 : i32, i32
  }
  func.func @transform_4(%arg0: i32) -> (i32, i32) {
    %c0_i32 = arith.constant 0 : i32
    %c0_i32_0 = arith.constant 0 : i32
    %c0_i32_1 = arith.constant 0 : i32
    return %c0_i32, %c0_i32_0 : i32, i32
  }
  func.func @transform_5(%arg0: i32) -> (i32, i32) {
    %c0_i32 = arith.constant 0 : i32
    %c0_i32_0 = arith.constant 0 : i32
    %c0_i32_1 = arith.constant 0 : i32
    return %c0_i32, %c0_i32_0 : i32, i32
  }
  func.func @transform_6(%arg0: i32) -> (i32, i32, i32, i32) {
    %c0_i32 = arith.constant 0 : i32
    %c0_i32_0 = arith.constant 0 : i32
    %c0_i32_1 = arith.constant 0 : i32
    %c0_i32_2 = arith.constant 0 : i32
    return %c0_i32, %c0_i32_0, %arg0, %c0_i32_1 : i32, i32, i32, i32
  }
}

module attributes {stable_mosaic.version = 11 : i64} {
  func.func @align_combine_kernel(%arg0: i32, %arg1: memref<8x2x8x64xf32, #tpu.memory_space<vmem>>, %arg2: memref<8x2x8xf32, #tpu.memory_space<vmem>>, %arg3: memref<8x2x8x256xbf16, #tpu.memory_space<vmem>>) attributes {dimension_semantics = [#tpu.dimension_semantics<parallel>], iteration_bounds = array<i64: 2>, scalar_prefetch = 0 : i64, scratch_operands = 0 : i64, tpu.core_type = #tpu.core_type<tc>, window_params = [{transform_indices = @transform_0, window_bounds = array<i64: 8, 2, 8, 64>}, {transform_indices = @transform_1, window_bounds = array<i64: 8, 2, 8>}, {transform_indices = @transform_2, window_bounds = array<i64: 8, 2, 8, 256>}]} {
    %c0 = arith.constant 0 : index
    %c0_0 = arith.constant 0 : index
    %c0_1 = arith.constant 0 : index
    %c0_2 = arith.constant 0 : index
    %0 = vector.load %arg1[%c0, %c0_0, %c0_1, %c0_2] : memref<8x2x8x64xf32, #tpu.memory_space<vmem>>, vector<8x1x8x64xf32>
    %1 = vector.shape_cast %0 : vector<8x1x8x64xf32> to vector<8x8x64xf32>
    %c0_3 = arith.constant 0 : index
    %c1 = arith.constant 1 : index
    %c0_4 = arith.constant 0 : index
    %c0_5 = arith.constant 0 : index
    %2 = vector.load %arg1[%c0_3, %c1, %c0_4, %c0_5] : memref<8x2x8x64xf32, #tpu.memory_space<vmem>>, vector<8x1x8x64xf32>
    %3 = vector.shape_cast %2 : vector<8x1x8x64xf32> to vector<8x8x64xf32>
    %c0_6 = arith.constant 0 : index
    %c0_7 = arith.constant 0 : index
    %c0_8 = arith.constant 0 : index
    %4 = vector.load %arg2[%c0_6, %c0_7, %c0_8] : memref<8x2x8xf32, #tpu.memory_space<vmem>>, vector<8x1x8xf32>
    %5 = vector.shape_cast %4 : vector<8x1x8xf32> to vector<8x8xf32>
    %c0_9 = arith.constant 0 : index
    %c1_10 = arith.constant 1 : index
    %c0_11 = arith.constant 0 : index
    %6 = vector.load %arg2[%c0_9, %c1_10, %c0_11] : memref<8x2x8xf32, #tpu.memory_space<vmem>>, vector<8x1x8xf32>
    %7 = vector.shape_cast %6 : vector<8x1x8xf32> to vector<8x8xf32>
    %8 = arith.truncf %1 : vector<8x8x64xf32> to vector<8x8x64xbf16>
    %9 = arith.truncf %3 : vector<8x8x64xf32> to vector<8x8x64xbf16>
    "tpu.trace_start"() <{level = 10 : i32, message = "bid,bjd->bij"}> : () -> ()
    %cst = arith.constant dense<0.000000e+00> : vector<8x8x8xf32>
    %10 = tpu.matmul %8, %9, %cst {dimension_numbers = #tpu.dot_dimension_numbers<[2], [2], [1], [1], [0, 0, 0, 1, 1, 1], [0], [0]>} : vector<8x8x64xbf16>, vector<8x8x64xbf16>, vector<8x8x8xf32> -> vector<8x8x8xf32>
    %cst_12 = arith.constant dense<0.000000e+00> : vector<8x8x8xf32>
    %11 = tpu.matmul %9, %8, %cst_12 {dimension_numbers = #tpu.dot_dimension_numbers<[2], [2], [1], [1], [0, 0, 0, 1, 1, 1], [0], [0]>} : vector<8x8x64xbf16>, vector<8x8x64xbf16>, vector<8x8x8xf32> -> vector<8x8x8xf32>
    "tpu.trace_stop"() : () -> ()
    %12 = vector.shape_cast %7 : vector<8x8xf32> to vector<8x1x8xf32>
    %13 = vector.broadcast %12 : vector<8x1x8xf32> to vector<8x8x8xf32>
    %14 = arith.addf %10, %13 : vector<8x8x8xf32>
    %cst_13 = arith.constant dense<0xFF800000> : vector<8x8xf32>
    %15 = vector.multi_reduction <maximumf>, %14, %cst_13 [2] : vector<8x8x8xf32> to vector<8x8xf32>
    %16 = vector.shape_cast %15 : vector<8x8xf32> to vector<8x8x1xf32>
    %17 = vector.broadcast %16 : vector<8x8x1xf32> to vector<8x8x8xf32>
    %18 = arith.subf %14, %17 : vector<8x8x8xf32>
    %19 = math.exp %18 : vector<8x8x8xf32>
    %cst_14 = arith.constant dense<0.000000e+00> : vector<8x8xf32>
    %20 = vector.multi_reduction <add>, %19, %cst_14 [2] : vector<8x8x8xf32> to vector<8x8xf32>
    %21 = vector.shape_cast %20 : vector<8x8xf32> to vector<8x8x1xf32>
    %22 = tpu.reciprocal %21 {approx = true} : vector<8x8x1xf32> -> vector<8x8x1xf32>
    %23 = vector.broadcast %22 : vector<8x8x1xf32> to vector<8x8x8xf32>
    %24 = arith.mulf %19, %23 : vector<8x8x8xf32>
    %25 = vector.shape_cast %5 : vector<8x8xf32> to vector<8x1x8xf32>
    %26 = vector.broadcast %25 : vector<8x1x8xf32> to vector<8x8x8xf32>
    %27 = arith.addf %11, %26 : vector<8x8x8xf32>
    %cst_15 = arith.constant dense<0xFF800000> : vector<8x8xf32>
    %28 = vector.multi_reduction <maximumf>, %27, %cst_15 [2] : vector<8x8x8xf32> to vector<8x8xf32>
    %29 = vector.shape_cast %28 : vector<8x8xf32> to vector<8x8x1xf32>
    %30 = vector.broadcast %29 : vector<8x8x1xf32> to vector<8x8x8xf32>
    %31 = arith.subf %27, %30 : vector<8x8x8xf32>
    %32 = math.exp %31 : vector<8x8x8xf32>
    %cst_16 = arith.constant dense<0.000000e+00> : vector<8x8xf32>
    %33 = vector.multi_reduction <add>, %32, %cst_16 [2] : vector<8x8x8xf32> to vector<8x8xf32>
    %34 = vector.shape_cast %33 : vector<8x8xf32> to vector<8x8x1xf32>
    %35 = tpu.reciprocal %34 {approx = true} : vector<8x8x1xf32> -> vector<8x8x1xf32>
    %36 = vector.broadcast %35 : vector<8x8x1xf32> to vector<8x8x8xf32>
    %37 = arith.mulf %32, %36 : vector<8x8x8xf32>
    %38 = arith.truncf %24 : vector<8x8x8xf32> to vector<8x8x8xbf16>
    "tpu.trace_start"() <{level = 10 : i32, message = "bij,bjd->bid"}> : () -> ()
    %cst_17 = arith.constant dense<0.000000e+00> : vector<8x8x64xf32>
    %39 = tpu.matmul %38, %9, %cst_17 {dimension_numbers = #tpu.dot_dimension_numbers<[2], [1], [1], [2], [0, 0, 0, 1, 1, 2], [0], [0]>} : vector<8x8x8xbf16>, vector<8x8x64xbf16>, vector<8x8x64xf32> -> vector<8x8x64xf32>
    "tpu.trace_stop"() : () -> ()
    %40 = arith.truncf %37 : vector<8x8x8xf32> to vector<8x8x8xbf16>
    "tpu.trace_start"() <{level = 10 : i32, message = "bij,bjd->bid"}> : () -> ()
    %cst_18 = arith.constant dense<0.000000e+00> : vector<8x8x64xf32>
    %41 = tpu.matmul %40, %8, %cst_18 {dimension_numbers = #tpu.dot_dimension_numbers<[2], [1], [1], [2], [0, 0, 0, 1, 1, 2], [0], [0]>} : vector<8x8x8xbf16>, vector<8x8x64xbf16>, vector<8x8x64xf32> -> vector<8x8x64xf32>
    "tpu.trace_stop"() : () -> ()
    %42 = arith.subf %1, %39 : vector<8x8x64xf32>
    %43 = arith.mulf %1, %39 : vector<8x8x64xf32>
    %44 = tpu.concatenate %1, %39, %42, %43 in 2 : vector<8x8x64xf32>, vector<8x8x64xf32>, vector<8x8x64xf32>, vector<8x8x64xf32> -> vector<8x8x256xf32>
    %45 = arith.truncf %44 : vector<8x8x256xf32> to vector<8x8x256xbf16>
    %c0_19 = arith.constant 0 : index
    %c0_20 = arith.constant 0 : index
    %c0_21 = arith.constant 0 : index
    %c0_22 = arith.constant 0 : index
    %46 = vector.load %arg3[%c0_19, %c0_20, %c0_21, %c0_22] : memref<8x2x8x256xbf16, #tpu.memory_space<vmem>>, vector<8x1x8x256xbf16>
    %47 = vector.shape_cast %46 : vector<8x1x8x256xbf16> to vector<8x8x256xbf16>
    %48 = vector.shape_cast %45 : vector<8x8x256xbf16> to vector<8x1x8x256xbf16>
    tpu.vector_store %arg3[%c0_19, %c0_20, %c0_21, %c0_22], %48 {strides = array<i32>} : memref<8x2x8x256xbf16, #tpu.memory_space<vmem>>, vector<8x1x8x256xbf16>,
    %49 = arith.subf %3, %41 : vector<8x8x64xf32>
    %50 = arith.mulf %3, %41 : vector<8x8x64xf32>
    %51 = tpu.concatenate %3, %41, %49, %50 in 2 : vector<8x8x64xf32>, vector<8x8x64xf32>, vector<8x8x64xf32>, vector<8x8x64xf32> -> vector<8x8x256xf32>
    %52 = arith.truncf %51 : vector<8x8x256xf32> to vector<8x8x256xbf16>
    %c0_23 = arith.constant 0 : index
    %c1_24 = arith.constant 1 : index
    %c0_25 = arith.constant 0 : index
    %c0_26 = arith.constant 0 : index
    %53 = vector.load %arg3[%c0_23, %c1_24, %c0_25, %c0_26] : memref<8x2x8x256xbf16, #tpu.memory_space<vmem>>, vector<8x1x8x256xbf16>
    %54 = vector.shape_cast %53 : vector<8x1x8x256xbf16> to vector<8x8x256xbf16>
    %55 = vector.shape_cast %52 : vector<8x8x256xbf16> to vector<8x1x8x256xbf16>
    tpu.vector_store %arg3[%c0_23, %c1_24, %c0_25, %c0_26], %55 {strides = array<i32>} : memref<8x2x8x256xbf16, #tpu.memory_space<vmem>>, vector<8x1x8x256xbf16>,
    return
  }
  func.func @transform_0(%arg0: i32) -> (i32, i32, i32, i32) {
    %c0_i32 = arith.constant 0 : i32
    %c0_i32_0 = arith.constant 0 : i32
    %c0_i32_1 = arith.constant 0 : i32
    %c0_i32_2 = arith.constant 0 : i32
    return %arg0, %c0_i32, %c0_i32_0, %c0_i32_1 : i32, i32, i32, i32
  }
  func.func @transform_1(%arg0: i32) -> (i32, i32, i32) {
    %c0_i32 = arith.constant 0 : i32
    %c0_i32_0 = arith.constant 0 : i32
    %c0_i32_1 = arith.constant 0 : i32
    return %arg0, %c0_i32, %c0_i32_0 : i32, i32, i32
  }
  func.func @transform_2(%arg0: i32) -> (i32, i32, i32, i32) {
    %c0_i32 = arith.constant 0 : i32
    %c0_i32_0 = arith.constant 0 : i32
    %c0_i32_1 = arith.constant 0 : i32
    %c0_i32_2 = arith.constant 0 : i32
    return %arg0, %c0_i32, %c0_i32_0, %c0_i32_1 : i32, i32, i32, i32
  }
}

module attributes {stable_mosaic.version = 11 : i64} {
  func.func @bilstm_kernel(%arg0: i32, %arg1: memref<8x16x256xbf16, #tpu.memory_space<vmem>>, %arg2: memref<256x128xbf16, #tpu.memory_space<vmem>>, %arg3: memref<256x128xbf16, #tpu.memory_space<vmem>>, %arg4: memref<1x128xf32, #tpu.memory_space<vmem>>, %arg5: memref<1x128xf32, #tpu.memory_space<vmem>>, %arg6: memref<64x128xbf16, #tpu.memory_space<vmem>>, %arg7: memref<8x2x16x32xf32, #tpu.memory_space<vmem>>, %arg8: memref<8x16x128xf32, #tpu.memory_space<vmem>>, %arg9: memref<8x16x128xf32, #tpu.memory_space<vmem>>) attributes {dimension_semantics = [#tpu.dimension_semantics<parallel>], iteration_bounds = array<i64: 2>, scalar_prefetch = 0 : i64, scratch_operands = 2 : i64, tpu.core_type = #tpu.core_type<tc>, window_params = [{transform_indices = @transform_0, window_bounds = array<i64: 8, 16, 256>}, {pipeline_mode = #tpu.pipeline_mode<synchronous>, transform_indices = @transform_1, window_bounds = array<i64: 256, 128>}, {pipeline_mode = #tpu.pipeline_mode<synchronous>, transform_indices = @transform_2, window_bounds = array<i64: 256, 128>}, {pipeline_mode = #tpu.pipeline_mode<synchronous>, transform_indices = @transform_3, window_bounds = array<i64: 1, 128>}, {pipeline_mode = #tpu.pipeline_mode<synchronous>, transform_indices = @transform_4, window_bounds = array<i64: 1, 128>}, {pipeline_mode = #tpu.pipeline_mode<synchronous>, transform_indices = @transform_5, window_bounds = array<i64: 64, 128>}, {transform_indices = @transform_6, window_bounds = array<i64: 8, 2, 16, 32>}]} {
    %c0 = arith.constant 0 : index
    %c0_0 = arith.constant 0 : index
    %c0_1 = arith.constant 0 : index
    %0 = vector.load %arg1[%c0, %c0_0, %c0_1] : memref<8x16x256xbf16, #tpu.memory_space<vmem>>, vector<8x16x256xbf16>
    %1 = vector.shape_cast %0 : vector<8x16x256xbf16> to vector<128x256xbf16>
    %c0_2 = arith.constant 0 : index
    %c0_3 = arith.constant 0 : index
    %2 = vector.load %arg2[%c0_2, %c0_3] : memref<256x128xbf16, #tpu.memory_space<vmem>>, vector<256x128xbf16>
    %cst = arith.constant dense<0.000000e+00> : vector<128x128xf32>
    %3 = tpu.matmul %1, %2, %cst {dimension_numbers = #tpu.dot_dimension_numbers<[1], [0], [0], [1], [0, 0, 1, 1], [], []>} : vector<128x256xbf16>, vector<256x128xbf16>, vector<128x128xf32> -> vector<128x128xf32>
    %c0_4 = arith.constant 0 : index
    %c0_5 = arith.constant 0 : index
    %4 = vector.load %arg4[%c0_4, %c0_5] : memref<1x128xf32, #tpu.memory_space<vmem>>, vector<1x128xf32>
    %5 = vector.broadcast %4 : vector<1x128xf32> to vector<128x128xf32>
    %6 = arith.addf %3, %5 : vector<128x128xf32>
    %7 = vector.shape_cast %6 : vector<128x128xf32> to vector<8x16x128xf32>
    %c0_6 = arith.constant 0 : index
    %c0_7 = arith.constant 0 : index
    %c0_8 = arith.constant 0 : index
    %8 = vector.load %arg8[%c0_6, %c0_7, %c0_8] : memref<8x16x128xf32, #tpu.memory_space<vmem>>, vector<8x16x128xf32>
    tpu.vector_store %arg8[%c0_6, %c0_7, %c0_8], %7 {strides = array<i32>} : memref<8x16x128xf32, #tpu.memory_space<vmem>>, vector<8x16x128xf32>,
    %c0_9 = arith.constant 0 : index
    %c0_10 = arith.constant 0 : index
    %9 = vector.load %arg3[%c0_9, %c0_10] : memref<256x128xbf16, #tpu.memory_space<vmem>>, vector<256x128xbf16>
    %cst_11 = arith.constant dense<0.000000e+00> : vector<128x128xf32>
    %10 = tpu.matmul %1, %9, %cst_11 {dimension_numbers = #tpu.dot_dimension_numbers<[1], [0], [0], [1], [0, 0, 1, 1], [], []>} : vector<128x256xbf16>, vector<256x128xbf16>, vector<128x128xf32> -> vector<128x128xf32>
    %c0_12 = arith.constant 0 : index
    %c0_13 = arith.constant 0 : index
    %11 = vector.load %arg5[%c0_12, %c0_13] : memref<1x128xf32, #tpu.memory_space<vmem>>, vector<1x128xf32>
    %12 = vector.broadcast %11 : vector<1x128xf32> to vector<128x128xf32>
    %13 = arith.addf %10, %12 : vector<128x128xf32>
    %14 = vector.shape_cast %13 : vector<128x128xf32> to vector<8x16x128xf32>
    %c0_14 = arith.constant 0 : index
    %c0_15 = arith.constant 0 : index
    %c0_16 = arith.constant 0 : index
    %15 = vector.load %arg9[%c0_14, %c0_15, %c0_16] : memref<8x16x128xf32, #tpu.memory_space<vmem>>, vector<8x16x128xf32>
    tpu.vector_store %arg9[%c0_14, %c0_15, %c0_16], %14 {strides = array<i32>} : memref<8x16x128xf32, #tpu.memory_space<vmem>>, vector<8x16x128xf32>,
    %c0_17 = arith.constant 0 : index
    %c0_18 = arith.constant 0 : index
    %16 = vector.load %arg6[%c0_17, %c0_18] : memref<64x128xbf16, #tpu.memory_space<vmem>>, vector<64x128xbf16>
    %17 = tpu.iota {dimensions = array<i32: 0>} : vector<32x64xi32>
    %18 = tpu.iota {dimensions = array<i32: 1>} : vector<32x64xi32>
    %c16_i32 = arith.constant 16 : i32
    %19 = vector.broadcast %c16_i32 : i32 to vector<32x64xi32>
    %20 = arith.cmpi slt, %17, %19 : vector<32x64xi32>
    %c32_i32 = arith.constant 32 : i32
    %21 = vector.broadcast %c32_i32 : i32 to vector<32x64xi32>
    %22 = arith.cmpi slt, %18, %21 : vector<32x64xi32>
    %23 = arith.xori %20, %22 : vector<32x64xi1>
    %cst_19 = arith.constant dense<true> : vector<32x64xi1>
    %24 = arith.xori %23, %cst_19 : vector<32x64xi1>
    %cst_20 = arith.constant 1.000000e+00 : f32
    %cst_21 = arith.constant 0.000000e+00 : f32
    %25 = vector.broadcast %cst_20 : f32 to vector<32x64xf32>
    %26 = vector.broadcast %cst_21 : f32 to vector<32x64xf32>
    %27 = arith.select %24, %25, %26 : vector<32x64xi1>, vector<32x64xf32>
    %cst_22 = arith.constant 0.000000e+00 : f32
    %28 = vector.broadcast %cst_22 : f32 to vector<32x64xf32>
    %cst_23 = arith.constant 0.000000e+00 : f32
    %29 = vector.broadcast %cst_23 : f32 to vector<32x32xf32>
    %c0_i32 = arith.constant 0 : i32
    %30 = arith.index_cast %c0_i32 : i32 to index
    %c0_24 = arith.constant 0 : index
    %c0_25 = arith.constant 0 : index
    %31 = vector.load %arg8[%30, %c0_24, %c0_25] : memref<8x16x128xf32, #tpu.memory_space<vmem>>, vector<1x16x128xf32>
    %32 = vector.shape_cast %31 : vector<1x16x128xf32> to vector<16x128xf32>
    %c7_i32 = arith.constant 7 : i32
    %33 = arith.subi %c7_i32, %c0_i32 : i32
    %34 = arith.index_cast %33 : i32 to index
    %c0_26 = arith.constant 0 : index
    %c0_27 = arith.constant 0 : index
    %35 = vector.load %arg9[%34, %c0_26, %c0_27] : memref<8x16x128xf32, #tpu.memory_space<vmem>>, vector<1x16x128xf32>
    %36 = vector.shape_cast %35 : vector<1x16x128xf32> to vector<16x128xf32>
    %37 = tpu.concatenate %32, %36 in 0 : vector<16x128xf32>, vector<16x128xf32> -> vector<32x128xf32>
    %38 = arith.truncf %28 : vector<32x64xf32> to vector<32x64xbf16>
    %cst_28 = arith.constant dense<0.000000e+00> : vector<32x128xf32>
    %39 = tpu.matmul %38, %16, %cst_28 {dimension_numbers = #tpu.dot_dimension_numbers<[1], [0], [0], [1], [0, 0, 1, 1], [], []>} : vector<32x64xbf16>, vector<64x128xbf16>, vector<32x128xf32> -> vector<32x128xf32>
    %40 = arith.addf %37, %39 : vector<32x128xf32>
    %41 = vector.extract_strided_slice %40 {offsets = [0, 0], sizes = [32, 96], strides = [1, 1]} : vector<32x128xf32> to vector<32x96xf32>
    %42 = arith.negf %41 : vector<32x96xf32>
    %43 = math.exp %42 : vector<32x96xf32>
    %cst_29 = arith.constant 1.000000e+00 : f32
    %44 = vector.broadcast %cst_29 : f32 to vector<32x96xf32>
    %45 = arith.addf %44, %43 : vector<32x96xf32>
    %46 = arith.divf %44, %45 : vector<32x96xf32>
    %47 = vector.extract_strided_slice %40 {offsets = [0, 96], sizes = [32, 32], strides = [1, 1]} : vector<32x128xf32> to vector<32x32xf32>
    %48 = math.tanh %47 : vector<32x32xf32>
    %49 = vector.extract_strided_slice %46 {offsets = [0, 0], sizes = [32, 32], strides = [1, 1]} : vector<32x96xf32> to vector<32x32xf32>
    %50 = vector.extract_strided_slice %46 {offsets = [0, 32], sizes = [32, 32], strides = [1, 1]} : vector<32x96xf32> to vector<32x32xf32>
    %51 = vector.extract_strided_slice %46 {offsets = [0, 64], sizes = [32, 32], strides = [1, 1]} : vector<32x96xf32> to vector<32x32xf32>
    %52 = arith.mulf %50, %29 : vector<32x32xf32>
    %53 = arith.mulf %49, %48 : vector<32x32xf32>
    %54 = arith.addf %52, %53 : vector<32x32xf32>
    %55 = math.tanh %54 : vector<32x32xf32>
    %56 = arith.mulf %51, %55 : vector<32x32xf32>
    %57 = vector.extract_strided_slice %56 {offsets = [0, 0], sizes = [16, 32], strides = [1, 1]} : vector<32x32xf32> to vector<16x32xf32>
    %58 = arith.index_cast %c0_i32 : i32 to index
    %c0_30 = arith.constant 0 : index
    %c0_31 = arith.constant 0 : index
    %c0_32 = arith.constant 0 : index
    %59 = vector.load %arg7[%58, %c0_30, %c0_31, %c0_32] : memref<8x2x16x32xf32, #tpu.memory_space<vmem>>, vector<1x1x16x32xf32>
    %60 = vector.shape_cast %59 : vector<1x1x16x32xf32> to vector<16x32xf32>
    %61 = vector.shape_cast %57 : vector<16x32xf32> to vector<1x1x16x32xf32>
    tpu.vector_store %arg7[%58, %c0_30, %c0_31, %c0_32], %61 {strides = array<i32>} : memref<8x2x16x32xf32, #tpu.memory_space<vmem>>, vector<1x1x16x32xf32>,
    %62 = vector.extract_strided_slice %56 {offsets = [16, 0], sizes = [16, 32], strides = [1, 1]} : vector<32x32xf32> to vector<16x32xf32>
    %c7_i32_33 = arith.constant 7 : i32
    %63 = arith.subi %c7_i32_33, %c0_i32 : i32
    %64 = arith.index_cast %63 : i32 to index
    %c1 = arith.constant 1 : index
    %c0_34 = arith.constant 0 : index
    %c0_35 = arith.constant 0 : index
    %65 = vector.load %arg7[%64, %c1, %c0_34, %c0_35] : memref<8x2x16x32xf32, #tpu.memory_space<vmem>>, vector<1x1x16x32xf32>
    %66 = vector.shape_cast %65 : vector<1x1x16x32xf32> to vector<16x32xf32>
    %67 = vector.shape_cast %62 : vector<16x32xf32> to vector<1x1x16x32xf32>
    tpu.vector_store %arg7[%64, %c1, %c0_34, %c0_35], %67 {strides = array<i32>} : memref<8x2x16x32xf32, #tpu.memory_space<vmem>>, vector<1x1x16x32xf32>,
    %68 = tpu.concatenate %56, %56 in 1 : vector<32x32xf32>, vector<32x32xf32> -> vector<32x64xf32>
    %69 = arith.mulf %68, %27 : vector<32x64xf32>
    %c1_i32 = arith.constant 1 : i32
    %70 = arith.index_cast %c1_i32 : i32 to index
    %c0_36 = arith.constant 0 : index
    %c0_37 = arith.constant 0 : index
    %71 = vector.load %arg8[%70, %c0_36, %c0_37] : memref<8x16x128xf32, #tpu.memory_space<vmem>>, vector<1x16x128xf32>
    %72 = vector.shape_cast %71 : vector<1x16x128xf32> to vector<16x128xf32>
    %c7_i32_38 = arith.constant 7 : i32
    %73 = arith.subi %c7_i32_38, %c1_i32 : i32
    %74 = arith.index_cast %73 : i32 to index
    %c0_39 = arith.constant 0 : index
    %c0_40 = arith.constant 0 : index
    %75 = vector.load %arg9[%74, %c0_39, %c0_40] : memref<8x16x128xf32, #tpu.memory_space<vmem>>, vector<1x16x128xf32>
    %76 = vector.shape_cast %75 : vector<1x16x128xf32> to vector<16x128xf32>
    %77 = tpu.concatenate %72, %76 in 0 : vector<16x128xf32>, vector<16x128xf32> -> vector<32x128xf32>
    %78 = arith.truncf %69 : vector<32x64xf32> to vector<32x64xbf16>
    %cst_41 = arith.constant dense<0.000000e+00> : vector<32x128xf32>
    %79 = tpu.matmul %78, %16, %cst_41 {dimension_numbers = #tpu.dot_dimension_numbers<[1], [0], [0], [1], [0, 0, 1, 1], [], []>} : vector<32x64xbf16>, vector<64x128xbf16>, vector<32x128xf32> -> vector<32x128xf32>
    %80 = arith.addf %77, %79 : vector<32x128xf32>
    %81 = vector.extract_strided_slice %80 {offsets = [0, 0], sizes = [32, 96], strides = [1, 1]} : vector<32x128xf32> to vector<32x96xf32>
    %82 = arith.negf %81 : vector<32x96xf32>
    %83 = math.exp %82 : vector<32x96xf32>
    %cst_42 = arith.constant 1.000000e+00 : f32
    %84 = vector.broadcast %cst_42 : f32 to vector<32x96xf32>
    %85 = arith.addf %84, %83 : vector<32x96xf32>
    %86 = arith.divf %84, %85 : vector<32x96xf32>
    %87 = vector.extract_strided_slice %80 {offsets = [0, 96], sizes = [32, 32], strides = [1, 1]} : vector<32x128xf32> to vector<32x32xf32>
    %88 = math.tanh %87 : vector<32x32xf32>
    %89 = vector.extract_strided_slice %86 {offsets = [0, 0], sizes = [32, 32], strides = [1, 1]} : vector<32x96xf32> to vector<32x32xf32>
    %90 = vector.extract_strided_slice %86 {offsets = [0, 32], sizes = [32, 32], strides = [1, 1]} : vector<32x96xf32> to vector<32x32xf32>
    %91 = vector.extract_strided_slice %86 {offsets = [0, 64], sizes = [32, 32], strides = [1, 1]} : vector<32x96xf32> to vector<32x32xf32>
    %92 = arith.mulf %90, %54 : vector<32x32xf32>
    %93 = arith.mulf %89, %88 : vector<32x32xf32>
    %94 = arith.addf %92, %93 : vector<32x32xf32>
    %95 = math.tanh %94 : vector<32x32xf32>
    %96 = arith.mulf %91, %95 : vector<32x32xf32>
    %97 = vector.extract_strided_slice %96 {offsets = [0, 0], sizes = [16, 32], strides = [1, 1]} : vector<32x32xf32> to vector<16x32xf32>
    %98 = arith.index_cast %c1_i32 : i32 to index
    %c0_43 = arith.constant 0 : index
    %c0_44 = arith.constant 0 : index
    %c0_45 = arith.constant 0 : index
    %99 = vector.load %arg7[%98, %c0_43, %c0_44, %c0_45] : memref<8x2x16x32xf32, #tpu.memory_space<vmem>>, vector<1x1x16x32xf32>
    %100 = vector.shape_cast %99 : vector<1x1x16x32xf32> to vector<16x32xf32>
    %101 = vector.shape_cast %97 : vector<16x32xf32> to vector<1x1x16x32xf32>
    tpu.vector_store %arg7[%98, %c0_43, %c0_44, %c0_45], %101 {strides = array<i32>} : memref<8x2x16x32xf32, #tpu.memory_space<vmem>>, vector<1x1x16x32xf32>,
    %102 = vector.extract_strided_slice %96 {offsets = [16, 0], sizes = [16, 32], strides = [1, 1]} : vector<32x32xf32> to vector<16x32xf32>
    %c7_i32_46 = arith.constant 7 : i32
    %103 = arith.subi %c7_i32_46, %c1_i32 : i32
    %104 = arith.index_cast %103 : i32 to index
    %c1_47 = arith.constant 1 : index
    %c0_48 = arith.constant 0 : index
    %c0_49 = arith.constant 0 : index
    %105 = vector.load %arg7[%104, %c1_47, %c0_48, %c0_49] : memref<8x2x16x32xf32, #tpu.memory_space<vmem>>, vector<1x1x16x32xf32>
    %106 = vector.shape_cast %105 : vector<1x1x16x32xf32> to vector<16x32xf32>
    %107 = vector.shape_cast %102 : vector<16x32xf32> to vector<1x1x16x32xf32>
    tpu.vector_store %arg7[%104, %c1_47, %c0_48, %c0_49], %107 {strides = array<i32>} : memref<8x2x16x32xf32, #tpu.memory_space<vmem>>, vector<1x1x16x32xf32>,
    %108 = tpu.concatenate %96, %96 in 1 : vector<32x32xf32>, vector<32x32xf32> -> vector<32x64xf32>
    %109 = arith.mulf %108, %27 : vector<32x64xf32>
    %c2_i32 = arith.constant 2 : i32
    %110 = arith.index_cast %c2_i32 : i32 to index
    %c0_50 = arith.constant 0 : index
    %c0_51 = arith.constant 0 : index
    %111 = vector.load %arg8[%110, %c0_50, %c0_51] : memref<8x16x128xf32, #tpu.memory_space<vmem>>, vector<1x16x128xf32>
    %112 = vector.shape_cast %111 : vector<1x16x128xf32> to vector<16x128xf32>
    %c7_i32_52 = arith.constant 7 : i32
    %113 = arith.subi %c7_i32_52, %c2_i32 : i32
    %114 = arith.index_cast %113 : i32 to index
    %c0_53 = arith.constant 0 : index
    %c0_54 = arith.constant 0 : index
    %115 = vector.load %arg9[%114, %c0_53, %c0_54] : memref<8x16x128xf32, #tpu.memory_space<vmem>>, vector<1x16x128xf32>
    %116 = vector.shape_cast %115 : vector<1x16x128xf32> to vector<16x128xf32>
    %117 = tpu.concatenate %112, %116 in 0 : vector<16x128xf32>, vector<16x128xf32> -> vector<32x128xf32>
    %118 = arith.truncf %109 : vector<32x64xf32> to vector<32x64xbf16>
    %cst_55 = arith.constant dense<0.000000e+00> : vector<32x128xf32>
    %119 = tpu.matmul %118, %16, %cst_55 {dimension_numbers = #tpu.dot_dimension_numbers<[1], [0], [0], [1], [0, 0, 1, 1], [], []>} : vector<32x64xbf16>, vector<64x128xbf16>, vector<32x128xf32> -> vector<32x128xf32>
    %120 = arith.addf %117, %119 : vector<32x128xf32>
    %121 = vector.extract_strided_slice %120 {offsets = [0, 0], sizes = [32, 96], strides = [1, 1]} : vector<32x128xf32> to vector<32x96xf32>
    %122 = arith.negf %121 : vector<32x96xf32>
    %123 = math.exp %122 : vector<32x96xf32>
    %cst_56 = arith.constant 1.000000e+00 : f32
    %124 = vector.broadcast %cst_56 : f32 to vector<32x96xf32>
    %125 = arith.addf %124, %123 : vector<32x96xf32>
    %126 = arith.divf %124, %125 : vector<32x96xf32>
    %127 = vector.extract_strided_slice %120 {offsets = [0, 96], sizes = [32, 32], strides = [1, 1]} : vector<32x128xf32> to vector<32x32xf32>
    %128 = math.tanh %127 : vector<32x32xf32>
    %129 = vector.extract_strided_slice %126 {offsets = [0, 0], sizes = [32, 32], strides = [1, 1]} : vector<32x96xf32> to vector<32x32xf32>
    %130 = vector.extract_strided_slice %126 {offsets = [0, 32], sizes = [32, 32], strides = [1, 1]} : vector<32x96xf32> to vector<32x32xf32>
    %131 = vector.extract_strided_slice %126 {offsets = [0, 64], sizes = [32, 32], strides = [1, 1]} : vector<32x96xf32> to vector<32x32xf32>
    %132 = arith.mulf %130, %94 : vector<32x32xf32>
    %133 = arith.mulf %129, %128 : vector<32x32xf32>
    %134 = arith.addf %132, %133 : vector<32x32xf32>
    %135 = math.tanh %134 : vector<32x32xf32>
    %136 = arith.mulf %131, %135 : vector<32x32xf32>
    %137 = vector.extract_strided_slice %136 {offsets = [0, 0], sizes = [16, 32], strides = [1, 1]} : vector<32x32xf32> to vector<16x32xf32>
    %138 = arith.index_cast %c2_i32 : i32 to index
    %c0_57 = arith.constant 0 : index
    %c0_58 = arith.constant 0 : index
    %c0_59 = arith.constant 0 : index
    %139 = vector.load %arg7[%138, %c0_57, %c0_58, %c0_59] : memref<8x2x16x32xf32, #tpu.memory_space<vmem>>, vector<1x1x16x32xf32>
    %140 = vector.shape_cast %139 : vector<1x1x16x32xf32> to vector<16x32xf32>
    %141 = vector.shape_cast %137 : vector<16x32xf32> to vector<1x1x16x32xf32>
    tpu.vector_store %arg7[%138, %c0_57, %c0_58, %c0_59], %141 {strides = array<i32>} : memref<8x2x16x32xf32, #tpu.memory_space<vmem>>, vector<1x1x16x32xf32>,
    %142 = vector.extract_strided_slice %136 {offsets = [16, 0], sizes = [16, 32], strides = [1, 1]} : vector<32x32xf32> to vector<16x32xf32>
    %c7_i32_60 = arith.constant 7 : i32
    %143 = arith.subi %c7_i32_60, %c2_i32 : i32
    %144 = arith.index_cast %143 : i32 to index
    %c1_61 = arith.constant 1 : index
    %c0_62 = arith.constant 0 : index
    %c0_63 = arith.constant 0 : index
    %145 = vector.load %arg7[%144, %c1_61, %c0_62, %c0_63] : memref<8x2x16x32xf32, #tpu.memory_space<vmem>>, vector<1x1x16x32xf32>
    %146 = vector.shape_cast %145 : vector<1x1x16x32xf32> to vector<16x32xf32>
    %147 = vector.shape_cast %142 : vector<16x32xf32> to vector<1x1x16x32xf32>
    tpu.vector_store %arg7[%144, %c1_61, %c0_62, %c0_63], %147 {strides = array<i32>} : memref<8x2x16x32xf32, #tpu.memory_space<vmem>>, vector<1x1x16x32xf32>,
    %148 = tpu.concatenate %136, %136 in 1 : vector<32x32xf32>, vector<32x32xf32> -> vector<32x64xf32>
    %149 = arith.mulf %148, %27 : vector<32x64xf32>
    %c3_i32 = arith.constant 3 : i32
    %150 = arith.index_cast %c3_i32 : i32 to index
    %c0_64 = arith.constant 0 : index
    %c0_65 = arith.constant 0 : index
    %151 = vector.load %arg8[%150, %c0_64, %c0_65] : memref<8x16x128xf32, #tpu.memory_space<vmem>>, vector<1x16x128xf32>
    %152 = vector.shape_cast %151 : vector<1x16x128xf32> to vector<16x128xf32>
    %c7_i32_66 = arith.constant 7 : i32
    %153 = arith.subi %c7_i32_66, %c3_i32 : i32
    %154 = arith.index_cast %153 : i32 to index
    %c0_67 = arith.constant 0 : index
    %c0_68 = arith.constant 0 : index
    %155 = vector.load %arg9[%154, %c0_67, %c0_68] : memref<8x16x128xf32, #tpu.memory_space<vmem>>, vector<1x16x128xf32>
    %156 = vector.shape_cast %155 : vector<1x16x128xf32> to vector<16x128xf32>
    %157 = tpu.concatenate %152, %156 in 0 : vector<16x128xf32>, vector<16x128xf32> -> vector<32x128xf32>
    %158 = arith.truncf %149 : vector<32x64xf32> to vector<32x64xbf16>
    %cst_69 = arith.constant dense<0.000000e+00> : vector<32x128xf32>
    %159 = tpu.matmul %158, %16, %cst_69 {dimension_numbers = #tpu.dot_dimension_numbers<[1], [0], [0], [1], [0, 0, 1, 1], [], []>} : vector<32x64xbf16>, vector<64x128xbf16>, vector<32x128xf32> -> vector<32x128xf32>
    %160 = arith.addf %157, %159 : vector<32x128xf32>
    %161 = vector.extract_strided_slice %160 {offsets = [0, 0], sizes = [32, 96], strides = [1, 1]} : vector<32x128xf32> to vector<32x96xf32>
    %162 = arith.negf %161 : vector<32x96xf32>
    %163 = math.exp %162 : vector<32x96xf32>
    %cst_70 = arith.constant 1.000000e+00 : f32
    %164 = vector.broadcast %cst_70 : f32 to vector<32x96xf32>
    %165 = arith.addf %164, %163 : vector<32x96xf32>
    %166 = arith.divf %164, %165 : vector<32x96xf32>
    %167 = vector.extract_strided_slice %160 {offsets = [0, 96], sizes = [32, 32], strides = [1, 1]} : vector<32x128xf32> to vector<32x32xf32>
    %168 = math.tanh %167 : vector<32x32xf32>
    %169 = vector.extract_strided_slice %166 {offsets = [0, 0], sizes = [32, 32], strides = [1, 1]} : vector<32x96xf32> to vector<32x32xf32>
    %170 = vector.extract_strided_slice %166 {offsets = [0, 32], sizes = [32, 32], strides = [1, 1]} : vector<32x96xf32> to vector<32x32xf32>
    %171 = vector.extract_strided_slice %166 {offsets = [0, 64], sizes = [32, 32], strides = [1, 1]} : vector<32x96xf32> to vector<32x32xf32>
    %172 = arith.mulf %170, %134 : vector<32x32xf32>
    %173 = arith.mulf %169, %168 : vector<32x32xf32>
    %174 = arith.addf %172, %173 : vector<32x32xf32>
    %175 = math.tanh %174 : vector<32x32xf32>
    %176 = arith.mulf %171, %175 : vector<32x32xf32>
    %177 = vector.extract_strided_slice %176 {offsets = [0, 0], sizes = [16, 32], strides = [1, 1]} : vector<32x32xf32> to vector<16x32xf32>
    %178 = arith.index_cast %c3_i32 : i32 to index
    %c0_71 = arith.constant 0 : index
    %c0_72 = arith.constant 0 : index
    %c0_73 = arith.constant 0 : index
    %179 = vector.load %arg7[%178, %c0_71, %c0_72, %c0_73] : memref<8x2x16x32xf32, #tpu.memory_space<vmem>>, vector<1x1x16x32xf32>
    %180 = vector.shape_cast %179 : vector<1x1x16x32xf32> to vector<16x32xf32>
    %181 = vector.shape_cast %177 : vector<16x32xf32> to vector<1x1x16x32xf32>
    tpu.vector_store %arg7[%178, %c0_71, %c0_72, %c0_73], %181 {strides = array<i32>} : memref<8x2x16x32xf32, #tpu.memory_space<vmem>>, vector<1x1x16x32xf32>,
    %182 = vector.extract_strided_slice %176 {offsets = [16, 0], sizes = [16, 32], strides = [1, 1]} : vector<32x32xf32> to vector<16x32xf32>
    %c7_i32_74 = arith.constant 7 : i32
    %183 = arith.subi %c7_i32_74, %c3_i32 : i32
    %184 = arith.index_cast %183 : i32 to index
    %c1_75 = arith.constant 1 : index
    %c0_76 = arith.constant 0 : index
    %c0_77 = arith.constant 0 : index
    %185 = vector.load %arg7[%184, %c1_75, %c0_76, %c0_77] : memref<8x2x16x32xf32, #tpu.memory_space<vmem>>, vector<1x1x16x32xf32>
    %186 = vector.shape_cast %185 : vector<1x1x16x32xf32> to vector<16x32xf32>
    %187 = vector.shape_cast %182 : vector<16x32xf32> to vector<1x1x16x32xf32>
    tpu.vector_store %arg7[%184, %c1_75, %c0_76, %c0_77], %187 {strides = array<i32>} : memref<8x2x16x32xf32, #tpu.memory_space<vmem>>, vector<1x1x16x32xf32>,
    %188 = tpu.concatenate %176, %176 in 1 : vector<32x32xf32>, vector<32x32xf32> -> vector<32x64xf32>
    %189 = arith.mulf %188, %27 : vector<32x64xf32>
    %c4_i32 = arith.constant 4 : i32
    %190 = arith.index_cast %c4_i32 : i32 to index
    %c0_78 = arith.constant 0 : index
    %c0_79 = arith.constant 0 : index
    %191 = vector.load %arg8[%190, %c0_78, %c0_79] : memref<8x16x128xf32, #tpu.memory_space<vmem>>, vector<1x16x128xf32>
    %192 = vector.shape_cast %191 : vector<1x16x128xf32> to vector<16x128xf32>
    %c7_i32_80 = arith.constant 7 : i32
    %193 = arith.subi %c7_i32_80, %c4_i32 : i32
    %194 = arith.index_cast %193 : i32 to index
    %c0_81 = arith.constant 0 : index
    %c0_82 = arith.constant 0 : index
    %195 = vector.load %arg9[%194, %c0_81, %c0_82] : memref<8x16x128xf32, #tpu.memory_space<vmem>>, vector<1x16x128xf32>
    %196 = vector.shape_cast %195 : vector<1x16x128xf32> to vector<16x128xf32>
    %197 = tpu.concatenate %192, %196 in 0 : vector<16x128xf32>, vector<16x128xf32> -> vector<32x128xf32>
    %198 = arith.truncf %189 : vector<32x64xf32> to vector<32x64xbf16>
    %cst_83 = arith.constant dense<0.000000e+00> : vector<32x128xf32>
    %199 = tpu.matmul %198, %16, %cst_83 {dimension_numbers = #tpu.dot_dimension_numbers<[1], [0], [0], [1], [0, 0, 1, 1], [], []>} : vector<32x64xbf16>, vector<64x128xbf16>, vector<32x128xf32> -> vector<32x128xf32>
    %200 = arith.addf %197, %199 : vector<32x128xf32>
    %201 = vector.extract_strided_slice %200 {offsets = [0, 0], sizes = [32, 96], strides = [1, 1]} : vector<32x128xf32> to vector<32x96xf32>
    %202 = arith.negf %201 : vector<32x96xf32>
    %203 = math.exp %202 : vector<32x96xf32>
    %cst_84 = arith.constant 1.000000e+00 : f32
    %204 = vector.broadcast %cst_84 : f32 to vector<32x96xf32>
    %205 = arith.addf %204, %203 : vector<32x96xf32>
    %206 = arith.divf %204, %205 : vector<32x96xf32>
    %207 = vector.extract_strided_slice %200 {offsets = [0, 96], sizes = [32, 32], strides = [1, 1]} : vector<32x128xf32> to vector<32x32xf32>
    %208 = math.tanh %207 : vector<32x32xf32>
    %209 = vector.extract_strided_slice %206 {offsets = [0, 0], sizes = [32, 32], strides = [1, 1]} : vector<32x96xf32> to vector<32x32xf32>
    %210 = vector.extract_strided_slice %206 {offsets = [0, 32], sizes = [32, 32], strides = [1, 1]} : vector<32x96xf32> to vector<32x32xf32>
    %211 = vector.extract_strided_slice %206 {offsets = [0, 64], sizes = [32, 32], strides = [1, 1]} : vector<32x96xf32> to vector<32x32xf32>
    %212 = arith.mulf %210, %174 : vector<32x32xf32>
    %213 = arith.mulf %209, %208 : vector<32x32xf32>
    %214 = arith.addf %212, %213 : vector<32x32xf32>
    %215 = math.tanh %214 : vector<32x32xf32>
    %216 = arith.mulf %211, %215 : vector<32x32xf32>
    %217 = vector.extract_strided_slice %216 {offsets = [0, 0], sizes = [16, 32], strides = [1, 1]} : vector<32x32xf32> to vector<16x32xf32>
    %218 = arith.index_cast %c4_i32 : i32 to index
    %c0_85 = arith.constant 0 : index
    %c0_86 = arith.constant 0 : index
    %c0_87 = arith.constant 0 : index
    %219 = vector.load %arg7[%218, %c0_85, %c0_86, %c0_87] : memref<8x2x16x32xf32, #tpu.memory_space<vmem>>, vector<1x1x16x32xf32>
    %220 = vector.shape_cast %219 : vector<1x1x16x32xf32> to vector<16x32xf32>
    %221 = vector.shape_cast %217 : vector<16x32xf32> to vector<1x1x16x32xf32>
    tpu.vector_store %arg7[%218, %c0_85, %c0_86, %c0_87], %221 {strides = array<i32>} : memref<8x2x16x32xf32, #tpu.memory_space<vmem>>, vector<1x1x16x32xf32>,
    %222 = vector.extract_strided_slice %216 {offsets = [16, 0], sizes = [16, 32], strides = [1, 1]} : vector<32x32xf32> to vector<16x32xf32>
    %c7_i32_88 = arith.constant 7 : i32
    %223 = arith.subi %c7_i32_88, %c4_i32 : i32
    %224 = arith.index_cast %223 : i32 to index
    %c1_89 = arith.constant 1 : index
    %c0_90 = arith.constant 0 : index
    %c0_91 = arith.constant 0 : index
    %225 = vector.load %arg7[%224, %c1_89, %c0_90, %c0_91] : memref<8x2x16x32xf32, #tpu.memory_space<vmem>>, vector<1x1x16x32xf32>
    %226 = vector.shape_cast %225 : vector<1x1x16x32xf32> to vector<16x32xf32>
    %227 = vector.shape_cast %222 : vector<16x32xf32> to vector<1x1x16x32xf32>
    tpu.vector_store %arg7[%224, %c1_89, %c0_90, %c0_91], %227 {strides = array<i32>} : memref<8x2x16x32xf32, #tpu.memory_space<vmem>>, vector<1x1x16x32xf32>,
    %228 = tpu.concatenate %216, %216 in 1 : vector<32x32xf32>, vector<32x32xf32> -> vector<32x64xf32>
    %229 = arith.mulf %228, %27 : vector<32x64xf32>
    %c5_i32 = arith.constant 5 : i32
    %230 = arith.index_cast %c5_i32 : i32 to index
    %c0_92 = arith.constant 0 : index
    %c0_93 = arith.constant 0 : index
    %231 = vector.load %arg8[%230, %c0_92, %c0_93] : memref<8x16x128xf32, #tpu.memory_space<vmem>>, vector<1x16x128xf32>
    %232 = vector.shape_cast %231 : vector<1x16x128xf32> to vector<16x128xf32>
    %c7_i32_94 = arith.constant 7 : i32
    %233 = arith.subi %c7_i32_94, %c5_i32 : i32
    %234 = arith.index_cast %233 : i32 to index
    %c0_95 = arith.constant 0 : index
    %c0_96 = arith.constant 0 : index
    %235 = vector.load %arg9[%234, %c0_95, %c0_96] : memref<8x16x128xf32, #tpu.memory_space<vmem>>, vector<1x16x128xf32>
    %236 = vector.shape_cast %235 : vector<1x16x128xf32> to vector<16x128xf32>
    %237 = tpu.concatenate %232, %236 in 0 : vector<16x128xf32>, vector<16x128xf32> -> vector<32x128xf32>
    %238 = arith.truncf %229 : vector<32x64xf32> to vector<32x64xbf16>
    %cst_97 = arith.constant dense<0.000000e+00> : vector<32x128xf32>
    %239 = tpu.matmul %238, %16, %cst_97 {dimension_numbers = #tpu.dot_dimension_numbers<[1], [0], [0], [1], [0, 0, 1, 1], [], []>} : vector<32x64xbf16>, vector<64x128xbf16>, vector<32x128xf32> -> vector<32x128xf32>
    %240 = arith.addf %237, %239 : vector<32x128xf32>
    %241 = vector.extract_strided_slice %240 {offsets = [0, 0], sizes = [32, 96], strides = [1, 1]} : vector<32x128xf32> to vector<32x96xf32>
    %242 = arith.negf %241 : vector<32x96xf32>
    %243 = math.exp %242 : vector<32x96xf32>
    %cst_98 = arith.constant 1.000000e+00 : f32
    %244 = vector.broadcast %cst_98 : f32 to vector<32x96xf32>
    %245 = arith.addf %244, %243 : vector<32x96xf32>
    %246 = arith.divf %244, %245 : vector<32x96xf32>
    %247 = vector.extract_strided_slice %240 {offsets = [0, 96], sizes = [32, 32], strides = [1, 1]} : vector<32x128xf32> to vector<32x32xf32>
    %248 = math.tanh %247 : vector<32x32xf32>
    %249 = vector.extract_strided_slice %246 {offsets = [0, 0], sizes = [32, 32], strides = [1, 1]} : vector<32x96xf32> to vector<32x32xf32>
    %250 = vector.extract_strided_slice %246 {offsets = [0, 32], sizes = [32, 32], strides = [1, 1]} : vector<32x96xf32> to vector<32x32xf32>
    %251 = vector.extract_strided_slice %246 {offsets = [0, 64], sizes = [32, 32], strides = [1, 1]} : vector<32x96xf32> to vector<32x32xf32>
    %252 = arith.mulf %250, %214 : vector<32x32xf32>
    %253 = arith.mulf %249, %248 : vector<32x32xf32>
    %254 = arith.addf %252, %253 : vector<32x32xf32>
    %255 = math.tanh %254 : vector<32x32xf32>
    %256 = arith.mulf %251, %255 : vector<32x32xf32>
    %257 = vector.extract_strided_slice %256 {offsets = [0, 0], sizes = [16, 32], strides = [1, 1]} : vector<32x32xf32> to vector<16x32xf32>
    %258 = arith.index_cast %c5_i32 : i32 to index
    %c0_99 = arith.constant 0 : index
    %c0_100 = arith.constant 0 : index
    %c0_101 = arith.constant 0 : index
    %259 = vector.load %arg7[%258, %c0_99, %c0_100, %c0_101] : memref<8x2x16x32xf32, #tpu.memory_space<vmem>>, vector<1x1x16x32xf32>
    %260 = vector.shape_cast %259 : vector<1x1x16x32xf32> to vector<16x32xf32>
    %261 = vector.shape_cast %257 : vector<16x32xf32> to vector<1x1x16x32xf32>
    tpu.vector_store %arg7[%258, %c0_99, %c0_100, %c0_101], %261 {strides = array<i32>} : memref<8x2x16x32xf32, #tpu.memory_space<vmem>>, vector<1x1x16x32xf32>,
    %262 = vector.extract_strided_slice %256 {offsets = [16, 0], sizes = [16, 32], strides = [1, 1]} : vector<32x32xf32> to vector<16x32xf32>
    %c7_i32_102 = arith.constant 7 : i32
    %263 = arith.subi %c7_i32_102, %c5_i32 : i32
    %264 = arith.index_cast %263 : i32 to index
    %c1_103 = arith.constant 1 : index
    %c0_104 = arith.constant 0 : index
    %c0_105 = arith.constant 0 : index
    %265 = vector.load %arg7[%264, %c1_103, %c0_104, %c0_105] : memref<8x2x16x32xf32, #tpu.memory_space<vmem>>, vector<1x1x16x32xf32>
    %266 = vector.shape_cast %265 : vector<1x1x16x32xf32> to vector<16x32xf32>
    %267 = vector.shape_cast %262 : vector<16x32xf32> to vector<1x1x16x32xf32>
    tpu.vector_store %arg7[%264, %c1_103, %c0_104, %c0_105], %267 {strides = array<i32>} : memref<8x2x16x32xf32, #tpu.memory_space<vmem>>, vector<1x1x16x32xf32>,
    %268 = tpu.concatenate %256, %256 in 1 : vector<32x32xf32>, vector<32x32xf32> -> vector<32x64xf32>
    %269 = arith.mulf %268, %27 : vector<32x64xf32>
    %c6_i32 = arith.constant 6 : i32
    %270 = arith.index_cast %c6_i32 : i32 to index
    %c0_106 = arith.constant 0 : index
    %c0_107 = arith.constant 0 : index
    %271 = vector.load %arg8[%270, %c0_106, %c0_107] : memref<8x16x128xf32, #tpu.memory_space<vmem>>, vector<1x16x128xf32>
    %272 = vector.shape_cast %271 : vector<1x16x128xf32> to vector<16x128xf32>
    %c7_i32_108 = arith.constant 7 : i32
    %273 = arith.subi %c7_i32_108, %c6_i32 : i32
    %274 = arith.index_cast %273 : i32 to index
    %c0_109 = arith.constant 0 : index
    %c0_110 = arith.constant 0 : index
    %275 = vector.load %arg9[%274, %c0_109, %c0_110] : memref<8x16x128xf32, #tpu.memory_space<vmem>>, vector<1x16x128xf32>
    %276 = vector.shape_cast %275 : vector<1x16x128xf32> to vector<16x128xf32>
    %277 = tpu.concatenate %272, %276 in 0 : vector<16x128xf32>, vector<16x128xf32> -> vector<32x128xf32>
    %278 = arith.truncf %269 : vector<32x64xf32> to vector<32x64xbf16>
    %cst_111 = arith.constant dense<0.000000e+00> : vector<32x128xf32>
    %279 = tpu.matmul %278, %16, %cst_111 {dimension_numbers = #tpu.dot_dimension_numbers<[1], [0], [0], [1], [0, 0, 1, 1], [], []>} : vector<32x64xbf16>, vector<64x128xbf16>, vector<32x128xf32> -> vector<32x128xf32>
    %280 = arith.addf %277, %279 : vector<32x128xf32>
    %281 = vector.extract_strided_slice %280 {offsets = [0, 0], sizes = [32, 96], strides = [1, 1]} : vector<32x128xf32> to vector<32x96xf32>
    %282 = arith.negf %281 : vector<32x96xf32>
    %283 = math.exp %282 : vector<32x96xf32>
    %cst_112 = arith.constant 1.000000e+00 : f32
    %284 = vector.broadcast %cst_112 : f32 to vector<32x96xf32>
    %285 = arith.addf %284, %283 : vector<32x96xf32>
    %286 = arith.divf %284, %285 : vector<32x96xf32>
    %287 = vector.extract_strided_slice %280 {offsets = [0, 96], sizes = [32, 32], strides = [1, 1]} : vector<32x128xf32> to vector<32x32xf32>
    %288 = math.tanh %287 : vector<32x32xf32>
    %289 = vector.extract_strided_slice %286 {offsets = [0, 0], sizes = [32, 32], strides = [1, 1]} : vector<32x96xf32> to vector<32x32xf32>
    %290 = vector.extract_strided_slice %286 {offsets = [0, 32], sizes = [32, 32], strides = [1, 1]} : vector<32x96xf32> to vector<32x32xf32>
    %291 = vector.extract_strided_slice %286 {offsets = [0, 64], sizes = [32, 32], strides = [1, 1]} : vector<32x96xf32> to vector<32x32xf32>
    %292 = arith.mulf %290, %254 : vector<32x32xf32>
    %293 = arith.mulf %289, %288 : vector<32x32xf32>
    %294 = arith.addf %292, %293 : vector<32x32xf32>
    %295 = math.tanh %294 : vector<32x32xf32>
    %296 = arith.mulf %291, %295 : vector<32x32xf32>
    %297 = vector.extract_strided_slice %296 {offsets = [0, 0], sizes = [16, 32], strides = [1, 1]} : vector<32x32xf32> to vector<16x32xf32>
    %298 = arith.index_cast %c6_i32 : i32 to index
    %c0_113 = arith.constant 0 : index
    %c0_114 = arith.constant 0 : index
    %c0_115 = arith.constant 0 : index
    %299 = vector.load %arg7[%298, %c0_113, %c0_114, %c0_115] : memref<8x2x16x32xf32, #tpu.memory_space<vmem>>, vector<1x1x16x32xf32>
    %300 = vector.shape_cast %299 : vector<1x1x16x32xf32> to vector<16x32xf32>
    %301 = vector.shape_cast %297 : vector<16x32xf32> to vector<1x1x16x32xf32>
    tpu.vector_store %arg7[%298, %c0_113, %c0_114, %c0_115], %301 {strides = array<i32>} : memref<8x2x16x32xf32, #tpu.memory_space<vmem>>, vector<1x1x16x32xf32>,
    %302 = vector.extract_strided_slice %296 {offsets = [16, 0], sizes = [16, 32], strides = [1, 1]} : vector<32x32xf32> to vector<16x32xf32>
    %c7_i32_116 = arith.constant 7 : i32
    %303 = arith.subi %c7_i32_116, %c6_i32 : i32
    %304 = arith.index_cast %303 : i32 to index
    %c1_117 = arith.constant 1 : index
    %c0_118 = arith.constant 0 : index
    %c0_119 = arith.constant 0 : index
    %305 = vector.load %arg7[%304, %c1_117, %c0_118, %c0_119] : memref<8x2x16x32xf32, #tpu.memory_space<vmem>>, vector<1x1x16x32xf32>
    %306 = vector.shape_cast %305 : vector<1x1x16x32xf32> to vector<16x32xf32>
    %307 = vector.shape_cast %302 : vector<16x32xf32> to vector<1x1x16x32xf32>
    tpu.vector_store %arg7[%304, %c1_117, %c0_118, %c0_119], %307 {strides = array<i32>} : memref<8x2x16x32xf32, #tpu.memory_space<vmem>>, vector<1x1x16x32xf32>,
    %308 = tpu.concatenate %296, %296 in 1 : vector<32x32xf32>, vector<32x32xf32> -> vector<32x64xf32>
    %309 = arith.mulf %308, %27 : vector<32x64xf32>
    %c7_i32_120 = arith.constant 7 : i32
    %310 = arith.index_cast %c7_i32_120 : i32 to index
    %c0_121 = arith.constant 0 : index
    %c0_122 = arith.constant 0 : index
    %311 = vector.load %arg8[%310, %c0_121, %c0_122] : memref<8x16x128xf32, #tpu.memory_space<vmem>>, vector<1x16x128xf32>
    %312 = vector.shape_cast %311 : vector<1x16x128xf32> to vector<16x128xf32>
    %c7_i32_123 = arith.constant 7 : i32
    %313 = arith.subi %c7_i32_123, %c7_i32_120 : i32
    %314 = arith.index_cast %313 : i32 to index
    %c0_124 = arith.constant 0 : index
    %c0_125 = arith.constant 0 : index
    %315 = vector.load %arg9[%314, %c0_124, %c0_125] : memref<8x16x128xf32, #tpu.memory_space<vmem>>, vector<1x16x128xf32>
    %316 = vector.shape_cast %315 : vector<1x16x128xf32> to vector<16x128xf32>
    %317 = tpu.concatenate %312, %316 in 0 : vector<16x128xf32>, vector<16x128xf32> -> vector<32x128xf32>
    %318 = arith.truncf %309 : vector<32x64xf32> to vector<32x64xbf16>
    %cst_126 = arith.constant dense<0.000000e+00> : vector<32x128xf32>
    %319 = tpu.matmul %318, %16, %cst_126 {dimension_numbers = #tpu.dot_dimension_numbers<[1], [0], [0], [1], [0, 0, 1, 1], [], []>} : vector<32x64xbf16>, vector<64x128xbf16>, vector<32x128xf32> -> vector<32x128xf32>
    %320 = arith.addf %317, %319 : vector<32x128xf32>
    %321 = vector.extract_strided_slice %320 {offsets = [0, 0], sizes = [32, 96], strides = [1, 1]} : vector<32x128xf32> to vector<32x96xf32>
    %322 = arith.negf %321 : vector<32x96xf32>
    %323 = math.exp %322 : vector<32x96xf32>
    %cst_127 = arith.constant 1.000000e+00 : f32
    %324 = vector.broadcast %cst_127 : f32 to vector<32x96xf32>
    %325 = arith.addf %324, %323 : vector<32x96xf32>
    %326 = arith.divf %324, %325 : vector<32x96xf32>
    %327 = vector.extract_strided_slice %320 {offsets = [0, 96], sizes = [32, 32], strides = [1, 1]} : vector<32x128xf32> to vector<32x32xf32>
    %328 = math.tanh %327 : vector<32x32xf32>
    %329 = vector.extract_strided_slice %326 {offsets = [0, 0], sizes = [32, 32], strides = [1, 1]} : vector<32x96xf32> to vector<32x32xf32>
    %330 = vector.extract_strided_slice %326 {offsets = [0, 32], sizes = [32, 32], strides = [1, 1]} : vector<32x96xf32> to vector<32x32xf32>
    %331 = vector.extract_strided_slice %326 {offsets = [0, 64], sizes = [32, 32], strides = [1, 1]} : vector<32x96xf32> to vector<32x32xf32>
    %332 = arith.mulf %330, %294 : vector<32x32xf32>
    %333 = arith.mulf %329, %328 : vector<32x32xf32>
    %334 = arith.addf %332, %333 : vector<32x32xf32>
    %335 = math.tanh %334 : vector<32x32xf32>
    %336 = arith.mulf %331, %335 : vector<32x32xf32>
    %337 = vector.extract_strided_slice %336 {offsets = [0, 0], sizes = [16, 32], strides = [1, 1]} : vector<32x32xf32> to vector<16x32xf32>
    %338 = arith.index_cast %c7_i32_120 : i32 to index
    %c0_128 = arith.constant 0 : index
    %c0_129 = arith.constant 0 : index
    %c0_130 = arith.constant 0 : index
    %339 = vector.load %arg7[%338, %c0_128, %c0_129, %c0_130] : memref<8x2x16x32xf32, #tpu.memory_space<vmem>>, vector<1x1x16x32xf32>
    %340 = vector.shape_cast %339 : vector<1x1x16x32xf32> to vector<16x32xf32>
    %341 = vector.shape_cast %337 : vector<16x32xf32> to vector<1x1x16x32xf32>
    tpu.vector_store %arg7[%338, %c0_128, %c0_129, %c0_130], %341 {strides = array<i32>} : memref<8x2x16x32xf32, #tpu.memory_space<vmem>>, vector<1x1x16x32xf32>,
    %342 = vector.extract_strided_slice %336 {offsets = [16, 0], sizes = [16, 32], strides = [1, 1]} : vector<32x32xf32> to vector<16x32xf32>
    %c7_i32_131 = arith.constant 7 : i32
    %343 = arith.subi %c7_i32_131, %c7_i32_120 : i32
    %344 = arith.index_cast %343 : i32 to index
    %c1_132 = arith.constant 1 : index
    %c0_133 = arith.constant 0 : index
    %c0_134 = arith.constant 0 : index
    %345 = vector.load %arg7[%344, %c1_132, %c0_133, %c0_134] : memref<8x2x16x32xf32, #tpu.memory_space<vmem>>, vector<1x1x16x32xf32>
    %346 = vector.shape_cast %345 : vector<1x1x16x32xf32> to vector<16x32xf32>
    %347 = vector.shape_cast %342 : vector<16x32xf32> to vector<1x1x16x32xf32>
    tpu.vector_store %arg7[%344, %c1_132, %c0_133, %c0_134], %347 {strides = array<i32>} : memref<8x2x16x32xf32, #tpu.memory_space<vmem>>, vector<1x1x16x32xf32>,
    %348 = tpu.concatenate %336, %336 in 1 : vector<32x32xf32>, vector<32x32xf32> -> vector<32x64xf32>
    %349 = arith.mulf %348, %27 : vector<32x64xf32>
    %c8_i32 = arith.constant 8 : i32
    return
  }
  func.func @transform_0(%arg0: i32) -> (i32, i32, i32) {
    %c0_i32 = arith.constant 0 : i32
    %c0_i32_0 = arith.constant 0 : i32
    %c0_i32_1 = arith.constant 0 : i32
    return %c0_i32, %arg0, %c0_i32_0 : i32, i32, i32
  }
  func.func @transform_1(%arg0: i32) -> (i32, i32) {
    %c0_i32 = arith.constant 0 : i32
    %c0_i32_0 = arith.constant 0 : i32
    %c0_i32_1 = arith.constant 0 : i32
    return %c0_i32, %c0_i32_0 : i32, i32
  }
  func.func @transform_2(%arg0: i32) -> (i32, i32) {
    %c0_i32 = arith.constant 0 : i32
    %c0_i32_0 = arith.constant 0 : i32
    %c0_i32_1 = arith.constant 0 : i32
    return %c0_i32, %c0_i32_0 : i32, i32
  }
  func.func @transform_3(%arg0: i32) -> (i32, i32) {
    %c0_i32 = arith.constant 0 : i32
    %c0_i32_0 = arith.constant 0 : i32
    %c0_i32_1 = arith.constant 0 : i32
    return %c0_i32, %c0_i32_0 : i32, i32
  }
  func.func @transform_4(%arg0: i32) -> (i32, i32) {
    %c0_i32 = arith.constant 0 : i32
    %c0_i32_0 = arith.constant 0 : i32
    %c0_i32_1 = arith.constant 0 : i32
    return %c0_i32, %c0_i32_0 : i32, i32
  }
  func.func @transform_5(%arg0: i32) -> (i32, i32) {
    %c0_i32 = arith.constant 0 : i32
    %c0_i32_0 = arith.constant 0 : i32
    %c0_i32_1 = arith.constant 0 : i32
    return %c0_i32, %c0_i32_0 : i32, i32
  }
  func.func @transform_6(%arg0: i32) -> (i32, i32, i32, i32) {
    %c0_i32 = arith.constant 0 : i32
    %c0_i32_0 = arith.constant 0 : i32
    %c0_i32_1 = arith.constant 0 : i32
    %c0_i32_2 = arith.constant 0 : i32
    return %c0_i32, %c0_i32_0, %arg0, %c0_i32_1 : i32, i32, i32, i32
  }
}

module attributes {stable_mosaic.version = 11 : i64} {
  func.func @attn_head_kernel(%arg0: i32, %arg1: memref<8x2x8x64xf32, #tpu.memory_space<vmem>>, %arg2: memref<64x64xbf16, #tpu.memory_space<vmem>>, %arg3: memref<1x64xf32, #tpu.memory_space<vmem>>, %arg4: memref<64x64xbf16, #tpu.memory_space<vmem>>, %arg5: memref<1x64xf32, #tpu.memory_space<vmem>>, %arg6: memref<256x32xbf16, #tpu.memory_space<vmem>>, %arg7: memref<1x32xf32, #tpu.memory_space<vmem>>, %arg8: memref<32x32xbf16, #tpu.memory_space<vmem>>, %arg9: memref<1x32xf32, #tpu.memory_space<vmem>>, %arg10: memref<32x2xbf16, #tpu.memory_space<vmem>>, %arg11: memref<1x2xf32, #tpu.memory_space<vmem>>, %arg12: memref<8x1x2xf32, #tpu.memory_space<vmem>>) attributes {dimension_semantics = [#tpu.dimension_semantics<parallel>], iteration_bounds = array<i64: 2>, scalar_prefetch = 0 : i64, scratch_operands = 0 : i64, tpu.core_type = #tpu.core_type<tc>, window_params = [{transform_indices = @transform_0, window_bounds = array<i64: 8, 2, 8, 64>}, {pipeline_mode = #tpu.pipeline_mode<synchronous>, transform_indices = @transform_1, window_bounds = array<i64: 64, 64>}, {pipeline_mode = #tpu.pipeline_mode<synchronous>, transform_indices = @transform_2, window_bounds = array<i64: 1, 64>}, {pipeline_mode = #tpu.pipeline_mode<synchronous>, transform_indices = @transform_3, window_bounds = array<i64: 64, 64>}, {pipeline_mode = #tpu.pipeline_mode<synchronous>, transform_indices = @transform_4, window_bounds = array<i64: 1, 64>}, {pipeline_mode = #tpu.pipeline_mode<synchronous>, transform_indices = @transform_5, window_bounds = array<i64: 256, 32>}, {pipeline_mode = #tpu.pipeline_mode<synchronous>, transform_indices = @transform_6, window_bounds = array<i64: 1, 32>}, {pipeline_mode = #tpu.pipeline_mode<synchronous>, transform_indices = @transform_7, window_bounds = array<i64: 32, 32>}, {pipeline_mode = #tpu.pipeline_mode<synchronous>, transform_indices = @transform_8, window_bounds = array<i64: 1, 32>}, {pipeline_mode = #tpu.pipeline_mode<synchronous>, transform_indices = @transform_9, window_bounds = array<i64: 32, 2>}, {pipeline_mode = #tpu.pipeline_mode<synchronous>, transform_indices = @transform_10, window_bounds = array<i64: 1, 2>}, {transform_indices = @transform_11, window_bounds = array<i64: 8, 1, 2>}]} {
    %c0 = arith.constant 0 : index
    %c0_0 = arith.constant 0 : index
    %c0_1 = arith.constant 0 : index
    %c0_2 = arith.constant 0 : index
    %0 = vector.load %arg1[%c0, %c0_0, %c0_1, %c0_2] : memref<8x2x8x64xf32, #tpu.memory_space<vmem>>, vector<8x2x8x64xf32>
    %1 = vector.shape_cast %0 : vector<8x2x8x64xf32> to vector<128x64xf32>
    %2 = arith.truncf %1 : vector<128x64xf32> to vector<128x64xbf16>
    %c0_3 = arith.constant 0 : index
    %c0_4 = arith.constant 0 : index
    %3 = vector.load %arg2[%c0_3, %c0_4] : memref<64x64xbf16, #tpu.memory_space<vmem>>, vector<64x64xbf16>
    %cst = arith.constant dense<0.000000e+00> : vector<128x64xf32>
    %4 = tpu.matmul %2, %3, %cst {dimension_numbers = #tpu.dot_dimension_numbers<[1], [0], [0], [1], [0, 0, 1, 1], [], []>} : vector<128x64xbf16>, vector<64x64xbf16>, vector<128x64xf32> -> vector<128x64xf32>
    %c0_5 = arith.constant 0 : index
    %c0_6 = arith.constant 0 : index
    %5 = vector.load %arg3[%c0_5, %c0_6] : memref<1x64xf32, #tpu.memory_space<vmem>>, vector<1x64xf32>
    %6 = vector.broadcast %5 : vector<1x64xf32> to vector<128x64xf32>
    %7 = arith.addf %4, %6 : vector<128x64xf32>
    %cst_7 = arith.constant 0.000000e+00 : f32
    %8 = vector.broadcast %cst_7 : f32 to vector<128x64xf32>
    %9 = arith.maximumf %7, %8 : vector<128x64xf32>
    %10 = arith.truncf %9 : vector<128x64xf32> to vector<128x64xbf16>
    %c0_8 = arith.constant 0 : index
    %c0_9 = arith.constant 0 : index
    %11 = vector.load %arg4[%c0_8, %c0_9] : memref<64x64xbf16, #tpu.memory_space<vmem>>, vector<64x64xbf16>
    %cst_10 = arith.constant dense<0.000000e+00> : vector<128x64xf32>
    %12 = tpu.matmul %10, %11, %cst_10 {dimension_numbers = #tpu.dot_dimension_numbers<[1], [0], [0], [1], [0, 0, 1, 1], [], []>} : vector<128x64xbf16>, vector<64x64xbf16>, vector<128x64xf32> -> vector<128x64xf32>
    %c0_11 = arith.constant 0 : index
    %c0_12 = arith.constant 0 : index
    %13 = vector.load %arg5[%c0_11, %c0_12] : memref<1x64xf32, #tpu.memory_space<vmem>>, vector<1x64xf32>
    %14 = vector.broadcast %13 : vector<1x64xf32> to vector<128x64xf32>
    %15 = arith.addf %12, %14 : vector<128x64xf32>
    %16 = vector.shape_cast %15 : vector<128x64xf32> to vector<8x2x8x64xf32>
    %cst_13 = arith.constant dense<0xFF800000> : vector<8x2x64xf32>
    %17 = vector.multi_reduction <maximumf>, %16, %cst_13 [2] : vector<8x2x8x64xf32> to vector<8x2x64xf32>
    %18 = vector.shape_cast %17 : vector<8x2x64xf32> to vector<8x2x1x64xf32>
    %19 = vector.broadcast %18 : vector<8x2x1x64xf32> to vector<8x2x8x64xf32>
    %20 = arith.subf %16, %19 : vector<8x2x8x64xf32>
    %21 = math.exp %20 : vector<8x2x8x64xf32>
    %cst_14 = arith.constant dense<0.000000e+00> : vector<8x2x64xf32>
    %22 = vector.multi_reduction <add>, %21, %cst_14 [2] : vector<8x2x8x64xf32> to vector<8x2x64xf32>
    %23 = vector.shape_cast %22 : vector<8x2x64xf32> to vector<8x2x1x64xf32>
    %24 = tpu.reciprocal %23 {approx = true} : vector<8x2x1x64xf32> -> vector<8x2x1x64xf32>
    %25 = vector.broadcast %24 : vector<8x2x1x64xf32> to vector<8x2x8x64xf32>
    %26 = arith.mulf %21, %25 : vector<8x2x8x64xf32>
    %27 = arith.mulf %0, %26 : vector<8x2x8x64xf32>
    %cst_15 = arith.constant dense<0.000000e+00> : vector<8x2x64xf32>
    %28 = vector.multi_reduction <add>, %27, %cst_15 [2] : vector<8x2x8x64xf32> to vector<8x2x64xf32>
    %cst_16 = arith.constant 8.000000e+00 : f32
    %29 = vector.broadcast %cst_16 : f32 to vector<8x2x64xf32>
    %30 = arith.divf %28, %29 : vector<8x2x64xf32>
    %cst_17 = arith.constant dense<0xFF800000> : vector<8x2x64xf32>
    %31 = vector.multi_reduction <maximumf>, %27, %cst_17 [2] : vector<8x2x8x64xf32> to vector<8x2x64xf32>
    %32 = vector.extract_strided_slice %30 {offsets = [0, 0, 0], sizes = [8, 1, 64], strides = [1, 1, 1]} : vector<8x2x64xf32> to vector<8x1x64xf32>
    %33 = vector.shape_cast %32 : vector<8x1x64xf32> to vector<8x64xf32>
    %34 = vector.extract_strided_slice %31 {offsets = [0, 0, 0], sizes = [8, 1, 64], strides = [1, 1, 1]} : vector<8x2x64xf32> to vector<8x1x64xf32>
    %35 = vector.shape_cast %34 : vector<8x1x64xf32> to vector<8x64xf32>
    %36 = vector.extract_strided_slice %30 {offsets = [0, 1, 0], sizes = [8, 1, 64], strides = [1, 1, 1]} : vector<8x2x64xf32> to vector<8x1x64xf32>
    %37 = vector.shape_cast %36 : vector<8x1x64xf32> to vector<8x64xf32>
    %38 = vector.extract_strided_slice %31 {offsets = [0, 1, 0], sizes = [8, 1, 64], strides = [1, 1, 1]} : vector<8x2x64xf32> to vector<8x1x64xf32>
    %39 = vector.shape_cast %38 : vector<8x1x64xf32> to vector<8x64xf32>
    %40 = tpu.concatenate %33, %35, %37, %39 in 1 : vector<8x64xf32>, vector<8x64xf32>, vector<8x64xf32>, vector<8x64xf32> -> vector<8x256xf32>
    %41 = arith.truncf %40 : vector<8x256xf32> to vector<8x256xbf16>
    %c0_18 = arith.constant 0 : index
    %c0_19 = arith.constant 0 : index
    %42 = vector.load %arg6[%c0_18, %c0_19] : memref<256x32xbf16, #tpu.memory_space<vmem>>, vector<256x32xbf16>
    %cst_20 = arith.constant dense<0.000000e+00> : vector<8x32xf32>
    %43 = tpu.matmul %41, %42, %cst_20 {dimension_numbers = #tpu.dot_dimension_numbers<[1], [0], [0], [1], [0, 0, 1, 1], [], []>} : vector<8x256xbf16>, vector<256x32xbf16>, vector<8x32xf32> -> vector<8x32xf32>
    %c0_21 = arith.constant 0 : index
    %c0_22 = arith.constant 0 : index
    %44 = vector.load %arg7[%c0_21, %c0_22] : memref<1x32xf32, #tpu.memory_space<vmem>>, vector<1x32xf32>
    %45 = vector.broadcast %44 : vector<1x32xf32> to vector<8x32xf32>
    %46 = arith.addf %43, %45 : vector<8x32xf32>
    %cst_23 = arith.constant 0.000000e+00 : f32
    %47 = vector.broadcast %cst_23 : f32 to vector<8x32xf32>
    %48 = arith.cmpf ogt, %46, %47 : vector<8x32xf32>
    %49 = math.exp %46 : vector<8x32xf32>
    %cst_24 = arith.constant 1.000000e+00 : f32
    %50 = vector.broadcast %cst_24 : f32 to vector<8x32xf32>
    %51 = arith.subf %49, %50 : vector<8x32xf32>
    %52 = arith.select %48, %46, %51 : vector<8x32xi1>, vector<8x32xf32>
    %53 = arith.truncf %52 : vector<8x32xf32> to vector<8x32xbf16>
    %c0_25 = arith.constant 0 : index
    %c0_26 = arith.constant 0 : index
    %54 = vector.load %arg8[%c0_25, %c0_26] : memref<32x32xbf16, #tpu.memory_space<vmem>>, vector<32x32xbf16>
    %cst_27 = arith.constant dense<0.000000e+00> : vector<8x32xf32>
    %55 = tpu.matmul %53, %54, %cst_27 {dimension_numbers = #tpu.dot_dimension_numbers<[1], [0], [0], [1], [0, 0, 1, 1], [], []>} : vector<8x32xbf16>, vector<32x32xbf16>, vector<8x32xf32> -> vector<8x32xf32>
    %c0_28 = arith.constant 0 : index
    %c0_29 = arith.constant 0 : index
    %56 = vector.load %arg9[%c0_28, %c0_29] : memref<1x32xf32, #tpu.memory_space<vmem>>, vector<1x32xf32>
    %57 = vector.broadcast %56 : vector<1x32xf32> to vector<8x32xf32>
    %58 = arith.addf %55, %57 : vector<8x32xf32>
    %cst_30 = arith.constant 0.000000e+00 : f32
    %59 = vector.broadcast %cst_30 : f32 to vector<8x32xf32>
    %60 = arith.cmpf ogt, %58, %59 : vector<8x32xf32>
    %61 = math.exp %58 : vector<8x32xf32>
    %cst_31 = arith.constant 1.000000e+00 : f32
    %62 = vector.broadcast %cst_31 : f32 to vector<8x32xf32>
    %63 = arith.subf %61, %62 : vector<8x32xf32>
    %64 = arith.select %60, %58, %63 : vector<8x32xi1>, vector<8x32xf32>
    %65 = arith.truncf %64 : vector<8x32xf32> to vector<8x32xbf16>
    %c0_32 = arith.constant 0 : index
    %c0_33 = arith.constant 0 : index
    %66 = vector.load %arg10[%c0_32, %c0_33] : memref<32x2xbf16, #tpu.memory_space<vmem>>, vector<32x2xbf16>
    %cst_34 = arith.constant dense<0.000000e+00> : vector<8x2xf32>
    %67 = tpu.matmul %65, %66, %cst_34 {dimension_numbers = #tpu.dot_dimension_numbers<[1], [0], [0], [1], [0, 0, 1, 1], [], []>} : vector<8x32xbf16>, vector<32x2xbf16>, vector<8x2xf32> -> vector<8x2xf32>
    %c0_35 = arith.constant 0 : index
    %c0_36 = arith.constant 0 : index
    %68 = vector.load %arg11[%c0_35, %c0_36] : memref<1x2xf32, #tpu.memory_space<vmem>>, vector<1x2xf32>
    %69 = vector.broadcast %68 : vector<1x2xf32> to vector<8x2xf32>
    %70 = arith.addf %67, %69 : vector<8x2xf32>
    %c0_37 = arith.constant 0 : index
    %c0_38 = arith.constant 0 : index
    %c0_39 = arith.constant 0 : index
    %71 = vector.load %arg12[%c0_37, %c0_38, %c0_39] : memref<8x1x2xf32, #tpu.memory_space<vmem>>, vector<8x1x2xf32>
    %72 = vector.shape_cast %71 : vector<8x1x2xf32> to vector<8x2xf32>
    %73 = vector.shape_cast %70 : vector<8x2xf32> to vector<8x1x2xf32>
    tpu.vector_store %arg12[%c0_37, %c0_38, %c0_39], %73 {strides = array<i32>} : memref<8x1x2xf32, #tpu.memory_space<vmem>>, vector<8x1x2xf32>,
    return
  }
  func.func @transform_0(%arg0: i32) -> (i32, i32, i32, i32) {
    %c0_i32 = arith.constant 0 : i32
    %c0_i32_0 = arith.constant 0 : i32
    %c0_i32_1 = arith.constant 0 : i32
    %c0_i32_2 = arith.constant 0 : i32
    return %arg0, %c0_i32, %c0_i32_0, %c0_i32_1 : i32, i32, i32, i32
  }
  func.func @transform_1(%arg0: i32) -> (i32, i32) {
    %c0_i32 = arith.constant 0 : i32
    %c0_i32_0 = arith.constant 0 : i32
    %c0_i32_1 = arith.constant 0 : i32
    return %c0_i32, %c0_i32_0 : i32, i32
  }
  func.func @transform_2(%arg0: i32) -> (i32, i32) {
    %c0_i32 = arith.constant 0 : i32
    %c0_i32_0 = arith.constant 0 : i32
    %c0_i32_1 = arith.constant 0 : i32
    return %c0_i32, %c0_i32_0 : i32, i32
  }
  func.func @transform_3(%arg0: i32) -> (i32, i32) {
    %c0_i32 = arith.constant 0 : i32
    %c0_i32_0 = arith.constant 0 : i32
    %c0_i32_1 = arith.constant 0 : i32
    return %c0_i32, %c0_i32_0 : i32, i32
  }
  func.func @transform_4(%arg0: i32) -> (i32, i32) {
    %c0_i32 = arith.constant 0 : i32
    %c0_i32_0 = arith.constant 0 : i32
    %c0_i32_1 = arith.constant 0 : i32
    return %c0_i32, %c0_i32_0 : i32, i32
  }
  func.func @transform_5(%arg0: i32) -> (i32, i32) {
    %c0_i32 = arith.constant 0 : i32
    %c0_i32_0 = arith.constant 0 : i32
    %c0_i32_1 = arith.constant 0 : i32
    return %c0_i32, %c0_i32_0 : i32, i32
  }
  func.func @transform_6(%arg0: i32) -> (i32, i32) {
    %c0_i32 = arith.constant 0 : i32
    %c0_i32_0 = arith.constant 0 : i32
    %c0_i32_1 = arith.constant 0 : i32
    return %c0_i32, %c0_i32_0 : i32, i32
  }
  func.func @transform_7(%arg0: i32) -> (i32, i32) {
    %c0_i32 = arith.constant 0 : i32
    %c0_i32_0 = arith.constant 0 : i32
    %c0_i32_1 = arith.constant 0 : i32
    return %c0_i32, %c0_i32_0 : i32, i32
  }
  func.func @transform_8(%arg0: i32) -> (i32, i32) {
    %c0_i32 = arith.constant 0 : i32
    %c0_i32_0 = arith.constant 0 : i32
    %c0_i32_1 = arith.constant 0 : i32
    return %c0_i32, %c0_i32_0 : i32, i32
  }
  func.func @transform_9(%arg0: i32) -> (i32, i32) {
    %c0_i32 = arith.constant 0 : i32
    %c0_i32_0 = arith.constant 0 : i32
    %c0_i32_1 = arith.constant 0 : i32
    return %c0_i32, %c0_i32_0 : i32, i32
  }
  func.func @transform_10(%arg0: i32) -> (i32, i32) {
    %c0_i32 = arith.constant 0 : i32
    %c0_i32_0 = arith.constant 0 : i32
    %c0_i32_1 = arith.constant 0 : i32
    return %c0_i32, %c0_i32_0 : i32, i32
  }
  func.func @transform_11(%arg0: i32) -> (i32, i32, i32) {
    %c0_i32 = arith.constant 0 : i32
    %c0_i32_0 = arith.constant 0 : i32
    %c0_i32_1 = arith.constant 0 : i32
    return %arg0, %c0_i32, %c0_i32_0 : i32, i32, i32
  }
}

</mosaic_0001>

<llo_original>
// kernel: esim_forward.5
$region0: #{esim_forward.5}
  #allocation0 [shape = 'u32[]', space=smem, size = 0x4, offset = 0x4, fixed_abs, tag = 'smem constant byte address 0x4 - core index']
  #allocation1 [shape = 'u32[72,128]{1,0:T(1,128)}', space=vmem, size = 0x9000, scoped, tag = 'internal scratch']
  %s0 = inlined_call_operand.vmem [shape: f32[16,2,8,64], index: 0, kind: input, shape index: {}]
  %s1 = inlined_call_operand.vmem [shape: f32[16,2,8], index: 1, kind: input, shape index: {}]
  %s2 = inlined_call_operand.vmem [shape: bf16[16,2,8,256], index: 2, kind: output, shape index: {}]
  %s3 = sld [smem:[#allocation0]]
  $region41: #{esim_forward.5} parent=0
    _
  %s5 = ssub.s32 1, %s3
  %s6 = scalar_select 0, %s5, %s3
  loop: start=0, step=1, limit=4
  $region2: #{esim_forward.5} parent=0 // loop_pre_header
    _
  $region3: #{esim_forward.5} parent=0 // loop_header
    %s8 = sphi 0, %s12
    %p9 = scmp.ge.s32.totalorder %s8, 4
    %s18 = sphi 0, %s20
    %s21 = sphi 0, %s18
    %s22 = sphi 0, %s21
    %s38 = sphi 0, %s22
    %s44 = sphi 0, %s46
    %s47 = sphi 0, %s44
    %s48 = sphi 0, %s47
    %s64 = sphi 0, %s48
    %s70 = sphi 0, %s72
    %s73 = sphi 0, %s70
    %s74 = sphi 0, %s73
    %s90 = sphi 0, %s74
  $region4: #{esim_forward.5} parent=0 // loop_header_branch
    %11 = sbr.rel (%p9) target = $region8
  $region5: #{esim_forward.5} parent=0 // loop_body
    %s13 = ssub.s32 %s8, 1
    %s14 = ssub.s32 %s8, 2
    %s15 = sadd.s32 %s8, 1
    %s16 = ssub.s32 %s8, %s15
    %p17 = scmp.eq.s32.totalorder %s16, 0
    %s19 = sadd.s32 %s18, 1
    %s20 = scalar_select %p17, %s18, %s19
    %p23 = pneg %p17
    %p24 = scmp.eq.s32.totalorder %s8, 1
    %p25 = por %p23, %p24
    %p26 = scmp.ne.s32.totalorder %s18, %s21
    %p27 = scmp.eq.s32.totalorder %s8, 0
    %p28 = por %p26, %p27
    %p29 = scmp.ne.s32.totalorder %s18, %s21
    %p30 = scmp.eq.s32.totalorder %s13, 1
    %p31 = por %p29, %p30
    %p32 = scmp.ne.s32.totalorder %s21, %s22
    %p33 = scmp.eq.s32.totalorder %s13, 0
    %p34 = por %p32, %p33
    %p35 = scmp.ne.s32.totalorder %s21, %s22
    %p36 = scmp.eq.s32.totalorder %s14, 1
    %p37 = por %p35, %p36
    %p39 = scmp.ne.s32.totalorder %s22, %s38
    %p40 = scmp.eq.s32.totalorder %s14, 0
    %p41 = por %p39, %p40
    %s42 = ssub.s32 %s8, %s15
    %p43 = scmp.eq.s32.totalorder %s42, 0
    %s45 = sadd.s32 %s44, 1
    %s46 = scalar_select %p43, %s44, %s45
    %p49 = pneg %p43
    %p50 = scmp.eq.s32.totalorder %s8, 1
    %p51 = por %p49, %p50
    %p52 = scmp.ne.s32.totalorder %s44, %s47
    %p53 = scmp.eq.s32.totalorder %s8, 0
    %p54 = por %p52, %p53
    %p55 = scmp.ne.s32.totalorder %s44, %s47
    %p56 = scmp.eq.s32.totalorder %s13, 1
    %p57 = por %p55, %p56
    %p58 = scmp.ne.s32.totalorder %s47, %s48
    %p59 = scmp.eq.s32.totalorder %s13, 0
    %p60 = por %p58, %p59
    %p61 = scmp.ne.s32.totalorder %s47, %s48
    %p62 = scmp.eq.s32.totalorder %s14, 1
    %p63 = por %p61, %p62
    %p65 = scmp.ne.s32.totalorder %s48, %s64
    %p66 = scmp.eq.s32.totalorder %s14, 0
    %p67 = por %p65, %p66
    %s68 = ssub.s32 %s8, %s15
    %p69 = scmp.eq.s32.totalorder %s68, 0
    %s71 = sadd.s32 %s70, 1
    %s72 = scalar_select %p69, %s70, %s71
    %p75 = pneg %p69
    %p76 = scmp.eq.s32.totalorder %s8, 1
    %p77 = por %p75, %p76
    %p78 = scmp.ne.s32.totalorder %s70, %s73
    %p79 = scmp.eq.s32.totalorder %s8, 0
    %p80 = por %p78, %p79
    %p81 = scmp.ne.s32.totalorder %s70, %s73
    %p82 = scmp.eq.s32.totalorder %s13, 1
    %p83 = por %p81, %p82
    %p84 = scmp.ne.s32.totalorder %s73, %s74
    %p85 = scmp.eq.s32.totalorder %s13, 0
    %p86 = por %p84, %p85
    %p87 = scmp.ne.s32.totalorder %s73, %s74
    %p88 = scmp.eq.s32.totalorder %s14, 1
    %p89 = por %p87, %p88
    %p91 = scmp.ne.s32.totalorder %s74, %s90
    %p92 = scmp.eq.s32.totalorder %s14, 0
    %p93 = por %p91, %p92
    %p94 = scmp.le.s32.totalorder 1, %s8
    %p95 = scmp.lt.s32.totalorder %s8, 3
    %p96 = pnand %p94, %p95
    %p97 = pneg %p96
    // Predicated region
    $region9: #{esim_forward.5} parent=5 // pred_check
      _
    $region10: #{esim_forward.5} parent=5 // pred_check_branch
      %99 = sbr.rel (%p96) target = $region12
    $region11: #{esim_forward.5} parent=5 // pred_region
      %s100 = ssub.s32 %s8, 1
    $region12: #{esim_forward.5} parent=5 // pred_fallthru
      _
    %p101 = scmp.lt.s32.totalorder %s8, 2
    // Predicated region
    $region13: #{esim_forward.5} parent=5 // pred_check
      %p102 = pneg %p101
    $region14: #{esim_forward.5} parent=5 // pred_check_branch
      %104 = sbr.rel (%p102) target = $region16
    $region15: #{esim_forward.5} parent=5 // pred_region
      // Predicated region
      $region17: #{esim_forward.5} parent=15 // pred_check
        %p105 = pneg %p28
      $region18: #{esim_forward.5} parent=15 // pred_check_branch
        %107 = sbr.rel (%p105) target = $region20
      $region19: #{esim_forward.5} parent=15 // pred_region
        %s108 = smul.u32 8, %s8
        %p109 = scmp.lt.s32.totalorder %s108, 15
        %s110 = scalar_select %p109, %s108, 15
        %s111 = smul.addr %s110, 2
        %s112 = smul.addr %s111, 8
        %s113 = scalar_lea.vmem %s0, %s112
        %s114 = smul.u32 8, %s8
      $region20: #{esim_forward.5} parent=15 // pred_fallthru
        _
      // Predicated region
      $region21: #{esim_forward.5} parent=15 // pred_check
        %p115 = pneg %p54
      $region22: #{esim_forward.5} parent=15 // pred_check_branch
        %117 = sbr.rel (%p115) target = $region24
      $region23: #{esim_forward.5} parent=15 // pred_region
        %s118 = smul.u32 8, %s8
        %p119 = scmp.lt.s32.totalorder %s118, 15
        %s120 = scalar_select %p119, %s118, 15
        %s121 = smul.addr %s120, 2
        %s122 = scalar_lea.vmem %s1, %s121
        %s123 = smul.u32 8, %s8
      $region24: #{esim_forward.5} parent=15 // pred_fallthru
        _
    $region16: #{esim_forward.5} parent=5 // pred_fallthru
      _
    %p124 = scmp.le.s32.totalorder 1, %s8
    %p125 = scmp.lt.s32.totalorder %s8, 3
    %p126 = pnand %p124, %p125
    %p127 = pneg %p126
    // Predicated region
    $region25: #{esim_forward.5} parent=5 // pred_check
      _
    $region26: #{esim_forward.5} parent=5 // pred_check_branch
      %129 = sbr.rel (%p126) target = $region28
    $region27: #{esim_forward.5} parent=5 // pred_region
      %s130 = ssub.s32 %s8, 1
      %s131 = smul.u32 8, %s13
      %p132 = scmp.lt.s32.totalorder %s131, 15
      %s133 = scalar_select %p132, %s131, 15
      %s134 = smul.addr %s133, 2
      %s135 = smul.addr %s134, 8
      %s136 = scalar_lea.vmem %s0, %s135
      %p137 = pneg %p34
      %p138 = pneg %p31
      %s139 = smul.u32 8, %s13
      %p140 = scmp.lt.s32.totalorder %s139, 15
      %s141 = scalar_select %p140, %s139, 15
      %s142 = smul.addr %s141, 2
      %s143 = scalar_lea.vmem %s1, %s142
      %p144 = pneg %p60
      %p145 = pneg %p57
      %p146 = pneg %p86
      %p147 = pneg %p83
      %s148 = smul.u32 8, %s13
      %p149 = scmp.lt.s32.totalorder %s148, 15
      %s150 = scalar_select %p149, %s148, 15
      %s151 = smul.addr %s150, 4
      %s152 = smul.addr %s151, 4
      %s153 = scalar_lea.vmem %s2, %s152
      %s154 = smul.u32 8, %s13
      %p155 = scmp.lt.s32.totalorder %s154, 15
      %s156 = scalar_select %p155, %s154, 15
      %s157 = smul.addr %s156, 2
      %s158 = smul.addr %s157, 8
      %s159 = scalar_lea.vmem %s0, %s158
      %s160 = smul.u32 8, %s13
      %s161 = smul.u32 8, %s13
      %p162 = scmp.lt.s32.totalorder %s161, 15
      %s163 = scalar_select %p162, %s161, 15
      %s164 = smul.addr %s163, 2
      %s165 = scalar_lea.vmem %s1, %s164
      %s166 = smul.u32 8, %s13
      %s167 = smul.u32 8, %s13
      %p168 = scmp.lt.s32.totalorder %s167, 15
      %s169 = scalar_select %p168, %s167, 15
      %s170 = smul.addr %s169, 4
      %s171 = smul.addr %s170, 4
      %s172 = scalar_lea.vmem %s2, %s171
      %s173 = smul.u32 8, %s13
      %v175 = vld [vmem:[%s159] sm:$0xff]
      %v176 = vld [vmem:[%s159 + $0x10] sm:$0xff]
      %v177 = vld [vmem:[%s159 + $0x20] sm:$0xff]
      %v178 = vld [vmem:[%s159 + $0x30] sm:$0xff]
      %v179 = vld [vmem:[%s159 + $0x40] sm:$0xff]
      %v180 = vld [vmem:[%s159 + $0x50] sm:$0xff]
      %v181 = vld [vmem:[%s159 + $0x60] sm:$0xff]
      %v182 = vld [vmem:[%s159 + $0x70] sm:$0xff]
      %s183 = scalar_lea.vmem %s159, 8
      %v184 = vld [vmem:[%s183] sm:$0xff]
      %v185 = vld [vmem:[%s183 + $0x10] sm:$0xff]
      %v186 = vld [vmem:[%s183 + $0x20] sm:$0xff]
      %v187 = vld [vmem:[%s183 + $0x30] sm:$0xff]
      %v188 = vld [vmem:[%s183 + $0x40] sm:$0xff]
      %v189 = vld [vmem:[%s183 + $0x50] sm:$0xff]
      %v190 = vld [vmem:[%s183 + $0x60] sm:$0xff]
      %v191 = vld [vmem:[%s183 + $0x70] sm:$0xff]
      %v192 = vld [vmem:[%s165] sm:$0x1]
      %v193 = vld [vmem:[%s165 + $0x2] sm:$0x1]
      %v194 = vld [vmem:[%s165 + $0x4] sm:$0x1]
      %v195 = vld [vmem:[%s165 + $0x6] sm:$0x1]
      %v196 = vld [vmem:[%s165 + $0x8] sm:$0x1]
      %v197 = vld [vmem:[%s165 + $0xa] sm:$0x1]
      %v198 = vld [vmem:[%s165 + $0xc] sm:$0x1]
      %v199 = vld [vmem:[%s165 + $0xe] sm:$0x1]
      %v200 = vld [vmem:[%s165 + $0x1] sm:$0x1]
      %v201 = vld [vmem:[%s165 + $0x3] sm:$0x1]
      %v202 = vld [vmem:[%s165 + $0x5] sm:$0x1]
      %v203 = vld [vmem:[%s165 + $0x7] sm:$0x1]
      %v204 = vld [vmem:[%s165 + $0x9] sm:$0x1]
      %v205 = vld [vmem:[%s165 + $0xb] sm:$0x1]
      %v206 = vld [vmem:[%s165 + $0xd] sm:$0x1]
      %v207 = vld [vmem:[%s165 + $0xf] sm:$0x1]
      %v208 = vpack.c.bf16 %v175, %v175
      %v209 = vpack.c.bf16 %v176, %v176
      %v210 = vpack.c.bf16 %v177, %v177
      %v211 = vpack.c.bf16 %v178, %v178
      %v212 = vpack.c.bf16 %v179, %v179
      %v213 = vpack.c.bf16 %v180, %v180
      %v214 = vpack.c.bf16 %v181, %v181
      %v215 = vpack.c.bf16 %v182, %v182
      %v216 = vpack.c.bf16 %v184, %v184
      %v217 = vpack.c.bf16 %v185, %v185
      %v218 = vpack.c.bf16 %v186, %v186
      %v219 = vpack.c.bf16 %v187, %v187
      %v220 = vpack.c.bf16 %v188, %v188
      %v221 = vpack.c.bf16 %v189, %v189
      %v222 = vpack.c.bf16 %v190, %v190
      %v223 = vpack.c.bf16 %v191, %v191
      %v224 = vperm.slane %v200, 0
      %v225 = vperm.slane %v201, 0
      %v226 = vperm.slane %v202, 0
      %v227 = vperm.slane %v203, 0
      %v228 = vperm.slane %v204, 0
      %v229 = vperm.slane %v205, 0
      %v230 = vperm.slane %v206, 0
      %v231 = vperm.slane %v207, 0
      %vm232 = vcmask 523264
      %v234 = vsel %vm232, %v208, 0
      %v237 = vsel %vm232, %v216, 0
      %239 = vmatpush.bf16.xpose.msra.mxu0 0
      %240 = vmatpush.bf16.xpose.msra.mxu0 0
      %241 = vmatpush.bf16.xpose.msra.mxu0 0
      %242 = vmatpush.bf16.xpose.msra.mxu0 0
      %243 = vmatpush.bf16.xpose.msra.mxu0 0
      %244 = vmatpush.bf16.xpose.msra.mxu0 0
      %245 = vmatpush.bf16.xpose.msra.mxu0 0
      %246 = vmatpush.bf16.xpose.msra.mxu0 %v237
      %247 = vmatmul.bf16.gmra.mxu0 %v234
      %v248 = vpop.f32.mrf.mxu0
      %v249 = vadd.f32 %v224, %v248
      %v250 = vpop.f32.mrf.mxu0
      %251 = vdwg.mxu0
      %v253 = vsel %vm232, %v209, 0
      %v256 = vsel %vm232, %v217, 0
      %258 = vmatpush.bf16.xpose.msra.mxu0 0
      %259 = vmatpush.bf16.xpose.msra.mxu0 0
      %260 = vmatpush.bf16.xpose.msra.mxu0 0
      %261 = vmatpush.bf16.xpose.msra.mxu0 0
      %262 = vmatpush.bf16.xpose.msra.mxu0 0
      %263 = vmatpush.bf16.xpose.msra.mxu0 0
      %264 = vmatpush.bf16.xpose.msra.mxu0 0
      %265 = vmatpush.bf16.xpose.msra.mxu0 %v256
      %266 = vmatmul.bf16.gmra.mxu0 %v253
      %v267 = vpop.f32.mrf.mxu0
      %v268 = vadd.f32 %v225, %v267
      %v269 = vpop.f32.mrf.mxu0
      %270 = vdwg.mxu0
      %v272 = vsel %vm232, %v210, 0
      %v275 = vsel %vm232, %v218, 0
      %277 = vmatpush.bf16.xpose.msra.mxu0 0
      %278 = vmatpush.bf16.xpose.msra.mxu0 0
      %279 = vmatpush.bf16.xpose.msra.mxu0 0
      %280 = vmatpush.bf16.xpose.msra.mxu0 0
      %281 = vmatpush.bf16.xpose.msra.mxu0 0
      %282 = vmatpush.bf16.xpose.msra.mxu0 0
      %283 = vmatpush.bf16.xpose.msra.mxu0 0
      %284 = vmatpush.bf16.xpose.msra.mxu0 %v275
      %285 = vmatmul.bf16.gmra.mxu0 %v272
      %v286 = vpop.f32.mrf.mxu0
      %v287 = vadd.f32 %v226, %v286
      %v288 = vpop.f32.mrf.mxu0
      %289 = vdwg.mxu0
      %v291 = vsel %vm232, %v211, 0
      %v294 = vsel %vm232, %v219, 0
      %296 = vmatpush.bf16.xpose.msra.mxu0 0
      %297 = vmatpush.bf16.xpose.msra.mxu0 0
      %298 = vmatpush.bf16.xpose.msra.mxu0 0
      %299 = vmatpush.bf16.xpose.msra.mxu0 0
      %300 = vmatpush.bf16.xpose.msra.mxu0 0
      %301 = vmatpush.bf16.xpose.msra.mxu0 0
      %302 = vmatpush.bf16.xpose.msra.mxu0 0
      %303 = vmatpush.bf16.xpose.msra.mxu0 %v294
      %304 = vmatmul.bf16.gmra.mxu0 %v291
      %v305 = vpop.f32.mrf.mxu0
      %v306 = vadd.f32 %v227, %v305
      %v307 = vpop.f32.mrf.mxu0
      %308 = vdwg.mxu0
      %v310 = vsel %vm232, %v212, 0
      %v313 = vsel %vm232, %v220, 0
      %315 = vmatpush.bf16.xpose.msra.mxu0 0
      %316 = vmatpush.bf16.xpose.msra.mxu0 0
      %317 = vmatpush.bf16.xpose.msra.mxu0 0
      %318 = vmatpush.bf16.xpose.msra.mxu0 0
      %319 = vmatpush.bf16.xpose.msra.mxu0 0
      %320 = vmatpush.bf16.xpose.msra.mxu0 0
      %321 = vmatpush.bf16.xpose.msra.mxu0 0
      %322 = vmatpush.bf16.xpose.msra.mxu0 %v313
      %323 = vmatmul.bf16.gmra.mxu0 %v310
      %v324 = vpop.f32.mrf.mxu0
      %v325 = vadd.f32 %v228, %v324
      %v326 = vpop.f32.mrf.mxu0
      %327 = vdwg.mxu0
      %v329 = vsel %vm232, %v213, 0
      %v332 = vsel %vm232, %v221, 0
      %334 = vmatpush.bf16.xpose.msra.mxu0 0
      %335 = vmatpush.bf16.xpose.msra.mxu0 0
      %336 = vmatpush.bf16.xpose.msra.mxu0 0
      %337 = vmatpush.bf16.xpose.msra.mxu0 0
      %338 = vmatpush.bf16.xpose.msra.mxu0 0
      %339 = vmatpush.bf16.xpose.msra.mxu0 0
      %340 = vmatpush.bf16.xpose.msra.mxu0 0
      %341 = vmatpush.bf16.xpose.msra.mxu0 %v332
      %342 = vmatmul.bf16.gmra.mxu0 %v329
      %v343 = vpop.f32.mrf.mxu0
      %v344 = vadd.f32 %v229, %v343
      %v345 = vpop.f32.mrf.mxu0
      %346 = vdwg.mxu0
      %v348 = vsel %vm232, %v214, 0
      %v351 = vsel %vm232, %v222, 0
      %353 = vmatpush.bf16.xpose.msra.mxu0 0
      %354 = vmatpush.bf16.xpose.msra.mxu0 0
      %355 = vmatpush.bf16.xpose.msra.mxu0 0
      %356 = vmatpush.bf16.xpose.msra.mxu0 0
      %357 = vmatpush.bf16.xpose.msra.mxu0 0
      %358 = vmatpush.bf16.xpose.msra.mxu0 0
      %359 = vmatpush.bf16.xpose.msra.mxu0 0
      %360 = vmatpush.bf16.xpose.msra.mxu0 %v351
      %361 = vmatmul.bf16.gmra.mxu0 %v348
      %v362 = vpop.f32.mrf.mxu0
      %v363 = vadd.f32 %v230, %v362
      %v364 = vpop.f32.mrf.mxu0
      %365 = vdwg.mxu0
      %v367 = vsel %vm232, %v215, 0
      %v370 = vsel %vm232, %v223, 0
      %372 = vmatpush.bf16.xpose.msra.mxu0 0
      %373 = vmatpush.bf16.xpose.msra.mxu0 0
      %374 = vmatpush.bf16.xpose.msra.mxu0 0
      %375 = vmatpush.bf16.xpose.msra.mxu0 0
      %376 = vmatpush.bf16.xpose.msra.mxu0 0
      %377 = vmatpush.bf16.xpose.msra.mxu0 0
      %378 = vmatpush.bf16.xpose.msra.mxu0 0
      %379 = vmatpush.bf16.xpose.msra.mxu0 %v370
      %380 = vmatmul.bf16.gmra.mxu0 %v367
      %v381 = vpop.f32.mrf.mxu0
      %v382 = vadd.f32 %v231, %v381
      %v383 = vpop.f32.mrf.mxu0
      %384 = vdwg.mxu0
      %vm385 = vcmask 64512
      %v386 = vsel %vm385, %v249, -inf
      %387 = vmax.xlane.f32.xlu0 %v386
      %v388 = vpop.xlane.xlu0 %387
      %v389 = vsel %vm385, %v268, -inf
      %390 = vmax.xlane.f32.xlu0 %v389
      %v391 = vpop.xlane.xlu0 %390
      %v392 = vsel %vm385, %v287, -inf
      %393 = vmax.xlane.f32.xlu0 %v392
      %v394 = vpop.xlane.xlu0 %393
      %v395 = vsel %vm385, %v306, -inf
      %396 = vmax.xlane.f32.xlu0 %v395
      %v397 = vpop.xlane.xlu0 %396
      %v398 = vsel %vm385, %v325, -inf
      %399 = vmax.xlane.f32.xlu0 %v398
      %v400 = vpop.xlane.xlu0 %399
      %v401 = vsel %vm385, %v344, -inf
      %402 = vmax.xlane.f32.xlu0 %v401
      %v403 = vpop.xlane.xlu0 %402
      %v404 = vsel %vm385, %v363, -inf
      %405 = vmax.xlane.f32.xlu0 %v404
      %v406 = vpop.xlane.xlu0 %405
      %v407 = vsel %vm385, %v382, -inf
      %408 = vmax.xlane.f32.xlu0 %v407
      %v409 = vpop.xlane.xlu0 %408
      %v410 = vsub.f32 %v249, %v388
      %v411 = vsub.f32 %v268, %v391
      %v412 = vsub.f32 %v287, %v394
      %v413 = vsub.f32 %v306, %v397
      %v414 = vsub.f32 %v325, %v400
      %v415 = vsub.f32 %v344, %v403
      %v416 = vsub.f32 %v363, %v406
      %v417 = vsub.f32 %v382, %v409
      %v418 = vmul.f32 %v410, 1.442695
      %v419 = vpow.pop %v418
      %v420 = vmul.f32 %v411, 1.442695
      %v421 = vpow.pop %v420
      %v422 = vmul.f32 %v412, 1.442695
      %v423 = vpow.pop %v422
      %v424 = vmul.f32 %v413, 1.442695
      %v425 = vpow.pop %v424
      %v426 = vmul.f32 %v414, 1.442695
      %v427 = vpow.pop %v426
      %v428 = vmul.f32 %v415, 1.442695
      %v429 = vpow.pop %v428
      %v430 = vmul.f32 %v416, 1.442695
      %v431 = vpow.pop %v430
      %v432 = vmul.f32 %v417, 1.442695
      %v433 = vpow.pop %v432
      %v434 = vsel %vm385, %v419, 0.0
      %435 = vadd.xlane.f32.xlu0 %v434
      %v436 = vpop.xlane.xlu0 %435
      %v437 = vsel %vm385, %v421, 0.0
      %438 = vadd.xlane.f32.xlu0 %v437
      %v439 = vpop.xlane.xlu0 %438
      %v440 = vsel %vm385, %v423, 0.0
      %441 = vadd.xlane.f32.xlu0 %v440
      %v442 = vpop.xlane.xlu0 %441
      %v443 = vsel %vm385, %v425, 0.0
      %444 = vadd.xlane.f32.xlu0 %v443
      %v445 = vpop.xlane.xlu0 %444
      %v446 = vsel %vm385, %v427, 0.0
      %447 = vadd.xlane.f32.xlu0 %v446
      %v448 = vpop.xlane.xlu0 %447
      %v449 = vsel %vm385, %v429, 0.0
      %450 = vadd.xlane.f32.xlu0 %v449
      %v451 = vpop.xlane.xlu0 %450
      %v452 = vsel %vm385, %v431, 0.0
      %453 = vadd.xlane.f32.xlu0 %v452
      %v454 = vpop.xlane.xlu0 %453
      %v455 = vsel %vm385, %v433, 0.0
      %456 = vadd.xlane.f32.xlu0 %v455
      %v457 = vpop.xlane.xlu0 %456
      %v458 = vrcp.pop %v436
      %v459 = vrcp.pop %v439
      %v460 = vrcp.pop %v442
      %v461 = vrcp.pop %v445
      %v462 = vrcp.pop %v448
      %v463 = vrcp.pop %v451
      %v464 = vrcp.pop %v454
      %v465 = vrcp.pop %v457
      %v466 = vmul.f32 %v419, %v458
      %v467 = vmul.f32 %v421, %v459
      %v468 = vmul.f32 %v423, %v460
      %v469 = vmul.f32 %v425, %v461
      %v470 = vmul.f32 %v427, %v462
      %v471 = vmul.f32 %v429, %v463
      %v472 = vmul.f32 %v431, %v464
      %v473 = vmul.f32 %v433, %v465
      %v474 = vperm.slane %v192, 0
      %v475 = vperm.slane %v193, 0
      %v476 = vperm.slane %v194, 0
      %v477 = vperm.slane %v195, 0
      %v478 = vperm.slane %v196, 0
      %v479 = vperm.slane %v197, 0
      %v480 = vperm.slane %v198, 0
      %v481 = vperm.slane %v199, 0
      %482 = vmatpush.bf16.xpose.msra.mxu0 0
      %483 = vmatpush.bf16.xpose.msra.mxu0 0
      %484 = vmatpush.bf16.xpose.msra.mxu0 0
      %485 = vmatpush.bf16.xpose.msra.mxu0 0
      %486 = vmatpush.bf16.xpose.msra.mxu0 0
      %487 = vmatpush.bf16.xpose.msra.mxu0 0
      %488 = vmatpush.bf16.xpose.msra.mxu0 0
      %489 = vmatpush.bf16.xpose.msra.mxu0 %v234
      %490 = vmatmul.bf16.gmra.mxu0 %v237
      %v491 = vpop.f32.mrf.mxu0
      %v492 = vadd.f32 %v474, %v491
      %v493 = vpop.f32.mrf.mxu0
      %494 = vdwg.mxu0
      %495 = vmatpush.bf16.xpose.msra.mxu0 0
      %496 = vmatpush.bf16.xpose.msra.mxu0 0
      %497 = vmatpush.bf16.xpose.msra.mxu0 0
      %498 = vmatpush.bf16.xpose.msra.mxu0 0
      %499 = vmatpush.bf16.xpose.msra.mxu0 0
      %500 = vmatpush.bf16.xpose.msra.mxu0 0
      %501 = vmatpush.bf16.xpose.msra.mxu0 0
      %502 = vmatpush.bf16.xpose.msra.mxu0 %v253
      %503 = vmatmul.bf16.gmra.mxu0 %v256
      %v504 = vpop.f32.mrf.mxu0
      %v505 = vadd.f32 %v475, %v504
      %v506 = vpop.f32.mrf.mxu0
      %507 = vdwg.mxu0
      %508 = vmatpush.bf16.xpose.msra.mxu0 0
      %509 = vmatpush.bf16.xpose.msra.mxu0 0
      %510 = vmatpush.bf16.xpose.msra.mxu0 0
      %511 = vmatpush.bf16.xpose.msra.mxu0 0
      %512 = vmatpush.bf16.xpose.msra.mxu0 0
      %513 = vmatpush.bf16.xpose.msra.mxu0 0
      %514 = vmatpush.bf16.xpose.msra.mxu0 0
      %515 = vmatpush.bf16.xpose.msra.mxu0 %v272
      %516 = vmatmul.bf16.gmra.mxu0 %v275
      %v517 = vpop.f32.mrf.mxu0
      %v518 = vadd.f32 %v476, %v517
      %v519 = vpop.f32.mrf.mxu0
      %520 = vdwg.mxu0
      %521 = vmatpush.bf16.xpose.msra.mxu0 0
      %522 = vmatpush.bf16.xpose.msra.mxu0 0
      %523 = vmatpush.bf16.xpose.msra.mxu0 0
      %524 = vmatpush.bf16.xpose.msra.mxu0 0
      %525 = vmatpush.bf16.xpose.msra.mxu0 0
      %526 = vmatpush.bf16.xpose.msra.mxu0 0
      %527 = vmatpush.bf16.xpose.msra.mxu0 0
      %528 = vmatpush.bf16.xpose.msra.mxu0 %v291
      %529 = vmatmul.bf16.gmra.mxu0 %v294
      %v530 = vpop.f32.mrf.mxu0
      %v531 = vadd.f32 %v477, %v530
      %v532 = vpop.f32.mrf.mxu0
      %533 = vdwg.mxu0
      %534 = vmatpush.bf16.xpose.msra.mxu0 0
      %535 = vmatpush.bf16.xpose.msra.mxu0 0
      %536 = vmatpush.bf16.xpose.msra.mxu0 0
      %537 = vmatpush.bf16.xpose.msra.mxu0 0
      %538 = vmatpush.bf16.xpose.msra.mxu0 0
      %539 = vmatpush.bf16.xpose.msra.mxu0 0
      %540 = vmatpush.bf16.xpose.msra.mxu0 0
      %541 = vmatpush.bf16.xpose.msra.mxu0 %v310
      %542 = vmatmul.bf16.gmra.mxu0 %v313
      %v543 = vpop.f32.mrf.mxu0
      %v544 = vadd.f32 %v478, %v543
      %v545 = vpop.f32.mrf.mxu0
      %546 = vdwg.mxu0
      %547 = vmatpush.bf16.xpose.msra.mxu0 0
      %548 = vmatpush.bf16.xpose.msra.mxu0 0
      %549 = vmatpush.bf16.xpose.msra.mxu0 0
      %550 = vmatpush.bf16.xpose.msra.mxu0 0
      %551 = vmatpush.bf16.xpose.msra.mxu0 0
      %552 = vmatpush.bf16.xpose.msra.mxu0 0
      %553 = vmatpush.bf16.xpose.msra.mxu0 0
      %554 = vmatpush.bf16.xpose.msra.mxu0 %v329
      %555 = vmatmul.bf16.gmra.mxu0 %v332
      %v556 = vpop.f32.mrf.mxu0
      %v557 = vadd.f32 %v479, %v556
      %v558 = vpop.f32.mrf.mxu0
      %559 = vdwg.mxu0
      %560 = vmatpush.bf16.xpose.msra.mxu0 0
      %561 = vmatpush.bf16.xpose.msra.mxu0 0
      %562 = vmatpush.bf16.xpose.msra.mxu0 0
      %563 = vmatpush.bf16.xpose.msra.mxu0 0
      %564 = vmatpush.bf16.xpose.msra.mxu0 0
      %565 = vmatpush.bf16.xpose.msra.mxu0 0
      %566 = vmatpush.bf16.xpose.msra.mxu0 0
      %567 = vmatpush.bf16.xpose.msra.mxu0 %v348
      %568 = vmatmul.bf16.gmra.mxu0 %v351
      %v569 = vpop.f32.mrf.mxu0
      %v570 = vadd.f32 %v480, %v569
      %v571 = vpop.f32.mrf.mxu0
      %572 = vdwg.mxu0
      %573 = vmatpush.bf16.xpose.msra.mxu0 0
      %574 = vmatpush.bf16.xpose.msra.mxu0 0
      %575 = vmatpush.bf16.xpose.msra.mxu0 0
      %576 = vmatpush.bf16.xpose.msra.mxu0 0
      %577 = vmatpush.bf16.xpose.msra.mxu0 0
      %578 = vmatpush.bf16.xpose.msra.mxu0 0
      %579 = vmatpush.bf16.xpose.msra.mxu0 0
      %580 = vmatpush.bf16.xpose.msra.mxu0 %v367
      %581 = vmatmul.bf16.gmra.mxu0 %v370
      %v582 = vpop.f32.mrf.mxu0
      %v583 = vadd.f32 %v481, %v582
      %v584 = vpop.f32.mrf.mxu0
      %585 = vdwg.mxu0
      %v586 = vsel %vm385, %v492, -inf
      %587 = vmax.xlane.f32.xlu0 %v586
      %v588 = vpop.xlane.xlu0 %587
      %v589 = vsel %vm385, %v505, -inf
      %590 = vmax.xlane.f32.xlu0 %v589
      %v591 = vpop.xlane.xlu0 %590
      %v592 = vsel %vm385, %v518, -inf
      %593 = vmax.xlane.f32.xlu0 %v592
      %v594 = vpop.xlane.xlu0 %593
      %v595 = vsel %vm385, %v531, -inf
      %596 = vmax.xlane.f32.xlu0 %v595
      %v597 = vpop.xlane.xlu0 %596
      %v598 = vsel %vm385, %v544, -inf
      %599 = vmax.xlane.f32.xlu0 %v598
      %v600 = vpop.xlane.xlu0 %599
      %v601 = vsel %vm385, %v557, -inf
      %602 = vmax.xlane.f32.xlu0 %v601
      %v603 = vpop.xlane.xlu0 %602
      %v604 = vsel %vm385, %v570, -inf
      %605 = vmax.xlane.f32.xlu0 %v604
      %v606 = vpop.xlane.xlu0 %605
      %v607 = vsel %vm385, %v583, -inf
      %608 = vmax.xlane.f32.xlu0 %v607
      %v609 = vpop.xlane.xlu0 %608
      %v610 = vsub.f32 %v492, %v588
      %v611 = vsub.f32 %v505, %v591
      %v612 = vsub.f32 %v518, %v594
      %v613 = vsub.f32 %v531, %v597
      %v614 = vsub.f32 %v544, %v600
      %v615 = vsub.f32 %v557, %v603
      %v616 = vsub.f32 %v570, %v606
      %v617 = vsub.f32 %v583, %v609
      %v618 = vmul.f32 %v610, 1.442695
      %v619 = vpow.pop %v618
      %v620 = vmul.f32 %v611, 1.442695
      %v621 = vpow.pop %v620
      %v622 = vmul.f32 %v612, 1.442695
      %v623 = vpow.pop %v622
      %v624 = vmul.f32 %v613, 1.442695
      %v625 = vpow.pop %v624
      %v626 = vmul.f32 %v614, 1.442695
      %v627 = vpow.pop %v626
      %v628 = vmul.f32 %v615, 1.442695
      %v629 = vpow.pop %v628
      %v630 = vmul.f32 %v616, 1.442695
      %v631 = vpow.pop %v630
      %v632 = vmul.f32 %v617, 1.442695
      %v633 = vpow.pop %v632
      %v634 = vsel %vm385, %v619, 0.0
      %635 = vadd.xlane.f32.xlu0 %v634
      %v636 = vpop.xlane.xlu0 %635
      %v637 = vsel %vm385, %v621, 0.0
      %638 = vadd.xlane.f32.xlu0 %v637
      %v639 = vpop.xlane.xlu0 %638
      %v640 = vsel %vm385, %v623, 0.0
      %641 = vadd.xlane.f32.xlu0 %v640
      %v642 = vpop.xlane.xlu0 %641
      %v643 = vsel %vm385, %v625, 0.0
      %644 = vadd.xlane.f32.xlu0 %v643
      %v645 = vpop.xlane.xlu0 %644
      %v646 = vsel %vm385, %v627, 0.0
      %647 = vadd.xlane.f32.xlu0 %v646
      %v648 = vpop.xlane.xlu0 %647
      %v649 = vsel %vm385, %v629, 0.0
      %650 = vadd.xlane.f32.xlu0 %v649
      %v651 = vpop.xlane.xlu0 %650
      %v652 = vsel %vm385, %v631, 0.0
      %653 = vadd.xlane.f32.xlu0 %v652
      %v654 = vpop.xlane.xlu0 %653
      %v655 = vsel %vm385, %v633, 0.0
      %656 = vadd.xlane.f32.xlu0 %v655
      %v657 = vpop.xlane.xlu0 %656
      %v658 = vrcp.pop %v636
      %v659 = vrcp.pop %v639
      %v660 = vrcp.pop %v642
      %v661 = vrcp.pop %v645
      %v662 = vrcp.pop %v648
      %v663 = vrcp.pop %v651
      %v664 = vrcp.pop %v654
      %v665 = vrcp.pop %v657
      %v666 = vmul.f32 %v619, %v658
      %v667 = vmul.f32 %v621, %v659
      %v668 = vmul.f32 %v623, %v660
      %v669 = vmul.f32 %v625, %v661
      %v670 = vmul.f32 %v627, %v662
      %v671 = vmul.f32 %v629, %v663
      %v672 = vmul.f32 %v631, %v664
      %v673 = vmul.f32 %v633, %v665
      %v674 = vpack.c.bf16 %v466, %v466
      %v675 = vpack.c.bf16 %v467, %v467
      %v676 = vpack.c.bf16 %v468, %v468
      %v677 = vpack.c.bf16 %v469, %v469
      %v678 = vpack.c.bf16 %v470, %v470
      %v679 = vpack.c.bf16 %v471, %v471
      %v680 = vpack.c.bf16 %v472, %v472
      %v681 = vpack.c.bf16 %v473, %v473
      %v683 = vsel %vm385, %v674, 0
      %vm685 = vcmask 1043456
      %v686 = vsel %vm685, %v216, 0
      %688 = vmatpush.bf16.msra.mxu0 0
      %689 = vmatpush.bf16.msra.mxu0 0
      %690 = vmatpush.bf16.msra.mxu0 0
      %691 = vmatpush.bf16.msra.mxu0 0
      %692 = vmatpush.bf16.msra.mxu0 0
      %693 = vmatpush.bf16.msra.mxu0 0
      %694 = vmatpush.bf16.msra.mxu0 0
      %695 = vmatpush.bf16.msra.mxu0 %v686
      %696 = vmatmul.bf16.gmra.mxu0 %v683
      %v697 = vpop.f32.mrf.mxu0
      %v698 = vadd.f32 0.0, %v697
      %v699 = vpop.f32.mrf.mxu0
      %700 = vdwg.mxu0
      %v702 = vsel %vm385, %v675, 0
      %v704 = vsel %vm685, %v217, 0
      %706 = vmatpush.bf16.msra.mxu0 0
      %707 = vmatpush.bf16.msra.mxu0 0
      %708 = vmatpush.bf16.msra.mxu0 0
      %709 = vmatpush.bf16.msra.mxu0 0
      %710 = vmatpush.bf16.msra.mxu0 0
      %711 = vmatpush.bf16.msra.mxu0 0
      %712 = vmatpush.bf16.msra.mxu0 0
      %713 = vmatpush.bf16.msra.mxu0 %v704
      %714 = vmatmul.bf16.gmra.mxu0 %v702
      %v715 = vpop.f32.mrf.mxu0
      %v716 = vadd.f32 0.0, %v715
      %v717 = vpop.f32.mrf.mxu0
      %718 = vdwg.mxu0
      %v720 = vsel %vm385, %v676, 0
      %v722 = vsel %vm685, %v218, 0
      %724 = vmatpush.bf16.msra.mxu0 0
      %725 = vmatpush.bf16.msra.mxu0 0
      %726 = vmatpush.bf16.msra.mxu0 0
      %727 = vmatpush.bf16.msra.mxu0 0
      %728 = vmatpush.bf16.msra.mxu0 0
      %729 = vmatpush.bf16.msra.mxu0 0
      %730 = vmatpush.bf16.msra.mxu0 0
      %731 = vmatpush.bf16.msra.mxu0 %v722
      %732 = vmatmul.bf16.gmra.mxu0 %v720
      %v733 = vpop.f32.mrf.mxu0
      %v734 = vadd.f32 0.0, %v733
      %v735 = vpop.f32.mrf.mxu0
      %736 = vdwg.mxu0
      %v738 = vsel %vm385, %v677, 0
      %v740 = vsel %vm685, %v219, 0
      %742 = vmatpush.bf16.msra.mxu0 0
      %743 = vmatpush.bf16.msra.mxu0 0
      %744 = vmatpush.bf16.msra.mxu0 0
      %745 = vmatpush.bf16.msra.mxu0 0
      %746 = vmatpush.bf16.msra.mxu0 0
      %747 = vmatpush.bf16.msra.mxu0 0
      %748 = vmatpush.bf16.msra.mxu0 0
      %749 = vmatpush.bf16.msra.mxu0 %v740
      %750 = vmatmul.bf16.gmra.mxu0 %v738
      %v751 = vpop.f32.mrf.mxu0
      %v752 = vadd.f32 0.0, %v751
      %v753 = vpop.f32.mrf.mxu0
      %754 = vdwg.mxu0
      %v756 = vsel %vm385, %v678, 0
      %v758 = vsel %vm685, %v220, 0
      %760 = vmatpush.bf16.msra.mxu0 0
      %761 = vmatpush.bf16.msra.mxu0 0
      %762 = vmatpush.bf16.msra.mxu0 0
      %763 = vmatpush.bf16.msra.mxu0 0
      %764 = vmatpush.bf16.msra.mxu0 0
      %765 = vmatpush.bf16.msra.mxu0 0
      %766 = vmatpush.bf16.msra.mxu0 0
      %767 = vmatpush.bf16.msra.mxu0 %v758
      %768 = vmatmul.bf16.gmra.mxu0 %v756
      %v769 = vpop.f32.mrf.mxu0
      %v770 = vadd.f32 0.0, %v769
      %v771 = vpop.f32.mrf.mxu0
      %772 = vdwg.mxu0
      %v774 = vsel %vm385, %v679, 0
      %v776 = vsel %vm685, %v221, 0
      %778 = vmatpush.bf16.msra.mxu0 0
      %779 = vmatpush.bf16.msra.mxu0 0
      %780 = vmatpush.bf16.msra.mxu0 0
      %781 = vmatpush.bf16.msra.mxu0 0
      %782 = vmatpush.bf16.msra.mxu0 0
      %783 = vmatpush.bf16.msra.mxu0 0
      %784 = vmatpush.bf16.msra.mxu0 0
      %785 = vmatpush.bf16.msra.mxu0 %v776
      %786 = vmatmul.bf16.gmra.mxu0 %v774
      %v787 = vpop.f32.mrf.mxu0
      %v788 = vadd.f32 0.0, %v787
      %v789 = vpop.f32.mrf.mxu0
      %790 = vdwg.mxu0
      %v792 = vsel %vm385, %v680, 0
      %v794 = vsel %vm685, %v222, 0
      %796 = vmatpush.bf16.msra.mxu0 0
      %797 = vmatpush.bf16.msra.mxu0 0
      %798 = vmatpush.bf16.msra.mxu0 0
      %799 = vmatpush.bf16.msra.mxu0 0
      %800 = vmatpush.bf16.msra.mxu0 0
      %801 = vmatpush.bf16.msra.mxu0 0
      %802 = vmatpush.bf16.msra.mxu0 0
      %803 = vmatpush.bf16.msra.mxu0 %v794
      %804 = vmatmul.bf16.gmra.mxu0 %v792
      %v805 = vpop.f32.mrf.mxu0
      %v806 = vadd.f32 0.0, %v805
      %v807 = vpop.f32.mrf.mxu0
      %808 = vdwg.mxu0
      %v810 = vsel %vm385, %v681, 0
      %v812 = vsel %vm685, %v223, 0
      %814 = vmatpush.bf16.msra.mxu0 0
      %815 = vmatpush.bf16.msra.mxu0 0
      %816 = vmatpush.bf16.msra.mxu0 0
      %817 = vmatpush.bf16.msra.mxu0 0
      %818 = vmatpush.bf16.msra.mxu0 0
      %819 = vmatpush.bf16.msra.mxu0 0
      %820 = vmatpush.bf16.msra.mxu0 0
      %821 = vmatpush.bf16.msra.mxu0 %v812
      %822 = vmatmul.bf16.gmra.mxu0 %v810
      %v823 = vpop.f32.mrf.mxu0
      %v824 = vadd.f32 0.0, %v823
      %v825 = vpop.f32.mrf.mxu0
      %826 = vdwg.mxu0
      %v827 = vpack.c.bf16 %v666, %v666
      %v828 = vpack.c.bf16 %v667, %v667
      %v829 = vpack.c.bf16 %v668, %v668
      %v830 = vpack.c.bf16 %v669, %v669
      %v831 = vpack.c.bf16 %v670, %v670
      %v832 = vpack.c.bf16 %v671, %v671
      %v833 = vpack.c.bf16 %v672, %v672
      %v834 = vpack.c.bf16 %v673, %v673
      %v836 = vsel %vm385, %v827, 0
      %v838 = vsel %vm685, %v208, 0
      %840 = vmatpush.bf16.msra.mxu0 0
      %841 = vmatpush.bf16.msra.mxu0 0
      %842 = vmatpush.bf16.msra.mxu0 0
      %843 = vmatpush.bf16.msra.mxu0 0
      %844 = vmatpush.bf16.msra.mxu0 0
      %845 = vmatpush.bf16.msra.mxu0 0
      %846 = vmatpush.bf16.msra.mxu0 0
      %847 = vmatpush.bf16.msra.mxu0 %v838
      %848 = vmatmul.bf16.gmra.mxu0 %v836
      %v849 = vpop.f32.mrf.mxu0
      %v850 = vadd.f32 0.0, %v849
      %v851 = vpop.f32.mrf.mxu0
      %852 = vdwg.mxu0
      %v854 = vsel %vm385, %v828, 0
      %v856 = vsel %vm685, %v209, 0
      %858 = vmatpush.bf16.msra.mxu0 0
      %859 = vmatpush.bf16.msra.mxu0 0
      %860 = vmatpush.bf16.msra.mxu0 0
      %861 = vmatpush.bf16.msra.mxu0 0
      %862 = vmatpush.bf16.msra.mxu0 0
      %863 = vmatpush.bf16.msra.mxu0 0
      %864 = vmatpush.bf16.msra.mxu0 0
      %865 = vmatpush.bf16.msra.mxu0 %v856
      %866 = vmatmul.bf16.gmra.mxu0 %v854
      %v867 = vpop.f32.mrf.mxu0
      %v868 = vadd.f32 0.0, %v867
      %v869 = vpop.f32.mrf.mxu0
      %870 = vdwg.mxu0
      %v872 = vsel %vm385, %v829, 0
      %v874 = vsel %vm685, %v210, 0
      %876 = vmatpush.bf16.msra.mxu0 0
      %877 = vmatpush.bf16.msra.mxu0 0
      %878 = vmatpush.bf16.msra.mxu0 0
      %879 = vmatpush.bf16.msra.mxu0 0
      %880 = vmatpush.bf16.msra.mxu0 0
      %881 = vmatpush.bf16.msra.mxu0 0
      %882 = vmatpush.bf16.msra.mxu0 0
      %883 = vmatpush.bf16.msra.mxu0 %v874
      %884 = vmatmul.bf16.gmra.mxu0 %v872
      %v885 = vpop.f32.mrf.mxu0
      %v886 = vadd.f32 0.0, %v885
      %v887 = vpop.f32.mrf.mxu0
      %888 = vdwg.mxu0
      %v890 = vsel %vm385, %v830, 0
      %v892 = vsel %vm685, %v211, 0
      %894 = vmatpush.bf16.msra.mxu0 0
      %895 = vmatpush.bf16.msra.mxu0 0
      %896 = vmatpush.bf16.msra.mxu0 0
      %897 = vmatpush.bf16.msra.mxu0 0
      %898 = vmatpush.bf16.msra.mxu0 0
      %899 = vmatpush.bf16.msra.mxu0 0
      %900 = vmatpush.bf16.msra.mxu0 0
      %901 = vmatpush.bf16.msra.mxu0 %v892
      %902 = vmatmul.bf16.gmra.mxu0 %v890
      %v903 = vpop.f32.mrf.mxu0
      %v904 = vadd.f32 0.0, %v903
      %v905 = vpop.f32.mrf.mxu0
      %906 = vdwg.mxu0
      %v908 = vsel %vm385, %v831, 0
      %v910 = vsel %vm685, %v212, 0
      %912 = vmatpush.bf16.msra.mxu0 0
      %913 = vmatpush.bf16.msra.mxu0 0
      %914 = vmatpush.bf16.msra.mxu0 0
      %915 = vmatpush.bf16.msra.mxu0 0
      %916 = vmatpush.bf16.msra.mxu0 0
      %917 = vmatpush.bf16.msra.mxu0 0
      %918 = vmatpush.bf16.msra.mxu0 0
      %919 = vmatpush.bf16.msra.mxu0 %v910
      %920 = vmatmul.bf16.gmra.mxu0 %v908
      %v921 = vpop.f32.mrf.mxu0
      %v922 = vadd.f32 0.0, %v921
      %v923 = vpop.f32.mrf.mxu0
      %924 = vdwg.mxu0
      %v926 = vsel %vm385, %v832, 0
      %v928 = vsel %vm685, %v213, 0
      %930 = vmatpush.bf16.msra.mxu0 0
      %931 = vmatpush.bf16.msra.mxu0 0
      %932 = vmatpush.bf16.msra.mxu0 0
      %933 = vmatpush.bf16.msra.mxu0 0
      %934 = vmatpush.bf16.msra.mxu0 0
      %935 = vmatpush.bf16.msra.mxu0 0
      %936 = vmatpush.bf16.msra.mxu0 0
      %937 = vmatpush.bf16.msra.mxu0 %v928
      %938 = vmatmul.bf16.gmra.mxu0 %v926
      %v939 = vpop.f32.mrf.mxu0
      %v940 = vadd.f32 0.0, %v939
      %v941 = vpop.f32.mrf.mxu0
      %942 = vdwg.mxu0
      %v944 = vsel %vm385, %v833, 0
      %v946 = vsel %vm685, %v214, 0
      %948 = vmatpush.bf16.msra.mxu0 0
      %949 = vmatpush.bf16.msra.mxu0 0
      %950 = vmatpush.bf16.msra.mxu0 0
      %951 = vmatpush.bf16.msra.mxu0 0
      %952 = vmatpush.bf16.msra.mxu0 0
      %953 = vmatpush.bf16.msra.mxu0 0
      %954 = vmatpush.bf16.msra.mxu0 0
      %955 = vmatpush.bf16.msra.mxu0 %v946
      %956 = vmatmul.bf16.gmra.mxu0 %v944
      %v957 = vpop.f32.mrf.mxu0
      %v958 = vadd.f32 0.0, %v957
      %v959 = vpop.f32.mrf.mxu0
      %960 = vdwg.mxu0
      %v962 = vsel %vm385, %v834, 0
      %v964 = vsel %vm685, %v215, 0
      %966 = vmatpush.bf16.msra.mxu0 0
      %967 = vmatpush.bf16.msra.mxu0 0
      %968 = vmatpush.bf16.msra.mxu0 0
      %969 = vmatpush.bf16.msra.mxu0 0
      %970 = vmatpush.bf16.msra.mxu0 0
      %971 = vmatpush.bf16.msra.mxu0 0
      %972 = vmatpush.bf16.msra.mxu0 0
      %973 = vmatpush.bf16.msra.mxu0 %v964
      %974 = vmatmul.bf16.gmra.mxu0 %v962
      %v975 = vpop.f32.mrf.mxu0
      %v976 = vadd.f32 0.0, %v975
      %v977 = vpop.f32.mrf.mxu0
      %978 = vdwg.mxu0
      %v979 = vsub.f32 %v175, %v698
      %v980 = vsub.f32 %v176, %v716
      %v981 = vsub.f32 %v177, %v734
      %v982 = vsub.f32 %v178, %v752
      %v983 = vsub.f32 %v179, %v770
      %v984 = vsub.f32 %v180, %v788
      %v985 = vsub.f32 %v181, %v806
      %v986 = vsub.f32 %v182, %v824
      %v987 = vmul.f32 %v175, %v698
      %v988 = vmul.f32 %v176, %v716
      %v989 = vmul.f32 %v177, %v734
      %v990 = vmul.f32 %v178, %v752
      %v991 = vmul.f32 %v179, %v770
      %v992 = vmul.f32 %v180, %v788
      %v993 = vmul.f32 %v181, %v806
      %v994 = vmul.f32 %v182, %v824
      %1003 = vrot.lane.b32.xlu0 %v698, 64
      %v1004 = vpop.permute.xlu0 %1003
      %1005 = vrot.lane.b32.xlu0 %v716, 64
      %v1006 = vpop.permute.xlu0 %1005
      %1007 = vrot.lane.b32.xlu0 %v734, 64
      %v1008 = vpop.permute.xlu0 %1007
      %1009 = vrot.lane.b32.xlu0 %v752, 64
      %v1010 = vpop.permute.xlu0 %1009
      %1011 = vrot.lane.b32.xlu0 %v770, 64
      %v1012 = vpop.permute.xlu0 %1011
      %1013 = vrot.lane.b32.xlu0 %v788, 64
      %v1014 = vpop.permute.xlu0 %1013
      %1015 = vrot.lane.b32.xlu0 %v806, 64
      %v1016 = vpop.permute.xlu0 %1015
      %1017 = vrot.lane.b32.xlu0 %v824, 64
      %v1018 = vpop.permute.xlu0 %1017
      %1035 = vrot.lane.b32.xlu0 %v987, 64
      %v1036 = vpop.permute.xlu0 %1035
      %1037 = vrot.lane.b32.xlu0 %v988, 64
      %v1038 = vpop.permute.xlu0 %1037
      %1039 = vrot.lane.b32.xlu0 %v989, 64
      %v1040 = vpop.permute.xlu0 %1039
      %1041 = vrot.lane.b32.xlu0 %v990, 64
      %v1042 = vpop.permute.xlu0 %1041
      %1043 = vrot.lane.b32.xlu0 %v991, 64
      %v1044 = vpop.permute.xlu0 %1043
      %1045 = vrot.lane.b32.xlu0 %v992, 64
      %v1046 = vpop.permute.xlu0 %1045
      %1047 = vrot.lane.b32.xlu0 %v993, 64
      %v1048 = vpop.permute.xlu0 %1047
      %1049 = vrot.lane.b32.xlu0 %v994, 64
      %v1050 = vpop.permute.xlu0 %1049
      %v1059 = vsel %vm232, %v175, %v1004
      %v1060 = vsel %vm232, %v176, %v1006
      %v1061 = vsel %vm232, %v177, %v1008
      %v1062 = vsel %vm232, %v178, %v1010
      %v1063 = vsel %vm232, %v179, %v1012
      %v1064 = vsel %vm232, %v180, %v1014
      %v1065 = vsel %vm232, %v181, %v1016
      %v1066 = vsel %vm232, %v182, %v1018
      %v1067 = vsel %vm232, %v979, %v1036
      %v1068 = vsel %vm232, %v980, %v1038
      %v1069 = vsel %vm232, %v981, %v1040
      %v1070 = vsel %vm232, %v982, %v1042
      %v1071 = vsel %vm232, %v983, %v1044
      %v1072 = vsel %vm232, %v984, %v1046
      %v1073 = vsel %vm232, %v985, %v1048
      %v1074 = vsel %vm232, %v986, %v1050
      %v1075 = vpack.c.bf16 %v1067, %v1059
      %v1076 = vpack.c.bf16 %v1068, %v1060
      %v1077 = vpack.c.bf16 %v1069, %v1061
      %v1078 = vpack.c.bf16 %v1070, %v1062
      %v1079 = vpack.c.bf16 %v1071, %v1063
      %v1080 = vpack.c.bf16 %v1072, %v1064
      %v1081 = vpack.c.bf16 %v1073, %v1065
      %v1082 = vpack.c.bf16 %v1074, %v1066
      %1083 = vst [vmem:[%s172] sm:$0xff] %v1075
      %1084 = vst [vmem:[%s172 + $0x10] sm:$0xff] %v1076
      %1085 = vst [vmem:[%s172 + $0x20] sm:$0xff] %v1077
      %1086 = vst [vmem:[%s172 + $0x30] sm:$0xff] %v1078
      %1087 = vst [vmem:[%s172 + $0x40] sm:$0xff] %v1079
      %1088 = vst [vmem:[%s172 + $0x50] sm:$0xff] %v1080
      %1089 = vst [vmem:[%s172 + $0x60] sm:$0xff] %v1081
      %1090 = vst [vmem:[%s172 + $0x70] sm:$0xff] %v1082
      %v1091 = vsub.f32 %v184, %v850
      %v1092 = vsub.f32 %v185, %v868
      %v1093 = vsub.f32 %v186, %v886
      %v1094 = vsub.f32 %v187, %v904
      %v1095 = vsub.f32 %v188, %v922
      %v1096 = vsub.f32 %v189, %v940
      %v1097 = vsub.f32 %v190, %v958
      %v1098 = vsub.f32 %v191, %v976
      %v1099 = vmul.f32 %v184, %v850
      %v1100 = vmul.f32 %v185, %v868
      %v1101 = vmul.f32 %v186, %v886
      %v1102 = vmul.f32 %v187, %v904
      %v1103 = vmul.f32 %v188, %v922
      %v1104 = vmul.f32 %v189, %v940
      %v1105 = vmul.f32 %v190, %v958
      %v1106 = vmul.f32 %v191, %v976
      %1115 = vrot.lane.b32.xlu0 %v850, 64
      %v1116 = vpop.permute.xlu0 %1115
      %1117 = vrot.lane.b32.xlu0 %v868, 64
      %v1118 = vpop.permute.xlu0 %1117
      %1119 = vrot.lane.b32.xlu0 %v886, 64
      %v1120 = vpop.permute.xlu0 %1119
      %1121 = vrot.lane.b32.xlu0 %v904, 64
      %v1122 = vpop.permute.xlu0 %1121
      %1123 = vrot.lane.b32.xlu0 %v922, 64
      %v1124 = vpop.permute.xlu0 %1123
      %1125 = vrot.lane.b32.xlu0 %v940, 64
      %v1126 = vpop.permute.xlu0 %1125
      %1127 = vrot.lane.b32.xlu0 %v958, 64
      %v1128 = vpop.permute.xlu0 %1127
      %1129 = vrot.lane.b32.xlu0 %v976, 64
      %v1130 = vpop.permute.xlu0 %1129
      %1147 = vrot.lane.b32.xlu0 %v1099, 64
      %v1148 = vpop.permute.xlu0 %1147
      %1149 = vrot.lane.b32.xlu0 %v1100, 64
      %v1150 = vpop.permute.xlu0 %1149
      %1151 = vrot.lane.b32.xlu0 %v1101, 64
      %v1152 = vpop.permute.xlu0 %1151
      %1153 = vrot.lane.b32.xlu0 %v1102, 64
      %v1154 = vpop.permute.xlu0 %1153
      %1155 = vrot.lane.b32.xlu0 %v1103, 64
      %v1156 = vpop.permute.xlu0 %1155
      %1157 = vrot.lane.b32.xlu0 %v1104, 64
      %v1158 = vpop.permute.xlu0 %1157
      %1159 = vrot.lane.b32.xlu0 %v1105, 64
      %v1160 = vpop.permute.xlu0 %1159
      %1161 = vrot.lane.b32.xlu0 %v1106, 64
      %v1162 = vpop.permute.xlu0 %1161
      %v1171 = vsel %vm232, %v184, %v1116
      %v1172 = vsel %vm232, %v185, %v1118
      %v1173 = vsel %vm232, %v186, %v1120
      %v1174 = vsel %vm232, %v187, %v1122
      %v1175 = vsel %vm232, %v188, %v1124
      %v1176 = vsel %vm232, %v189, %v1126
      %v1177 = vsel %vm232, %v190, %v1128
      %v1178 = vsel %vm232, %v191, %v1130
      %v1179 = vsel %vm232, %v1091, %v1148
      %v1180 = vsel %vm232, %v1092, %v1150
      %v1181 = vsel %vm232, %v1093, %v1152
      %v1182 = vsel %vm232, %v1094, %v1154
      %v1183 = vsel %vm232, %v1095, %v1156
      %v1184 = vsel %vm232, %v1096, %v1158
      %v1185 = vsel %vm232, %v1097, %v1160
      %v1186 = vsel %vm232, %v1098, %v1162
      %v1187 = vpack.c.bf16 %v1179, %v1171
      %v1188 = vpack.c.bf16 %v1180, %v1172
      %v1189 = vpack.c.bf16 %v1181, %v1173
      %v1190 = vpack.c.bf16 %v1182, %v1174
      %v1191 = vpack.c.bf16 %v1183, %v1175
      %v1192 = vpack.c.bf16 %v1184, %v1176
      %v1193 = vpack.c.bf16 %v1185, %v1177
      %v1194 = vpack.c.bf16 %v1186, %v1178
      %s1195 = scalar_lea.vmem %s172, 8
      %1196 = vst [vmem:[%s1195] sm:$0xff] %v1187
      %1197 = vst [vmem:[%s1195 + $0x10] sm:$0xff] %v1188
      %1198 = vst [vmem:[%s1195 + $0x20] sm:$0xff] %v1189
      %1199 = vst [vmem:[%s1195 + $0x30] sm:$0xff] %v1190
      %1200 = vst [vmem:[%s1195 + $0x40] sm:$0xff] %v1191
      %1201 = vst [vmem:[%s1195 + $0x50] sm:$0xff] %v1192
      %1202 = vst [vmem:[%s1195 + $0x60] sm:$0xff] %v1193
      %1203 = vst [vmem:[%s1195 + $0x70] sm:$0xff] %v1194
      %s1204 = smul.u32 8, %s13
      %p1205 = scmp.lt.s32.totalorder %s1204, 15
      %s1206 = scalar_select %p1205, %s1204, 15
      %s1207 = smul.addr %s1206, 4
      %s1208 = smul.addr %s1207, 4
      %s1209 = scalar_lea.vmem %s2, %s1208
      // Predicated region
      $region29: #{esim_forward.5} parent=27 // pred_check
        %p1210 = pneg %p83
      $region30: #{esim_forward.5} parent=27 // pred_check_branch
        %1212 = sbr.rel (%p1210) target = $region32
      $region31: #{esim_forward.5} parent=27 // pred_region
        %s1213 = smul.u32 8, %s13
      $region32: #{esim_forward.5} parent=27 // pred_fallthru
        _
    $region28: #{esim_forward.5} parent=5 // pred_fallthru
      _
    %p1214 = scmp.le.s32.totalorder 2, %s8
    // Predicated region
    $region33: #{esim_forward.5} parent=5 // pred_check
      %p1215 = pneg %p1214
    $region34: #{esim_forward.5} parent=5 // pred_check_branch
      %1217 = sbr.rel (%p1215) target = $region36
    $region35: #{esim_forward.5} parent=5 // pred_region
      %s1218 = ssub.s32 %s8, 2
      // Predicated region
      $region37: #{esim_forward.5} parent=35 // pred_check
        %p1219 = pneg %p89
      $region38: #{esim_forward.5} parent=35 // pred_check_branch
        %1221 = sbr.rel (%p1219) target = $region40
      $region39: #{esim_forward.5} parent=35 // pred_region
        %s1222 = smul.u32 8, %s14
        %p1223 = scmp.lt.s32.totalorder %s1222, 15
        %s1224 = scalar_select %p1223, %s1222, 15
        %s1225 = smul.addr %s1224, 4
        %s1226 = smul.addr %s1225, 4
        %s1227 = scalar_lea.vmem %s2, %s1226
      $region40: #{esim_forward.5} parent=35 // pred_fallthru
        _
    $region36: #{esim_forward.5} parent=5 // pred_fallthru
      _
  $region6: #{esim_forward.5} parent=0 // loop_footer
    %s12 = sadd.s32 1, %s8
  $region7: #{esim_forward.5} parent=0 // loop_footer_branch
    %7 = sbr.rel target = $region3
  $region8: #{esim_forward.5} parent=0 // loop_exit
    _

// kernel: esim_forward.4
$region0: #{esim_forward.4}
  #allocation0 [shape = 'u32[]', space=smem, size = 0x4, offset = 0x4, fixed_abs, tag = 'smem constant byte address 0x4 - core index']
  #allocation1 [shape = 'u32[72,128]{1,0:T(1,128)}', space=vmem, size = 0x9000, scoped, tag = 'internal scratch']
  #allocation2 [shape = 'f32[8,16,128]{2,1,0:T(8,128)}', space=vmem, size = 0x10000, scoped, tag = 'scratch operand']
  #allocation3 [shape = 'f32[8,16,128]{2,1,0:T(8,128)}', space=vmem, size = 0x10000, scoped, tag = 'scratch operand']
  %s0 = inlined_call_operand.vmem [shape: bf16[8,32,32], index: 0, kind: input, shape index: {}]
  %s1 = inlined_call_operand.vmem [shape: bf16[32,128], index: 1, kind: input, shape index: {}]
  %s2 = inlined_call_operand.vmem [shape: bf16[32,128], index: 2, kind: input, shape index: {}]
  %s3 = inlined_call_operand.vmem [shape: f32[1,128], index: 3, kind: input, shape index: {}]
  %s4 = inlined_call_operand.vmem [shape: f32[1,128], index: 4, kind: input, shape index: {}]
  %s5 = inlined_call_operand.vmem [shape: bf16[64,128], index: 5, kind: input, shape index: {}]
  %s6 = inlined_call_operand.vmem [shape: f32[8,2,32,32], index: 6, kind: output, shape index: {}]
  %s7 = sld [smem:[#allocation0]]
  $region132: #{esim_forward.4} parent=0
    _
  %s9 = ssub.s32 1, %s7
  %s10 = scalar_select 0, %s9, %s7
  $region1: #{esim_forward.4} parent=0
    #allocation4 [shape = 'u8[65536]{0}', space=vmem, size = 0x10000, scoped, tag = 'input window, operand 0']
    #allocation5 [shape = 'u8[262144]{0}', space=vmem, size = 0x40000, scoped, tag = 'output window, operand 0']
    loop: start=0, step=1, limit=4
    $region2: #{esim_forward.4} parent=1 // loop_pre_header
      _
    $region3: #{esim_forward.4} parent=1 // loop_header
      %s12 = sphi 0, %s16
      %p13 = scmp.ge.s32.totalorder %s12, 4
      %s22 = sphi 0, %s24
      %s25 = sphi 0, %s22
      %s26 = sphi 0, %s25
      %s42 = sphi 0, %s26
      %s46 = sphi 0, %s46
      %s48 = sphi 0, %s46
      %s49 = sphi 0, %s48
      %s63 = sphi 0, %s49
      %s67 = sphi 0, %s67
      %s69 = sphi 0, %s67
      %s70 = sphi 0, %s69
      %s84 = sphi 0, %s70
      %s88 = sphi 0, %s88
      %s90 = sphi 0, %s88
      %s91 = sphi 0, %s90
      %s105 = sphi 0, %s91
      %s109 = sphi 0, %s109
      %s111 = sphi 0, %s109
      %s112 = sphi 0, %s111
      %s126 = sphi 0, %s112
      %s130 = sphi 0, %s130
      %s132 = sphi 0, %s130
      %s133 = sphi 0, %s132
      %s147 = sphi 0, %s133
      %s153 = sphi 0, %s155
      %s156 = sphi 0, %s153
      %s157 = sphi 0, %s156
      %s173 = sphi 0, %s157
    $region4: #{esim_forward.4} parent=1 // loop_header_branch
      %15 = sbr.rel (%p13) target = $region8
    $region5: #{esim_forward.4} parent=1 // loop_body
      %s17 = ssub.s32 %s12, 1
      %s18 = ssub.s32 %s12, 2
      %s19 = sadd.s32 %s12, 1
      %s20 = ssub.s32 %s12, %s19
      %p21 = scmp.eq.s32.totalorder %s20, 0
      %s23 = sadd.s32 %s22, 1
      %s24 = scalar_select %p21, %s22, %s23
      %p27 = pneg %p21
      %p28 = scmp.eq.s32.totalorder %s12, 1
      %p29 = por %p27, %p28
      %p30 = scmp.ne.s32.totalorder %s22, %s25
      %p31 = scmp.eq.s32.totalorder %s12, 0
      %p32 = por %p30, %p31
      %p33 = scmp.ne.s32.totalorder %s22, %s25
      %p34 = scmp.eq.s32.totalorder %s17, 1
      %p35 = por %p33, %p34
      %p36 = scmp.ne.s32.totalorder %s25, %s26
      %p37 = scmp.eq.s32.totalorder %s17, 0
      %p38 = por %p36, %p37
      %p39 = scmp.ne.s32.totalorder %s25, %s26
      %p40 = scmp.eq.s32.totalorder %s18, 1
      %p41 = por %p39, %p40
      %p43 = scmp.ne.s32.totalorder %s26, %s42
      %p44 = scmp.eq.s32.totalorder %s18, 0
      %p45 = por %p43, %p44
      %s47 = sadd.s32 %s46, 1
      %p50 = scmp.eq.s32.totalorder %s12, 1
      %p51 = scmp.ne.s32.totalorder %s46, %s48
      %p52 = scmp.eq.s32.totalorder %s12, 0
      %p53 = por %p51, %p52
      %p54 = scmp.ne.s32.totalorder %s46, %s48
      %p55 = scmp.eq.s32.totalorder %s17, 1
      %p56 = por %p54, %p55
      %p57 = scmp.ne.s32.totalorder %s48, %s49
      %p58 = scmp.eq.s32.totalorder %s17, 0
      %p59 = por %p57, %p58
      %p60 = scmp.ne.s32.totalorder %s48, %s49
      %p61 = scmp.eq.s32.totalorder %s18, 1
      %p62 = por %p60, %p61
      %p64 = scmp.ne.s32.totalorder %s49, %s63
      %p65 = scmp.eq.s32.totalorder %s18, 0
      %p66 = por %p64, %p65
      %s68 = sadd.s32 %s67, 1
      %p71 = scmp.eq.s32.totalorder %s12, 1
      %p72 = scmp.ne.s32.totalorder %s67, %s69
      %p73 = scmp.eq.s32.totalorder %s12, 0
      %p74 = por %p72, %p73
      %p75 = scmp.ne.s32.totalorder %s67, %s69
      %p76 = scmp.eq.s32.totalorder %s17, 1
      %p77 = por %p75, %p76
      %p78 = scmp.ne.s32.totalorder %s69, %s70
      %p79 = scmp.eq.s32.totalorder %s17, 0
      %p80 = por %p78, %p79
      %p81 = scmp.ne.s32.totalorder %s69, %s70
      %p82 = scmp.eq.s32.totalorder %s18, 1
      %p83 = por %p81, %p82
      %p85 = scmp.ne.s32.totalorder %s70, %s84
      %p86 = scmp.eq.s32.totalorder %s18, 0
      %p87 = por %p85, %p86
      %s89 = sadd.s32 %s88, 1
      %p92 = scmp.eq.s32.totalorder %s12, 1
      %p93 = scmp.ne.s32.totalorder %s88, %s90
      %p94 = scmp.eq.s32.totalorder %s12, 0
      %p95 = por %p93, %p94
      %p96 = scmp.ne.s32.totalorder %s88, %s90
      %p97 = scmp.eq.s32.totalorder %s17, 1
      %p98 = por %p96, %p97
      %p99 = scmp.ne.s32.totalorder %s90, %s91
      %p100 = scmp.eq.s32.totalorder %s17, 0
      %p101 = por %p99, %p100
      %p102 = scmp.ne.s32.totalorder %s90, %s91
      %p103 = scmp.eq.s32.totalorder %s18, 1
      %p104 = por %p102, %p103
      %p106 = scmp.ne.s32.totalorder %s91, %s105
      %p107 = scmp.eq.s32.totalorder %s18, 0
      %p108 = por %p106, %p107
      %s110 = sadd.s32 %s109, 1
      %p113 = scmp.eq.s32.totalorder %s12, 1
      %p114 = scmp.ne.s32.totalorder %s109, %s111
      %p115 = scmp.eq.s32.totalorder %s12, 0
      %p116 = por %p114, %p115
      %p117 = scmp.ne.s32.totalorder %s109, %s111
      %p118 = scmp.eq.s32.totalorder %s17, 1
      %p119 = por %p117, %p118
      %p120 = scmp.ne.s32.totalorder %s111, %s112
      %p121 = scmp.eq.s32.totalorder %s17, 0
      %p122 = por %p120, %p121
      %p123 = scmp.ne.s32.totalorder %s111, %s112
      %p124 = scmp.eq.s32.totalorder %s18, 1
      %p125 = por %p123, %p124
      %p127 = scmp.ne.s32.totalorder %s112, %s126
      %p128 = scmp.eq.s32.totalorder %s18, 0
      %p129 = por %p127, %p128
      %s131 = sadd.s32 %s130, 1
      %p134 = scmp.eq.s32.totalorder %s12, 1
      %p135 = scmp.ne.s32.totalorder %s130, %s132
      %p136 = scmp.eq.s32.totalorder %s12, 0
      %p137 = por %p135, %p136
      %p138 = scmp.ne.s32.totalorder %s130, %s132
      %p139 = scmp.eq.s32.totalorder %s17, 1
      %p140 = por %p138, %p139
      %p141 = scmp.ne.s32.totalorder %s132, %s133
      %p142 = scmp.eq.s32.totalorder %s17, 0
      %p143 = por %p141, %p142
      %p144 = scmp.ne.s32.totalorder %s132, %s133
      %p145 = scmp.eq.s32.totalorder %s18, 1
      %p146 = por %p144, %p145
      %p148 = scmp.ne.s32.totalorder %s133, %s147
      %p149 = scmp.eq.s32.totalorder %s18, 0
      %p150 = por %p148, %p149
      %s151 = ssub.s32 %s12, %s19
      %p152 = scmp.eq.s32.totalorder %s151, 0
      %s154 = sadd.s32 %s153, 1
      %s155 = scalar_select %p152, %s153, %s154
      %p158 = pneg %p152
      %p159 = scmp.eq.s32.totalorder %s12, 1
      %p160 = por %p158, %p159
      %p161 = scmp.ne.s32.totalorder %s153, %s156
      %p162 = scmp.eq.s32.totalorder %s12, 0
      %p163 = por %p161, %p162
      %p164 = scmp.ne.s32.totalorder %s153, %s156
      %p165 = scmp.eq.s32.totalorder %s17, 1
      %p166 = por %p164, %p165
      %p167 = scmp.ne.s32.totalorder %s156, %s157
      %p168 = scmp.eq.s32.totalorder %s17, 0
      %p169 = por %p167, %p168
      %p170 = scmp.ne.s32.totalorder %s156, %s157
      %p171 = scmp.eq.s32.totalorder %s18, 1
      %p172 = por %p170, %p171
      %p174 = scmp.ne.s32.totalorder %s157, %s173
      %p175 = scmp.eq.s32.totalorder %s18, 0
      %p176 = por %p174, %p175
      %p177 = scmp.le.s32.totalorder 1, %s12
      %p178 = scmp.lt.s32.totalorder %s12, 3
      %p179 = pnand %p177, %p178
      %p180 = pneg %p179
      // Predicated region
      $region9: #{esim_forward.4} parent=5 // pred_check
        _
      $region10: #{esim_forward.4} parent=5 // pred_check_branch
        %182 = sbr.rel (%p179) target = $region12
      $region11: #{esim_forward.4} parent=5 // pred_region
        %s183 = ssub.s32 %s12, 1
        // Predicated region
        $region13: #{esim_forward.4} parent=11 // pred_check
          %p184 = pneg %p59
        $region14: #{esim_forward.4} parent=11 // pred_check_branch
          %186 = sbr.rel (%p184) target = $region16
        $region15: #{esim_forward.4} parent=11 // pred_region
          _
        $region16: #{esim_forward.4} parent=11 // pred_fallthru
          _
        // Predicated region
        $region17: #{esim_forward.4} parent=11 // pred_check
          %p187 = pneg %p80
        $region18: #{esim_forward.4} parent=11 // pred_check_branch
          %189 = sbr.rel (%p187) target = $region20
        $region19: #{esim_forward.4} parent=11 // pred_region
          _
        $region20: #{esim_forward.4} parent=11 // pred_fallthru
          _
        // Predicated region
        $region21: #{esim_forward.4} parent=11 // pred_check
          %p190 = pneg %p101
        $region22: #{esim_forward.4} parent=11 // pred_check_branch
          %192 = sbr.rel (%p190) target = $region24
        $region23: #{esim_forward.4} parent=11 // pred_region
          _
        $region24: #{esim_forward.4} parent=11 // pred_fallthru
          _
        // Predicated region
        $region25: #{esim_forward.4} parent=11 // pred_check
          %p193 = pneg %p122
        $region26: #{esim_forward.4} parent=11 // pred_check_branch
          %195 = sbr.rel (%p193) target = $region28
        $region27: #{esim_forward.4} parent=11 // pred_region
          _
        $region28: #{esim_forward.4} parent=11 // pred_fallthru
          _
        // Predicated region
        $region29: #{esim_forward.4} parent=11 // pred_check
          %p196 = pneg %p143
        $region30: #{esim_forward.4} parent=11 // pred_check_branch
          %198 = sbr.rel (%p196) target = $region32
        $region31: #{esim_forward.4} parent=11 // pred_region
          _
        $region32: #{esim_forward.4} parent=11 // pred_fallthru
          _
      $region12: #{esim_forward.4} parent=5 // pred_fallthru
        _
      %p199 = scmp.lt.s32.totalorder %s12, 2
      // Predicated region
      $region33: #{esim_forward.4} parent=5 // pred_check
        %p200 = pneg %p199
      $region34: #{esim_forward.4} parent=5 // pred_check_branch
        %202 = sbr.rel (%p200) target = $region36
      $region35: #{esim_forward.4} parent=5 // pred_region
        // Predicated region
        $region37: #{esim_forward.4} parent=35 // pred_check
          %p203 = pneg %p32
        $region38: #{esim_forward.4} parent=35 // pred_check_branch
          %205 = sbr.rel (%p203) target = $region40
        $region39: #{esim_forward.4} parent=35 // pred_region
          %s206 = sand.u32 %s22, 1
          %s207 = sand.u32 %s22, 1
          %s208 = smul.addr %s207, 64
          %s209 = scalar_lea.vmem [#allocation4], %s208
          %s210 = smul.u32 2, %s12
          %s211 = smul.addr %s210, 4
          %s212 = scalar_lea.vmem %s0, %s211
          // Predicated region
          $region41: #{esim_forward.4} parent=39 // pred_check
            _
          $region42: #{esim_forward.4} parent=39 // pred_check_branch
            %214 = sbr.rel (0) target = $region44
          $region43: #{esim_forward.4} parent=39 // pred_region
            // Predicated region
            $region45: #{esim_forward.4} parent=43 // pred_check
              _
            $region46: #{esim_forward.4} parent=43 // pred_check_branch
              %216 = sbr.rel target = $region48
            $region47: #{esim_forward.4} parent=43 // pred_region
              // Predicated region
              $region60: #{esim_forward.4} parent=47 // pred_check
                _
              $region61: #{esim_forward.4} parent=47 // pred_check_branch
                %262 = sbr.rel (0) target = $region63
              $region62: #{esim_forward.4} parent=47 // pred_region
                loop: start=0, step=1, limit=1
                $region64: #{esim_forward.4} parent=62 // loop_pre_header
                  _
                $region65: #{esim_forward.4} parent=62 // loop_header
                  %s264 = sphi 0, %s268
                  %p265 = scmp.ge.s32.totalorder %s264, 1
                  %s269 = sphi %s212, %s212
                  %s270 = sphi %s209, %s209
                $region66: #{esim_forward.4} parent=62 // loop_header_branch
                  %267 = sbr.rel (%p265) target = $region70
                $region67: #{esim_forward.4} parent=62 // loop_body
                  _
                $region68: #{esim_forward.4} parent=62 // loop_footer
                  %s268 = sadd.s32 1, %s264
                $region69: #{esim_forward.4} parent=62 // loop_footer_branch
                  %263 = sbr.rel target = $region65
                $region70: #{esim_forward.4} parent=62 // loop_exit
                  _
                %s272 = ssub.s32 16, 1
                loop: start=0, step=1, limit=1
                $region71: #{esim_forward.4} parent=62 // loop_pre_header
                  _
                $region72: #{esim_forward.4} parent=62 // loop_header
                  %s274 = sphi 0, %s278
                  %p275 = scmp.ge.s32.totalorder %s274, 1
                  %s279 = sphi %s212, %s212
                  %s280 = sphi %s209, %s209
                $region73: #{esim_forward.4} parent=62 // loop_header_branch
                  %277 = sbr.rel (%p275) target = $region77
                $region74: #{esim_forward.4} parent=62 // loop_body
                  %v281 = vld [vmem:[%s279] sm:%s272]
                  %282 = vst [vmem:[%s280] sm:%s272] %v281
                  %v283 = vld [vmem:[%s279 + $0x4] sm:%s272]
                  %284 = vst [vmem:[%s280 + $0x4] sm:%s272] %v283
                  %v285 = vld [vmem:[%s279 + $0x10] sm:%s272]
                  %286 = vst [vmem:[%s280 + $0x8] sm:%s272] %v285
                  %v287 = vld [vmem:[%s279 + $0x14] sm:%s272]
                  %288 = vst [vmem:[%s280 + $0xc] sm:%s272] %v287
                  %v289 = vld [vmem:[%s279 + $0x20] sm:%s272]
                  %290 = vst [vmem:[%s280 + $0x10] sm:%s272] %v289
                  %v291 = vld [vmem:[%s279 + $0x24] sm:%s272]
                  %292 = vst [vmem:[%s280 + $0x14] sm:%s272] %v291
                  %v293 = vld [vmem:[%s279 + $0x30] sm:%s272]
                  %294 = vst [vmem:[%s280 + $0x18] sm:%s272] %v293
                  %v295 = vld [vmem:[%s279 + $0x34] sm:%s272]
                  %296 = vst [vmem:[%s280 + $0x1c] sm:%s272] %v295
                  %v297 = vld [vmem:[%s279 + $0x40] sm:%s272]
                  %298 = vst [vmem:[%s280 + $0x20] sm:%s272] %v297
                  %v299 = vld [vmem:[%s279 + $0x44] sm:%s272]
                  %300 = vst [vmem:[%s280 + $0x24] sm:%s272] %v299
                  %v301 = vld [vmem:[%s279 + $0x50] sm:%s272]
                  %302 = vst [vmem:[%s280 + $0x28] sm:%s272] %v301
                  %v303 = vld [vmem:[%s279 + $0x54] sm:%s272]
                  %304 = vst [vmem:[%s280 + $0x2c] sm:%s272] %v303
                  %v305 = vld [vmem:[%s279 + $0x60] sm:%s272]
                  %306 = vst [vmem:[%s280 + $0x30] sm:%s272] %v305
                  %v307 = vld [vmem:[%s279 + $0x64] sm:%s272]
                  %308 = vst [vmem:[%s280 + $0x34] sm:%s272] %v307
                  %v309 = vld [vmem:[%s279 + $0x70] sm:%s272]
                  %310 = vst [vmem:[%s280 + $0x38] sm:%s272] %v309
                  %v311 = vld [vmem:[%s279 + $0x74] sm:%s272]
                  %312 = vst [vmem:[%s280 + $0x3c] sm:%s272] %v311
                $region75: #{esim_forward.4} parent=62 // loop_footer
                  %s278 = sadd.s32 1, %s274
                $region76: #{esim_forward.4} parent=62 // loop_footer_branch
                  %273 = sbr.rel target = $region72
                $region77: #{esim_forward.4} parent=62 // loop_exit
                  _
              $region63: #{esim_forward.4} parent=47 // pred_fallthru
                _
            $region48: #{esim_forward.4} parent=43 // pred_fallthru
              _
            // Predicated region
            $region49: #{esim_forward.4} parent=43 // pred_check
              _
            $region50: #{esim_forward.4} parent=43 // pred_check_branch
              %218 = sbr.rel (0) target = $region52
            $region51: #{esim_forward.4} parent=43 // pred_region
              %s220 = ssub.s32 16, 1
              loop: start=0, step=1, limit=1
              $region53: #{esim_forward.4} parent=51 // loop_pre_header
                _
              $region54: #{esim_forward.4} parent=51 // loop_header
                %s222 = sphi 0, %s226
                %p223 = scmp.ge.s32.totalorder %s222, 1
                %s227 = sphi %s212, %s212
                %s228 = sphi %s209, %s209
              $region55: #{esim_forward.4} parent=51 // loop_header_branch
                %225 = sbr.rel (%p223) target = $region59
              $region56: #{esim_forward.4} parent=51 // loop_body
                %v229 = vld [vmem:[%s227] sm:%s220]
                %230 = vst [vmem:[%s228] sm:%s220] %v229
                %v231 = vld [vmem:[%s227 + $0x4] sm:%s220]
                %232 = vst [vmem:[%s228 + $0x4] sm:%s220] %v231
                %v233 = vld [vmem:[%s227 + $0x10] sm:%s220]
                %234 = vst [vmem:[%s228 + $0x8] sm:%s220] %v233
                %v235 = vld [vmem:[%s227 + $0x14] sm:%s220]
                %236 = vst [vmem:[%s228 + $0xc] sm:%s220] %v235
                %v237 = vld [vmem:[%s227 + $0x20] sm:%s220]
                %238 = vst [vmem:[%s228 + $0x10] sm:%s220] %v237
                %v239 = vld [vmem:[%s227 + $0x24] sm:%s220]
                %240 = vst [vmem:[%s228 + $0x14] sm:%s220] %v239
                %v241 = vld [vmem:[%s227 + $0x30] sm:%s220]
                %242 = vst [vmem:[%s228 + $0x18] sm:%s220] %v241
                %v243 = vld [vmem:[%s227 + $0x34] sm:%s220]
                %244 = vst [vmem:[%s228 + $0x1c] sm:%s220] %v243
                %v245 = vld [vmem:[%s227 + $0x40] sm:%s220]
                %246 = vst [vmem:[%s228 + $0x20] sm:%s220] %v245
                %v247 = vld [vmem:[%s227 + $0x44] sm:%s220]
                %248 = vst [vmem:[%s228 + $0x24] sm:%s220] %v247
                %v249 = vld [vmem:[%s227 + $0x50] sm:%s220]
                %250 = vst [vmem:[%s228 + $0x28] sm:%s220] %v249
                %v251 = vld [vmem:[%s227 + $0x54] sm:%s220]
                %252 = vst [vmem:[%s228 + $0x2c] sm:%s220] %v251
                %v253 = vld [vmem:[%s227 + $0x60] sm:%s220]
                %254 = vst [vmem:[%s228 + $0x30] sm:%s220] %v253
                %v255 = vld [vmem:[%s227 + $0x64] sm:%s220]
                %256 = vst [vmem:[%s228 + $0x34] sm:%s220] %v255
                %v257 = vld [vmem:[%s227 + $0x70] sm:%s220]
                %258 = vst [vmem:[%s228 + $0x38] sm:%s220] %v257
                %v259 = vld [vmem:[%s227 + $0x74] sm:%s220]
                %260 = vst [vmem:[%s228 + $0x3c] sm:%s220] %v259
              $region57: #{esim_forward.4} parent=51 // loop_footer
                %s226 = sadd.s32 1, %s222
              $region58: #{esim_forward.4} parent=51 // loop_footer_branch
                %221 = sbr.rel target = $region54
              $region59: #{esim_forward.4} parent=51 // loop_exit
                _
            $region52: #{esim_forward.4} parent=43 // pred_fallthru
              _
          $region44: #{esim_forward.4} parent=39 // pred_fallthru
            _
          %313 = vnop
        $region40: #{esim_forward.4} parent=35 // pred_fallthru
          _
      $region36: #{esim_forward.4} parent=5 // pred_fallthru
        _
      %p314 = scmp.le.s32.totalorder 1, %s12
      %p315 = scmp.lt.s32.totalorder %s12, 3
      %p316 = pnand %p314, %p315
      %p317 = pneg %p316
      // Predicated region
      $region78: #{esim_forward.4} parent=5 // pred_check
        _
      $region79: #{esim_forward.4} parent=5 // pred_check_branch
        %319 = sbr.rel (%p316) target = $region81
      $region80: #{esim_forward.4} parent=5 // pred_region
        %s320 = ssub.s32 %s12, 1
        %s321 = sand.u32 %s25, 1
        %s322 = sand.u32 %s25, 1
        %s323 = smul.addr %s322, 64
        %s324 = scalar_lea.vmem [#allocation4], %s323
        // Predicated region
        $region82: #{esim_forward.4} parent=80 // pred_check
          %p325 = pneg %p38
        $region83: #{esim_forward.4} parent=80 // pred_check_branch
          %327 = sbr.rel (%p325) target = $region85
        $region84: #{esim_forward.4} parent=80 // pred_region
          _
        $region85: #{esim_forward.4} parent=80 // pred_fallthru
          _
        %s328 = sand.u32 %s25, 1
        %s329 = sand.u32 %s25, 1
        %s330 = smul.addr %s329, 64
        %s331 = scalar_lea.vmem [#allocation4], %s330
        %p332 = pneg %p38
        %p333 = pneg %p35
        %p334 = pneg %p59
        %p335 = pneg %p56
        %p336 = pneg %p80
        %p337 = pneg %p77
        %p338 = pneg %p101
        %p339 = pneg %p98
        %p340 = pneg %p122
        %p341 = pneg %p119
        %p342 = pneg %p143
        %p343 = pneg %p140
        %p344 = pneg %p169
        %p345 = pneg %p166
        %s346 = sand.u32 %s156, 1
        %s347 = sand.u32 %s156, 1
        %s348 = smul.addr %s347, 256
        %s349 = scalar_lea.vmem [#allocation5], %s348
        %s350 = smul.u32 2, %s17
        %s351 = smul.u32 2, %s17
        %v353 = vld [vmem:[%s324] sm:$0xf]
        %v354 = vld [vmem:[%s324 + $0x4] sm:$0xf]
        %v355 = vld [vmem:[%s324 + $0x8] sm:$0xf]
        %v356 = vld [vmem:[%s324 + $0xc] sm:$0xf]
        %v357 = vld [vmem:[%s324 + $0x10] sm:$0xf]
        %v358 = vld [vmem:[%s324 + $0x14] sm:$0xf]
        %v359 = vld [vmem:[%s324 + $0x18] sm:$0xf]
        %v360 = vld [vmem:[%s324 + $0x1c] sm:$0xf]
        %v361 = vld [vmem:[%s324 + $0x20] sm:$0xf]
        %v362 = vld [vmem:[%s324 + $0x24] sm:$0xf]
        %v363 = vld [vmem:[%s324 + $0x28] sm:$0xf]
        %v364 = vld [vmem:[%s324 + $0x2c] sm:$0xf]
        %v365 = vld [vmem:[%s324 + $0x30] sm:$0xf]
        %v366 = vld [vmem:[%s324 + $0x34] sm:$0xf]
        %v367 = vld [vmem:[%s324 + $0x38] sm:$0xf]
        %v368 = vld [vmem:[%s324 + $0x3c] sm:$0xf]
        %v369 = vld [vmem:[%s1] sm:$0xf]
        %v370 = vld [vmem:[%s1 + $0x4] sm:$0xf]
        %v371 = vld [vmem:[%s1 + $0x8] sm:$0xf]
        %v372 = vld [vmem:[%s1 + $0xc] sm:$0xf]
        %v373 = vld [vmem:[%s3] sm:$0x1]
        %v375 = vperm.slane %v373, 0
        %v393 = vunpack.c.l.b16 %v353
        %v394 = vunpack.c.l.b16 %v354
        %v395 = vunpack.c.l.b16 %v355
        %v396 = vunpack.c.l.b16 %v356
        %v397 = vunpack.c.l.b16 %v357
        %v398 = vunpack.c.l.b16 %v358
        %v399 = vunpack.c.l.b16 %v359
        %v400 = vunpack.c.l.b16 %v360
        %v401 = vunpack.c.l.b16 %v361
        %v402 = vunpack.c.l.b16 %v362
        %v403 = vunpack.c.l.b16 %v363
        %v404 = vunpack.c.l.b16 %v364
        %v405 = vunpack.c.l.b16 %v365
        %v406 = vunpack.c.l.b16 %v366
        %v407 = vunpack.c.l.b16 %v367
        %v408 = vunpack.c.l.b16 %v368
        %v409 = vpack.c.b16 %v394, %v393
        %v410 = vpack.c.b16 %v396, %v395
        %v411 = vpack.c.b16 %v398, %v397
        %v412 = vpack.c.b16 %v400, %v399
        %v413 = vpack.c.b16 %v402, %v401
        %v414 = vpack.c.b16 %v404, %v403
        %v415 = vpack.c.b16 %v406, %v405
        %v416 = vpack.c.b16 %v408, %v407
        %v421 = vunpack.c.l.b16 %v369
        %v422 = vunpack.c.l.b16 %v370
        %v423 = vunpack.c.l.b16 %v371
        %v424 = vunpack.c.l.b16 %v372
        %v425 = vpack.c.b16 %v422, %v421
        %v426 = vpack.c.b16 %v424, %v423
        %vm429 = vcmask 261120
        %v431 = vsel %vm429, %v409, 0
        %v434 = vsel %vm429, %v410, 0
        %v437 = vsel %vm429, %v411, 0
        %v440 = vsel %vm429, %v412, 0
        %v443 = vsel %vm429, %v413, 0
        %v446 = vsel %vm429, %v414, 0
        %v449 = vsel %vm429, %v415, 0
        %v452 = vsel %vm429, %v416, 0
        %454 = vmatpush.bf16.msra.mxu0 0
        %455 = vmatpush.bf16.msra.mxu0 0
        %456 = vmatpush.bf16.msra.mxu0 0
        %457 = vmatpush.bf16.msra.mxu0 0
        %458 = vmatpush.bf16.msra.mxu0 0
        %459 = vmatpush.bf16.msra.mxu0 0
        %460 = vmatpush.bf16.msra.mxu0 %v426
        %461 = vmatpush.bf16.msra.mxu0 %v425
        %462 = vmatmul.bf16.gmra.mxu0 %v431
        %v463 = vpop.f32.mrf.mxu0
        %v464 = vadd.f32 %v375, %v463
        %v465 = vpop.f32.mrf.mxu0
        %v466 = vadd.f32 %v375, %v465
        %467 = vmatmul.bf16.gmra.mxu0 %v434
        %v468 = vpop.f32.mrf.mxu0
        %v469 = vadd.f32 %v375, %v468
        %v470 = vpop.f32.mrf.mxu0
        %v471 = vadd.f32 %v375, %v470
        %472 = vmatmul.bf16.gmra.mxu0 %v437
        %v473 = vpop.f32.mrf.mxu0
        %v474 = vadd.f32 %v375, %v473
        %v475 = vpop.f32.mrf.mxu0
        %v476 = vadd.f32 %v375, %v475
        %477 = vmatmul.bf16.gmra.mxu0 %v440
        %v478 = vpop.f32.mrf.mxu0
        %v479 = vadd.f32 %v375, %v478
        %v480 = vpop.f32.mrf.mxu0
        %v481 = vadd.f32 %v375, %v480
        %482 = vmatmul.bf16.gmra.mxu0 %v443
        %v483 = vpop.f32.mrf.mxu0
        %v484 = vadd.f32 %v375, %v483
        %v485 = vpop.f32.mrf.mxu0
        %v486 = vadd.f32 %v375, %v485
        %487 = vmatmul.bf16.gmra.mxu0 %v446
        %v488 = vpop.f32.mrf.mxu0
        %v489 = vadd.f32 %v375, %v488
        %v490 = vpop.f32.mrf.mxu0
        %v491 = vadd.f32 %v375, %v490
        %492 = vmatmul.bf16.gmra.mxu0 %v449
        %v493 = vpop.f32.mrf.mxu0
        %v494 = vadd.f32 %v375, %v493
        %v495 = vpop.f32.mrf.mxu0
        %v496 = vadd.f32 %v375, %v495
        %497 = vmatmul.bf16.gmra.mxu0 %v452
        %v498 = vpop.f32.mrf.mxu0
        %v499 = vadd.f32 %v375, %v498
        %v500 = vpop.f32.mrf.mxu0
        %v501 = vadd.f32 %v375, %v500
        %502 = vdwg.mxu0
        %503 = vst [vmem:[#allocation2] sm:$0xff] %v464
        %504 = vst [vmem:[#allocation2 + $0x8] sm:$0xff] %v466
        %505 = vst [vmem:[#allocation2 + $0x10] sm:$0xff] %v469
        %506 = vst [vmem:[#allocation2 + $0x18] sm:$0xff] %v471
        %507 = vst [vmem:[#allocation2 + $0x20] sm:$0xff] %v474
        %508 = vst [vmem:[#allocation2 + $0x28] sm:$0xff] %v476
        %509 = vst [vmem:[#allocation2 + $0x30] sm:$0xff] %v479
        %510 = vst [vmem:[#allocation2 + $0x38] sm:$0xff] %v481
        %511 = vst [vmem:[#allocation2 + $0x40] sm:$0xff] %v484
        %512 = vst [vmem:[#allocation2 + $0x48] sm:$0xff] %v486
        %513 = vst [vmem:[#allocation2 + $0x50] sm:$0xff] %v489
        %514 = vst [vmem:[#allocation2 + $0x58] sm:$0xff] %v491
        %515 = vst [vmem:[#allocation2 + $0x60] sm:$0xff] %v494
        %516 = vst [vmem:[#allocation2 + $0x68] sm:$0xff] %v496
        %517 = vst [vmem:[#allocation2 + $0x70] sm:$0xff] %v499
        %518 = vst [vmem:[#allocation2 + $0x78] sm:$0xff] %v501
        %v519 = vld [vmem:[%s2] sm:$0xf]
        %v520 = vld [vmem:[%s2 + $0x4] sm:$0xf]
        %v521 = vld [vmem:[%s2 + $0x8] sm:$0xf]
        %v522 = vld [vmem:[%s2 + $0xc] sm:$0xf]
        %v523 = vld [vmem:[%s4] sm:$0x1]
        %v525 = vperm.slane %v523, 0
        %v531 = vunpack.c.l.b16 %v519
        %v532 = vunpack.c.l.b16 %v520
        %v533 = vunpack.c.l.b16 %v521
        %v534 = vunpack.c.l.b16 %v522
        %v535 = vpack.c.b16 %v532, %v531
        %v536 = vpack.c.b16 %v534, %v533
        %539 = vmatpush.bf16.msra.mxu0 0
        %540 = vmatpush.bf16.msra.mxu0 0
        %541 = vmatpush.bf16.msra.mxu0 0
        %542 = vmatpush.bf16.msra.mxu0 0
        %543 = vmatpush.bf16.msra.mxu0 0
        %544 = vmatpush.bf16.msra.mxu0 0
        %545 = vmatpush.bf16.msra.mxu0 %v536
        %546 = vmatpush.bf16.msra.mxu0 %v535
        %547 = vmatmul.bf16.gmra.mxu0 %v431
        %v548 = vpop.f32.mrf.mxu0
        %v549 = vadd.f32 %v525, %v548
        %v550 = vpop.f32.mrf.mxu0
        %v551 = vadd.f32 %v525, %v550
        %552 = vmatmul.bf16.gmra.mxu0 %v434
        %v553 = vpop.f32.mrf.mxu0
        %v554 = vadd.f32 %v525, %v553
        %v555 = vpop.f32.mrf.mxu0
        %v556 = vadd.f32 %v525, %v555
        %557 = vmatmul.bf16.gmra.mxu0 %v437
        %v558 = vpop.f32.mrf.mxu0
        %v559 = vadd.f32 %v525, %v558
        %v560 = vpop.f32.mrf.mxu0
        %v561 = vadd.f32 %v525, %v560
        %562 = vmatmul.bf16.gmra.mxu0 %v440
        %v563 = vpop.f32.mrf.mxu0
        %v564 = vadd.f32 %v525, %v563
        %v565 = vpop.f32.mrf.mxu0
        %v566 = vadd.f32 %v525, %v565
        %567 = vmatmul.bf16.gmra.mxu0 %v443
        %v568 = vpop.f32.mrf.mxu0
        %v569 = vadd.f32 %v525, %v568
        %v570 = vpop.f32.mrf.mxu0
        %v571 = vadd.f32 %v525, %v570
        %572 = vmatmul.bf16.gmra.mxu0 %v446
        %v573 = vpop.f32.mrf.mxu0
        %v574 = vadd.f32 %v525, %v573
        %v575 = vpop.f32.mrf.mxu0
        %v576 = vadd.f32 %v525, %v575
        %577 = vmatmul.bf16.gmra.mxu0 %v449
        %v578 = vpop.f32.mrf.mxu0
        %v579 = vadd.f32 %v525, %v578
        %v580 = vpop.f32.mrf.mxu0
        %v581 = vadd.f32 %v525, %v580
        %582 = vmatmul.bf16.gmra.mxu0 %v452
        %v583 = vpop.f32.mrf.mxu0
        %v584 = vadd.f32 %v525, %v583
        %v585 = vpop.f32.mrf.mxu0
        %v586 = vadd.f32 %v525, %v585
        %587 = vdwg.mxu0
        %588 = vst [vmem:[#allocation3] sm:$0xff] %v549
        %589 = vst [vmem:[#allocation3 + $0x8] sm:$0xff] %v551
        %590 = vst [vmem:[#allocation3 + $0x10] sm:$0xff] %v554
        %591 = vst [vmem:[#allocation3 + $0x18] sm:$0xff] %v556
        %592 = vst [vmem:[#allocation3 + $0x20] sm:$0xff] %v559
        %593 = vst [vmem:[#allocation3 + $0x28] sm:$0xff] %v561
        %594 = vst [vmem:[#allocation3 + $0x30] sm:$0xff] %v564
        %595 = vst [vmem:[#allocation3 + $0x38] sm:$0xff] %v566
        %596 = vst [vmem:[#allocation3 + $0x40] sm:$0xff] %v569
        %597 = vst [vmem:[#allocation3 + $0x48] sm:$0xff] %v571
        %598 = vst [vmem:[#allocation3 + $0x50] sm:$0xff] %v574
        %599 = vst [vmem:[#allocation3 + $0x58] sm:$0xff] %v576
        %600 = vst [vmem:[#allocation3 + $0x60] sm:$0xff] %v579
        %601 = vst [vmem:[#allocation3 + $0x68] sm:$0xff] %v581
        %602 = vst [vmem:[#allocation3 + $0x70] sm:$0xff] %v584
        %603 = vst [vmem:[#allocation3 + $0x78] sm:$0xff] %v586
        %v604 = vld [vmem:[%s5] sm:$0xf]
        %v605 = vld [vmem:[%s5 + $0x4] sm:$0xf]
        %v606 = vld [vmem:[%s5 + $0x8] sm:$0xf]
        %v607 = vld [vmem:[%s5 + $0xc] sm:$0xf]
        %v608 = vld [vmem:[%s5 + $0x10] sm:$0xf]
        %v609 = vld [vmem:[%s5 + $0x14] sm:$0xf]
        %v610 = vld [vmem:[%s5 + $0x18] sm:$0xf]
        %v611 = vld [vmem:[%s5 + $0x1c] sm:$0xf]
        %v612 = vlaneseq
        %v613 = vshrl.u32 %v612, 7
        %v614 = vadd.s32 %v613, 8
        %v615 = vadd.s32 %v613, 16
        %v616 = vadd.s32 %v613, 24
        %v617 = vlaneseq
        %v618 = vand.u32 %v617, 127
        %vm619 = vcmp.lt.s32.totalorder %v613, 16
        %vm620 = vcmp.lt.s32.totalorder %v614, 16
        %vm621 = vcmp.lt.s32.totalorder %v615, 16
        %vm622 = vcmp.lt.s32.totalorder %v616, 16
        %vm623 = vcmp.lt.s32.totalorder %v618, 32
        %vm624 = vmxor %vm619, %vm623
        %vm625 = vmxor %vm620, %vm623
        %vm626 = vmxor %vm621, %vm623
        %vm627 = vmxor %vm622, %vm623
        %vm628 = vmxor %vm624, 1
        %vm629 = vmxor %vm625, 1
        %vm630 = vmxor %vm626, 1
        %vm631 = vmxor %vm627, 1
        %v632 = vsel %vm628, 1.0, 0.0
        %v633 = vsel %vm629, 1.0, 0.0
        %v634 = vsel %vm630, 1.0, 0.0
        %v635 = vsel %vm631, 1.0, 0.0
        %v636 = vld [vmem:[#allocation2] sm:$0xff]
        %v637 = vld [vmem:[#allocation2 + $0x8] sm:$0xff]
        %s638 = scalar_lea.vmem [#allocation3], 112
        %v639 = vld [vmem:[%s638] sm:$0xff]
        %v640 = vld [vmem:[%s638 + $0x8] sm:$0xff]
        %v649 = vunpack.c.l.b16 %v604
        %v650 = vunpack.c.l.b16 %v605
        %v651 = vunpack.c.l.b16 %v606
        %v652 = vunpack.c.l.b16 %v607
        %v653 = vunpack.c.l.b16 %v608
        %v654 = vunpack.c.l.b16 %v609
        %v655 = vunpack.c.l.b16 %v610
        %v656 = vunpack.c.l.b16 %v611
        %v657 = vpack.c.b16 %v650, %v649
        %v658 = vpack.c.b16 %v652, %v651
        %v659 = vpack.c.b16 %v654, %v653
        %v660 = vpack.c.b16 %v656, %v655
        %vm665 = vcmask 523264
        %v667 = vsel %vm665, 0, 0
        %669 = vmatpush.bf16.msra.mxu0 0
        %670 = vmatpush.bf16.msra.mxu0 0
        %671 = vmatpush.bf16.msra.mxu0 0
        %672 = vmatpush.bf16.msra.mxu0 0
        %673 = vmatpush.bf16.msra.mxu0 %v660
        %674 = vmatpush.bf16.msra.mxu0 %v659
        %675 = vmatpush.bf16.msra.mxu0 %v658
        %676 = vmatpush.bf16.msra.mxu0 %v657
        %677 = vmatmul.bf16.gmra.mxu0 %v667
        %v678 = vpop.f32.mrf.mxu0
        %v679 = vadd.f32 0.0, %v678
        %v680 = vpop.f32.mrf.mxu0
        %v681 = vadd.f32 0.0, %v680
        %682 = vmatmul.bf16.gmra.mxu0 %v667
        %v683 = vpop.f32.mrf.mxu0
        %v684 = vadd.f32 0.0, %v683
        %v685 = vpop.f32.mrf.mxu0
        %v686 = vadd.f32 0.0, %v685
        %687 = vdwg.mxu0
        %v688 = vadd.f32 %v636, %v679
        %v689 = vadd.f32 %v637, %v681
        %v690 = vadd.f32 %v639, %v684
        %v691 = vadd.f32 %v640, %v686
        %v692 = vxor.u32 %v688, 2147483648
        %v693 = vxor.u32 %v689, 2147483648
        %v694 = vxor.u32 %v690, 2147483648
        %v695 = vxor.u32 %v691, 2147483648
        %v696 = vmul.f32 %v692, 1.442695
        %v697 = vpow.pop %v696
        %v698 = vmul.f32 %v693, 1.442695
        %v699 = vpow.pop %v698
        %v700 = vmul.f32 %v694, 1.442695
        %v701 = vpow.pop %v700
        %v702 = vmul.f32 %v695, 1.442695
        %v703 = vpow.pop %v702
        %v704 = vadd.f32 %v697, 1.0
        %v705 = vadd.f32 %v699, 1.0
        %v706 = vadd.f32 %v701, 1.0
        %v707 = vadd.f32 %v703, 1.0
        %v708 = vrcp.pop %v704
        %v709 = vmul.f32 %v704, %v708
        %v710 = vsub.f32 1.0, %v709
        %v711 = vmul.f32 %v708, %v710
        %v712 = vadd.f32 %v708, %v711
        %vm713 = vweird.f32 %v704
        %vm714 = vweird.f32 %v708
        %vm715 = vmor %vm713, %vm714
        %v716 = vsel %vm715, %v708, %v712
        %v717 = vand.u32 2147483647, %v704
        %vm718 = vcmp.eq.f32.partialorder %v717, 8.507059e+37
        %v719 = vand.u32 %v704, 2147483648
        %v720 = vor.u32 1.1754944e-38, %v719
        %v721 = vsel %vm718, %v720, %v716
        %v722 = vmul.f32 1.0, %v721
        %v723 = vrcp.pop %v705
        %v724 = vmul.f32 %v705, %v723
        %v725 = vsub.f32 1.0, %v724
        %v726 = vmul.f32 %v723, %v725
        %v727 = vadd.f32 %v723, %v726
        %vm728 = vweird.f32 %v705
        %vm729 = vweird.f32 %v723
        %vm730 = vmor %vm728, %vm729
        %v731 = vsel %vm730, %v723, %v727
        %v732 = vand.u32 2147483647, %v705
        %vm733 = vcmp.eq.f32.partialorder %v732, 8.507059e+37
        %v734 = vand.u32 %v705, 2147483648
        %v735 = vor.u32 1.1754944e-38, %v734
        %v736 = vsel %vm733, %v735, %v731
        %v737 = vmul.f32 1.0, %v736
        %v738 = vrcp.pop %v706
        %v739 = vmul.f32 %v706, %v738
        %v740 = vsub.f32 1.0, %v739
        %v741 = vmul.f32 %v738, %v740
        %v742 = vadd.f32 %v738, %v741
        %vm743 = vweird.f32 %v706
        %vm744 = vweird.f32 %v738
        %vm745 = vmor %vm743, %vm744
        %v746 = vsel %vm745, %v738, %v742
        %v747 = vand.u32 2147483647, %v706
        %vm748 = vcmp.eq.f32.partialorder %v747, 8.507059e+37
        %v749 = vand.u32 %v706, 2147483648
        %v750 = vor.u32 1.1754944e-38, %v749
        %v751 = vsel %vm748, %v750, %v746
        %v752 = vmul.f32 1.0, %v751
        %v753 = vrcp.pop %v707
        %v754 = vmul.f32 %v707, %v753
        %v755 = vsub.f32 1.0, %v754
        %v756 = vmul.f32 %v753, %v755
        %v757 = vadd.f32 %v753, %v756
        %vm758 = vweird.f32 %v707
        %vm759 = vweird.f32 %v753
        %vm760 = vmor %vm758, %vm759
        %v761 = vsel %vm760, %v753, %v757
        %v762 = vand.u32 2147483647, %v707
        %vm763 = vcmp.eq.f32.partialorder %v762, 8.507059e+37
        %v764 = vand.u32 %v707, 2147483648
        %v765 = vor.u32 1.1754944e-38, %v764
        %v766 = vsel %vm763, %v765, %v761
        %v767 = vmul.f32 1.0, %v766
        %v768 = vtanh.pop %v688
        %v769 = vtanh.pop %v689
        %v770 = vtanh.pop %v690
        %v771 = vtanh.pop %v691
        %v772 = vmul.f32 %v722, 0.0
        %v773 = vmul.f32 %v737, 0.0
        %v774 = vmul.f32 %v752, 0.0
        %v775 = vmul.f32 %v767, 0.0
        %780 = vrot.lane.b32.xlu0 %v768, 32
        %v781 = vpop.permute.xlu0 %780
        %782 = vrot.lane.b32.xlu0 %v769, 32
        %v783 = vpop.permute.xlu0 %782
        %784 = vrot.lane.b32.xlu0 %v770, 32
        %v785 = vpop.permute.xlu0 %784
        %786 = vrot.lane.b32.xlu0 %v771, 32
        %v787 = vpop.permute.xlu0 %786
        %v792 = vmul.f32 %v722, %v781
        %v793 = vmul.f32 %v737, %v783
        %v794 = vmul.f32 %v752, %v785
        %v795 = vmul.f32 %v767, %v787
        %800 = vrot.lane.b32.xlu0 %v792, 32
        %v801 = vpop.permute.xlu0 %800
        %802 = vrot.lane.b32.xlu0 %v793, 32
        %v803 = vpop.permute.xlu0 %802
        %804 = vrot.lane.b32.xlu0 %v794, 32
        %v805 = vpop.permute.xlu0 %804
        %806 = vrot.lane.b32.xlu0 %v795, 32
        %v807 = vpop.permute.xlu0 %806
        %v812 = vadd.f32 %v772, %v801
        %v813 = vadd.f32 %v773, %v803
        %v814 = vadd.f32 %v774, %v805
        %v815 = vadd.f32 %v775, %v807
        %v816 = vtanh.pop %v812
        %v817 = vtanh.pop %v813
        %v818 = vtanh.pop %v814
        %v819 = vtanh.pop %v815
        %824 = vrot.lane.b32.xlu0 %v816, 32
        %v825 = vpop.permute.xlu0 %824
        %826 = vrot.lane.b32.xlu0 %v817, 32
        %v827 = vpop.permute.xlu0 %826
        %828 = vrot.lane.b32.xlu0 %v818, 32
        %v829 = vpop.permute.xlu0 %828
        %830 = vrot.lane.b32.xlu0 %v819, 32
        %v831 = vpop.permute.xlu0 %830
        %v836 = vmul.f32 %v722, %v825
        %v837 = vmul.f32 %v737, %v827
        %v838 = vmul.f32 %v752, %v829
        %v839 = vmul.f32 %v767, %v831
        %842 = vrot.lane.b32.xlu0 %v836, 64
        %v843 = vpop.permute.xlu0 %842
        %844 = vrot.lane.b32.xlu0 %v837, 64
        %v845 = vpop.permute.xlu0 %844
        %848 = vst.msk [vmem:[%s349] sm:$0xff] %vm429, %v843
        %849 = vst.msk [vmem:[%s349 + $0x8] sm:$0xff] %vm429, %v845
        %852 = vrot.lane.b32.xlu0 %v838, 64
        %v853 = vpop.permute.xlu0 %852
        %854 = vrot.lane.b32.xlu0 %v839, 64
        %v855 = vpop.permute.xlu0 %854
        %s858 = scalar_lea.vmem %s349, 240 [#allocation5]
        %859 = vst.msk [vmem:[%s858] sm:$0xff] %vm429, %v853
        %860 = vst.msk [vmem:[%s858 + $0x8] sm:$0xff] %vm429, %v855
        %861 = vrot.lane.b32.xlu0 %v836, 96
        %v862 = vpop.permute.xlu0 %861
        %863 = vrot.lane.b32.xlu0 %v837, 96
        %v864 = vpop.permute.xlu0 %863
        %865 = vrot.lane.b32.xlu0 %v838, 96
        %v866 = vpop.permute.xlu0 %865
        %867 = vrot.lane.b32.xlu0 %v839, 96
        %v868 = vpop.permute.xlu0 %867
        %v873 = vsel %vm429, %v843, %v862
        %v874 = vsel %vm429, %v845, %v864
        %v875 = vsel %vm429, %v853, %v866
        %v876 = vsel %vm429, %v855, %v868
        %v877 = vmul.f32 %v873, %v632
        %v878 = vmul.f32 %v874, %v633
        %v879 = vmul.f32 %v875, %v634
        %v880 = vmul.f32 %v876, %v635
        %s881 = scalar_lea.vmem [#allocation2], 16
        %v882 = vld [vmem:[%s881] sm:$0xff]
        %v883 = vld [vmem:[%s881 + $0x8] sm:$0xff]
        %s884 = scalar_lea.vmem [#allocation3], 96
        %v885 = vld [vmem:[%s884] sm:$0xff]
        %v886 = vld [vmem:[%s884 + $0x8] sm:$0xff]
        %v887 = vpack.c.bf16 %v878, %v877
        %v888 = vpack.c.bf16 %v880, %v879
        %v890 = vsel %vm665, %v887, 0
        %v893 = vsel %vm665, %v888, 0
        %895 = vmatpush.bf16.msra.mxu0 0
        %896 = vmatpush.bf16.msra.mxu0 0
        %897 = vmatpush.bf16.msra.mxu0 0
        %898 = vmatpush.bf16.msra.mxu0 0
        %899 = vmatpush.bf16.msra.mxu0 %v660
        %900 = vmatpush.bf16.msra.mxu0 %v659
        %901 = vmatpush.bf16.msra.mxu0 %v658
        %902 = vmatpush.bf16.msra.mxu0 %v657
        %903 = vmatmul.bf16.gmra.mxu0 %v890
        %v904 = vpop.f32.mrf.mxu0
        %v905 = vadd.f32 0.0, %v904
        %v906 = vpop.f32.mrf.mxu0
        %v907 = vadd.f32 0.0, %v906
        %908 = vmatmul.bf16.gmra.mxu0 %v893
        %v909 = vpop.f32.mrf.mxu0
        %v910 = vadd.f32 0.0, %v909
        %v911 = vpop.f32.mrf.mxu0
        %v912 = vadd.f32 0.0, %v911
        %913 = vdwg.mxu0
        %v914 = vadd.f32 %v882, %v905
        %v915 = vadd.f32 %v883, %v907
        %v916 = vadd.f32 %v885, %v910
        %v917 = vadd.f32 %v886, %v912
        %v918 = vxor.u32 %v914, 2147483648
        %v919 = vxor.u32 %v915, 2147483648
        %v920 = vxor.u32 %v916, 2147483648
        %v921 = vxor.u32 %v917, 2147483648
        %v922 = vmul.f32 %v918, 1.442695
        %v923 = vpow.pop %v922
        %v924 = vmul.f32 %v919, 1.442695
        %v925 = vpow.pop %v924
        %v926 = vmul.f32 %v920, 1.442695
        %v927 = vpow.pop %v926
        %v928 = vmul.f32 %v921, 1.442695
        %v929 = vpow.pop %v928
        %v930 = vadd.f32 %v923, 1.0
        %v931 = vadd.f32 %v925, 1.0
        %v932 = vadd.f32 %v927, 1.0
        %v933 = vadd.f32 %v929, 1.0
        %v934 = vrcp.pop %v930
        %v935 = vmul.f32 %v930, %v934
        %v936 = vsub.f32 1.0, %v935
        %v937 = vmul.f32 %v934, %v936
        %v938 = vadd.f32 %v934, %v937
        %vm939 = vweird.f32 %v930
        %vm940 = vweird.f32 %v934
        %vm941 = vmor %vm939, %vm940
        %v942 = vsel %vm941, %v934, %v938
        %v943 = vand.u32 2147483647, %v930
        %vm944 = vcmp.eq.f32.partialorder %v943, 8.507059e+37
        %v945 = vand.u32 %v930, 2147483648
        %v946 = vor.u32 1.1754944e-38, %v945
        %v947 = vsel %vm944, %v946, %v942
        %v948 = vmul.f32 1.0, %v947
        %v949 = vrcp.pop %v931
        %v950 = vmul.f32 %v931, %v949
        %v951 = vsub.f32 1.0, %v950
        %v952 = vmul.f32 %v949, %v951
        %v953 = vadd.f32 %v949, %v952
        %vm954 = vweird.f32 %v931
        %vm955 = vweird.f32 %v949
        %vm956 = vmor %vm954, %vm955
        %v957 = vsel %vm956, %v949, %v953
        %v958 = vand.u32 2147483647, %v931
        %vm959 = vcmp.eq.f32.partialorder %v958, 8.507059e+37
        %v960 = vand.u32 %v931, 2147483648
        %v961 = vor.u32 1.1754944e-38, %v960
        %v962 = vsel %vm959, %v961, %v957
        %v963 = vmul.f32 1.0, %v962
        %v964 = vrcp.pop %v932
        %v965 = vmul.f32 %v932, %v964
        %v966 = vsub.f32 1.0, %v965
        %v967 = vmul.f32 %v964, %v966
        %v968 = vadd.f32 %v964, %v967
        %vm969 = vweird.f32 %v932
        %vm970 = vweird.f32 %v964
        %vm971 = vmor %vm969, %vm970
        %v972 = vsel %vm971, %v964, %v968
        %v973 = vand.u32 2147483647, %v932
        %vm974 = vcmp.eq.f32.partialorder %v973, 8.507059e+37
        %v975 = vand.u32 %v932, 2147483648
        %v976 = vor.u32 1.1754944e-38, %v975
        %v977 = vsel %vm974, %v976, %v972
        %v978 = vmul.f32 1.0, %v977
        %v979 = vrcp.pop %v933
        %v980 = vmul.f32 %v933, %v979
        %v981 = vsub.f32 1.0, %v980
        %v982 = vmul.f32 %v979, %v981
        %v983 = vadd.f32 %v979, %v982
        %vm984 = vweird.f32 %v933
        %vm985 = vweird.f32 %v979
        %vm986 = vmor %vm984, %vm985
        %v987 = vsel %vm986, %v979, %v983
        %v988 = vand.u32 2147483647, %v933
        %vm989 = vcmp.eq.f32.partialorder %v988, 8.507059e+37
        %v990 = vand.u32 %v933, 2147483648
        %v991 = vor.u32 1.1754944e-38, %v990
        %v992 = vsel %vm989, %v991, %v987
        %v993 = vmul.f32 1.0, %v992
        %v994 = vtanh.pop %v914
        %v995 = vtanh.pop %v915
        %v996 = vtanh.pop %v916
        %v997 = vtanh.pop %v917
        %v998 = vmul.f32 %v948, %v812
        %v999 = vmul.f32 %v963, %v813
        %v1000 = vmul.f32 %v978, %v814
        %v1001 = vmul.f32 %v993, %v815
        %1006 = vrot.lane.b32.xlu0 %v994, 32
        %v1007 = vpop.permute.xlu0 %1006
        %1008 = vrot.lane.b32.xlu0 %v995, 32
        %v1009 = vpop.permute.xlu0 %1008
        %1010 = vrot.lane.b32.xlu0 %v996, 32
        %v1011 = vpop.permute.xlu0 %1010
        %1012 = vrot.lane.b32.xlu0 %v997, 32
        %v1013 = vpop.permute.xlu0 %1012
        %v1018 = vmul.f32 %v948, %v1007
        %v1019 = vmul.f32 %v963, %v1009
        %v1020 = vmul.f32 %v978, %v1011
        %v1021 = vmul.f32 %v993, %v1013
        %1026 = vrot.lane.b32.xlu0 %v1018, 32
        %v1027 = vpop.permute.xlu0 %1026
        %1028 = vrot.lane.b32.xlu0 %v1019, 32
        %v1029 = vpop.permute.xlu0 %1028
        %1030 = vrot.lane.b32.xlu0 %v1020, 32
        %v1031 = vpop.permute.xlu0 %1030
        %1032 = vrot.lane.b32.xlu0 %v1021, 32
        %v1033 = vpop.permute.xlu0 %1032
        %v1038 = vadd.f32 %v998, %v1027
        %v1039 = vadd.f32 %v999, %v1029
        %v1040 = vadd.f32 %v1000, %v1031
        %v1041 = vadd.f32 %v1001, %v1033
        %v1042 = vtanh.pop %v1038
        %v1043 = vtanh.pop %v1039
        %v1044 = vtanh.pop %v1040
        %v1045 = vtanh.pop %v1041
        %1050 = vrot.lane.b32.xlu0 %v1042, 32
        %v1051 = vpop.permute.xlu0 %1050
        %1052 = vrot.lane.b32.xlu0 %v1043, 32
        %v1053 = vpop.permute.xlu0 %1052
        %1054 = vrot.lane.b32.xlu0 %v1044, 32
        %v1055 = vpop.permute.xlu0 %1054
        %1056 = vrot.lane.b32.xlu0 %v1045, 32
        %v1057 = vpop.permute.xlu0 %1056
        %v1062 = vmul.f32 %v948, %v1051
        %v1063 = vmul.f32 %v963, %v1053
        %v1064 = vmul.f32 %v978, %v1055
        %v1065 = vmul.f32 %v993, %v1057
        %1068 = vrot.lane.b32.xlu0 %v1062, 64
        %v1069 = vpop.permute.xlu0 %1068
        %1070 = vrot.lane.b32.xlu0 %v1063, 64
        %v1071 = vpop.permute.xlu0 %1070
        %s1074 = scalar_lea.vmem %s349, 32 [#allocation5]
        %1075 = vst.msk [vmem:[%s1074] sm:$0xff] %vm429, %v1069
        %1076 = vst.msk [vmem:[%s1074 + $0x8] sm:$0xff] %vm429, %v1071
        %1079 = vrot.lane.b32.xlu0 %v1064, 64
        %v1080 = vpop.permute.xlu0 %1079
        %1081 = vrot.lane.b32.xlu0 %v1065, 64
        %v1082 = vpop.permute.xlu0 %1081
        %s1085 = scalar_lea.vmem %s349, 208 [#allocation5]
        %1086 = vst.msk [vmem:[%s1085] sm:$0xff] %vm429, %v1080
        %1087 = vst.msk [vmem:[%s1085 + $0x8] sm:$0xff] %vm429, %v1082
        %1088 = vrot.lane.b32.xlu0 %v1062, 96
        %v1089 = vpop.permute.xlu0 %1088
        %1090 = vrot.lane.b32.xlu0 %v1063, 96
        %v1091 = vpop.permute.xlu0 %1090
        %1092 = vrot.lane.b32.xlu0 %v1064, 96
        %v1093 = vpop.permute.xlu0 %1092
        %1094 = vrot.lane.b32.xlu0 %v1065, 96
        %v1095 = vpop.permute.xlu0 %1094
        %v1100 = vsel %vm429, %v1069, %v1089
        %v1101 = vsel %vm429, %v1071, %v1091
        %v1102 = vsel %vm429, %v1080, %v1093
        %v1103 = vsel %vm429, %v1082, %v1095
        %v1104 = vmul.f32 %v1100, %v632
        %v1105 = vmul.f32 %v1101, %v633
        %v1106 = vmul.f32 %v1102, %v634
        %v1107 = vmul.f32 %v1103, %v635
        %s1108 = scalar_lea.vmem [#allocation2], 32
        %v1109 = vld [vmem:[%s1108] sm:$0xff]
        %v1110 = vld [vmem:[%s1108 + $0x8] sm:$0xff]
        %s1111 = scalar_lea.vmem [#allocation3], 80
        %v1112 = vld [vmem:[%s1111] sm:$0xff]
        %v1113 = vld [vmem:[%s1111 + $0x8] sm:$0xff]
        %v1114 = vpack.c.bf16 %v1105, %v1104
        %v1115 = vpack.c.bf16 %v1107, %v1106
        %v1117 = vsel %vm665, %v1114, 0
        %v1120 = vsel %vm665, %v1115, 0
        %1122 = vmatpush.bf16.msra.mxu0 0
        %1123 = vmatpush.bf16.msra.mxu0 0
        %1124 = vmatpush.bf16.msra.mxu0 0
        %1125 = vmatpush.bf16.msra.mxu0 0
        %1126 = vmatpush.bf16.msra.mxu0 %v660
        %1127 = vmatpush.bf16.msra.mxu0 %v659
        %1128 = vmatpush.bf16.msra.mxu0 %v658
        %1129 = vmatpush.bf16.msra.mxu0 %v657
        %1130 = vmatmul.bf16.gmra.mxu0 %v1117
        %v1131 = vpop.f32.mrf.mxu0
        %v1132 = vadd.f32 0.0, %v1131
        %v1133 = vpop.f32.mrf.mxu0
        %v1134 = vadd.f32 0.0, %v1133
        %1135 = vmatmul.bf16.gmra.mxu0 %v1120
        %v1136 = vpop.f32.mrf.mxu0
        %v1137 = vadd.f32 0.0, %v1136
        %v1138 = vpop.f32.mrf.mxu0
        %v1139 = vadd.f32 0.0, %v1138
        %1140 = vdwg.mxu0
        %v1141 = vadd.f32 %v1109, %v1132
        %v1142 = vadd.f32 %v1110, %v1134
        %v1143 = vadd.f32 %v1112, %v1137
        %v1144 = vadd.f32 %v1113, %v1139
        %v1145 = vxor.u32 %v1141, 2147483648
        %v1146 = vxor.u32 %v1142, 2147483648
        %v1147 = vxor.u32 %v1143, 2147483648
        %v1148 = vxor.u32 %v1144, 2147483648
        %v1149 = vmul.f32 %v1145, 1.442695
        %v1150 = vpow.pop %v1149
        %v1151 = vmul.f32 %v1146, 1.442695
        %v1152 = vpow.pop %v1151
        %v1153 = vmul.f32 %v1147, 1.442695
        %v1154 = vpow.pop %v1153
        %v1155 = vmul.f32 %v1148, 1.442695
        %v1156 = vpow.pop %v1155
        %v1157 = vadd.f32 %v1150, 1.0
        %v1158 = vadd.f32 %v1152, 1.0
        %v1159 = vadd.f32 %v1154, 1.0
        %v1160 = vadd.f32 %v1156, 1.0
        %v1161 = vrcp.pop %v1157
        %v1162 = vmul.f32 %v1157, %v1161
        %v1163 = vsub.f32 1.0, %v1162
        %v1164 = vmul.f32 %v1161, %v1163
        %v1165 = vadd.f32 %v1161, %v1164
        %vm1166 = vweird.f32 %v1157
        %vm1167 = vweird.f32 %v1161
        %vm1168 = vmor %vm1166, %vm1167
        %v1169 = vsel %vm1168, %v1161, %v1165
        %v1170 = vand.u32 2147483647, %v1157
        %vm1171 = vcmp.eq.f32.partialorder %v1170, 8.507059e+37
        %v1172 = vand.u32 %v1157, 2147483648
        %v1173 = vor.u32 1.1754944e-38, %v1172
        %v1174 = vsel %vm1171, %v1173, %v1169
        %v1175 = vmul.f32 1.0, %v1174
        %v1176 = vrcp.pop %v1158
        %v1177 = vmul.f32 %v1158, %v1176
        %v1178 = vsub.f32 1.0, %v1177
        %v1179 = vmul.f32 %v1176, %v1178
        %v1180 = vadd.f32 %v1176, %v1179
        %vm1181 = vweird.f32 %v1158
        %vm1182 = vweird.f32 %v1176
        %vm1183 = vmor %vm1181, %vm1182
        %v1184 = vsel %vm1183, %v1176, %v1180
        %v1185 = vand.u32 2147483647, %v1158
        %vm1186 = vcmp.eq.f32.partialorder %v1185, 8.507059e+37
        %v1187 = vand.u32 %v1158, 2147483648
        %v1188 = vor.u32 1.1754944e-38, %v1187
        %v1189 = vsel %vm1186, %v1188, %v1184
        %v1190 = vmul.f32 1.0, %v1189
        %v1191 = vrcp.pop %v1159
        %v1192 = vmul.f32 %v1159, %v1191
        %v1193 = vsub.f32 1.0, %v1192
        %v1194 = vmul.f32 %v1191, %v1193
        %v1195 = vadd.f32 %v1191, %v1194
        %vm1196 = vweird.f32 %v1159
        %vm1197 = vweird.f32 %v1191
        %vm1198 = vmor %vm1196, %vm1197
        %v1199 = vsel %vm1198, %v1191, %v1195
        %v1200 = vand.u32 2147483647, %v1159
        %vm1201 = vcmp.eq.f32.partialorder %v1200, 8.507059e+37
        %v1202 = vand.u32 %v1159, 2147483648
        %v1203 = vor.u32 1.1754944e-38, %v1202
        %v1204 = vsel %vm1201, %v1203, %v1199
        %v1205 = vmul.f32 1.0, %v1204
        %v1206 = vrcp.pop %v1160
        %v1207 = vmul.f32 %v1160, %v1206
        %v1208 = vsub.f32 1.0, %v1207
        %v1209 = vmul.f32 %v1206, %v1208
        %v1210 = vadd.f32 %v1206, %v1209
        %vm1211 = vweird.f32 %v1160
        %vm1212 = vweird.f32 %v1206
        %vm1213 = vmor %vm1211, %vm1212
        %v1214 = vsel %vm1213, %v1206, %v1210
        %v1215 = vand.u32 2147483647, %v1160
        %vm1216 = vcmp.eq.f32.partialorder %v1215, 8.507059e+37
        %v1217 = vand.u32 %v1160, 2147483648
        %v1218 = vor.u32 1.1754944e-38, %v1217
        %v1219 = vsel %vm1216, %v1218, %v1214
        %v1220 = vmul.f32 1.0, %v1219
        %v1221 = vtanh.pop %v1141
        %v1222 = vtanh.pop %v1142
        %v1223 = vtanh.pop %v1143
        %v1224 = vtanh.pop %v1144
        %v1225 = vmul.f32 %v1175, %v1038
        %v1226 = vmul.f32 %v1190, %v1039
        %v1227 = vmul.f32 %v1205, %v1040
        %v1228 = vmul.f32 %v1220, %v1041
        %1233 = vrot.lane.b32.xlu0 %v1221, 32
        %v1234 = vpop.permute.xlu0 %1233
        %1235 = vrot.lane.b32.xlu0 %v1222, 32
        %v1236 = vpop.permute.xlu0 %1235
        %1237 = vrot.lane.b32.xlu0 %v1223, 32
        %v1238 = vpop.permute.xlu0 %1237
        %1239 = vrot.lane.b32.xlu0 %v1224, 32
        %v1240 = vpop.permute.xlu0 %1239
        %v1245 = vmul.f32 %v1175, %v1234
        %v1246 = vmul.f32 %v1190, %v1236
        %v1247 = vmul.f32 %v1205, %v1238
        %v1248 = vmul.f32 %v1220, %v1240
        %1253 = vrot.lane.b32.xlu0 %v1245, 32
        %v1254 = vpop.permute.xlu0 %1253
        %1255 = vrot.lane.b32.xlu0 %v1246, 32
        %v1256 = vpop.permute.xlu0 %1255
        %1257 = vrot.lane.b32.xlu0 %v1247, 32
        %v1258 = vpop.permute.xlu0 %1257
        %1259 = vrot.lane.b32.xlu0 %v1248, 32
        %v1260 = vpop.permute.xlu0 %1259
        %v1265 = vadd.f32 %v1225, %v1254
        %v1266 = vadd.f32 %v1226, %v1256
        %v1267 = vadd.f32 %v1227, %v1258
        %v1268 = vadd.f32 %v1228, %v1260
        %v1269 = vtanh.pop %v1265
        %v1270 = vtanh.pop %v1266
        %v1271 = vtanh.pop %v1267
        %v1272 = vtanh.pop %v1268
        %1277 = vrot.lane.b32.xlu0 %v1269, 32
        %v1278 = vpop.permute.xlu0 %1277
        %1279 = vrot.lane.b32.xlu0 %v1270, 32
        %v1280 = vpop.permute.xlu0 %1279
        %1281 = vrot.lane.b32.xlu0 %v1271, 32
        %v1282 = vpop.permute.xlu0 %1281
        %1283 = vrot.lane.b32.xlu0 %v1272, 32
        %v1284 = vpop.permute.xlu0 %1283
        %v1289 = vmul.f32 %v1175, %v1278
        %v1290 = vmul.f32 %v1190, %v1280
        %v1291 = vmul.f32 %v1205, %v1282
        %v1292 = vmul.f32 %v1220, %v1284
        %1295 = vrot.lane.b32.xlu0 %v1289, 64
        %v1296 = vpop.permute.xlu0 %1295
        %1297 = vrot.lane.b32.xlu0 %v1290, 64
        %v1298 = vpop.permute.xlu0 %1297
        %s1301 = scalar_lea.vmem %s349, 64 [#allocation5]
        %1302 = vst.msk [vmem:[%s1301] sm:$0xff] %vm429, %v1296
        %1303 = vst.msk [vmem:[%s1301 + $0x8] sm:$0xff] %vm429, %v1298
        %1306 = vrot.lane.b32.xlu0 %v1291, 64
        %v1307 = vpop.permute.xlu0 %1306
        %1308 = vrot.lane.b32.xlu0 %v1292, 64
        %v1309 = vpop.permute.xlu0 %1308
        %s1312 = scalar_lea.vmem %s349, 176 [#allocation5]
        %1313 = vst.msk [vmem:[%s1312] sm:$0xff] %vm429, %v1307
        %1314 = vst.msk [vmem:[%s1312 + $0x8] sm:$0xff] %vm429, %v1309
        %1315 = vrot.lane.b32.xlu0 %v1289, 96
        %v1316 = vpop.permute.xlu0 %1315
        %1317 = vrot.lane.b32.xlu0 %v1290, 96
        %v1318 = vpop.permute.xlu0 %1317
        %1319 = vrot.lane.b32.xlu0 %v1291, 96
        %v1320 = vpop.permute.xlu0 %1319
        %1321 = vrot.lane.b32.xlu0 %v1292, 96
        %v1322 = vpop.permute.xlu0 %1321
        %v1327 = vsel %vm429, %v1296, %v1316
        %v1328 = vsel %vm429, %v1298, %v1318
        %v1329 = vsel %vm429, %v1307, %v1320
        %v1330 = vsel %vm429, %v1309, %v1322
        %v1331 = vmul.f32 %v1327, %v632
        %v1332 = vmul.f32 %v1328, %v633
        %v1333 = vmul.f32 %v1329, %v634
        %v1334 = vmul.f32 %v1330, %v635
        %s1335 = scalar_lea.vmem [#allocation2], 48
        %v1336 = vld [vmem:[%s1335] sm:$0xff]
        %v1337 = vld [vmem:[%s1335 + $0x8] sm:$0xff]
        %s1338 = scalar_lea.vmem [#allocation3], 64
        %v1339 = vld [vmem:[%s1338] sm:$0xff]
        %v1340 = vld [vmem:[%s1338 + $0x8] sm:$0xff]
        %v1341 = vpack.c.bf16 %v1332, %v1331
        %v1342 = vpack.c.bf16 %v1334, %v1333
        %v1344 = vsel %vm665, %v1341, 0
        %v1347 = vsel %vm665, %v1342, 0
        %1349 = vmatpush.bf16.msra.mxu0 0
        %1350 = vmatpush.bf16.msra.mxu0 0
        %1351 = vmatpush.bf16.msra.mxu0 0
        %1352 = vmatpush.bf16.msra.mxu0 0
        %1353 = vmatpush.bf16.msra.mxu0 %v660
        %1354 = vmatpush.bf16.msra.mxu0 %v659
        %1355 = vmatpush.bf16.msra.mxu0 %v658
        %1356 = vmatpush.bf16.msra.mxu0 %v657
        %1357 = vmatmul.bf16.gmra.mxu0 %v1344
        %v1358 = vpop.f32.mrf.mxu0
        %v1359 = vadd.f32 0.0, %v1358
        %v1360 = vpop.f32.mrf.mxu0
        %v1361 = vadd.f32 0.0, %v1360
        %1362 = vmatmul.bf16.gmra.mxu0 %v1347
        %v1363 = vpop.f32.mrf.mxu0
        %v1364 = vadd.f32 0.0, %v1363
        %v1365 = vpop.f32.mrf.mxu0
        %v1366 = vadd.f32 0.0, %v1365
        %1367 = vdwg.mxu0
        %v1368 = vadd.f32 %v1336, %v1359
        %v1369 = vadd.f32 %v1337, %v1361
        %v1370 = vadd.f32 %v1339, %v1364
        %v1371 = vadd.f32 %v1340, %v1366
        %v1372 = vxor.u32 %v1368, 2147483648
        %v1373 = vxor.u32 %v1369, 2147483648
        %v1374 = vxor.u32 %v1370, 2147483648
        %v1375 = vxor.u32 %v1371, 2147483648
        %v1376 = vmul.f32 %v1372, 1.442695
        %v1377 = vpow.pop %v1376
        %v1378 = vmul.f32 %v1373, 1.442695
        %v1379 = vpow.pop %v1378
        %v1380 = vmul.f32 %v1374, 1.442695
        %v1381 = vpow.pop %v1380
        %v1382 = vmul.f32 %v1375, 1.442695
        %v1383 = vpow.pop %v1382
        %v1384 = vadd.f32 %v1377, 1.0
        %v1385 = vadd.f32 %v1379, 1.0
        %v1386 = vadd.f32 %v1381, 1.0
        %v1387 = vadd.f32 %v1383, 1.0
        %v1388 = vrcp.pop %v1384
        %v1389 = vmul.f32 %v1384, %v1388
        %v1390 = vsub.f32 1.0, %v1389
        %v1391 = vmul.f32 %v1388, %v1390
        %v1392 = vadd.f32 %v1388, %v1391
        %vm1393 = vweird.f32 %v1384
        %vm1394 = vweird.f32 %v1388
        %vm1395 = vmor %vm1393, %vm1394
        %v1396 = vsel %vm1395, %v1388, %v1392
        %v1397 = vand.u32 2147483647, %v1384
        %vm1398 = vcmp.eq.f32.partialorder %v1397, 8.507059e+37
        %v1399 = vand.u32 %v1384, 2147483648
        %v1400 = vor.u32 1.1754944e-38, %v1399
        %v1401 = vsel %vm1398, %v1400, %v1396
        %v1402 = vmul.f32 1.0, %v1401
        %v1403 = vrcp.pop %v1385
        %v1404 = vmul.f32 %v1385, %v1403
        %v1405 = vsub.f32 1.0, %v1404
        %v1406 = vmul.f32 %v1403, %v1405
        %v1407 = vadd.f32 %v1403, %v1406
        %vm1408 = vweird.f32 %v1385
        %vm1409 = vweird.f32 %v1403
        %vm1410 = vmor %vm1408, %vm1409
        %v1411 = vsel %vm1410, %v1403, %v1407
        %v1412 = vand.u32 2147483647, %v1385
        %vm1413 = vcmp.eq.f32.partialorder %v1412, 8.507059e+37
        %v1414 = vand.u32 %v1385, 2147483648
        %v1415 = vor.u32 1.1754944e-38, %v1414
        %v1416 = vsel %vm1413, %v1415, %v1411
        %v1417 = vmul.f32 1.0, %v1416
        %v1418 = vrcp.pop %v1386
        %v1419 = vmul.f32 %v1386, %v1418
        %v1420 = vsub.f32 1.0, %v1419
        %v1421 = vmul.f32 %v1418, %v1420
        %v1422 = vadd.f32 %v1418, %v1421
        %vm1423 = vweird.f32 %v1386
        %vm1424 = vweird.f32 %v1418
        %vm1425 = vmor %vm1423, %vm1424
        %v1426 = vsel %vm1425, %v1418, %v1422
        %v1427 = vand.u32 2147483647, %v1386
        %vm1428 = vcmp.eq.f32.partialorder %v1427, 8.507059e+37
        %v1429 = vand.u32 %v1386, 2147483648
        %v1430 = vor.u32 1.1754944e-38, %v1429
        %v1431 = vsel %vm1428, %v1430, %v1426
        %v1432 = vmul.f32 1.0, %v1431
        %v1433 = vrcp.pop %v1387
        %v1434 = vmul.f32 %v1387, %v1433
        %v1435 = vsub.f32 1.0, %v1434
        %v1436 = vmul.f32 %v1433, %v1435
        %v1437 = vadd.f32 %v1433, %v1436
        %vm1438 = vweird.f32 %v1387
        %vm1439 = vweird.f32 %v1433
        %vm1440 = vmor %vm1438, %vm1439
        %v1441 = vsel %vm1440, %v1433, %v1437
        %v1442 = vand.u32 2147483647, %v1387
        %vm1443 = vcmp.eq.f32.partialorder %v1442, 8.507059e+37
        %v1444 = vand.u32 %v1387, 2147483648
        %v1445 = vor.u32 1.1754944e-38, %v1444
        %v1446 = vsel %vm1443, %v1445, %v1441
        %v1447 = vmul.f32 1.0, %v1446
        %v1448 = vtanh.pop %v1368
        %v1449 = vtanh.pop %v1369
        %v1450 = vtanh.pop %v1370
        %v1451 = vtanh.pop %v1371
        %v1452 = vmul.f32 %v1402, %v1265
        %v1453 = vmul.f32 %v1417, %v1266
        %v1454 = vmul.f32 %v1432, %v1267
        %v1455 = vmul.f32 %v1447, %v1268
        %1460 = vrot.lane.b32.xlu0 %v1448, 32
        %v1461 = vpop.permute.xlu0 %1460
        %1462 = vrot.lane.b32.xlu0 %v1449, 32
        %v1463 = vpop.permute.xlu0 %1462
        %1464 = vrot.lane.b32.xlu0 %v1450, 32
        %v1465 = vpop.permute.xlu0 %1464
        %1466 = vrot.lane.b32.xlu0 %v1451, 32
        %v1467 = vpop.permute.xlu0 %1466
        %v1472 = vmul.f32 %v1402, %v1461
        %v1473 = vmul.f32 %v1417, %v1463
        %v1474 = vmul.f32 %v1432, %v1465
        %v1475 = vmul.f32 %v1447, %v1467
        %1480 = vrot.lane.b32.xlu0 %v1472, 32
        %v1481 = vpop.permute.xlu0 %1480
        %1482 = vrot.lane.b32.xlu0 %v1473, 32
        %v1483 = vpop.permute.xlu0 %1482
        %1484 = vrot.lane.b32.xlu0 %v1474, 32
        %v1485 = vpop.permute.xlu0 %1484
        %1486 = vrot.lane.b32.xlu0 %v1475, 32
        %v1487 = vpop.permute.xlu0 %1486
        %v1492 = vadd.f32 %v1452, %v1481
        %v1493 = vadd.f32 %v1453, %v1483
        %v1494 = vadd.f32 %v1454, %v1485
        %v1495 = vadd.f32 %v1455, %v1487
        %v1496 = vtanh.pop %v1492
        %v1497 = vtanh.pop %v1493
        %v1498 = vtanh.pop %v1494
        %v1499 = vtanh.pop %v1495
        %1504 = vrot.lane.b32.xlu0 %v1496, 32
        %v1505 = vpop.permute.xlu0 %1504
        %1506 = vrot.lane.b32.xlu0 %v1497, 32
        %v1507 = vpop.permute.xlu0 %1506
        %1508 = vrot.lane.b32.xlu0 %v1498, 32
        %v1509 = vpop.permute.xlu0 %1508
        %1510 = vrot.lane.b32.xlu0 %v1499, 32
        %v1511 = vpop.permute.xlu0 %1510
        %v1516 = vmul.f32 %v1402, %v1505
        %v1517 = vmul.f32 %v1417, %v1507
        %v1518 = vmul.f32 %v1432, %v1509
        %v1519 = vmul.f32 %v1447, %v1511
        %1522 = vrot.lane.b32.xlu0 %v1516, 64
        %v1523 = vpop.permute.xlu0 %1522
        %1524 = vrot.lane.b32.xlu0 %v1517, 64
        %v1525 = vpop.permute.xlu0 %1524
        %s1528 = scalar_lea.vmem %s349, 96 [#allocation5]
        %1529 = vst.msk [vmem:[%s1528] sm:$0xff] %vm429, %v1523
        %1530 = vst.msk [vmem:[%s1528 + $0x8] sm:$0xff] %vm429, %v1525
        %1533 = vrot.lane.b32.xlu0 %v1518, 64
        %v1534 = vpop.permute.xlu0 %1533
        %1535 = vrot.lane.b32.xlu0 %v1519, 64
        %v1536 = vpop.permute.xlu0 %1535
        %s1539 = scalar_lea.vmem %s349, 144 [#allocation5]
        %1540 = vst.msk [vmem:[%s1539] sm:$0xff] %vm429, %v1534
        %1541 = vst.msk [vmem:[%s1539 + $0x8] sm:$0xff] %vm429, %v1536
        %1542 = vrot.lane.b32.xlu0 %v1516, 96
        %v1543 = vpop.permute.xlu0 %1542
        %1544 = vrot.lane.b32.xlu0 %v1517, 96
        %v1545 = vpop.permute.xlu0 %1544
        %1546 = vrot.lane.b32.xlu0 %v1518, 96
        %v1547 = vpop.permute.xlu0 %1546
        %1548 = vrot.lane.b32.xlu0 %v1519, 96
        %v1549 = vpop.permute.xlu0 %1548
        %v1554 = vsel %vm429, %v1523, %v1543
        %v1555 = vsel %vm429, %v1525, %v1545
        %v1556 = vsel %vm429, %v1534, %v1547
        %v1557 = vsel %vm429, %v1536, %v1549
        %v1558 = vmul.f32 %v1554, %v632
        %v1559 = vmul.f32 %v1555, %v633
        %v1560 = vmul.f32 %v1556, %v634
        %v1561 = vmul.f32 %v1557, %v635
        %s1562 = scalar_lea.vmem [#allocation2], 64
        %v1563 = vld [vmem:[%s1562] sm:$0xff]
        %v1564 = vld [vmem:[%s1562 + $0x8] sm:$0xff]
        %s1565 = scalar_lea.vmem [#allocation3], 48
        %v1566 = vld [vmem:[%s1565] sm:$0xff]
        %v1567 = vld [vmem:[%s1565 + $0x8] sm:$0xff]
        %v1568 = vpack.c.bf16 %v1559, %v1558
        %v1569 = vpack.c.bf16 %v1561, %v1560
        %v1571 = vsel %vm665, %v1568, 0
        %v1574 = vsel %vm665, %v1569, 0
        %1576 = vmatpush.bf16.msra.mxu0 0
        %1577 = vmatpush.bf16.msra.mxu0 0
        %1578 = vmatpush.bf16.msra.mxu0 0
        %1579 = vmatpush.bf16.msra.mxu0 0
        %1580 = vmatpush.bf16.msra.mxu0 %v660
        %1581 = vmatpush.bf16.msra.mxu0 %v659
        %1582 = vmatpush.bf16.msra.mxu0 %v658
        %1583 = vmatpush.bf16.msra.mxu0 %v657
        %1584 = vmatmul.bf16.gmra.mxu0 %v1571
        %v1585 = vpop.f32.mrf.mxu0
        %v1586 = vadd.f32 0.0, %v1585
        %v1587 = vpop.f32.mrf.mxu0
        %v1588 = vadd.f32 0.0, %v1587
        %1589 = vmatmul.bf16.gmra.mxu0 %v1574
        %v1590 = vpop.f32.mrf.mxu0
        %v1591 = vadd.f32 0.0, %v1590
        %v1592 = vpop.f32.mrf.mxu0
        %v1593 = vadd.f32 0.0, %v1592
        %1594 = vdwg.mxu0
        %v1595 = vadd.f32 %v1563, %v1586
        %v1596 = vadd.f32 %v1564, %v1588
        %v1597 = vadd.f32 %v1566, %v1591
        %v1598 = vadd.f32 %v1567, %v1593
        %v1599 = vxor.u32 %v1595, 2147483648
        %v1600 = vxor.u32 %v1596, 2147483648
        %v1601 = vxor.u32 %v1597, 2147483648
        %v1602 = vxor.u32 %v1598, 2147483648
        %v1603 = vmul.f32 %v1599, 1.442695
        %v1604 = vpow.pop %v1603
        %v1605 = vmul.f32 %v1600, 1.442695
        %v1606 = vpow.pop %v1605
        %v1607 = vmul.f32 %v1601, 1.442695
        %v1608 = vpow.pop %v1607
        %v1609 = vmul.f32 %v1602, 1.442695
        %v1610 = vpow.pop %v1609
        %v1611 = vadd.f32 %v1604, 1.0
        %v1612 = vadd.f32 %v1606, 1.0
        %v1613 = vadd.f32 %v1608, 1.0
        %v1614 = vadd.f32 %v1610, 1.0
        %v1615 = vrcp.pop %v1611
        %v1616 = vmul.f32 %v1611, %v1615
        %v1617 = vsub.f32 1.0, %v1616
        %v1618 = vmul.f32 %v1615, %v1617
        %v1619 = vadd.f32 %v1615, %v1618
        %vm1620 = vweird.f32 %v1611
        %vm1621 = vweird.f32 %v1615
        %vm1622 = vmor %vm1620, %vm1621
        %v1623 = vsel %vm1622, %v1615, %v1619
        %v1624 = vand.u32 2147483647, %v1611
        %vm1625 = vcmp.eq.f32.partialorder %v1624, 8.507059e+37
        %v1626 = vand.u32 %v1611, 2147483648
        %v1627 = vor.u32 1.1754944e-38, %v1626
        %v1628 = vsel %vm1625, %v1627, %v1623
        %v1629 = vmul.f32 1.0, %v1628
        %v1630 = vrcp.pop %v1612
        %v1631 = vmul.f32 %v1612, %v1630
        %v1632 = vsub.f32 1.0, %v1631
        %v1633 = vmul.f32 %v1630, %v1632
        %v1634 = vadd.f32 %v1630, %v1633
        %vm1635 = vweird.f32 %v1612
        %vm1636 = vweird.f32 %v1630
        %vm1637 = vmor %vm1635, %vm1636
        %v1638 = vsel %vm1637, %v1630, %v1634
        %v1639 = vand.u32 2147483647, %v1612
        %vm1640 = vcmp.eq.f32.partialorder %v1639, 8.507059e+37
        %v1641 = vand.u32 %v1612, 2147483648
        %v1642 = vor.u32 1.1754944e-38, %v1641
        %v1643 = vsel %vm1640, %v1642, %v1638
        %v1644 = vmul.f32 1.0, %v1643
        %v1645 = vrcp.pop %v1613
        %v1646 = vmul.f32 %v1613, %v1645
        %v1647 = vsub.f32 1.0, %v1646
        %v1648 = vmul.f32 %v1645, %v1647
        %v1649 = vadd.f32 %v1645, %v1648
        %vm1650 = vweird.f32 %v1613
        %vm1651 = vweird.f32 %v1645
        %vm1652 = vmor %vm1650, %vm1651
        %v1653 = vsel %vm1652, %v1645, %v1649
        %v1654 = vand.u32 2147483647, %v1613
        %vm1655 = vcmp.eq.f32.partialorder %v1654, 8.507059e+37
        %v1656 = vand.u32 %v1613, 2147483648
        %v1657 = vor.u32 1.1754944e-38, %v1656
        %v1658 = vsel %vm1655, %v1657, %v1653
        %v1659 = vmul.f32 1.0, %v1658
        %v1660 = vrcp.pop %v1614
        %v1661 = vmul.f32 %v1614, %v1660
        %v1662 = vsub.f32 1.0, %v1661
        %v1663 = vmul.f32 %v1660, %v1662
        %v1664 = vadd.f32 %v1660, %v1663
        %vm1665 = vweird.f32 %v1614
        %vm1666 = vweird.f32 %v1660
        %vm1667 = vmor %vm1665, %vm1666
        %v1668 = vsel %vm1667, %v1660, %v1664
        %v1669 = vand.u32 2147483647, %v1614
        %vm1670 = vcmp.eq.f32.partialorder %v1669, 8.507059e+37
        %v1671 = vand.u32 %v1614, 2147483648
        %v1672 = vor.u32 1.1754944e-38, %v1671
        %v1673 = vsel %vm1670, %v1672, %v1668
        %v1674 = vmul.f32 1.0, %v1673
        %v1675 = vtanh.pop %v1595
        %v1676 = vtanh.pop %v1596
        %v1677 = vtanh.pop %v1597
        %v1678 = vtanh.pop %v1598
        %v1679 = vmul.f32 %v1629, %v1492
        %v1680 = vmul.f32 %v1644, %v1493
        %v1681 = vmul.f32 %v1659, %v1494
        %v1682 = vmul.f32 %v1674, %v1495
        %1687 = vrot.lane.b32.xlu0 %v1675, 32
        %v1688 = vpop.permute.xlu0 %1687
        %1689 = vrot.lane.b32.xlu0 %v1676, 32
        %v1690 = vpop.permute.xlu0 %1689
        %1691 = vrot.lane.b32.xlu0 %v1677, 32
        %v1692 = vpop.permute.xlu0 %1691
        %1693 = vrot.lane.b32.xlu0 %v1678, 32
        %v1694 = vpop.permute.xlu0 %1693
        %v1699 = vmul.f32 %v1629, %v1688
        %v1700 = vmul.f32 %v1644, %v1690
        %v1701 = vmul.f32 %v1659, %v1692
        %v1702 = vmul.f32 %v1674, %v1694
        %1707 = vrot.lane.b32.xlu0 %v1699, 32
        %v1708 = vpop.permute.xlu0 %1707
        %1709 = vrot.lane.b32.xlu0 %v1700, 32
        %v1710 = vpop.permute.xlu0 %1709
        %1711 = vrot.lane.b32.xlu0 %v1701, 32
        %v1712 = vpop.permute.xlu0 %1711
        %1713 = vrot.lane.b32.xlu0 %v1702, 32
        %v1714 = vpop.permute.xlu0 %1713
        %v1719 = vadd.f32 %v1679, %v1708
        %v1720 = vadd.f32 %v1680, %v1710
        %v1721 = vadd.f32 %v1681, %v1712
        %v1722 = vadd.f32 %v1682, %v1714
        %v1723 = vtanh.pop %v1719
        %v1724 = vtanh.pop %v1720
        %v1725 = vtanh.pop %v1721
        %v1726 = vtanh.pop %v1722
        %1731 = vrot.lane.b32.xlu0 %v1723, 32
        %v1732 = vpop.permute.xlu0 %1731
        %1733 = vrot.lane.b32.xlu0 %v1724, 32
        %v1734 = vpop.permute.xlu0 %1733
        %1735 = vrot.lane.b32.xlu0 %v1725, 32
        %v1736 = vpop.permute.xlu0 %1735
        %1737 = vrot.lane.b32.xlu0 %v1726, 32
        %v1738 = vpop.permute.xlu0 %1737
        %v1743 = vmul.f32 %v1629, %v1732
        %v1744 = vmul.f32 %v1644, %v1734
        %v1745 = vmul.f32 %v1659, %v1736
        %v1746 = vmul.f32 %v1674, %v1738
        %1749 = vrot.lane.b32.xlu0 %v1743, 64
        %v1750 = vpop.permute.xlu0 %1749
        %1751 = vrot.lane.b32.xlu0 %v1744, 64
        %v1752 = vpop.permute.xlu0 %1751
        %s1755 = scalar_lea.vmem %s349, 128 [#allocation5]
        %1756 = vst.msk [vmem:[%s1755] sm:$0xff] %vm429, %v1750
        %1757 = vst.msk [vmem:[%s1755 + $0x8] sm:$0xff] %vm429, %v1752
        %1760 = vrot.lane.b32.xlu0 %v1745, 64
        %v1761 = vpop.permute.xlu0 %1760
        %1762 = vrot.lane.b32.xlu0 %v1746, 64
        %v1763 = vpop.permute.xlu0 %1762
        %s1766 = scalar_lea.vmem %s349, 112 [#allocation5]
        %1767 = vst.msk [vmem:[%s1766] sm:$0xff] %vm429, %v1761
        %1768 = vst.msk [vmem:[%s1766 + $0x8] sm:$0xff] %vm429, %v1763
        %1769 = vrot.lane.b32.xlu0 %v1743, 96
        %v1770 = vpop.permute.xlu0 %1769
        %1771 = vrot.lane.b32.xlu0 %v1744, 96
        %v1772 = vpop.permute.xlu0 %1771
        %1773 = vrot.lane.b32.xlu0 %v1745, 96
        %v1774 = vpop.permute.xlu0 %1773
        %1775 = vrot.lane.b32.xlu0 %v1746, 96
        %v1776 = vpop.permute.xlu0 %1775
        %v1781 = vsel %vm429, %v1750, %v1770
        %v1782 = vsel %vm429, %v1752, %v1772
        %v1783 = vsel %vm429, %v1761, %v1774
        %v1784 = vsel %vm429, %v1763, %v1776
        %v1785 = vmul.f32 %v1781, %v632
        %v1786 = vmul.f32 %v1782, %v633
        %v1787 = vmul.f32 %v1783, %v634
        %v1788 = vmul.f32 %v1784, %v635
        %s1789 = scalar_lea.vmem [#allocation2], 80
        %v1790 = vld [vmem:[%s1789] sm:$0xff]
        %v1791 = vld [vmem:[%s1789 + $0x8] sm:$0xff]
        %s1792 = scalar_lea.vmem [#allocation3], 32
        %v1793 = vld [vmem:[%s1792] sm:$0xff]
        %v1794 = vld [vmem:[%s1792 + $0x8] sm:$0xff]
        %v1795 = vpack.c.bf16 %v1786, %v1785
        %v1796 = vpack.c.bf16 %v1788, %v1787
        %v1798 = vsel %vm665, %v1795, 0
        %v1801 = vsel %vm665, %v1796, 0
        %1803 = vmatpush.bf16.msra.mxu0 0
        %1804 = vmatpush.bf16.msra.mxu0 0
        %1805 = vmatpush.bf16.msra.mxu0 0
        %1806 = vmatpush.bf16.msra.mxu0 0
        %1807 = vmatpush.bf16.msra.mxu0 %v660
        %1808 = vmatpush.bf16.msra.mxu0 %v659
        %1809 = vmatpush.bf16.msra.mxu0 %v658
        %1810 = vmatpush.bf16.msra.mxu0 %v657
        %1811 = vmatmul.bf16.gmra.mxu0 %v1798
        %v1812 = vpop.f32.mrf.mxu0
        %v1813 = vadd.f32 0.0, %v1812
        %v1814 = vpop.f32.mrf.mxu0
        %v1815 = vadd.f32 0.0, %v1814
        %1816 = vmatmul.bf16.gmra.mxu0 %v1801
        %v1817 = vpop.f32.mrf.mxu0
        %v1818 = vadd.f32 0.0, %v1817
        %v1819 = vpop.f32.mrf.mxu0
        %v1820 = vadd.f32 0.0, %v1819
        %1821 = vdwg.mxu0
        %v1822 = vadd.f32 %v1790, %v1813
        %v1823 = vadd.f32 %v1791, %v1815
        %v1824 = vadd.f32 %v1793, %v1818
        %v1825 = vadd.f32 %v1794, %v1820
        %v1826 = vxor.u32 %v1822, 2147483648
        %v1827 = vxor.u32 %v1823, 2147483648
        %v1828 = vxor.u32 %v1824, 2147483648
        %v1829 = vxor.u32 %v1825, 2147483648
        %v1830 = vmul.f32 %v1826, 1.442695
        %v1831 = vpow.pop %v1830
        %v1832 = vmul.f32 %v1827, 1.442695
        %v1833 = vpow.pop %v1832
        %v1834 = vmul.f32 %v1828, 1.442695
        %v1835 = vpow.pop %v1834
        %v1836 = vmul.f32 %v1829, 1.442695
        %v1837 = vpow.pop %v1836
        %v1838 = vadd.f32 %v1831, 1.0
        %v1839 = vadd.f32 %v1833, 1.0
        %v1840 = vadd.f32 %v1835, 1.0
        %v1841 = vadd.f32 %v1837, 1.0
        %v1842 = vrcp.pop %v1838
        %v1843 = vmul.f32 %v1838, %v1842
        %v1844 = vsub.f32 1.0, %v1843
        %v1845 = vmul.f32 %v1842, %v1844
        %v1846 = vadd.f32 %v1842, %v1845
        %vm1847 = vweird.f32 %v1838
        %vm1848 = vweird.f32 %v1842
        %vm1849 = vmor %vm1847, %vm1848
        %v1850 = vsel %vm1849, %v1842, %v1846
        %v1851 = vand.u32 2147483647, %v1838
        %vm1852 = vcmp.eq.f32.partialorder %v1851, 8.507059e+37
        %v1853 = vand.u32 %v1838, 2147483648
        %v1854 = vor.u32 1.1754944e-38, %v1853
        %v1855 = vsel %vm1852, %v1854, %v1850
        %v1856 = vmul.f32 1.0, %v1855
        %v1857 = vrcp.pop %v1839
        %v1858 = vmul.f32 %v1839, %v1857
        %v1859 = vsub.f32 1.0, %v1858
        %v1860 = vmul.f32 %v1857, %v1859
        %v1861 = vadd.f32 %v1857, %v1860
        %vm1862 = vweird.f32 %v1839
        %vm1863 = vweird.f32 %v1857
        %vm1864 = vmor %vm1862, %vm1863
        %v1865 = vsel %vm1864, %v1857, %v1861
        %v1866 = vand.u32 2147483647, %v1839
        %vm1867 = vcmp.eq.f32.partialorder %v1866, 8.507059e+37
        %v1868 = vand.u32 %v1839, 2147483648
        %v1869 = vor.u32 1.1754944e-38, %v1868
        %v1870 = vsel %vm1867, %v1869, %v1865
        %v1871 = vmul.f32 1.0, %v1870
        %v1872 = vrcp.pop %v1840
        %v1873 = vmul.f32 %v1840, %v1872
        %v1874 = vsub.f32 1.0, %v1873
        %v1875 = vmul.f32 %v1872, %v1874
        %v1876 = vadd.f32 %v1872, %v1875
        %vm1877 = vweird.f32 %v1840
        %vm1878 = vweird.f32 %v1872
        %vm1879 = vmor %vm1877, %vm1878
        %v1880 = vsel %vm1879, %v1872, %v1876
        %v1881 = vand.u32 2147483647, %v1840
        %vm1882 = vcmp.eq.f32.partialorder %v1881, 8.507059e+37
        %v1883 = vand.u32 %v1840, 2147483648
        %v1884 = vor.u32 1.1754944e-38, %v1883
        %v1885 = vsel %vm1882, %v1884, %v1880
        %v1886 = vmul.f32 1.0, %v1885
        %v1887 = vrcp.pop %v1841
        %v1888 = vmul.f32 %v1841, %v1887
        %v1889 = vsub.f32 1.0, %v1888
        %v1890 = vmul.f32 %v1887, %v1889
        %v1891 = vadd.f32 %v1887, %v1890
        %vm1892 = vweird.f32 %v1841
        %vm1893 = vweird.f32 %v1887
        %vm1894 = vmor %vm1892, %vm1893
        %v1895 = vsel %vm1894, %v1887, %v1891
        %v1896 = vand.u32 2147483647, %v1841
        %vm1897 = vcmp.eq.f32.partialorder %v1896, 8.507059e+37
        %v1898 = vand.u32 %v1841, 2147483648
        %v1899 = vor.u32 1.1754944e-38, %v1898
        %v1900 = vsel %vm1897, %v1899, %v1895
        %v1901 = vmul.f32 1.0, %v1900
        %v1902 = vtanh.pop %v1822
        %v1903 = vtanh.pop %v1823
        %v1904 = vtanh.pop %v1824
        %v1905 = vtanh.pop %v1825
        %v1906 = vmul.f32 %v1856, %v1719
        %v1907 = vmul.f32 %v1871, %v1720
        %v1908 = vmul.f32 %v1886, %v1721
        %v1909 = vmul.f32 %v1901, %v1722
        %1914 = vrot.lane.b32.xlu0 %v1902, 32
        %v1915 = vpop.permute.xlu0 %1914
        %1916 = vrot.lane.b32.xlu0 %v1903, 32
        %v1917 = vpop.permute.xlu0 %1916
        %1918 = vrot.lane.b32.xlu0 %v1904, 32
        %v1919 = vpop.permute.xlu0 %1918
        %1920 = vrot.lane.b32.xlu0 %v1905, 32
        %v1921 = vpop.permute.xlu0 %1920
        %v1926 = vmul.f32 %v1856, %v1915
        %v1927 = vmul.f32 %v1871, %v1917
        %v1928 = vmul.f32 %v1886, %v1919
        %v1929 = vmul.f32 %v1901, %v1921
        %1934 = vrot.lane.b32.xlu0 %v1926, 32
        %v1935 = vpop.permute.xlu0 %1934
        %1936 = vrot.lane.b32.xlu0 %v1927, 32
        %v1937 = vpop.permute.xlu0 %1936
        %1938 = vrot.lane.b32.xlu0 %v1928, 32
        %v1939 = vpop.permute.xlu0 %1938
        %1940 = vrot.lane.b32.xlu0 %v1929, 32
        %v1941 = vpop.permute.xlu0 %1940
        %v1946 = vadd.f32 %v1906, %v1935
        %v1947 = vadd.f32 %v1907, %v1937
        %v1948 = vadd.f32 %v1908, %v1939
        %v1949 = vadd.f32 %v1909, %v1941
        %v1950 = vtanh.pop %v1946
        %v1951 = vtanh.pop %v1947
        %v1952 = vtanh.pop %v1948
        %v1953 = vtanh.pop %v1949
        %1958 = vrot.lane.b32.xlu0 %v1950, 32
        %v1959 = vpop.permute.xlu0 %1958
        %1960 = vrot.lane.b32.xlu0 %v1951, 32
        %v1961 = vpop.permute.xlu0 %1960
        %1962 = vrot.lane.b32.xlu0 %v1952, 32
        %v1963 = vpop.permute.xlu0 %1962
        %1964 = vrot.lane.b32.xlu0 %v1953, 32
        %v1965 = vpop.permute.xlu0 %1964
        %v1970 = vmul.f32 %v1856, %v1959
        %v1971 = vmul.f32 %v1871, %v1961
        %v1972 = vmul.f32 %v1886, %v1963
        %v1973 = vmul.f32 %v1901, %v1965
        %1976 = vrot.lane.b32.xlu0 %v1970, 64
        %v1977 = vpop.permute.xlu0 %1976
        %1978 = vrot.lane.b32.xlu0 %v1971, 64
        %v1979 = vpop.permute.xlu0 %1978
        %s1982 = scalar_lea.vmem %s349, 160 [#allocation5]
        %1983 = vst.msk [vmem:[%s1982] sm:$0xff] %vm429, %v1977
        %1984 = vst.msk [vmem:[%s1982 + $0x8] sm:$0xff] %vm429, %v1979
        %1987 = vrot.lane.b32.xlu0 %v1972, 64
        %v1988 = vpop.permute.xlu0 %1987
        %1989 = vrot.lane.b32.xlu0 %v1973, 64
        %v1990 = vpop.permute.xlu0 %1989
        %s1993 = scalar_lea.vmem %s349, 80 [#allocation5]
        %1994 = vst.msk [vmem:[%s1993] sm:$0xff] %vm429, %v1988
        %1995 = vst.msk [vmem:[%s1993 + $0x8] sm:$0xff] %vm429, %v1990
        %1996 = vrot.lane.b32.xlu0 %v1970, 96
        %v1997 = vpop.permute.xlu0 %1996
        %1998 = vrot.lane.b32.xlu0 %v1971, 96
        %v1999 = vpop.permute.xlu0 %1998
        %2000 = vrot.lane.b32.xlu0 %v1972, 96
        %v2001 = vpop.permute.xlu0 %2000
        %2002 = vrot.lane.b32.xlu0 %v1973, 96
        %v2003 = vpop.permute.xlu0 %2002
        %v2008 = vsel %vm429, %v1977, %v1997
        %v2009 = vsel %vm429, %v1979, %v1999
        %v2010 = vsel %vm429, %v1988, %v2001
        %v2011 = vsel %vm429, %v1990, %v2003
        %v2012 = vmul.f32 %v2008, %v632
        %v2013 = vmul.f32 %v2009, %v633
        %v2014 = vmul.f32 %v2010, %v634
        %v2015 = vmul.f32 %v2011, %v635
        %s2016 = scalar_lea.vmem [#allocation2], 96
        %v2017 = vld [vmem:[%s2016] sm:$0xff]
        %v2018 = vld [vmem:[%s2016 + $0x8] sm:$0xff]
        %s2019 = scalar_lea.vmem [#allocation3], 16
        %v2020 = vld [vmem:[%s2019] sm:$0xff]
        %v2021 = vld [vmem:[%s2019 + $0x8] sm:$0xff]
        %v2022 = vpack.c.bf16 %v2013, %v2012
        %v2023 = vpack.c.bf16 %v2015, %v2014
        %v2025 = vsel %vm665, %v2022, 0
        %v2028 = vsel %vm665, %v2023, 0
        %2030 = vmatpush.bf16.msra.mxu0 0
        %2031 = vmatpush.bf16.msra.mxu0 0
        %2032 = vmatpush.bf16.msra.mxu0 0
        %2033 = vmatpush.bf16.msra.mxu0 0
        %2034 = vmatpush.bf16.msra.mxu0 %v660
        %2035 = vmatpush.bf16.msra.mxu0 %v659
        %2036 = vmatpush.bf16.msra.mxu0 %v658
        %2037 = vmatpush.bf16.msra.mxu0 %v657
        %2038 = vmatmul.bf16.gmra.mxu0 %v2025
        %v2039 = vpop.f32.mrf.mxu0
        %v2040 = vadd.f32 0.0, %v2039
        %v2041 = vpop.f32.mrf.mxu0
        %v2042 = vadd.f32 0.0, %v2041
        %2043 = vmatmul.bf16.gmra.mxu0 %v2028
        %v2044 = vpop.f32.mrf.mxu0
        %v2045 = vadd.f32 0.0, %v2044
        %v2046 = vpop.f32.mrf.mxu0
        %v2047 = vadd.f32 0.0, %v2046
        %2048 = vdwg.mxu0
        %v2049 = vadd.f32 %v2017, %v2040
        %v2050 = vadd.f32 %v2018, %v2042
        %v2051 = vadd.f32 %v2020, %v2045
        %v2052 = vadd.f32 %v2021, %v2047
        %v2053 = vxor.u32 %v2049, 2147483648
        %v2054 = vxor.u32 %v2050, 2147483648
        %v2055 = vxor.u32 %v2051, 2147483648
        %v2056 = vxor.u32 %v2052, 2147483648
        %v2057 = vmul.f32 %v2053, 1.442695
        %v2058 = vpow.pop %v2057
        %v2059 = vmul.f32 %v2054, 1.442695
        %v2060 = vpow.pop %v2059
        %v2061 = vmul.f32 %v2055, 1.442695
        %v2062 = vpow.pop %v2061
        %v2063 = vmul.f32 %v2056, 1.442695
        %v2064 = vpow.pop %v2063
        %v2065 = vadd.f32 %v2058, 1.0
        %v2066 = vadd.f32 %v2060, 1.0
        %v2067 = vadd.f32 %v2062, 1.0
        %v2068 = vadd.f32 %v2064, 1.0
        %v2069 = vrcp.pop %v2065
        %v2070 = vmul.f32 %v2065, %v2069
        %v2071 = vsub.f32 1.0, %v2070
        %v2072 = vmul.f32 %v2069, %v2071
        %v2073 = vadd.f32 %v2069, %v2072
        %vm2074 = vweird.f32 %v2065
        %vm2075 = vweird.f32 %v2069
        %vm2076 = vmor %vm2074, %vm2075
        %v2077 = vsel %vm2076, %v2069, %v2073
        %v2078 = vand.u32 2147483647, %v2065
        %vm2079 = vcmp.eq.f32.partialorder %v2078, 8.507059e+37
        %v2080 = vand.u32 %v2065, 2147483648
        %v2081 = vor.u32 1.1754944e-38, %v2080
        %v2082 = vsel %vm2079, %v2081, %v2077
        %v2083 = vmul.f32 1.0, %v2082
        %v2084 = vrcp.pop %v2066
        %v2085 = vmul.f32 %v2066, %v2084
        %v2086 = vsub.f32 1.0, %v2085
        %v2087 = vmul.f32 %v2084, %v2086
        %v2088 = vadd.f32 %v2084, %v2087
        %vm2089 = vweird.f32 %v2066
        %vm2090 = vweird.f32 %v2084
        %vm2091 = vmor %vm2089, %vm2090
        %v2092 = vsel %vm2091, %v2084, %v2088
        %v2093 = vand.u32 2147483647, %v2066
        %vm2094 = vcmp.eq.f32.partialorder %v2093, 8.507059e+37
        %v2095 = vand.u32 %v2066, 2147483648
        %v2096 = vor.u32 1.1754944e-38, %v2095
        %v2097 = vsel %vm2094, %v2096, %v2092
        %v2098 = vmul.f32 1.0, %v2097
        %v2099 = vrcp.pop %v2067
        %v2100 = vmul.f32 %v2067, %v2099
        %v2101 = vsub.f32 1.0, %v2100
        %v2102 = vmul.f32 %v2099, %v2101
        %v2103 = vadd.f32 %v2099, %v2102
        %vm2104 = vweird.f32 %v2067
        %vm2105 = vweird.f32 %v2099
        %vm2106 = vmor %vm2104, %vm2105
        %v2107 = vsel %vm2106, %v2099, %v2103
        %v2108 = vand.u32 2147483647, %v2067
        %vm2109 = vcmp.eq.f32.partialorder %v2108, 8.507059e+37
        %v2110 = vand.u32 %v2067, 2147483648
        %v2111 = vor.u32 1.1754944e-38, %v2110
        %v2112 = vsel %vm2109, %v2111, %v2107
        %v2113 = vmul.f32 1.0, %v2112
        %v2114 = vrcp.pop %v2068
        %v2115 = vmul.f32 %v2068, %v2114
        %v2116 = vsub.f32 1.0, %v2115
        %v2117 = vmul.f32 %v2114, %v2116
        %v2118 = vadd.f32 %v2114, %v2117
        %vm2119 = vweird.f32 %v2068
        %vm2120 = vweird.f32 %v2114
        %vm2121 = vmor %vm2119, %vm2120
        %v2122 = vsel %vm2121, %v2114, %v2118
        %v2123 = vand.u32 2147483647, %v2068
        %vm2124 = vcmp.eq.f32.partialorder %v2123, 8.507059e+37
        %v2125 = vand.u32 %v2068, 2147483648
        %v2126 = vor.u32 1.1754944e-38, %v2125
        %v2127 = vsel %vm2124, %v2126, %v2122
        %v2128 = vmul.f32 1.0, %v2127
        %v2129 = vtanh.pop %v2049
        %v2130 = vtanh.pop %v2050
        %v2131 = vtanh.pop %v2051
        %v2132 = vtanh.pop %v2052
        %v2133 = vmul.f32 %v2083, %v1946
        %v2134 = vmul.f32 %v2098, %v1947
        %v2135 = vmul.f32 %v2113, %v1948
        %v2136 = vmul.f32 %v2128, %v1949
        %2141 = vrot.lane.b32.xlu0 %v2129, 32
        %v2142 = vpop.permute.xlu0 %2141
        %2143 = vrot.lane.b32.xlu0 %v2130, 32
        %v2144 = vpop.permute.xlu0 %2143
        %2145 = vrot.lane.b32.xlu0 %v2131, 32
        %v2146 = vpop.permute.xlu0 %2145
        %2147 = vrot.lane.b32.xlu0 %v2132, 32
        %v2148 = vpop.permute.xlu0 %2147
        %v2153 = vmul.f32 %v2083, %v2142
        %v2154 = vmul.f32 %v2098, %v2144
        %v2155 = vmul.f32 %v2113, %v2146
        %v2156 = vmul.f32 %v2128, %v2148
        %2161 = vrot.lane.b32.xlu0 %v2153, 32
        %v2162 = vpop.permute.xlu0 %2161
        %2163 = vrot.lane.b32.xlu0 %v2154, 32
        %v2164 = vpop.permute.xlu0 %2163
        %2165 = vrot.lane.b32.xlu0 %v2155, 32
        %v2166 = vpop.permute.xlu0 %2165
        %2167 = vrot.lane.b32.xlu0 %v2156, 32
        %v2168 = vpop.permute.xlu0 %2167
        %v2173 = vadd.f32 %v2133, %v2162
        %v2174 = vadd.f32 %v2134, %v2164
        %v2175 = vadd.f32 %v2135, %v2166
        %v2176 = vadd.f32 %v2136, %v2168
        %v2177 = vtanh.pop %v2173
        %v2178 = vtanh.pop %v2174
        %v2179 = vtanh.pop %v2175
        %v2180 = vtanh.pop %v2176
        %2185 = vrot.lane.b32.xlu0 %v2177, 32
        %v2186 = vpop.permute.xlu0 %2185
        %2187 = vrot.lane.b32.xlu0 %v2178, 32
        %v2188 = vpop.permute.xlu0 %2187
        %2189 = vrot.lane.b32.xlu0 %v2179, 32
        %v2190 = vpop.permute.xlu0 %2189
        %2191 = vrot.lane.b32.xlu0 %v2180, 32
        %v2192 = vpop.permute.xlu0 %2191
        %v2197 = vmul.f32 %v2083, %v2186
        %v2198 = vmul.f32 %v2098, %v2188
        %v2199 = vmul.f32 %v2113, %v2190
        %v2200 = vmul.f32 %v2128, %v2192
        %2203 = vrot.lane.b32.xlu0 %v2197, 64
        %v2204 = vpop.permute.xlu0 %2203
        %2205 = vrot.lane.b32.xlu0 %v2198, 64
        %v2206 = vpop.permute.xlu0 %2205
        %s2209 = scalar_lea.vmem %s349, 192 [#allocation5]
        %2210 = vst.msk [vmem:[%s2209] sm:$0xff] %vm429, %v2204
        %2211 = vst.msk [vmem:[%s2209 + $0x8] sm:$0xff] %vm429, %v2206
        %2214 = vrot.lane.b32.xlu0 %v2199, 64
        %v2215 = vpop.permute.xlu0 %2214
        %2216 = vrot.lane.b32.xlu0 %v2200, 64
        %v2217 = vpop.permute.xlu0 %2216
        %s2220 = scalar_lea.vmem %s349, 48 [#allocation5]
        %2221 = vst.msk [vmem:[%s2220] sm:$0xff] %vm429, %v2215
        %2222 = vst.msk [vmem:[%s2220 + $0x8] sm:$0xff] %vm429, %v2217
        %2223 = vrot.lane.b32.xlu0 %v2197, 96
        %v2224 = vpop.permute.xlu0 %2223
        %2225 = vrot.lane.b32.xlu0 %v2198, 96
        %v2226 = vpop.permute.xlu0 %2225
        %2227 = vrot.lane.b32.xlu0 %v2199, 96
        %v2228 = vpop.permute.xlu0 %2227
        %2229 = vrot.lane.b32.xlu0 %v2200, 96
        %v2230 = vpop.permute.xlu0 %2229
        %v2235 = vsel %vm429, %v2204, %v2224
        %v2236 = vsel %vm429, %v2206, %v2226
        %v2237 = vsel %vm429, %v2215, %v2228
        %v2238 = vsel %vm429, %v2217, %v2230
        %v2239 = vmul.f32 %v2235, %v632
        %v2240 = vmul.f32 %v2236, %v633
        %v2241 = vmul.f32 %v2237, %v634
        %v2242 = vmul.f32 %v2238, %v635
        %s2243 = scalar_lea.vmem [#allocation2], 112
        %v2244 = vld [vmem:[%s2243] sm:$0xff]
        %v2245 = vld [vmem:[%s2243 + $0x8] sm:$0xff]
        %v2246 = vld [vmem:[#allocation3] sm:$0xff]
        %v2247 = vld [vmem:[#allocation3 + $0x8] sm:$0xff]
        %v2248 = vpack.c.bf16 %v2240, %v2239
        %v2249 = vpack.c.bf16 %v2242, %v2241
        %v2251 = vsel %vm665, %v2248, 0
        %v2254 = vsel %vm665, %v2249, 0
        %2256 = vmatpush.bf16.msra.mxu0 0
        %2257 = vmatpush.bf16.msra.mxu0 0
        %2258 = vmatpush.bf16.msra.mxu0 0
        %2259 = vmatpush.bf16.msra.mxu0 0
        %2260 = vmatpush.bf16.msra.mxu0 %v660
        %2261 = vmatpush.bf16.msra.mxu0 %v659
        %2262 = vmatpush.bf16.msra.mxu0 %v658
        %2263 = vmatpush.bf16.msra.mxu0 %v657
        %2264 = vmatmul.bf16.gmra.mxu0 %v2251
        %v2265 = vpop.f32.mrf.mxu0
        %v2266 = vadd.f32 0.0, %v2265
        %v2267 = vpop.f32.mrf.mxu0
        %v2268 = vadd.f32 0.0, %v2267
        %2269 = vmatmul.bf16.gmra.mxu0 %v2254
        %v2270 = vpop.f32.mrf.mxu0
        %v2271 = vadd.f32 0.0, %v2270
        %v2272 = vpop.f32.mrf.mxu0
        %v2273 = vadd.f32 0.0, %v2272
        %2274 = vdwg.mxu0
        %v2275 = vadd.f32 %v2244, %v2266
        %v2276 = vadd.f32 %v2245, %v2268
        %v2277 = vadd.f32 %v2246, %v2271
        %v2278 = vadd.f32 %v2247, %v2273
        %v2279 = vxor.u32 %v2275, 2147483648
        %v2280 = vxor.u32 %v2276, 2147483648
        %v2281 = vxor.u32 %v2277, 2147483648
        %v2282 = vxor.u32 %v2278, 2147483648
        %v2283 = vmul.f32 %v2279, 1.442695
        %v2284 = vpow.pop %v2283
        %v2285 = vmul.f32 %v2280, 1.442695
        %v2286 = vpow.pop %v2285
        %v2287 = vmul.f32 %v2281, 1.442695
        %v2288 = vpow.pop %v2287
        %v2289 = vmul.f32 %v2282, 1.442695
        %v2290 = vpow.pop %v2289
        %v2291 = vadd.f32 %v2284, 1.0
        %v2292 = vadd.f32 %v2286, 1.0
        %v2293 = vadd.f32 %v2288, 1.0
        %v2294 = vadd.f32 %v2290, 1.0
        %v2295 = vrcp.pop %v2291
        %v2296 = vmul.f32 %v2291, %v2295
        %v2297 = vsub.f32 1.0, %v2296
        %v2298 = vmul.f32 %v2295, %v2297
        %v2299 = vadd.f32 %v2295, %v2298
        %vm2300 = vweird.f32 %v2291
        %vm2301 = vweird.f32 %v2295
        %vm2302 = vmor %vm2300, %vm2301
        %v2303 = vsel %vm2302, %v2295, %v2299
        %v2304 = vand.u32 2147483647, %v2291
        %vm2305 = vcmp.eq.f32.partialorder %v2304, 8.507059e+37
        %v2306 = vand.u32 %v2291, 2147483648
        %v2307 = vor.u32 1.1754944e-38, %v2306
        %v2308 = vsel %vm2305, %v2307, %v2303
        %v2309 = vmul.f32 1.0, %v2308
        %v2310 = vrcp.pop %v2292
        %v2311 = vmul.f32 %v2292, %v2310
        %v2312 = vsub.f32 1.0, %v2311
        %v2313 = vmul.f32 %v2310, %v2312
        %v2314 = vadd.f32 %v2310, %v2313
        %vm2315 = vweird.f32 %v2292
        %vm2316 = vweird.f32 %v2310
        %vm2317 = vmor %vm2315, %vm2316
        %v2318 = vsel %vm2317, %v2310, %v2314
        %v2319 = vand.u32 2147483647, %v2292
        %vm2320 = vcmp.eq.f32.partialorder %v2319, 8.507059e+37
        %v2321 = vand.u32 %v2292, 2147483648
        %v2322 = vor.u32 1.1754944e-38, %v2321
        %v2323 = vsel %vm2320, %v2322, %v2318
        %v2324 = vmul.f32 1.0, %v2323
        %v2325 = vrcp.pop %v2293
        %v2326 = vmul.f32 %v2293, %v2325
        %v2327 = vsub.f32 1.0, %v2326
        %v2328 = vmul.f32 %v2325, %v2327
        %v2329 = vadd.f32 %v2325, %v2328
        %vm2330 = vweird.f32 %v2293
        %vm2331 = vweird.f32 %v2325
        %vm2332 = vmor %vm2330, %vm2331
        %v2333 = vsel %vm2332, %v2325, %v2329
        %v2334 = vand.u32 2147483647, %v2293
        %vm2335 = vcmp.eq.f32.partialorder %v2334, 8.507059e+37
        %v2336 = vand.u32 %v2293, 2147483648
        %v2337 = vor.u32 1.1754944e-38, %v2336
        %v2338 = vsel %vm2335, %v2337, %v2333
        %v2339 = vmul.f32 1.0, %v2338
        %v2340 = vrcp.pop %v2294
        %v2341 = vmul.f32 %v2294, %v2340
        %v2342 = vsub.f32 1.0, %v2341
        %v2343 = vmul.f32 %v2340, %v2342
        %v2344 = vadd.f32 %v2340, %v2343
        %vm2345 = vweird.f32 %v2294
        %vm2346 = vweird.f32 %v2340
        %vm2347 = vmor %vm2345, %vm2346
        %v2348 = vsel %vm2347, %v2340, %v2344
        %v2349 = vand.u32 2147483647, %v2294
        %vm2350 = vcmp.eq.f32.partialorder %v2349, 8.507059e+37
        %v2351 = vand.u32 %v2294, 2147483648
        %v2352 = vor.u32 1.1754944e-38, %v2351
        %v2353 = vsel %vm2350, %v2352, %v2348
        %v2354 = vmul.f32 1.0, %v2353
        %v2355 = vtanh.pop %v2275
        %v2356 = vtanh.pop %v2276
        %v2357 = vtanh.pop %v2277
        %v2358 = vtanh.pop %v2278
        %v2359 = vmul.f32 %v2309, %v2173
        %v2360 = vmul.f32 %v2324, %v2174
        %v2361 = vmul.f32 %v2339, %v2175
        %v2362 = vmul.f32 %v2354, %v2176
        %2367 = vrot.lane.b32.xlu0 %v2355, 32
        %v2368 = vpop.permute.xlu0 %2367
        %2369 = vrot.lane.b32.xlu0 %v2356, 32
        %v2370 = vpop.permute.xlu0 %2369
        %2371 = vrot.lane.b32.xlu0 %v2357, 32
        %v2372 = vpop.permute.xlu0 %2371
        %2373 = vrot.lane.b32.xlu0 %v2358, 32
        %v2374 = vpop.permute.xlu0 %2373
        %v2379 = vmul.f32 %v2309, %v2368
        %v2380 = vmul.f32 %v2324, %v2370
        %v2381 = vmul.f32 %v2339, %v2372
        %v2382 = vmul.f32 %v2354, %v2374
        %2387 = vrot.lane.b32.xlu0 %v2379, 32
        %v2388 = vpop.permute.xlu0 %2387
        %2389 = vrot.lane.b32.xlu0 %v2380, 32
        %v2390 = vpop.permute.xlu0 %2389
        %2391 = vrot.lane.b32.xlu0 %v2381, 32
        %v2392 = vpop.permute.xlu0 %2391
        %2393 = vrot.lane.b32.xlu0 %v2382, 32
        %v2394 = vpop.permute.xlu0 %2393
        %v2399 = vadd.f32 %v2359, %v2388
        %v2400 = vadd.f32 %v2360, %v2390
        %v2401 = vadd.f32 %v2361, %v2392
        %v2402 = vadd.f32 %v2362, %v2394
        %v2403 = vtanh.pop %v2399
        %v2404 = vtanh.pop %v2400
        %v2405 = vtanh.pop %v2401
        %v2406 = vtanh.pop %v2402
        %2411 = vrot.lane.b32.xlu0 %v2403, 32
        %v2412 = vpop.permute.xlu0 %2411
        %2413 = vrot.lane.b32.xlu0 %v2404, 32
        %v2414 = vpop.permute.xlu0 %2413
        %2415 = vrot.lane.b32.xlu0 %v2405, 32
        %v2416 = vpop.permute.xlu0 %2415
        %2417 = vrot.lane.b32.xlu0 %v2406, 32
        %v2418 = vpop.permute.xlu0 %2417
        %v2423 = vmul.f32 %v2309, %v2412
        %v2424 = vmul.f32 %v2324, %v2414
        %v2425 = vmul.f32 %v2339, %v2416
        %v2426 = vmul.f32 %v2354, %v2418
        %2429 = vrot.lane.b32.xlu0 %v2423, 64
        %v2430 = vpop.permute.xlu0 %2429
        %2431 = vrot.lane.b32.xlu0 %v2424, 64
        %v2432 = vpop.permute.xlu0 %2431
        %s2435 = scalar_lea.vmem %s349, 224 [#allocation5]
        %2436 = vst.msk [vmem:[%s2435] sm:$0xff] %vm429, %v2430
        %2437 = vst.msk [vmem:[%s2435 + $0x8] sm:$0xff] %vm429, %v2432
        %2440 = vrot.lane.b32.xlu0 %v2425, 64
        %v2441 = vpop.permute.xlu0 %2440
        %2442 = vrot.lane.b32.xlu0 %v2426, 64
        %v2443 = vpop.permute.xlu0 %2442
        %s2446 = scalar_lea.vmem %s349, 16 [#allocation5]
        %2447 = vst.msk [vmem:[%s2446] sm:$0xff] %vm429, %v2441
        %2448 = vst.msk [vmem:[%s2446 + $0x8] sm:$0xff] %vm429, %v2443
        %s2449 = sand.u32 %s156, 1
        %s2450 = sand.u32 %s156, 1
        %s2451 = smul.addr %s2450, 256
        %s2452 = scalar_lea.vmem [#allocation5], %s2451
        // Predicated region
        $region86: #{esim_forward.4} parent=80 // pred_check
          %p2453 = pneg %p166
        $region87: #{esim_forward.4} parent=80 // pred_check_branch
          %2455 = sbr.rel (%p2453) target = $region89
        $region88: #{esim_forward.4} parent=80 // pred_region
          %s2456 = smul.u32 2, %s17
          %s2457 = smul.addr %s2456, 8
          %s2458 = scalar_lea.vmem %s6, %s2457
          // Predicated region
          $region90: #{esim_forward.4} parent=88 // pred_check
            _
          $region91: #{esim_forward.4} parent=88 // pred_check_branch
            %2460 = sbr.rel (0) target = $region93
          $region92: #{esim_forward.4} parent=88 // pred_region
            // Predicated region
            $region94: #{esim_forward.4} parent=92 // pred_check
              _
            $region95: #{esim_forward.4} parent=92 // pred_check_branch
              %2462 = sbr.rel (0) target = $region97
            $region96: #{esim_forward.4} parent=92 // pred_region
              // Predicated region
              $region109: #{esim_forward.4} parent=96 // pred_check
                _
              $region110: #{esim_forward.4} parent=96 // pred_check_branch
                %2540 = sbr.rel (0) target = $region112
              $region111: #{esim_forward.4} parent=96 // pred_region
                loop: start=0, step=1, limit=1
                $region113: #{esim_forward.4} parent=111 // loop_pre_header
                  _
                $region114: #{esim_forward.4} parent=111 // loop_header
                  %s2542 = sphi 0, %s2546
                  %p2543 = scmp.ge.s32.totalorder %s2542, 1
                  %s2547 = sphi %s2452, %s2452
                  %s2548 = sphi %s2458, %s2458
                $region115: #{esim_forward.4} parent=111 // loop_header_branch
                  %2545 = sbr.rel (%p2543) target = $region119
                $region116: #{esim_forward.4} parent=111 // loop_body
                  %v2549 = vld [vmem:[%s2547] sm:$0xff]
                  %2550 = vst [vmem:[%s2548] sm:$0xff] %v2549
                  %v2551 = vld [vmem:[%s2547 + $0x8] sm:$0xff]
                  %2552 = vst [vmem:[%s2548 + $0x8] sm:$0xff] %v2551
                  %v2553 = vld [vmem:[%s2547 + $0x10] sm:$0xff]
                  %2554 = vst [vmem:[%s2548 + $0x20] sm:$0xff] %v2553
                  %v2555 = vld [vmem:[%s2547 + $0x18] sm:$0xff]
                  %2556 = vst [vmem:[%s2548 + $0x28] sm:$0xff] %v2555
                  %v2557 = vld [vmem:[%s2547 + $0x20] sm:$0xff]
                  %2558 = vst [vmem:[%s2548 + $0x40] sm:$0xff] %v2557
                  %v2559 = vld [vmem:[%s2547 + $0x28] sm:$0xff]
                  %2560 = vst [vmem:[%s2548 + $0x48] sm:$0xff] %v2559
                  %v2561 = vld [vmem:[%s2547 + $0x30] sm:$0xff]
                  %2562 = vst [vmem:[%s2548 + $0x60] sm:$0xff] %v2561
                  %v2563 = vld [vmem:[%s2547 + $0x38] sm:$0xff]
                  %2564 = vst [vmem:[%s2548 + $0x68] sm:$0xff] %v2563
                  %v2565 = vld [vmem:[%s2547 + $0x40] sm:$0xff]
                  %2566 = vst [vmem:[%s2548 + $0x80] sm:$0xff] %v2565
                  %v2567 = vld [vmem:[%s2547 + $0x48] sm:$0xff]
                  %2568 = vst [vmem:[%s2548 + $0x88] sm:$0xff] %v2567
                  %v2569 = vld [vmem:[%s2547 + $0x50] sm:$0xff]
                  %2570 = vst [vmem:[%s2548 + $0xa0] sm:$0xff] %v2569
                  %v2571 = vld [vmem:[%s2547 + $0x58] sm:$0xff]
                  %2572 = vst [vmem:[%s2548 + $0xa8] sm:$0xff] %v2571
                  %v2573 = vld [vmem:[%s2547 + $0x60] sm:$0xff]
                  %2574 = vst [vmem:[%s2548 + $0xc0] sm:$0xff] %v2573
                  %v2575 = vld [vmem:[%s2547 + $0x68] sm:$0xff]
                  %2576 = vst [vmem:[%s2548 + $0xc8] sm:$0xff] %v2575
                  %v2577 = vld [vmem:[%s2547 + $0x70] sm:$0xff]
                  %2578 = vst [vmem:[%s2548 + $0xe0] sm:$0xff] %v2577
                  %v2579 = vld [vmem:[%s2547 + $0x78] sm:$0xff]
                  %2580 = vst [vmem:[%s2548 + $0xe8] sm:$0xff] %v2579
                  %v2581 = vld [vmem:[%s2547 + $0x80] sm:$0xff]
                  %2582 = vst [vmem:[%s2548 + $0x100] sm:$0xff] %v2581
                  %v2583 = vld [vmem:[%s2547 + $0x88] sm:$0xff]
                  %2584 = vst [vmem:[%s2548 + $0x108] sm:$0xff] %v2583
                  %v2585 = vld [vmem:[%s2547 + $0x90] sm:$0xff]
                  %2586 = vst [vmem:[%s2548 + $0x120] sm:$0xff] %v2585
                  %v2587 = vld [vmem:[%s2547 + $0x98] sm:$0xff]
                  %2588 = vst [vmem:[%s2548 + $0x128] sm:$0xff] %v2587
                  %v2589 = vld [vmem:[%s2547 + $0xa0] sm:$0xff]
                  %2590 = vst [vmem:[%s2548 + $0x140] sm:$0xff] %v2589
                  %v2591 = vld [vmem:[%s2547 + $0xa8] sm:$0xff]
                  %2592 = vst [vmem:[%s2548 + $0x148] sm:$0xff] %v2591
                  %v2593 = vld [vmem:[%s2547 + $0xb0] sm:$0xff]
                  %2594 = vst [vmem:[%s2548 + $0x160] sm:$0xff] %v2593
                  %v2595 = vld [vmem:[%s2547 + $0xb8] sm:$0xff]
                  %2596 = vst [vmem:[%s2548 + $0x168] sm:$0xff] %v2595
                  %v2597 = vld [vmem:[%s2547 + $0xc0] sm:$0xff]
                  %2598 = vst [vmem:[%s2548 + $0x180] sm:$0xff] %v2597
                  %v2599 = vld [vmem:[%s2547 + $0xc8] sm:$0xff]
                  %2600 = vst [vmem:[%s2548 + $0x188] sm:$0xff] %v2599
                  %v2601 = vld [vmem:[%s2547 + $0xd0] sm:$0xff]
                  %2602 = vst [vmem:[%s2548 + $0x1a0] sm:$0xff] %v2601
                  %v2603 = vld [vmem:[%s2547 + $0xd8] sm:$0xff]
                  %2604 = vst [vmem:[%s2548 + $0x1a8] sm:$0xff] %v2603
                  %v2605 = vld [vmem:[%s2547 + $0xe0] sm:$0xff]
                  %2606 = vst [vmem:[%s2548 + $0x1c0] sm:$0xff] %v2605
                  %v2607 = vld [vmem:[%s2547 + $0xe8] sm:$0xff]
                  %2608 = vst [vmem:[%s2548 + $0x1c8] sm:$0xff] %v2607
                  %v2609 = vld [vmem:[%s2547 + $0xf0] sm:$0xff]
                  %2610 = vst [vmem:[%s2548 + $0x1e0] sm:$0xff] %v2609
                  %v2611 = vld [vmem:[%s2547 + $0xf8] sm:$0xff]
                  %2612 = vst [vmem:[%s2548 + $0x1e8] sm:$0xff] %v2611
                $region117: #{esim_forward.4} parent=111 // loop_footer
                  %s2546 = sadd.s32 1, %s2542
                $region118: #{esim_forward.4} parent=111 // loop_footer_branch
                  %2541 = sbr.rel target = $region114
                $region119: #{esim_forward.4} parent=111 // loop_exit
                  _
              $region112: #{esim_forward.4} parent=96 // pred_fallthru
                _
              // Predicated region
              $region120: #{esim_forward.4} parent=96 // pred_check
                _
              $region121: #{esim_forward.4} parent=96 // pred_check_branch
                %2614 = sbr.rel target = $region123
              $region122: #{esim_forward.4} parent=96 // pred_region
                _
              $region123: #{esim_forward.4} parent=96 // pred_fallthru
                _
            $region97: #{esim_forward.4} parent=92 // pred_fallthru
              _
            // Predicated region
            $region98: #{esim_forward.4} parent=92 // pred_check
              _
            $region99: #{esim_forward.4} parent=92 // pred_check_branch
              %2464 = sbr.rel target = $region101
            $region100: #{esim_forward.4} parent=92 // pred_region
              %s2466 = ssub.s32 256, 1
              loop: start=0, step=1, limit=1
              $region102: #{esim_forward.4} parent=100 // loop_pre_header
                _
              $region103: #{esim_forward.4} parent=100 // loop_header
                %s2468 = sphi 0, %s2472
                %p2469 = scmp.ge.s32.totalorder %s2468, 1
                %s2473 = sphi %s2452, %s2452
                %s2474 = sphi %s2458, %s2458
              $region104: #{esim_forward.4} parent=100 // loop_header_branch
                %2471 = sbr.rel (%p2469) target = $region108
              $region105: #{esim_forward.4} parent=100 // loop_body
                %v2475 = vld [vmem:[%s2473] sm:%s2466]
                %2476 = vst [vmem:[%s2474] sm:%s2466] %v2475
                %v2477 = vld [vmem:[%s2473 + $0x8] sm:%s2466]
                %2478 = vst [vmem:[%s2474 + $0x8] sm:%s2466] %v2477
                %v2479 = vld [vmem:[%s2473 + $0x10] sm:%s2466]
                %2480 = vst [vmem:[%s2474 + $0x20] sm:%s2466] %v2479
                %v2481 = vld [vmem:[%s2473 + $0x18] sm:%s2466]
                %2482 = vst [vmem:[%s2474 + $0x28] sm:%s2466] %v2481
                %v2483 = vld [vmem:[%s2473 + $0x20] sm:%s2466]
                %2484 = vst [vmem:[%s2474 + $0x40] sm:%s2466] %v2483
                %v2485 = vld [vmem:[%s2473 + $0x28] sm:%s2466]
                %2486 = vst [vmem:[%s2474 + $0x48] sm:%s2466] %v2485
                %v2487 = vld [vmem:[%s2473 + $0x30] sm:%s2466]
                %2488 = vst [vmem:[%s2474 + $0x60] sm:%s2466] %v2487
                %v2489 = vld [vmem:[%s2473 + $0x38] sm:%s2466]
                %2490 = vst [vmem:[%s2474 + $0x68] sm:%s2466] %v2489
                %v2491 = vld [vmem:[%s2473 + $0x40] sm:%s2466]
                %2492 = vst [vmem:[%s2474 + $0x80] sm:%s2466] %v2491
                %v2493 = vld [vmem:[%s2473 + $0x48] sm:%s2466]
                %2494 = vst [vmem:[%s2474 + $0x88] sm:%s2466] %v2493
                %v2495 = vld [vmem:[%s2473 + $0x50] sm:%s2466]
                %2496 = vst [vmem:[%s2474 + $0xa0] sm:%s2466] %v2495
                %v2497 = vld [vmem:[%s2473 + $0x58] sm:%s2466]
                %2498 = vst [vmem:[%s2474 + $0xa8] sm:%s2466] %v2497
                %v2499 = vld [vmem:[%s2473 + $0x60] sm:%s2466]
                %2500 = vst [vmem:[%s2474 + $0xc0] sm:%s2466] %v2499
                %v2501 = vld [vmem:[%s2473 + $0x68] sm:%s2466]
                %2502 = vst [vmem:[%s2474 + $0xc8] sm:%s2466] %v2501
                %v2503 = vld [vmem:[%s2473 + $0x70] sm:%s2466]
                %2504 = vst [vmem:[%s2474 + $0xe0] sm:%s2466] %v2503
                %v2505 = vld [vmem:[%s2473 + $0x78] sm:%s2466]
                %2506 = vst [vmem:[%s2474 + $0xe8] sm:%s2466] %v2505
                %v2507 = vld [vmem:[%s2473 + $0x80] sm:%s2466]
                %2508 = vst [vmem:[%s2474 + $0x100] sm:%s2466] %v2507
                %v2509 = vld [vmem:[%s2473 + $0x88] sm:%s2466]
                %2510 = vst [vmem:[%s2474 + $0x108] sm:%s2466] %v2509
                %v2511 = vld [vmem:[%s2473 + $0x90] sm:%s2466]
                %2512 = vst [vmem:[%s2474 + $0x120] sm:%s2466] %v2511
                %v2513 = vld [vmem:[%s2473 + $0x98] sm:%s2466]
                %2514 = vst [vmem:[%s2474 + $0x128] sm:%s2466] %v2513
                %v2515 = vld [vmem:[%s2473 + $0xa0] sm:%s2466]
                %2516 = vst [vmem:[%s2474 + $0x140] sm:%s2466] %v2515
                %v2517 = vld [vmem:[%s2473 + $0xa8] sm:%s2466]
                %2518 = vst [vmem:[%s2474 + $0x148] sm:%s2466] %v2517
                %v2519 = vld [vmem:[%s2473 + $0xb0] sm:%s2466]
                %2520 = vst [vmem:[%s2474 + $0x160] sm:%s2466] %v2519
                %v2521 = vld [vmem:[%s2473 + $0xb8] sm:%s2466]
                %2522 = vst [vmem:[%s2474 + $0x168] sm:%s2466] %v2521
                %v2523 = vld [vmem:[%s2473 + $0xc0] sm:%s2466]
                %2524 = vst [vmem:[%s2474 + $0x180] sm:%s2466] %v2523
                %v2525 = vld [vmem:[%s2473 + $0xc8] sm:%s2466]
                %2526 = vst [vmem:[%s2474 + $0x188] sm:%s2466] %v2525
                %v2527 = vld [vmem:[%s2473 + $0xd0] sm:%s2466]
                %2528 = vst [vmem:[%s2474 + $0x1a0] sm:%s2466] %v2527
                %v2529 = vld [vmem:[%s2473 + $0xd8] sm:%s2466]
                %2530 = vst [vmem:[%s2474 + $0x1a8] sm:%s2466] %v2529
                %v2531 = vld [vmem:[%s2473 + $0xe0] sm:%s2466]
                %2532 = vst [vmem:[%s2474 + $0x1c0] sm:%s2466] %v2531
                %v2533 = vld [vmem:[%s2473 + $0xe8] sm:%s2466]
                %2534 = vst [vmem:[%s2474 + $0x1c8] sm:%s2466] %v2533
                %v2535 = vld [vmem:[%s2473 + $0xf0] sm:%s2466]
                %2536 = vst [vmem:[%s2474 + $0x1e0] sm:%s2466] %v2535
                %v2537 = vld [vmem:[%s2473 + $0xf8] sm:%s2466]
                %2538 = vst [vmem:[%s2474 + $0x1e8] sm:%s2466] %v2537
              $region106: #{esim_forward.4} parent=100 // loop_footer
                %s2472 = sadd.s32 1, %s2468
              $region107: #{esim_forward.4} parent=100 // loop_footer_branch
                %2467 = sbr.rel target = $region103
              $region108: #{esim_forward.4} parent=100 // loop_exit
                _
            $region101: #{esim_forward.4} parent=92 // pred_fallthru
              _
          $region93: #{esim_forward.4} parent=88 // pred_fallthru
            _
          %2615 = vnop
        $region89: #{esim_forward.4} parent=80 // pred_fallthru
          _
      $region81: #{esim_forward.4} parent=5 // pred_fallthru
        _
      %p2616 = scmp.le.s32.totalorder 2, %s12
      // Predicated region
      $region124: #{esim_forward.4} parent=5 // pred_check
        %p2617 = pneg %p2616
      $region125: #{esim_forward.4} parent=5 // pred_check_branch
        %2619 = sbr.rel (%p2617) target = $region127
      $region126: #{esim_forward.4} parent=5 // pred_region
        %s2620 = ssub.s32 %s12, 2
        // Predicated region
        $region128: #{esim_forward.4} parent=126 // pred_check
          %p2621 = pneg %p172
        $region129: #{esim_forward.4} parent=126 // pred_check_branch
          %2623 = sbr.rel (%p2621) target = $region131
        $region130: #{esim_forward.4} parent=126 // pred_region
          %s2624 = sand.u32 %s157, 1
          %s2625 = sand.u32 %s157, 1
          %s2626 = smul.addr %s2625, 256
          %s2627 = scalar_lea.vmem [#allocation5], %s2626
        $region131: #{esim_forward.4} parent=126 // pred_fallthru
          _
      $region127: #{esim_forward.4} parent=5 // pred_fallthru
        _
    $region6: #{esim_forward.4} parent=1 // loop_footer
      %s16 = sadd.s32 1, %s12
    $region7: #{esim_forward.4} parent=1 // loop_footer_branch
      %11 = sbr.rel target = $region3
    $region8: #{esim_forward.4} parent=1 // loop_exit
      _

// kernel: esim_forward.7
$region0: #{esim_forward.7}
  #allocation0 [shape = 'u32[]', space=smem, size = 0x4, offset = 0x4, fixed_abs, tag = 'smem constant byte address 0x4 - core index']
  #allocation1 [shape = 'u32[72,128]{1,0:T(1,128)}', space=vmem, size = 0x9000, scoped, tag = 'internal scratch']
  %s0 = inlined_call_operand.vmem [shape: f32[16,2,8,64], index: 0, kind: input, shape index: {}]
  %s1 = inlined_call_operand.vmem [shape: bf16[64,64], index: 1, kind: input, shape index: {}]
  %s2 = inlined_call_operand.vmem [shape: f32[1,64], index: 2, kind: input, shape index: {}]
  %s3 = inlined_call_operand.vmem [shape: bf16[64,64], index: 3, kind: input, shape index: {}]
  %s4 = inlined_call_operand.vmem [shape: f32[1,64], index: 4, kind: input, shape index: {}]
  %s5 = inlined_call_operand.vmem [shape: bf16[256,32], index: 5, kind: input, shape index: {}]
  %s6 = inlined_call_operand.vmem [shape: f32[1,32], index: 6, kind: input, shape index: {}]
  %s7 = inlined_call_operand.vmem [shape: bf16[32,32], index: 7, kind: input, shape index: {}]
  %s8 = inlined_call_operand.vmem [shape: f32[1,32], index: 8, kind: input, shape index: {}]
  %s9 = inlined_call_operand.vmem [shape: bf16[32,2], index: 9, kind: input, shape index: {}]
  %s10 = inlined_call_operand.vmem [shape: f32[1,2], index: 10, kind: input, shape index: {}]
  %s11 = inlined_call_operand.vmem [shape: f32[16,1,2], index: 11, kind: output, shape index: {}]
  %s12 = sld [smem:[#allocation0]]
  $region77: #{esim_forward.7} parent=0
    _
  %s14 = ssub.s32 1, %s12
  %s15 = scalar_select 0, %s14, %s12
  loop: start=0, step=1, limit=4
  $region2: #{esim_forward.7} parent=0 // loop_pre_header
    _
  $region3: #{esim_forward.7} parent=0 // loop_header
    %s17 = sphi 0, %s21
    %p18 = scmp.ge.s32.totalorder %s17, 4
    %s27 = sphi 0, %s29
    %s30 = sphi 0, %s27
    %s31 = sphi 0, %s30
    %s47 = sphi 0, %s31
    %s51 = sphi 0, %s51
    %s53 = sphi 0, %s51
    %s54 = sphi 0, %s53
    %s68 = sphi 0, %s54
    %s72 = sphi 0, %s72
    %s74 = sphi 0, %s72
    %s75 = sphi 0, %s74
    %s89 = sphi 0, %s75
    %s93 = sphi 0, %s93
    %s95 = sphi 0, %s93
    %s96 = sphi 0, %s95
    %s110 = sphi 0, %s96
    %s114 = sphi 0, %s114
    %s116 = sphi 0, %s114
    %s117 = sphi 0, %s116
    %s131 = sphi 0, %s117
    %s135 = sphi 0, %s135
    %s137 = sphi 0, %s135
    %s138 = sphi 0, %s137
    %s152 = sphi 0, %s138
    %s156 = sphi 0, %s156
    %s158 = sphi 0, %s156
    %s159 = sphi 0, %s158
    %s173 = sphi 0, %s159
    %s177 = sphi 0, %s177
    %s179 = sphi 0, %s177
    %s180 = sphi 0, %s179
    %s194 = sphi 0, %s180
    %s198 = sphi 0, %s198
    %s200 = sphi 0, %s198
    %s201 = sphi 0, %s200
    %s215 = sphi 0, %s201
    %s219 = sphi 0, %s219
    %s221 = sphi 0, %s219
    %s222 = sphi 0, %s221
    %s236 = sphi 0, %s222
    %s240 = sphi 0, %s240
    %s242 = sphi 0, %s240
    %s243 = sphi 0, %s242
    %s257 = sphi 0, %s243
    %s263 = sphi 0, %s265
    %s266 = sphi 0, %s263
    %s267 = sphi 0, %s266
    %s283 = sphi 0, %s267
  $region4: #{esim_forward.7} parent=0 // loop_header_branch
    %20 = sbr.rel (%p18) target = $region8
  $region5: #{esim_forward.7} parent=0 // loop_body
    %s22 = ssub.s32 %s17, 1
    %s23 = ssub.s32 %s17, 2
    %s24 = sadd.s32 %s17, 1
    %s25 = ssub.s32 %s17, %s24
    %p26 = scmp.eq.s32.totalorder %s25, 0
    %s28 = sadd.s32 %s27, 1
    %s29 = scalar_select %p26, %s27, %s28
    %p32 = pneg %p26
    %p33 = scmp.eq.s32.totalorder %s17, 1
    %p34 = por %p32, %p33
    %p35 = scmp.ne.s32.totalorder %s27, %s30
    %p36 = scmp.eq.s32.totalorder %s17, 0
    %p37 = por %p35, %p36
    %p38 = scmp.ne.s32.totalorder %s27, %s30
    %p39 = scmp.eq.s32.totalorder %s22, 1
    %p40 = por %p38, %p39
    %p41 = scmp.ne.s32.totalorder %s30, %s31
    %p42 = scmp.eq.s32.totalorder %s22, 0
    %p43 = por %p41, %p42
    %p44 = scmp.ne.s32.totalorder %s30, %s31
    %p45 = scmp.eq.s32.totalorder %s23, 1
    %p46 = por %p44, %p45
    %p48 = scmp.ne.s32.totalorder %s31, %s47
    %p49 = scmp.eq.s32.totalorder %s23, 0
    %p50 = por %p48, %p49
    %s52 = sadd.s32 %s51, 1
    %p55 = scmp.eq.s32.totalorder %s17, 1
    %p56 = scmp.ne.s32.totalorder %s51, %s53
    %p57 = scmp.eq.s32.totalorder %s17, 0
    %p58 = por %p56, %p57
    %p59 = scmp.ne.s32.totalorder %s51, %s53
    %p60 = scmp.eq.s32.totalorder %s22, 1
    %p61 = por %p59, %p60
    %p62 = scmp.ne.s32.totalorder %s53, %s54
    %p63 = scmp.eq.s32.totalorder %s22, 0
    %p64 = por %p62, %p63
    %p65 = scmp.ne.s32.totalorder %s53, %s54
    %p66 = scmp.eq.s32.totalorder %s23, 1
    %p67 = por %p65, %p66
    %p69 = scmp.ne.s32.totalorder %s54, %s68
    %p70 = scmp.eq.s32.totalorder %s23, 0
    %p71 = por %p69, %p70
    %s73 = sadd.s32 %s72, 1
    %p76 = scmp.eq.s32.totalorder %s17, 1
    %p77 = scmp.ne.s32.totalorder %s72, %s74
    %p78 = scmp.eq.s32.totalorder %s17, 0
    %p79 = por %p77, %p78
    %p80 = scmp.ne.s32.totalorder %s72, %s74
    %p81 = scmp.eq.s32.totalorder %s22, 1
    %p82 = por %p80, %p81
    %p83 = scmp.ne.s32.totalorder %s74, %s75
    %p84 = scmp.eq.s32.totalorder %s22, 0
    %p85 = por %p83, %p84
    %p86 = scmp.ne.s32.totalorder %s74, %s75
    %p87 = scmp.eq.s32.totalorder %s23, 1
    %p88 = por %p86, %p87
    %p90 = scmp.ne.s32.totalorder %s75, %s89
    %p91 = scmp.eq.s32.totalorder %s23, 0
    %p92 = por %p90, %p91
    %s94 = sadd.s32 %s93, 1
    %p97 = scmp.eq.s32.totalorder %s17, 1
    %p98 = scmp.ne.s32.totalorder %s93, %s95
    %p99 = scmp.eq.s32.totalorder %s17, 0
    %p100 = por %p98, %p99
    %p101 = scmp.ne.s32.totalorder %s93, %s95
    %p102 = scmp.eq.s32.totalorder %s22, 1
    %p103 = por %p101, %p102
    %p104 = scmp.ne.s32.totalorder %s95, %s96
    %p105 = scmp.eq.s32.totalorder %s22, 0
    %p106 = por %p104, %p105
    %p107 = scmp.ne.s32.totalorder %s95, %s96
    %p108 = scmp.eq.s32.totalorder %s23, 1
    %p109 = por %p107, %p108
    %p111 = scmp.ne.s32.totalorder %s96, %s110
    %p112 = scmp.eq.s32.totalorder %s23, 0
    %p113 = por %p111, %p112
    %s115 = sadd.s32 %s114, 1
    %p118 = scmp.eq.s32.totalorder %s17, 1
    %p119 = scmp.ne.s32.totalorder %s114, %s116
    %p120 = scmp.eq.s32.totalorder %s17, 0
    %p121 = por %p119, %p120
    %p122 = scmp.ne.s32.totalorder %s114, %s116
    %p123 = scmp.eq.s32.totalorder %s22, 1
    %p124 = por %p122, %p123
    %p125 = scmp.ne.s32.totalorder %s116, %s117
    %p126 = scmp.eq.s32.totalorder %s22, 0
    %p127 = por %p125, %p126
    %p128 = scmp.ne.s32.totalorder %s116, %s117
    %p129 = scmp.eq.s32.totalorder %s23, 1
    %p130 = por %p128, %p129
    %p132 = scmp.ne.s32.totalorder %s117, %s131
    %p133 = scmp.eq.s32.totalorder %s23, 0
    %p134 = por %p132, %p133
    %s136 = sadd.s32 %s135, 1
    %p139 = scmp.eq.s32.totalorder %s17, 1
    %p140 = scmp.ne.s32.totalorder %s135, %s137
    %p141 = scmp.eq.s32.totalorder %s17, 0
    %p142 = por %p140, %p141
    %p143 = scmp.ne.s32.totalorder %s135, %s137
    %p144 = scmp.eq.s32.totalorder %s22, 1
    %p145 = por %p143, %p144
    %p146 = scmp.ne.s32.totalorder %s137, %s138
    %p147 = scmp.eq.s32.totalorder %s22, 0
    %p148 = por %p146, %p147
    %p149 = scmp.ne.s32.totalorder %s137, %s138
    %p150 = scmp.eq.s32.totalorder %s23, 1
    %p151 = por %p149, %p150
    %p153 = scmp.ne.s32.totalorder %s138, %s152
    %p154 = scmp.eq.s32.totalorder %s23, 0
    %p155 = por %p153, %p154
    %s157 = sadd.s32 %s156, 1
    %p160 = scmp.eq.s32.totalorder %s17, 1
    %p161 = scmp.ne.s32.totalorder %s156, %s158
    %p162 = scmp.eq.s32.totalorder %s17, 0
    %p163 = por %p161, %p162
    %p164 = scmp.ne.s32.totalorder %s156, %s158
    %p165 = scmp.eq.s32.totalorder %s22, 1
    %p166 = por %p164, %p165
    %p167 = scmp.ne.s32.totalorder %s158, %s159
    %p168 = scmp.eq.s32.totalorder %s22, 0
    %p169 = por %p167, %p168
    %p170 = scmp.ne.s32.totalorder %s158, %s159
    %p171 = scmp.eq.s32.totalorder %s23, 1
    %p172 = por %p170, %p171
    %p174 = scmp.ne.s32.totalorder %s159, %s173
    %p175 = scmp.eq.s32.totalorder %s23, 0
    %p176 = por %p174, %p175
    %s178 = sadd.s32 %s177, 1
    %p181 = scmp.eq.s32.totalorder %s17, 1
    %p182 = scmp.ne.s32.totalorder %s177, %s179
    %p183 = scmp.eq.s32.totalorder %s17, 0
    %p184 = por %p182, %p183
    %p185 = scmp.ne.s32.totalorder %s177, %s179
    %p186 = scmp.eq.s32.totalorder %s22, 1
    %p187 = por %p185, %p186
    %p188 = scmp.ne.s32.totalorder %s179, %s180
    %p189 = scmp.eq.s32.totalorder %s22, 0
    %p190 = por %p188, %p189
    %p191 = scmp.ne.s32.totalorder %s179, %s180
    %p192 = scmp.eq.s32.totalorder %s23, 1
    %p193 = por %p191, %p192
    %p195 = scmp.ne.s32.totalorder %s180, %s194
    %p196 = scmp.eq.s32.totalorder %s23, 0
    %p197 = por %p195, %p196
    %s199 = sadd.s32 %s198, 1
    %p202 = scmp.eq.s32.totalorder %s17, 1
    %p203 = scmp.ne.s32.totalorder %s198, %s200
    %p204 = scmp.eq.s32.totalorder %s17, 0
    %p205 = por %p203, %p204
    %p206 = scmp.ne.s32.totalorder %s198, %s200
    %p207 = scmp.eq.s32.totalorder %s22, 1
    %p208 = por %p206, %p207
    %p209 = scmp.ne.s32.totalorder %s200, %s201
    %p210 = scmp.eq.s32.totalorder %s22, 0
    %p211 = por %p209, %p210
    %p212 = scmp.ne.s32.totalorder %s200, %s201
    %p213 = scmp.eq.s32.totalorder %s23, 1
    %p214 = por %p212, %p213
    %p216 = scmp.ne.s32.totalorder %s201, %s215
    %p217 = scmp.eq.s32.totalorder %s23, 0
    %p218 = por %p216, %p217
    %s220 = sadd.s32 %s219, 1
    %p223 = scmp.eq.s32.totalorder %s17, 1
    %p224 = scmp.ne.s32.totalorder %s219, %s221
    %p225 = scmp.eq.s32.totalorder %s17, 0
    %p226 = por %p224, %p225
    %p227 = scmp.ne.s32.totalorder %s219, %s221
    %p228 = scmp.eq.s32.totalorder %s22, 1
    %p229 = por %p227, %p228
    %p230 = scmp.ne.s32.totalorder %s221, %s222
    %p231 = scmp.eq.s32.totalorder %s22, 0
    %p232 = por %p230, %p231
    %p233 = scmp.ne.s32.totalorder %s221, %s222
    %p234 = scmp.eq.s32.totalorder %s23, 1
    %p235 = por %p233, %p234
    %p237 = scmp.ne.s32.totalorder %s222, %s236
    %p238 = scmp.eq.s32.totalorder %s23, 0
    %p239 = por %p237, %p238
    %s241 = sadd.s32 %s240, 1
    %p244 = scmp.eq.s32.totalorder %s17, 1
    %p245 = scmp.ne.s32.totalorder %s240, %s242
    %p246 = scmp.eq.s32.totalorder %s17, 0
    %p247 = por %p245, %p246
    %p248 = scmp.ne.s32.totalorder %s240, %s242
    %p249 = scmp.eq.s32.totalorder %s22, 1
    %p250 = por %p248, %p249
    %p251 = scmp.ne.s32.totalorder %s242, %s243
    %p252 = scmp.eq.s32.totalorder %s22, 0
    %p253 = por %p251, %p252
    %p254 = scmp.ne.s32.totalorder %s242, %s243
    %p255 = scmp.eq.s32.totalorder %s23, 1
    %p256 = por %p254, %p255
    %p258 = scmp.ne.s32.totalorder %s243, %s257
    %p259 = scmp.eq.s32.totalorder %s23, 0
    %p260 = por %p258, %p259
    %s261 = ssub.s32 %s17, %s24
    %p262 = scmp.eq.s32.totalorder %s261, 0
    %s264 = sadd.s32 %s263, 1
    %s265 = scalar_select %p262, %s263, %s264
    %p268 = pneg %p262
    %p269 = scmp.eq.s32.totalorder %s17, 1
    %p270 = por %p268, %p269
    %p271 = scmp.ne.s32.totalorder %s263, %s266
    %p272 = scmp.eq.s32.totalorder %s17, 0
    %p273 = por %p271, %p272
    %p274 = scmp.ne.s32.totalorder %s263, %s266
    %p275 = scmp.eq.s32.totalorder %s22, 1
    %p276 = por %p274, %p275
    %p277 = scmp.ne.s32.totalorder %s266, %s267
    %p278 = scmp.eq.s32.totalorder %s22, 0
    %p279 = por %p277, %p278
    %p280 = scmp.ne.s32.totalorder %s266, %s267
    %p281 = scmp.eq.s32.totalorder %s23, 1
    %p282 = por %p280, %p281
    %p284 = scmp.ne.s32.totalorder %s267, %s283
    %p285 = scmp.eq.s32.totalorder %s23, 0
    %p286 = por %p284, %p285
    %p287 = scmp.le.s32.totalorder 1, %s17
    %p288 = scmp.lt.s32.totalorder %s17, 3
    %p289 = pnand %p287, %p288
    %p290 = pneg %p289
    // Predicated region
    $region9: #{esim_forward.7} parent=5 // pred_check
      _
    $region10: #{esim_forward.7} parent=5 // pred_check_branch
      %292 = sbr.rel (%p289) target = $region12
    $region11: #{esim_forward.7} parent=5 // pred_region
      %s293 = ssub.s32 %s17, 1
      // Predicated region
      $region13: #{esim_forward.7} parent=11 // pred_check
        %p294 = pneg %p64
      $region14: #{esim_forward.7} parent=11 // pred_check_branch
        %296 = sbr.rel (%p294) target = $region16
      $region15: #{esim_forward.7} parent=11 // pred_region
        _
      $region16: #{esim_forward.7} parent=11 // pred_fallthru
        _
      // Predicated region
      $region17: #{esim_forward.7} parent=11 // pred_check
        %p297 = pneg %p85
      $region18: #{esim_forward.7} parent=11 // pred_check_branch
        %299 = sbr.rel (%p297) target = $region20
      $region19: #{esim_forward.7} parent=11 // pred_region
        _
      $region20: #{esim_forward.7} parent=11 // pred_fallthru
        _
      // Predicated region
      $region21: #{esim_forward.7} parent=11 // pred_check
        %p300 = pneg %p106
      $region22: #{esim_forward.7} parent=11 // pred_check_branch
        %302 = sbr.rel (%p300) target = $region24
      $region23: #{esim_forward.7} parent=11 // pred_region
        _
      $region24: #{esim_forward.7} parent=11 // pred_fallthru
        _
      // Predicated region
      $region25: #{esim_forward.7} parent=11 // pred_check
        %p303 = pneg %p127
      $region26: #{esim_forward.7} parent=11 // pred_check_branch
        %305 = sbr.rel (%p303) target = $region28
      $region27: #{esim_forward.7} parent=11 // pred_region
        _
      $region28: #{esim_forward.7} parent=11 // pred_fallthru
        _
      // Predicated region
      $region29: #{esim_forward.7} parent=11 // pred_check
        %p306 = pneg %p148
      $region30: #{esim_forward.7} parent=11 // pred_check_branch
        %308 = sbr.rel (%p306) target = $region32
      $region31: #{esim_forward.7} parent=11 // pred_region
        _
      $region32: #{esim_forward.7} parent=11 // pred_fallthru
        _
      // Predicated region
      $region33: #{esim_forward.7} parent=11 // pred_check
        %p309 = pneg %p169
      $region34: #{esim_forward.7} parent=11 // pred_check_branch
        %311 = sbr.rel (%p309) target = $region36
      $region35: #{esim_forward.7} parent=11 // pred_region
        _
      $region36: #{esim_forward.7} parent=11 // pred_fallthru
        _
      // Predicated region
      $region37: #{esim_forward.7} parent=11 // pred_check
        %p312 = pneg %p190
      $region38: #{esim_forward.7} parent=11 // pred_check_branch
        %314 = sbr.rel (%p312) target = $region40
      $region39: #{esim_forward.7} parent=11 // pred_region
        _
      $region40: #{esim_forward.7} parent=11 // pred_fallthru
        _
      // Predicated region
      $region41: #{esim_forward.7} parent=11 // pred_check
        %p315 = pneg %p211
      $region42: #{esim_forward.7} parent=11 // pred_check_branch
        %317 = sbr.rel (%p315) target = $region44
      $region43: #{esim_forward.7} parent=11 // pred_region
        _
      $region44: #{esim_forward.7} parent=11 // pred_fallthru
        _
      // Predicated region
      $region45: #{esim_forward.7} parent=11 // pred_check
        %p318 = pneg %p232
      $region46: #{esim_forward.7} parent=11 // pred_check_branch
        %320 = sbr.rel (%p318) target = $region48
      $region47: #{esim_forward.7} parent=11 // pred_region
        _
      $region48: #{esim_forward.7} parent=11 // pred_fallthru
        _
      // Predicated region
      $region49: #{esim_forward.7} parent=11 // pred_check
        %p321 = pneg %p253
      $region50: #{esim_forward.7} parent=11 // pred_check_branch
        %323 = sbr.rel (%p321) target = $region52
      $region51: #{esim_forward.7} parent=11 // pred_region
        _
      $region52: #{esim_forward.7} parent=11 // pred_fallthru
        _
    $region12: #{esim_forward.7} parent=5 // pred_fallthru
      _
    %p324 = scmp.lt.s32.totalorder %s17, 2
    // Predicated region
    $region53: #{esim_forward.7} parent=5 // pred_check
      %p325 = pneg %p324
    $region54: #{esim_forward.7} parent=5 // pred_check_branch
      %327 = sbr.rel (%p325) target = $region56
    $region55: #{esim_forward.7} parent=5 // pred_region
      // Predicated region
      $region57: #{esim_forward.7} parent=55 // pred_check
        %p328 = pneg %p37
      $region58: #{esim_forward.7} parent=55 // pred_check_branch
        %330 = sbr.rel (%p328) target = $region60
      $region59: #{esim_forward.7} parent=55 // pred_region
        %s331 = smul.u32 8, %s17
        %p332 = scmp.lt.s32.totalorder %s331, 15
        %s333 = scalar_select %p332, %s331, 15
        %s334 = smul.addr %s333, 2
        %s335 = smul.addr %s334, 8
        %s336 = scalar_lea.vmem %s0, %s335
        %s337 = smul.u32 8, %s17
      $region60: #{esim_forward.7} parent=55 // pred_fallthru
        _
    $region56: #{esim_forward.7} parent=5 // pred_fallthru
      _
    %p338 = scmp.le.s32.totalorder 1, %s17
    %p339 = scmp.lt.s32.totalorder %s17, 3
    %p340 = pnand %p338, %p339
    %p341 = pneg %p340
    // Predicated region
    $region61: #{esim_forward.7} parent=5 // pred_check
      _
    $region62: #{esim_forward.7} parent=5 // pred_check_branch
      %343 = sbr.rel (%p340) target = $region64
    $region63: #{esim_forward.7} parent=5 // pred_region
      %s344 = ssub.s32 %s17, 1
      %s345 = smul.u32 8, %s22
      %p346 = scmp.lt.s32.totalorder %s345, 15
      %s347 = scalar_select %p346, %s345, 15
      %s348 = smul.addr %s347, 2
      %s349 = smul.addr %s348, 8
      %s350 = scalar_lea.vmem %s0, %s349
      %p351 = pneg %p43
      %p352 = pneg %p40
      %p353 = pneg %p64
      %p354 = pneg %p61
      %p355 = pneg %p85
      %p356 = pneg %p82
      %p357 = pneg %p106
      %p358 = pneg %p103
      %p359 = pneg %p127
      %p360 = pneg %p124
      %p361 = pneg %p148
      %p362 = pneg %p145
      %p363 = pneg %p169
      %p364 = pneg %p166
      %p365 = pneg %p190
      %p366 = pneg %p187
      %p367 = pneg %p211
      %p368 = pneg %p208
      %p369 = pneg %p232
      %p370 = pneg %p229
      %p371 = pneg %p253
      %p372 = pneg %p250
      %p373 = pneg %p279
      %p374 = pneg %p276
      %s375 = smul.u32 8, %s22
      %p376 = scmp.lt.s32.totalorder %s375, 15
      %s377 = scalar_select %p376, %s375, 15
      %s378 = scalar_lea.vmem %s11, %s377
      %s379 = smul.u32 8, %s22
      %p380 = scmp.lt.s32.totalorder %s379, 15
      %s381 = scalar_select %p380, %s379, 15
      %s382 = smul.addr %s381, 2
      %s383 = smul.addr %s382, 8
      %s384 = scalar_lea.vmem %s0, %s383
      %s385 = smul.u32 8, %s22
      %s386 = smul.u32 8, %s22
      %p387 = scmp.lt.s32.totalorder %s386, 15
      %s388 = scalar_select %p387, %s386, 15
      %s389 = scalar_lea.vmem %s11, %s388
      %s390 = smul.u32 8, %s22
      %v392 = vld [vmem:[%s384] sm:$0xff]
      %v393 = vld [vmem:[%s384 + $0x8] sm:$0xff]
      %v394 = vld [vmem:[%s384 + $0x10] sm:$0xff]
      %v395 = vld [vmem:[%s384 + $0x18] sm:$0xff]
      %v396 = vld [vmem:[%s384 + $0x20] sm:$0xff]
      %v397 = vld [vmem:[%s384 + $0x28] sm:$0xff]
      %v398 = vld [vmem:[%s384 + $0x30] sm:$0xff]
      %v399 = vld [vmem:[%s384 + $0x38] sm:$0xff]
      %v400 = vld [vmem:[%s384 + $0x40] sm:$0xff]
      %v401 = vld [vmem:[%s384 + $0x48] sm:$0xff]
      %v402 = vld [vmem:[%s384 + $0x50] sm:$0xff]
      %v403 = vld [vmem:[%s384 + $0x58] sm:$0xff]
      %v404 = vld [vmem:[%s384 + $0x60] sm:$0xff]
      %v405 = vld [vmem:[%s384 + $0x68] sm:$0xff]
      %v406 = vld [vmem:[%s384 + $0x70] sm:$0xff]
      %v407 = vld [vmem:[%s384 + $0x78] sm:$0xff]
      %v408 = vpack.c.bf16 %v393, %v392
      %v409 = vpack.c.bf16 %v395, %v394
      %v410 = vpack.c.bf16 %v397, %v396
      %v411 = vpack.c.bf16 %v399, %v398
      %v412 = vpack.c.bf16 %v401, %v400
      %v413 = vpack.c.bf16 %v403, %v402
      %v414 = vpack.c.bf16 %v405, %v404
      %v415 = vpack.c.bf16 %v407, %v406
      %v416 = vld [vmem:[%s1] sm:$0xf]
      %v417 = vld [vmem:[%s1 + $0x4] sm:$0xf]
      %v418 = vld [vmem:[%s1 + $0x8] sm:$0xf]
      %v419 = vld [vmem:[%s1 + $0xc] sm:$0xf]
      %v420 = vld [vmem:[%s1 + $0x10] sm:$0xf]
      %v421 = vld [vmem:[%s1 + $0x14] sm:$0xf]
      %v422 = vld [vmem:[%s1 + $0x18] sm:$0xf]
      %v423 = vld [vmem:[%s1 + $0x1c] sm:$0xf]
      %v424 = vld [vmem:[%s2] sm:$0x1]
      %v426 = vperm.slane %v424, 0
      %v436 = vunpack.c.l.b16 %v416
      %v437 = vunpack.c.l.b16 %v417
      %v438 = vunpack.c.l.b16 %v418
      %v439 = vunpack.c.l.b16 %v419
      %v440 = vunpack.c.l.b16 %v420
      %v441 = vunpack.c.l.b16 %v421
      %v442 = vunpack.c.l.b16 %v422
      %v443 = vunpack.c.l.b16 %v423
      %v444 = vpack.c.b16 %v437, %v436
      %v445 = vpack.c.b16 %v439, %v438
      %v446 = vpack.c.b16 %v441, %v440
      %v447 = vpack.c.b16 %v443, %v442
      %vm452 = vcmask 523264
      %v454 = vsel %vm452, %v408, 0
      %v457 = vsel %vm452, %v409, 0
      %v460 = vsel %vm452, %v410, 0
      %v463 = vsel %vm452, %v411, 0
      %v466 = vsel %vm452, %v412, 0
      %v469 = vsel %vm452, %v413, 0
      %v472 = vsel %vm452, %v414, 0
      %v475 = vsel %vm452, %v415, 0
      %477 = vmatpush.bf16.msra.mxu0 0
      %478 = vmatpush.bf16.msra.mxu0 0
      %479 = vmatpush.bf16.msra.mxu0 0
      %480 = vmatpush.bf16.msra.mxu0 0
      %481 = vmatpush.bf16.msra.mxu0 %v447
      %482 = vmatpush.bf16.msra.mxu0 %v446
      %483 = vmatpush.bf16.msra.mxu0 %v445
      %484 = vmatpush.bf16.msra.mxu0 %v444
      %485 = vmatmul.bf16.gmra.mxu0 %v454
      %v486 = vpop.f32.mrf.mxu0
      %v487 = vadd.f32 %v426, %v486
      %v488 = vpop.f32.mrf.mxu0
      %v489 = vadd.f32 %v426, %v488
      %490 = vmatmul.bf16.gmra.mxu0 %v457
      %v491 = vpop.f32.mrf.mxu0
      %v492 = vadd.f32 %v426, %v491
      %v493 = vpop.f32.mrf.mxu0
      %v494 = vadd.f32 %v426, %v493
      %495 = vmatmul.bf16.gmra.mxu0 %v460
      %v496 = vpop.f32.mrf.mxu0
      %v497 = vadd.f32 %v426, %v496
      %v498 = vpop.f32.mrf.mxu0
      %v499 = vadd.f32 %v426, %v498
      %500 = vmatmul.bf16.gmra.mxu0 %v463
      %v501 = vpop.f32.mrf.mxu0
      %v502 = vadd.f32 %v426, %v501
      %v503 = vpop.f32.mrf.mxu0
      %v504 = vadd.f32 %v426, %v503
      %505 = vmatmul.bf16.gmra.mxu0 %v466
      %v506 = vpop.f32.mrf.mxu0
      %v507 = vadd.f32 %v426, %v506
      %v508 = vpop.f32.mrf.mxu0
      %v509 = vadd.f32 %v426, %v508
      %510 = vmatmul.bf16.gmra.mxu0 %v469
      %v511 = vpop.f32.mrf.mxu0
      %v512 = vadd.f32 %v426, %v511
      %v513 = vpop.f32.mrf.mxu0
      %v514 = vadd.f32 %v426, %v513
      %515 = vmatmul.bf16.gmra.mxu0 %v472
      %v516 = vpop.f32.mrf.mxu0
      %v517 = vadd.f32 %v426, %v516
      %v518 = vpop.f32.mrf.mxu0
      %v519 = vadd.f32 %v426, %v518
      %520 = vmatmul.bf16.gmra.mxu0 %v475
      %v521 = vpop.f32.mrf.mxu0
      %v522 = vadd.f32 %v426, %v521
      %v523 = vpop.f32.mrf.mxu0
      %v524 = vadd.f32 %v426, %v523
      %525 = vdwg.mxu0
      %v526 = vmax.f32 %v487, 0.0
      %v527 = vmax.f32 %v489, 0.0
      %v528 = vmax.f32 %v492, 0.0
      %v529 = vmax.f32 %v494, 0.0
      %v530 = vmax.f32 %v497, 0.0
      %v531 = vmax.f32 %v499, 0.0
      %v532 = vmax.f32 %v502, 0.0
      %v533 = vmax.f32 %v504, 0.0
      %v534 = vmax.f32 %v507, 0.0
      %v535 = vmax.f32 %v509, 0.0
      %v536 = vmax.f32 %v512, 0.0
      %v537 = vmax.f32 %v514, 0.0
      %v538 = vmax.f32 %v517, 0.0
      %v539 = vmax.f32 %v519, 0.0
      %v540 = vmax.f32 %v522, 0.0
      %v541 = vmax.f32 %v524, 0.0
      %v542 = vpack.c.bf16 %v527, %v526
      %v543 = vpack.c.bf16 %v529, %v528
      %v544 = vpack.c.bf16 %v531, %v530
      %v545 = vpack.c.bf16 %v533, %v532
      %v546 = vpack.c.bf16 %v535, %v534
      %v547 = vpack.c.bf16 %v537, %v536
      %v548 = vpack.c.bf16 %v539, %v538
      %v549 = vpack.c.bf16 %v541, %v540
      %v550 = vld [vmem:[%s3] sm:$0xf]
      %v551 = vld [vmem:[%s3 + $0x4] sm:$0xf]
      %v552 = vld [vmem:[%s3 + $0x8] sm:$0xf]
      %v553 = vld [vmem:[%s3 + $0xc] sm:$0xf]
      %v554 = vld [vmem:[%s3 + $0x10] sm:$0xf]
      %v555 = vld [vmem:[%s3 + $0x14] sm:$0xf]
      %v556 = vld [vmem:[%s3 + $0x18] sm:$0xf]
      %v557 = vld [vmem:[%s3 + $0x1c] sm:$0xf]
      %v558 = vld [vmem:[%s4] sm:$0x1]
      %v560 = vperm.slane %v558, 0
      %v570 = vunpack.c.l.b16 %v550
      %v571 = vunpack.c.l.b16 %v551
      %v572 = vunpack.c.l.b16 %v552
      %v573 = vunpack.c.l.b16 %v553
      %v574 = vunpack.c.l.b16 %v554
      %v575 = vunpack.c.l.b16 %v555
      %v576 = vunpack.c.l.b16 %v556
      %v577 = vunpack.c.l.b16 %v557
      %v578 = vpack.c.b16 %v571, %v570
      %v579 = vpack.c.b16 %v573, %v572
      %v580 = vpack.c.b16 %v575, %v574
      %v581 = vpack.c.b16 %v577, %v576
      %v587 = vsel %vm452, %v542, 0
      %v590 = vsel %vm452, %v543, 0
      %v593 = vsel %vm452, %v544, 0
      %v596 = vsel %vm452, %v545, 0
      %v599 = vsel %vm452, %v546, 0
      %v602 = vsel %vm452, %v547, 0
      %v605 = vsel %vm452, %v548, 0
      %v608 = vsel %vm452, %v549, 0
      %610 = vmatpush.bf16.msra.mxu0 0
      %611 = vmatpush.bf16.msra.mxu0 0
      %612 = vmatpush.bf16.msra.mxu0 0
      %613 = vmatpush.bf16.msra.mxu0 0
      %614 = vmatpush.bf16.msra.mxu0 %v581
      %615 = vmatpush.bf16.msra.mxu0 %v580
      %616 = vmatpush.bf16.msra.mxu0 %v579
      %617 = vmatpush.bf16.msra.mxu0 %v578
      %618 = vmatmul.bf16.gmra.mxu0 %v587
      %v619 = vpop.f32.mrf.mxu0
      %v620 = vadd.f32 %v560, %v619
      %v621 = vpop.f32.mrf.mxu0
      %v622 = vadd.f32 %v560, %v621
      %623 = vmatmul.bf16.gmra.mxu0 %v590
      %v624 = vpop.f32.mrf.mxu0
      %v625 = vadd.f32 %v560, %v624
      %v626 = vpop.f32.mrf.mxu0
      %v627 = vadd.f32 %v560, %v626
      %628 = vmatmul.bf16.gmra.mxu0 %v593
      %v629 = vpop.f32.mrf.mxu0
      %v630 = vadd.f32 %v560, %v629
      %v631 = vpop.f32.mrf.mxu0
      %v632 = vadd.f32 %v560, %v631
      %633 = vmatmul.bf16.gmra.mxu0 %v596
      %v634 = vpop.f32.mrf.mxu0
      %v635 = vadd.f32 %v560, %v634
      %v636 = vpop.f32.mrf.mxu0
      %v637 = vadd.f32 %v560, %v636
      %638 = vmatmul.bf16.gmra.mxu0 %v599
      %v639 = vpop.f32.mrf.mxu0
      %v640 = vadd.f32 %v560, %v639
      %v641 = vpop.f32.mrf.mxu0
      %v642 = vadd.f32 %v560, %v641
      %643 = vmatmul.bf16.gmra.mxu0 %v602
      %v644 = vpop.f32.mrf.mxu0
      %v645 = vadd.f32 %v560, %v644
      %v646 = vpop.f32.mrf.mxu0
      %v647 = vadd.f32 %v560, %v646
      %648 = vmatmul.bf16.gmra.mxu0 %v605
      %v649 = vpop.f32.mrf.mxu0
      %v650 = vadd.f32 %v560, %v649
      %v651 = vpop.f32.mrf.mxu0
      %v652 = vadd.f32 %v560, %v651
      %653 = vmatmul.bf16.gmra.mxu0 %v608
      %v654 = vpop.f32.mrf.mxu0
      %v655 = vadd.f32 %v560, %v654
      %v656 = vpop.f32.mrf.mxu0
      %v657 = vadd.f32 %v560, %v656
      %658 = vdwg.mxu0
      %v659 = vsel %vm452, %v620, -inf
      %v660 = vrot.slane %v659, 4
      %v661 = vmax.f32 %v659, %v660
      %v662 = vrot.slane %v661, 2
      %v663 = vmax.f32 %v661, %v662
      %v664 = vrot.slane %v663, 1
      %v665 = vmax.f32 %v663, %v664
      %v666 = vsel %vm452, %v622, -inf
      %v667 = vrot.slane %v666, 4
      %v668 = vmax.f32 %v666, %v667
      %v669 = vrot.slane %v668, 2
      %v670 = vmax.f32 %v668, %v669
      %v671 = vrot.slane %v670, 1
      %v672 = vmax.f32 %v670, %v671
      %v673 = vsel %vm452, %v625, -inf
      %v674 = vrot.slane %v673, 4
      %v675 = vmax.f32 %v673, %v674
      %v676 = vrot.slane %v675, 2
      %v677 = vmax.f32 %v675, %v676
      %v678 = vrot.slane %v677, 1
      %v679 = vmax.f32 %v677, %v678
      %v680 = vsel %vm452, %v627, -inf
      %v681 = vrot.slane %v680, 4
      %v682 = vmax.f32 %v680, %v681
      %v683 = vrot.slane %v682, 2
      %v684 = vmax.f32 %v682, %v683
      %v685 = vrot.slane %v684, 1
      %v686 = vmax.f32 %v684, %v685
      %v687 = vsel %vm452, %v630, -inf
      %v688 = vrot.slane %v687, 4
      %v689 = vmax.f32 %v687, %v688
      %v690 = vrot.slane %v689, 2
      %v691 = vmax.f32 %v689, %v690
      %v692 = vrot.slane %v691, 1
      %v693 = vmax.f32 %v691, %v692
      %v694 = vsel %vm452, %v632, -inf
      %v695 = vrot.slane %v694, 4
      %v696 = vmax.f32 %v694, %v695
      %v697 = vrot.slane %v696, 2
      %v698 = vmax.f32 %v696, %v697
      %v699 = vrot.slane %v698, 1
      %v700 = vmax.f32 %v698, %v699
      %v701 = vsel %vm452, %v635, -inf
      %v702 = vrot.slane %v701, 4
      %v703 = vmax.f32 %v701, %v702
      %v704 = vrot.slane %v703, 2
      %v705 = vmax.f32 %v703, %v704
      %v706 = vrot.slane %v705, 1
      %v707 = vmax.f32 %v705, %v706
      %v708 = vsel %vm452, %v637, -inf
      %v709 = vrot.slane %v708, 4
      %v710 = vmax.f32 %v708, %v709
      %v711 = vrot.slane %v710, 2
      %v712 = vmax.f32 %v710, %v711
      %v713 = vrot.slane %v712, 1
      %v714 = vmax.f32 %v712, %v713
      %v715 = vsel %vm452, %v640, -inf
      %v716 = vrot.slane %v715, 4
      %v717 = vmax.f32 %v715, %v716
      %v718 = vrot.slane %v717, 2
      %v719 = vmax.f32 %v717, %v718
      %v720 = vrot.slane %v719, 1
      %v721 = vmax.f32 %v719, %v720
      %v722 = vsel %vm452, %v642, -inf
      %v723 = vrot.slane %v722, 4
      %v724 = vmax.f32 %v722, %v723
      %v725 = vrot.slane %v724, 2
      %v726 = vmax.f32 %v724, %v725
      %v727 = vrot.slane %v726, 1
      %v728 = vmax.f32 %v726, %v727
      %v729 = vsel %vm452, %v645, -inf
      %v730 = vrot.slane %v729, 4
      %v731 = vmax.f32 %v729, %v730
      %v732 = vrot.slane %v731, 2
      %v733 = vmax.f32 %v731, %v732
      %v734 = vrot.slane %v733, 1
      %v735 = vmax.f32 %v733, %v734
      %v736 = vsel %vm452, %v647, -inf
      %v737 = vrot.slane %v736, 4
      %v738 = vmax.f32 %v736, %v737
      %v739 = vrot.slane %v738, 2
      %v740 = vmax.f32 %v738, %v739
      %v741 = vrot.slane %v740, 1
      %v742 = vmax.f32 %v740, %v741
      %v743 = vsel %vm452, %v650, -inf
      %v744 = vrot.slane %v743, 4
      %v745 = vmax.f32 %v743, %v744
      %v746 = vrot.slane %v745, 2
      %v747 = vmax.f32 %v745, %v746
      %v748 = vrot.slane %v747, 1
      %v749 = vmax.f32 %v747, %v748
      %v750 = vsel %vm452, %v652, -inf
      %v751 = vrot.slane %v750, 4
      %v752 = vmax.f32 %v750, %v751
      %v753 = vrot.slane %v752, 2
      %v754 = vmax.f32 %v752, %v753
      %v755 = vrot.slane %v754, 1
      %v756 = vmax.f32 %v754, %v755
      %v757 = vsel %vm452, %v655, -inf
      %v758 = vrot.slane %v757, 4
      %v759 = vmax.f32 %v757, %v758
      %v760 = vrot.slane %v759, 2
      %v761 = vmax.f32 %v759, %v760
      %v762 = vrot.slane %v761, 1
      %v763 = vmax.f32 %v761, %v762
      %v764 = vsel %vm452, %v657, -inf
      %v765 = vrot.slane %v764, 4
      %v766 = vmax.f32 %v764, %v765
      %v767 = vrot.slane %v766, 2
      %v768 = vmax.f32 %v766, %v767
      %v769 = vrot.slane %v768, 1
      %v770 = vmax.f32 %v768, %v769
      %v771 = vsub.f32 %v620, %v665
      %v772 = vsub.f32 %v622, %v672
      %v773 = vsub.f32 %v625, %v679
      %v774 = vsub.f32 %v627, %v686
      %v775 = vsub.f32 %v630, %v693
      %v776 = vsub.f32 %v632, %v700
      %v777 = vsub.f32 %v635, %v707
      %v778 = vsub.f32 %v637, %v714
      %v779 = vsub.f32 %v640, %v721
      %v780 = vsub.f32 %v642, %v728
      %v781 = vsub.f32 %v645, %v735
      %v782 = vsub.f32 %v647, %v742
      %v783 = vsub.f32 %v650, %v749
      %v784 = vsub.f32 %v652, %v756
      %v785 = vsub.f32 %v655, %v763
      %v786 = vsub.f32 %v657, %v770
      %v787 = vmul.f32 %v771, 1.442695
      %v788 = vpow.pop %v787
      %v789 = vmul.f32 %v772, 1.442695
      %v790 = vpow.pop %v789
      %v791 = vmul.f32 %v773, 1.442695
      %v792 = vpow.pop %v791
      %v793 = vmul.f32 %v774, 1.442695
      %v794 = vpow.pop %v793
      %v795 = vmul.f32 %v775, 1.442695
      %v796 = vpow.pop %v795
      %v797 = vmul.f32 %v776, 1.442695
      %v798 = vpow.pop %v797
      %v799 = vmul.f32 %v777, 1.442695
      %v800 = vpow.pop %v799
      %v801 = vmul.f32 %v778, 1.442695
      %v802 = vpow.pop %v801
      %v803 = vmul.f32 %v779, 1.442695
      %v804 = vpow.pop %v803
      %v805 = vmul.f32 %v780, 1.442695
      %v806 = vpow.pop %v805
      %v807 = vmul.f32 %v781, 1.442695
      %v808 = vpow.pop %v807
      %v809 = vmul.f32 %v782, 1.442695
      %v810 = vpow.pop %v809
      %v811 = vmul.f32 %v783, 1.442695
      %v812 = vpow.pop %v811
      %v813 = vmul.f32 %v784, 1.442695
      %v814 = vpow.pop %v813
      %v815 = vmul.f32 %v785, 1.442695
      %v816 = vpow.pop %v815
      %v817 = vmul.f32 %v786, 1.442695
      %v818 = vpow.pop %v817
      %v819 = vsel %vm452, %v788, 0.0
      %v820 = vrot.slane %v819, 4
      %v821 = vadd.f32 %v819, %v820
      %v822 = vrot.slane %v821, 2
      %v823 = vadd.f32 %v821, %v822
      %v824 = vrot.slane %v823, 1
      %v825 = vadd.f32 %v823, %v824
      %v826 = vsel %vm452, %v790, 0.0
      %v827 = vrot.slane %v826, 4
      %v828 = vadd.f32 %v826, %v827
      %v829 = vrot.slane %v828, 2
      %v830 = vadd.f32 %v828, %v829
      %v831 = vrot.slane %v830, 1
      %v832 = vadd.f32 %v830, %v831
      %v833 = vsel %vm452, %v792, 0.0
      %v834 = vrot.slane %v833, 4
      %v835 = vadd.f32 %v833, %v834
      %v836 = vrot.slane %v835, 2
      %v837 = vadd.f32 %v835, %v836
      %v838 = vrot.slane %v837, 1
      %v839 = vadd.f32 %v837, %v838
      %v840 = vsel %vm452, %v794, 0.0
      %v841 = vrot.slane %v840, 4
      %v842 = vadd.f32 %v840, %v841
      %v843 = vrot.slane %v842, 2
      %v844 = vadd.f32 %v842, %v843
      %v845 = vrot.slane %v844, 1
      %v846 = vadd.f32 %v844, %v845
      %v847 = vsel %vm452, %v796, 0.0
      %v848 = vrot.slane %v847, 4
      %v849 = vadd.f32 %v847, %v848
      %v850 = vrot.slane %v849, 2
      %v851 = vadd.f32 %v849, %v850
      %v852 = vrot.slane %v851, 1
      %v853 = vadd.f32 %v851, %v852
      %v854 = vsel %vm452, %v798, 0.0
      %v855 = vrot.slane %v854, 4
      %v856 = vadd.f32 %v854, %v855
      %v857 = vrot.slane %v856, 2
      %v858 = vadd.f32 %v856, %v857
      %v859 = vrot.slane %v858, 1
      %v860 = vadd.f32 %v858, %v859
      %v861 = vsel %vm452, %v800, 0.0
      %v862 = vrot.slane %v861, 4
      %v863 = vadd.f32 %v861, %v862
      %v864 = vrot.slane %v863, 2
      %v865 = vadd.f32 %v863, %v864
      %v866 = vrot.slane %v865, 1
      %v867 = vadd.f32 %v865, %v866
      %v868 = vsel %vm452, %v802, 0.0
      %v869 = vrot.slane %v868, 4
      %v870 = vadd.f32 %v868, %v869
      %v871 = vrot.slane %v870, 2
      %v872 = vadd.f32 %v870, %v871
      %v873 = vrot.slane %v872, 1
      %v874 = vadd.f32 %v872, %v873
      %v875 = vsel %vm452, %v804, 0.0
      %v876 = vrot.slane %v875, 4
      %v877 = vadd.f32 %v875, %v876
      %v878 = vrot.slane %v877, 2
      %v879 = vadd.f32 %v877, %v878
      %v880 = vrot.slane %v879, 1
      %v881 = vadd.f32 %v879, %v880
      %v882 = vsel %vm452, %v806, 0.0
      %v883 = vrot.slane %v882, 4
      %v884 = vadd.f32 %v882, %v883
      %v885 = vrot.slane %v884, 2
      %v886 = vadd.f32 %v884, %v885
      %v887 = vrot.slane %v886, 1
      %v888 = vadd.f32 %v886, %v887
      %v889 = vsel %vm452, %v808, 0.0
      %v890 = vrot.slane %v889, 4
      %v891 = vadd.f32 %v889, %v890
      %v892 = vrot.slane %v891, 2
      %v893 = vadd.f32 %v891, %v892
      %v894 = vrot.slane %v893, 1
      %v895 = vadd.f32 %v893, %v894
      %v896 = vsel %vm452, %v810, 0.0
      %v897 = vrot.slane %v896, 4
      %v898 = vadd.f32 %v896, %v897
      %v899 = vrot.slane %v898, 2
      %v900 = vadd.f32 %v898, %v899
      %v901 = vrot.slane %v900, 1
      %v902 = vadd.f32 %v900, %v901
      %v903 = vsel %vm452, %v812, 0.0
      %v904 = vrot.slane %v903, 4
      %v905 = vadd.f32 %v903, %v904
      %v906 = vrot.slane %v905, 2
      %v907 = vadd.f32 %v905, %v906
      %v908 = vrot.slane %v907, 1
      %v909 = vadd.f32 %v907, %v908
      %v910 = vsel %vm452, %v814, 0.0
      %v911 = vrot.slane %v910, 4
      %v912 = vadd.f32 %v910, %v911
      %v913 = vrot.slane %v912, 2
      %v914 = vadd.f32 %v912, %v913
      %v915 = vrot.slane %v914, 1
      %v916 = vadd.f32 %v914, %v915
      %v917 = vsel %vm452, %v816, 0.0
      %v918 = vrot.slane %v917, 4
      %v919 = vadd.f32 %v917, %v918
      %v920 = vrot.slane %v919, 2
      %v921 = vadd.f32 %v919, %v920
      %v922 = vrot.slane %v921, 1
      %v923 = vadd.f32 %v921, %v922
      %v924 = vsel %vm452, %v818, 0.0
      %v925 = vrot.slane %v924, 4
      %v926 = vadd.f32 %v924, %v925
      %v927 = vrot.slane %v926, 2
      %v928 = vadd.f32 %v926, %v927
      %v929 = vrot.slane %v928, 1
      %v930 = vadd.f32 %v928, %v929
      %v931 = vrcp.pop %v825
      %v932 = vrcp.pop %v832
      %v933 = vrcp.pop %v839
      %v934 = vrcp.pop %v846
      %v935 = vrcp.pop %v853
      %v936 = vrcp.pop %v860
      %v937 = vrcp.pop %v867
      %v938 = vrcp.pop %v874
      %v939 = vrcp.pop %v881
      %v940 = vrcp.pop %v888
      %v941 = vrcp.pop %v895
      %v942 = vrcp.pop %v902
      %v943 = vrcp.pop %v909
      %v944 = vrcp.pop %v916
      %v945 = vrcp.pop %v923
      %v946 = vrcp.pop %v930
      %v947 = vmul.f32 %v788, %v931
      %v948 = vmul.f32 %v790, %v932
      %v949 = vmul.f32 %v792, %v933
      %v950 = vmul.f32 %v794, %v934
      %v951 = vmul.f32 %v796, %v935
      %v952 = vmul.f32 %v798, %v936
      %v953 = vmul.f32 %v800, %v937
      %v954 = vmul.f32 %v802, %v938
      %v955 = vmul.f32 %v804, %v939
      %v956 = vmul.f32 %v806, %v940
      %v957 = vmul.f32 %v808, %v941
      %v958 = vmul.f32 %v810, %v942
      %v959 = vmul.f32 %v812, %v943
      %v960 = vmul.f32 %v814, %v944
      %v961 = vmul.f32 %v816, %v945
      %v962 = vmul.f32 %v818, %v946
      %v963 = vmul.f32 %v392, %v947
      %v964 = vmul.f32 %v393, %v948
      %v965 = vmul.f32 %v394, %v949
      %v966 = vmul.f32 %v395, %v950
      %v967 = vmul.f32 %v396, %v951
      %v968 = vmul.f32 %v397, %v952
      %v969 = vmul.f32 %v398, %v953
      %v970 = vmul.f32 %v399, %v954
      %v971 = vmul.f32 %v400, %v955
      %v972 = vmul.f32 %v401, %v956
      %v973 = vmul.f32 %v402, %v957
      %v974 = vmul.f32 %v403, %v958
      %v975 = vmul.f32 %v404, %v959
      %v976 = vmul.f32 %v405, %v960
      %v977 = vmul.f32 %v406, %v961
      %v978 = vmul.f32 %v407, %v962
      %v979 = vsel %vm452, %v963, 0.0
      %v980 = vrot.slane %v979, 4
      %v981 = vadd.f32 %v979, %v980
      %v982 = vrot.slane %v981, 2
      %v983 = vadd.f32 %v981, %v982
      %v984 = vrot.slane %v983, 1
      %v985 = vadd.f32 %v983, %v984
      %v986 = vsel %vm452, %v964, 0.0
      %v987 = vrot.slane %v986, 4
      %v988 = vadd.f32 %v986, %v987
      %v989 = vrot.slane %v988, 2
      %v990 = vadd.f32 %v988, %v989
      %v991 = vrot.slane %v990, 1
      %v992 = vadd.f32 %v990, %v991
      %v993 = vsel %vm452, %v965, 0.0
      %v994 = vrot.slane %v993, 4
      %v995 = vadd.f32 %v993, %v994
      %v996 = vrot.slane %v995, 2
      %v997 = vadd.f32 %v995, %v996
      %v998 = vrot.slane %v997, 1
      %v999 = vadd.f32 %v997, %v998
      %v1000 = vsel %vm452, %v966, 0.0
      %v1001 = vrot.slane %v1000, 4
      %v1002 = vadd.f32 %v1000, %v1001
      %v1003 = vrot.slane %v1002, 2
      %v1004 = vadd.f32 %v1002, %v1003
      %v1005 = vrot.slane %v1004, 1
      %v1006 = vadd.f32 %v1004, %v1005
      %v1007 = vsel %vm452, %v967, 0.0
      %v1008 = vrot.slane %v1007, 4
      %v1009 = vadd.f32 %v1007, %v1008
      %v1010 = vrot.slane %v1009, 2
      %v1011 = vadd.f32 %v1009, %v1010
      %v1012 = vrot.slane %v1011, 1
      %v1013 = vadd.f32 %v1011, %v1012
      %v1014 = vsel %vm452, %v968, 0.0
      %v1015 = vrot.slane %v1014, 4
      %v1016 = vadd.f32 %v1014, %v1015
      %v1017 = vrot.slane %v1016, 2
      %v1018 = vadd.f32 %v1016, %v1017
      %v1019 = vrot.slane %v1018, 1
      %v1020 = vadd.f32 %v1018, %v1019
      %v1021 = vsel %vm452, %v969, 0.0
      %v1022 = vrot.slane %v1021, 4
      %v1023 = vadd.f32 %v1021, %v1022
      %v1024 = vrot.slane %v1023, 2
      %v1025 = vadd.f32 %v1023, %v1024
      %v1026 = vrot.slane %v1025, 1
      %v1027 = vadd.f32 %v1025, %v1026
      %v1028 = vsel %vm452, %v970, 0.0
      %v1029 = vrot.slane %v1028, 4
      %v1030 = vadd.f32 %v1028, %v1029
      %v1031 = vrot.slane %v1030, 2
      %v1032 = vadd.f32 %v1030, %v1031
      %v1033 = vrot.slane %v1032, 1
      %v1034 = vadd.f32 %v1032, %v1033
      %v1035 = vsel %vm452, %v971, 0.0
      %v1036 = vrot.slane %v1035, 4
      %v1037 = vadd.f32 %v1035, %v1036
      %v1038 = vrot.slane %v1037, 2
      %v1039 = vadd.f32 %v1037, %v1038
      %v1040 = vrot.slane %v1039, 1
      %v1041 = vadd.f32 %v1039, %v1040
      %v1042 = vsel %vm452, %v972, 0.0
      %v1043 = vrot.slane %v1042, 4
      %v1044 = vadd.f32 %v1042, %v1043
      %v1045 = vrot.slane %v1044, 2
      %v1046 = vadd.f32 %v1044, %v1045
      %v1047 = vrot.slane %v1046, 1
      %v1048 = vadd.f32 %v1046, %v1047
      %v1049 = vsel %vm452, %v973, 0.0
      %v1050 = vrot.slane %v1049, 4
      %v1051 = vadd.f32 %v1049, %v1050
      %v1052 = vrot.slane %v1051, 2
      %v1053 = vadd.f32 %v1051, %v1052
      %v1054 = vrot.slane %v1053, 1
      %v1055 = vadd.f32 %v1053, %v1054
      %v1056 = vsel %vm452, %v974, 0.0
      %v1057 = vrot.slane %v1056, 4
      %v1058 = vadd.f32 %v1056, %v1057
      %v1059 = vrot.slane %v1058, 2
      %v1060 = vadd.f32 %v1058, %v1059
      %v1061 = vrot.slane %v1060, 1
      %v1062 = vadd.f32 %v1060, %v1061
      %v1063 = vsel %vm452, %v975, 0.0
      %v1064 = vrot.slane %v1063, 4
      %v1065 = vadd.f32 %v1063, %v1064
      %v1066 = vrot.slane %v1065, 2
      %v1067 = vadd.f32 %v1065, %v1066
      %v1068 = vrot.slane %v1067, 1
      %v1069 = vadd.f32 %v1067, %v1068
      %v1070 = vsel %vm452, %v976, 0.0
      %v1071 = vrot.slane %v1070, 4
      %v1072 = vadd.f32 %v1070, %v1071
      %v1073 = vrot.slane %v1072, 2
      %v1074 = vadd.f32 %v1072, %v1073
      %v1075 = vrot.slane %v1074, 1
      %v1076 = vadd.f32 %v1074, %v1075
      %v1077 = vsel %vm452, %v977, 0.0
      %v1078 = vrot.slane %v1077, 4
      %v1079 = vadd.f32 %v1077, %v1078
      %v1080 = vrot.slane %v1079, 2
      %v1081 = vadd.f32 %v1079, %v1080
      %v1082 = vrot.slane %v1081, 1
      %v1083 = vadd.f32 %v1081, %v1082
      %v1084 = vsel %vm452, %v978, 0.0
      %v1085 = vrot.slane %v1084, 4
      %v1086 = vadd.f32 %v1084, %v1085
      %v1087 = vrot.slane %v1086, 2
      %v1088 = vadd.f32 %v1086, %v1087
      %v1089 = vrot.slane %v1088, 1
      %v1090 = vadd.f32 %v1088, %v1089
      %v1091 = vrcp.pop 8.0
      %v1092 = vmul.f32 8.0, %v1091
      %v1093 = vsub.f32 1.0, %v1092
      %v1094 = vmul.f32 %v1091, %v1093
      %v1095 = vadd.f32 %v1091, %v1094
      %vm1096 = vweird.f32 %v1091
      %v1097 = vsel %vm1096, %v1091, %v1095
      %v1098 = vmul.f32 %v985, %v1097
      %v1099 = vmul.f32 %v992, %v1097
      %v1100 = vmul.f32 %v999, %v1097
      %v1101 = vmul.f32 %v1006, %v1097
      %v1102 = vmul.f32 %v1013, %v1097
      %v1103 = vmul.f32 %v1020, %v1097
      %v1104 = vmul.f32 %v1027, %v1097
      %v1105 = vmul.f32 %v1034, %v1097
      %v1106 = vmul.f32 %v1041, %v1097
      %v1107 = vmul.f32 %v1048, %v1097
      %v1108 = vmul.f32 %v1055, %v1097
      %v1109 = vmul.f32 %v1062, %v1097
      %v1110 = vmul.f32 %v1069, %v1097
      %v1111 = vmul.f32 %v1076, %v1097
      %v1112 = vmul.f32 %v1083, %v1097
      %v1113 = vmul.f32 %v1090, %v1097
      %v1114 = vsel %vm452, %v963, -inf
      %v1115 = vrot.slane %v1114, 4
      %v1116 = vmax.f32 %v1114, %v1115
      %v1117 = vrot.slane %v1116, 2
      %v1118 = vmax.f32 %v1116, %v1117
      %v1119 = vrot.slane %v1118, 1
      %v1120 = vmax.f32 %v1118, %v1119
      %v1121 = vsel %vm452, %v964, -inf
      %v1122 = vrot.slane %v1121, 4
      %v1123 = vmax.f32 %v1121, %v1122
      %v1124 = vrot.slane %v1123, 2
      %v1125 = vmax.f32 %v1123, %v1124
      %v1126 = vrot.slane %v1125, 1
      %v1127 = vmax.f32 %v1125, %v1126
      %v1128 = vsel %vm452, %v965, -inf
      %v1129 = vrot.slane %v1128, 4
      %v1130 = vmax.f32 %v1128, %v1129
      %v1131 = vrot.slane %v1130, 2
      %v1132 = vmax.f32 %v1130, %v1131
      %v1133 = vrot.slane %v1132, 1
      %v1134 = vmax.f32 %v1132, %v1133
      %v1135 = vsel %vm452, %v966, -inf
      %v1136 = vrot.slane %v1135, 4
      %v1137 = vmax.f32 %v1135, %v1136
      %v1138 = vrot.slane %v1137, 2
      %v1139 = vmax.f32 %v1137, %v1138
      %v1140 = vrot.slane %v1139, 1
      %v1141 = vmax.f32 %v1139, %v1140
      %v1142 = vsel %vm452, %v967, -inf
      %v1143 = vrot.slane %v1142, 4
      %v1144 = vmax.f32 %v1142, %v1143
      %v1145 = vrot.slane %v1144, 2
      %v1146 = vmax.f32 %v1144, %v1145
      %v1147 = vrot.slane %v1146, 1
      %v1148 = vmax.f32 %v1146, %v1147
      %v1149 = vsel %vm452, %v968, -inf
      %v1150 = vrot.slane %v1149, 4
      %v1151 = vmax.f32 %v1149, %v1150
      %v1152 = vrot.slane %v1151, 2
      %v1153 = vmax.f32 %v1151, %v1152
      %v1154 = vrot.slane %v1153, 1
      %v1155 = vmax.f32 %v1153, %v1154
      %v1156 = vsel %vm452, %v969, -inf
      %v1157 = vrot.slane %v1156, 4
      %v1158 = vmax.f32 %v1156, %v1157
      %v1159 = vrot.slane %v1158, 2
      %v1160 = vmax.f32 %v1158, %v1159
      %v1161 = vrot.slane %v1160, 1
      %v1162 = vmax.f32 %v1160, %v1161
      %v1163 = vsel %vm452, %v970, -inf
      %v1164 = vrot.slane %v1163, 4
      %v1165 = vmax.f32 %v1163, %v1164
      %v1166 = vrot.slane %v1165, 2
      %v1167 = vmax.f32 %v1165, %v1166
      %v1168 = vrot.slane %v1167, 1
      %v1169 = vmax.f32 %v1167, %v1168
      %v1170 = vsel %vm452, %v971, -inf
      %v1171 = vrot.slane %v1170, 4
      %v1172 = vmax.f32 %v1170, %v1171
      %v1173 = vrot.slane %v1172, 2
      %v1174 = vmax.f32 %v1172, %v1173
      %v1175 = vrot.slane %v1174, 1
      %v1176 = vmax.f32 %v1174, %v1175
      %v1177 = vsel %vm452, %v972, -inf
      %v1178 = vrot.slane %v1177, 4
      %v1179 = vmax.f32 %v1177, %v1178
      %v1180 = vrot.slane %v1179, 2
      %v1181 = vmax.f32 %v1179, %v1180
      %v1182 = vrot.slane %v1181, 1
      %v1183 = vmax.f32 %v1181, %v1182
      %v1184 = vsel %vm452, %v973, -inf
      %v1185 = vrot.slane %v1184, 4
      %v1186 = vmax.f32 %v1184, %v1185
      %v1187 = vrot.slane %v1186, 2
      %v1188 = vmax.f32 %v1186, %v1187
      %v1189 = vrot.slane %v1188, 1
      %v1190 = vmax.f32 %v1188, %v1189
      %v1191 = vsel %vm452, %v974, -inf
      %v1192 = vrot.slane %v1191, 4
      %v1193 = vmax.f32 %v1191, %v1192
      %v1194 = vrot.slane %v1193, 2
      %v1195 = vmax.f32 %v1193, %v1194
      %v1196 = vrot.slane %v1195, 1
      %v1197 = vmax.f32 %v1195, %v1196
      %v1198 = vsel %vm452, %v975, -inf
      %v1199 = vrot.slane %v1198, 4
      %v1200 = vmax.f32 %v1198, %v1199
      %v1201 = vrot.slane %v1200, 2
      %v1202 = vmax.f32 %v1200, %v1201
      %v1203 = vrot.slane %v1202, 1
      %v1204 = vmax.f32 %v1202, %v1203
      %v1205 = vsel %vm452, %v976, -inf
      %v1206 = vrot.slane %v1205, 4
      %v1207 = vmax.f32 %v1205, %v1206
      %v1208 = vrot.slane %v1207, 2
      %v1209 = vmax.f32 %v1207, %v1208
      %v1210 = vrot.slane %v1209, 1
      %v1211 = vmax.f32 %v1209, %v1210
      %v1212 = vsel %vm452, %v977, -inf
      %v1213 = vrot.slane %v1212, 4
      %v1214 = vmax.f32 %v1212, %v1213
      %v1215 = vrot.slane %v1214, 2
      %v1216 = vmax.f32 %v1214, %v1215
      %v1217 = vrot.slane %v1216, 1
      %v1218 = vmax.f32 %v1216, %v1217
      %v1219 = vsel %vm452, %v978, -inf
      %v1220 = vrot.slane %v1219, 4
      %v1221 = vmax.f32 %v1219, %v1220
      %v1222 = vrot.slane %v1221, 2
      %v1223 = vmax.f32 %v1221, %v1222
      %v1224 = vrot.slane %v1223, 1
      %v1225 = vmax.f32 %v1223, %v1224
      %vm1234 = vcmask 1041409
      %v1235 = vsel %vm1234, %v1100, %v1098
      %vm1236 = vcmask 1042434
      %v1237 = vsel %vm1236, %v1102, %v1235
      %vm1238 = vcmask 1043459
      %v1239 = vsel %vm1238, %v1104, %v1237
      %vm1240 = vcmask 1044484
      %v1241 = vsel %vm1240, %v1106, %v1239
      %vm1242 = vcmask 1045509
      %v1243 = vsel %vm1242, %v1108, %v1241
      %vm1244 = vcmask 1046534
      %v1245 = vsel %vm1244, %v1110, %v1243
      %vm1246 = vcmask 1047559
      %v1247 = vsel %vm1246, %v1112, %v1245
      %v1257 = vsel %vm1234, %v1134, %v1120
      %v1258 = vsel %vm1236, %v1148, %v1257
      %v1259 = vsel %vm1238, %v1162, %v1258
      %v1260 = vsel %vm1240, %v1176, %v1259
      %v1261 = vsel %vm1242, %v1190, %v1260
      %v1262 = vsel %vm1244, %v1204, %v1261
      %v1263 = vsel %vm1246, %v1218, %v1262
      %1264 = vrot.lane.b32.xlu0 %v1263, 64
      %v1265 = vpop.permute.xlu0 %1264
      %v1275 = vsel %vm1234, %v1101, %v1099
      %v1276 = vsel %vm1236, %v1103, %v1275
      %v1277 = vsel %vm1238, %v1105, %v1276
      %v1278 = vsel %vm1240, %v1107, %v1277
      %v1279 = vsel %vm1242, %v1109, %v1278
      %v1280 = vsel %vm1244, %v1111, %v1279
      %v1281 = vsel %vm1246, %v1113, %v1280
      %v1291 = vsel %vm1234, %v1141, %v1127
      %v1292 = vsel %vm1236, %v1155, %v1291
      %v1293 = vsel %vm1238, %v1169, %v1292
      %v1294 = vsel %vm1240, %v1183, %v1293
      %v1295 = vsel %vm1242, %v1197, %v1294
      %v1296 = vsel %vm1244, %v1211, %v1295
      %v1297 = vsel %vm1246, %v1225, %v1296
      %1298 = vrot.lane.b32.xlu0 %v1297, 64
      %v1299 = vpop.permute.xlu0 %1298
      %v1301 = vsel %vm452, %v1247, %v1265
      %v1302 = vsel %vm452, %v1281, %v1299
      %v1303 = vpack.c.bf16 %v1301, %v1301
      %v1304 = vpack.c.bf16 %v1302, %v1302
      %v1305 = vld [vmem:[%s5] sm:$0xf]
      %v1306 = vld [vmem:[%s5 + $0x4] sm:$0xf]
      %v1307 = vld [vmem:[%s5 + $0x8] sm:$0xf]
      %v1308 = vld [vmem:[%s5 + $0xc] sm:$0xf]
      %v1309 = vld [vmem:[%s5 + $0x10] sm:$0xf]
      %v1310 = vld [vmem:[%s5 + $0x14] sm:$0xf]
      %v1311 = vld [vmem:[%s5 + $0x18] sm:$0xf]
      %v1312 = vld [vmem:[%s5 + $0x1c] sm:$0xf]
      %v1313 = vld [vmem:[%s5 + $0x20] sm:$0xf]
      %v1314 = vld [vmem:[%s5 + $0x24] sm:$0xf]
      %v1315 = vld [vmem:[%s5 + $0x28] sm:$0xf]
      %v1316 = vld [vmem:[%s5 + $0x2c] sm:$0xf]
      %v1317 = vld [vmem:[%s5 + $0x30] sm:$0xf]
      %v1318 = vld [vmem:[%s5 + $0x34] sm:$0xf]
      %v1319 = vld [vmem:[%s5 + $0x38] sm:$0xf]
      %v1320 = vld [vmem:[%s5 + $0x3c] sm:$0xf]
      %v1321 = vld [vmem:[%s5 + $0x40] sm:$0xf]
      %v1322 = vld [vmem:[%s5 + $0x44] sm:$0xf]
      %v1323 = vld [vmem:[%s5 + $0x48] sm:$0xf]
      %v1324 = vld [vmem:[%s5 + $0x4c] sm:$0xf]
      %v1325 = vld [vmem:[%s5 + $0x50] sm:$0xf]
      %v1326 = vld [vmem:[%s5 + $0x54] sm:$0xf]
      %v1327 = vld [vmem:[%s5 + $0x58] sm:$0xf]
      %v1328 = vld [vmem:[%s5 + $0x5c] sm:$0xf]
      %v1329 = vld [vmem:[%s5 + $0x60] sm:$0xf]
      %v1330 = vld [vmem:[%s5 + $0x64] sm:$0xf]
      %v1331 = vld [vmem:[%s5 + $0x68] sm:$0xf]
      %v1332 = vld [vmem:[%s5 + $0x6c] sm:$0xf]
      %v1333 = vld [vmem:[%s5 + $0x70] sm:$0xf]
      %v1334 = vld [vmem:[%s5 + $0x74] sm:$0xf]
      %v1335 = vld [vmem:[%s5 + $0x78] sm:$0xf]
      %v1336 = vld [vmem:[%s5 + $0x7c] sm:$0xf]
      %v1337 = vld [vmem:[%s6] sm:$0x1]
      %v1339 = vperm.slane %v1337, 0
      %v1373 = vunpack.c.l.b16 %v1305
      %v1374 = vunpack.c.l.b16 %v1306
      %v1375 = vunpack.c.l.b16 %v1307
      %v1376 = vunpack.c.l.b16 %v1308
      %v1377 = vunpack.c.l.b16 %v1309
      %v1378 = vunpack.c.l.b16 %v1310
      %v1379 = vunpack.c.l.b16 %v1311
      %v1380 = vunpack.c.l.b16 %v1312
      %v1381 = vunpack.c.l.b16 %v1313
      %v1382 = vunpack.c.l.b16 %v1314
      %v1383 = vunpack.c.l.b16 %v1315
      %v1384 = vunpack.c.l.b16 %v1316
      %v1385 = vunpack.c.l.b16 %v1317
      %v1386 = vunpack.c.l.b16 %v1318
      %v1387 = vunpack.c.l.b16 %v1319
      %v1388 = vunpack.c.l.b16 %v1320
      %v1389 = vunpack.c.l.b16 %v1321
      %v1390 = vunpack.c.l.b16 %v1322
      %v1391 = vunpack.c.l.b16 %v1323
      %v1392 = vunpack.c.l.b16 %v1324
      %v1393 = vunpack.c.l.b16 %v1325
      %v1394 = vunpack.c.l.b16 %v1326
      %v1395 = vunpack.c.l.b16 %v1327
      %v1396 = vunpack.c.l.b16 %v1328
      %v1397 = vunpack.c.l.b16 %v1329
      %v1398 = vunpack.c.l.b16 %v1330
      %v1399 = vunpack.c.l.b16 %v1331
      %v1400 = vunpack.c.l.b16 %v1332
      %v1401 = vunpack.c.l.b16 %v1333
      %v1402 = vunpack.c.l.b16 %v1334
      %v1403 = vunpack.c.l.b16 %v1335
      %v1404 = vunpack.c.l.b16 %v1336
      %v1405 = vpack.c.b16 %v1374, %v1373
      %v1406 = vpack.c.b16 %v1376, %v1375
      %v1407 = vpack.c.b16 %v1378, %v1377
      %v1408 = vpack.c.b16 %v1380, %v1379
      %v1409 = vpack.c.b16 %v1382, %v1381
      %v1410 = vpack.c.b16 %v1384, %v1383
      %v1411 = vpack.c.b16 %v1386, %v1385
      %v1412 = vpack.c.b16 %v1388, %v1387
      %v1413 = vpack.c.b16 %v1390, %v1389
      %v1414 = vpack.c.b16 %v1392, %v1391
      %v1415 = vpack.c.b16 %v1394, %v1393
      %v1416 = vpack.c.b16 %v1396, %v1395
      %v1417 = vpack.c.b16 %v1398, %v1397
      %v1418 = vpack.c.b16 %v1400, %v1399
      %v1419 = vpack.c.b16 %v1402, %v1401
      %v1420 = vpack.c.b16 %v1404, %v1403
      %1437 = vmatpush.bf16.msra.mxu0 %v1412
      %1438 = vmatpush.bf16.msra.mxu0 %v1411
      %1439 = vmatpush.bf16.msra.mxu0 %v1410
      %1440 = vmatpush.bf16.msra.mxu0 %v1409
      %1441 = vmatpush.bf16.msra.mxu0 %v1408
      %1442 = vmatpush.bf16.msra.mxu0 %v1407
      %1443 = vmatpush.bf16.msra.mxu0 %v1406
      %1444 = vmatpush.bf16.msra.mxu0 %v1405
      %1445 = vmatmul.bf16.gmra.mxu0 %v1303
      %v1446 = vpop.f32.mrf.mxu0
      %v1447 = vadd.f32 %v1339, %v1446
      %v1448 = vpop.f32.mrf.mxu0
      %1449 = vdwg.mxu0
      %1450 = vmatpush.bf16.msra.mxu0 %v1420
      %1451 = vmatpush.bf16.msra.mxu0 %v1419
      %1452 = vmatpush.bf16.msra.mxu0 %v1418
      %1453 = vmatpush.bf16.msra.mxu0 %v1417
      %1454 = vmatpush.bf16.msra.mxu0 %v1416
      %1455 = vmatpush.bf16.msra.mxu0 %v1415
      %1456 = vmatpush.bf16.msra.mxu0 %v1414
      %1457 = vmatpush.bf16.msra.mxu0 %v1413
      %1458 = vmatmul.bf16.gmra.mxu0 %v1304
      %v1459 = vpop.f32.mrf.mxu0
      %v1460 = vadd.f32 %v1447, %v1459
      %v1461 = vpop.f32.mrf.mxu0
      %1462 = vdwg.mxu0
      %vm1463 = vcmp.gt.f32.partialorder %v1460, 0.0
      %v1464 = vmul.f32 %v1460, 1.442695
      %v1465 = vpow.pop %v1464
      %v1466 = vsub.f32 %v1465, 1.0
      %v1467 = vsel %vm1463, %v1460, %v1466
      %v1468 = vpack.c.bf16 %v1467, %v1467
      %v1469 = vld [vmem:[%s7] sm:$0xf]
      %v1470 = vld [vmem:[%s7 + $0x4] sm:$0xf]
      %v1471 = vld [vmem:[%s7 + $0x8] sm:$0xf]
      %v1472 = vld [vmem:[%s7 + $0xc] sm:$0xf]
      %v1473 = vld [vmem:[%s8] sm:$0x1]
      %v1475 = vperm.slane %v1473, 0
      %v1481 = vunpack.c.l.b16 %v1469
      %v1482 = vunpack.c.l.b16 %v1470
      %v1483 = vunpack.c.l.b16 %v1471
      %v1484 = vunpack.c.l.b16 %v1472
      %v1485 = vpack.c.b16 %v1482, %v1481
      %v1486 = vpack.c.b16 %v1484, %v1483
      %vm1489 = vcmask 261120
      %v1491 = vsel %vm1489, %v1468, 0
      %1493 = vmatpush.bf16.msra.mxu0 0
      %1494 = vmatpush.bf16.msra.mxu0 0
      %1495 = vmatpush.bf16.msra.mxu0 0
      %1496 = vmatpush.bf16.msra.mxu0 0
      %1497 = vmatpush.bf16.msra.mxu0 0
      %1498 = vmatpush.bf16.msra.mxu0 0
      %1499 = vmatpush.bf16.msra.mxu0 %v1486
      %1500 = vmatpush.bf16.msra.mxu0 %v1485
      %1501 = vmatmul.bf16.gmra.mxu0 %v1491
      %v1502 = vpop.f32.mrf.mxu0
      %v1503 = vadd.f32 %v1475, %v1502
      %v1504 = vpop.f32.mrf.mxu0
      %1505 = vdwg.mxu0
      %vm1506 = vcmp.gt.f32.partialorder %v1503, 0.0
      %v1507 = vmul.f32 %v1503, 1.442695
      %v1508 = vpow.pop %v1507
      %v1509 = vsub.f32 %v1508, 1.0
      %v1510 = vsel %vm1506, %v1503, %v1509
      %v1511 = vpack.c.bf16 %v1510, %v1510
      %v1512 = vld [vmem:[%s9] sm:$0xf]
      %v1513 = vld [vmem:[%s9 + $0x4] sm:$0xf]
      %v1514 = vld [vmem:[%s9 + $0x8] sm:$0xf]
      %v1515 = vld [vmem:[%s9 + $0xc] sm:$0xf]
      %v1516 = vld [vmem:[%s10] sm:$0x1]
      %v1518 = vperm.slane %v1516, 0
      %v1524 = vunpack.c.l.b16 %v1512
      %v1525 = vunpack.c.l.b16 %v1513
      %v1526 = vunpack.c.l.b16 %v1514
      %v1527 = vunpack.c.l.b16 %v1515
      %v1528 = vpack.c.b16 %v1525, %v1524
      %v1529 = vpack.c.b16 %v1527, %v1526
      %v1533 = vsel %vm1489, %v1511, 0
      %1535 = vmatpush.bf16.msra.mxu0 0
      %1536 = vmatpush.bf16.msra.mxu0 0
      %1537 = vmatpush.bf16.msra.mxu0 0
      %1538 = vmatpush.bf16.msra.mxu0 0
      %1539 = vmatpush.bf16.msra.mxu0 0
      %1540 = vmatpush.bf16.msra.mxu0 0
      %1541 = vmatpush.bf16.msra.mxu0 %v1529
      %1542 = vmatpush.bf16.msra.mxu0 %v1528
      %1543 = vmatmul.bf16.gmra.mxu0 %v1533
      %v1544 = vpop.f32.mrf.mxu0
      %v1545 = vadd.f32 %v1518, %v1544
      %v1546 = vpop.f32.mrf.mxu0
      %1547 = vdwg.mxu0
      %v1549 = vrot.slane %v1545, 1
      %v1550 = vrot.slane %v1545, 2
      %v1551 = vrot.slane %v1545, 3
      %v1552 = vrot.slane %v1545, 4
      %v1553 = vrot.slane %v1545, 5
      %v1554 = vrot.slane %v1545, 6
      %v1555 = vrot.slane %v1545, 7
      %vm1563 = vcmask 8192
      %1564 = vst.msk [vmem:[%s389] sm:$0x1] %vm1563, %v1545
      %1565 = vst.msk [vmem:[%s389 + $0x1] sm:$0x1] %vm1563, %v1549
      %1566 = vst.msk [vmem:[%s389 + $0x2] sm:$0x1] %vm1563, %v1550
      %1567 = vst.msk [vmem:[%s389 + $0x3] sm:$0x1] %vm1563, %v1551
      %1568 = vst.msk [vmem:[%s389 + $0x4] sm:$0x1] %vm1563, %v1552
      %1569 = vst.msk [vmem:[%s389 + $0x5] sm:$0x1] %vm1563, %v1553
      %1570 = vst.msk [vmem:[%s389 + $0x6] sm:$0x1] %vm1563, %v1554
      %1571 = vst.msk [vmem:[%s389 + $0x7] sm:$0x1] %vm1563, %v1555
      %s1572 = smul.u32 8, %s22
      %p1573 = scmp.lt.s32.totalorder %s1572, 15
      %s1574 = scalar_select %p1573, %s1572, 15
      %s1575 = scalar_lea.vmem %s11, %s1574
      // Predicated region
      $region65: #{esim_forward.7} parent=63 // pred_check
        %p1576 = pneg %p276
      $region66: #{esim_forward.7} parent=63 // pred_check_branch
        %1578 = sbr.rel (%p1576) target = $region68
      $region67: #{esim_forward.7} parent=63 // pred_region
        %s1579 = smul.u32 8, %s22
      $region68: #{esim_forward.7} parent=63 // pred_fallthru
        _
    $region64: #{esim_forward.7} parent=5 // pred_fallthru
      _
    %p1580 = scmp.le.s32.totalorder 2, %s17
    // Predicated region
    $region69: #{esim_forward.7} parent=5 // pred_check
      %p1581 = pneg %p1580
    $region70: #{esim_forward.7} parent=5 // pred_check_branch
      %1583 = sbr.rel (%p1581) target = $region72
    $region71: #{esim_forward.7} parent=5 // pred_region
      %s1584 = ssub.s32 %s17, 2
      // Predicated region
      $region73: #{esim_forward.7} parent=71 // pred_check
        %p1585 = pneg %p282
      $region74: #{esim_forward.7} parent=71 // pred_check_branch
        %1587 = sbr.rel (%p1585) target = $region76
      $region75: #{esim_forward.7} parent=71 // pred_region
        %s1588 = smul.u32 8, %s23
        %p1589 = scmp.lt.s32.totalorder %s1588, 15
        %s1590 = scalar_select %p1589, %s1588, 15
        %s1591 = scalar_lea.vmem %s11, %s1590
      $region76: #{esim_forward.7} parent=71 // pred_fallthru
        _
    $region72: #{esim_forward.7} parent=5 // pred_fallthru
      _
  $region6: #{esim_forward.7} parent=0 // loop_footer
    %s21 = sadd.s32 1, %s17
  $region7: #{esim_forward.7} parent=0 // loop_footer_branch
    %16 = sbr.rel target = $region3
  $region8: #{esim_forward.7} parent=0 // loop_exit
    _

// kernel: esim_forward.6
$region0: #{esim_forward.6}
  #allocation0 [shape = 'u32[]', space=smem, size = 0x4, offset = 0x4, fixed_abs, tag = 'smem constant byte address 0x4 - core index']
  #allocation1 [shape = 'u32[72,128]{1,0:T(1,128)}', space=vmem, size = 0x9000, scoped, tag = 'internal scratch']
  #allocation2 [shape = 'f32[8,16,128]{2,1,0:T(8,128)}', space=vmem, size = 0x10000, scoped, tag = 'scratch operand']
  #allocation3 [shape = 'f32[8,16,128]{2,1,0:T(8,128)}', space=vmem, size = 0x10000, scoped, tag = 'scratch operand']
  %s0 = inlined_call_operand.vmem [shape: bf16[8,32,256], index: 0, kind: input, shape index: {}]
  %s1 = inlined_call_operand.vmem [shape: bf16[256,128], index: 1, kind: input, shape index: {}]
  %s2 = inlined_call_operand.vmem [shape: bf16[256,128], index: 2, kind: input, shape index: {}]
  %s3 = inlined_call_operand.vmem [shape: f32[1,128], index: 3, kind: input, shape index: {}]
  %s4 = inlined_call_operand.vmem [shape: f32[1,128], index: 4, kind: input, shape index: {}]
  %s5 = inlined_call_operand.vmem [shape: bf16[64,128], index: 5, kind: input, shape index: {}]
  %s6 = inlined_call_operand.vmem [shape: f32[8,2,32,32], index: 6, kind: output, shape index: {}]
  %s7 = sld [smem:[#allocation0]]
  $region129: #{esim_forward.6} parent=0
    _
  %s9 = ssub.s32 1, %s7
  %s10 = scalar_select 0, %s9, %s7
  $region1: #{esim_forward.6} parent=0
    #allocation4 [shape = 'u8[131072]{0}', space=vmem, size = 0x20000, scoped, tag = 'input window, operand 0']
    #allocation5 [shape = 'u8[262144]{0}', space=vmem, size = 0x40000, scoped, tag = 'output window, operand 0']
    loop: start=0, step=1, limit=4
    $region2: #{esim_forward.6} parent=1 // loop_pre_header
      _
    $region3: #{esim_forward.6} parent=1 // loop_header
      %s12 = sphi 0, %s16
      %p13 = scmp.ge.s32.totalorder %s12, 4
      %s22 = sphi 0, %s24
      %s25 = sphi 0, %s22
      %s26 = sphi 0, %s25
      %s42 = sphi 0, %s26
      %s46 = sphi 0, %s46
      %s48 = sphi 0, %s46
      %s49 = sphi 0, %s48
      %s63 = sphi 0, %s49
      %s67 = sphi 0, %s67
      %s69 = sphi 0, %s67
      %s70 = sphi 0, %s69
      %s84 = sphi 0, %s70
      %s88 = sphi 0, %s88
      %s90 = sphi 0, %s88
      %s91 = sphi 0, %s90
      %s105 = sphi 0, %s91
      %s109 = sphi 0, %s109
      %s111 = sphi 0, %s109
      %s112 = sphi 0, %s111
      %s126 = sphi 0, %s112
      %s130 = sphi 0, %s130
      %s132 = sphi 0, %s130
      %s133 = sphi 0, %s132
      %s147 = sphi 0, %s133
      %s153 = sphi 0, %s155
      %s156 = sphi 0, %s153
      %s157 = sphi 0, %s156
      %s173 = sphi 0, %s157
    $region4: #{esim_forward.6} parent=1 // loop_header_branch
      %15 = sbr.rel (%p13) target = $region8
    $region5: #{esim_forward.6} parent=1 // loop_body
      %s17 = ssub.s32 %s12, 1
      %s18 = ssub.s32 %s12, 2
      %s19 = sadd.s32 %s12, 1
      %s20 = ssub.s32 %s12, %s19
      %p21 = scmp.eq.s32.totalorder %s20, 0
      %s23 = sadd.s32 %s22, 1
      %s24 = scalar_select %p21, %s22, %s23
      %p27 = pneg %p21
      %p28 = scmp.eq.s32.totalorder %s12, 1
      %p29 = por %p27, %p28
      %p30 = scmp.ne.s32.totalorder %s22, %s25
      %p31 = scmp.eq.s32.totalorder %s12, 0
      %p32 = por %p30, %p31
      %p33 = scmp.ne.s32.totalorder %s22, %s25
      %p34 = scmp.eq.s32.totalorder %s17, 1
      %p35 = por %p33, %p34
      %p36 = scmp.ne.s32.totalorder %s25, %s26
      %p37 = scmp.eq.s32.totalorder %s17, 0
      %p38 = por %p36, %p37
      %p39 = scmp.ne.s32.totalorder %s25, %s26
      %p40 = scmp.eq.s32.totalorder %s18, 1
      %p41 = por %p39, %p40
      %p43 = scmp.ne.s32.totalorder %s26, %s42
      %p44 = scmp.eq.s32.totalorder %s18, 0
      %p45 = por %p43, %p44
      %s47 = sadd.s32 %s46, 1
      %p50 = scmp.eq.s32.totalorder %s12, 1
      %p51 = scmp.ne.s32.totalorder %s46, %s48
      %p52 = scmp.eq.s32.totalorder %s12, 0
      %p53 = por %p51, %p52
      %p54 = scmp.ne.s32.totalorder %s46, %s48
      %p55 = scmp.eq.s32.totalorder %s17, 1
      %p56 = por %p54, %p55
      %p57 = scmp.ne.s32.totalorder %s48, %s49
      %p58 = scmp.eq.s32.totalorder %s17, 0
      %p59 = por %p57, %p58
      %p60 = scmp.ne.s32.totalorder %s48, %s49
      %p61 = scmp.eq.s32.totalorder %s18, 1
      %p62 = por %p60, %p61
      %p64 = scmp.ne.s32.totalorder %s49, %s63
      %p65 = scmp.eq.s32.totalorder %s18, 0
      %p66 = por %p64, %p65
      %s68 = sadd.s32 %s67, 1
      %p71 = scmp.eq.s32.totalorder %s12, 1
      %p72 = scmp.ne.s32.totalorder %s67, %s69
      %p73 = scmp.eq.s32.totalorder %s12, 0
      %p74 = por %p72, %p73
      %p75 = scmp.ne.s32.totalorder %s67, %s69
      %p76 = scmp.eq.s32.totalorder %s17, 1
      %p77 = por %p75, %p76
      %p78 = scmp.ne.s32.totalorder %s69, %s70
      %p79 = scmp.eq.s32.totalorder %s17, 0
      %p80 = por %p78, %p79
      %p81 = scmp.ne.s32.totalorder %s69, %s70
      %p82 = scmp.eq.s32.totalorder %s18, 1
      %p83 = por %p81, %p82
      %p85 = scmp.ne.s32.totalorder %s70, %s84
      %p86 = scmp.eq.s32.totalorder %s18, 0
      %p87 = por %p85, %p86
      %s89 = sadd.s32 %s88, 1
      %p92 = scmp.eq.s32.totalorder %s12, 1
      %p93 = scmp.ne.s32.totalorder %s88, %s90
      %p94 = scmp.eq.s32.totalorder %s12, 0
      %p95 = por %p93, %p94
      %p96 = scmp.ne.s32.totalorder %s88, %s90
      %p97 = scmp.eq.s32.totalorder %s17, 1
      %p98 = por %p96, %p97
      %p99 = scmp.ne.s32.totalorder %s90, %s91
      %p100 = scmp.eq.s32.totalorder %s17, 0
      %p101 = por %p99, %p100
      %p102 = scmp.ne.s32.totalorder %s90, %s91
      %p103 = scmp.eq.s32.totalorder %s18, 1
      %p104 = por %p102, %p103
      %p106 = scmp.ne.s32.totalorder %s91, %s105
      %p107 = scmp.eq.s32.totalorder %s18, 0
      %p108 = por %p106, %p107
      %s110 = sadd.s32 %s109, 1
      %p113 = scmp.eq.s32.totalorder %s12, 1
      %p114 = scmp.ne.s32.totalorder %s109, %s111
      %p115 = scmp.eq.s32.totalorder %s12, 0
      %p116 = por %p114, %p115
      %p117 = scmp.ne.s32.totalorder %s109, %s111
      %p118 = scmp.eq.s32.totalorder %s17, 1
      %p119 = por %p117, %p118
      %p120 = scmp.ne.s32.totalorder %s111, %s112
      %p121 = scmp.eq.s32.totalorder %s17, 0
      %p122 = por %p120, %p121
      %p123 = scmp.ne.s32.totalorder %s111, %s112
      %p124 = scmp.eq.s32.totalorder %s18, 1
      %p125 = por %p123, %p124
      %p127 = scmp.ne.s32.totalorder %s112, %s126
      %p128 = scmp.eq.s32.totalorder %s18, 0
      %p129 = por %p127, %p128
      %s131 = sadd.s32 %s130, 1
      %p134 = scmp.eq.s32.totalorder %s12, 1
      %p135 = scmp.ne.s32.totalorder %s130, %s132
      %p136 = scmp.eq.s32.totalorder %s12, 0
      %p137 = por %p135, %p136
      %p138 = scmp.ne.s32.totalorder %s130, %s132
      %p139 = scmp.eq.s32.totalorder %s17, 1
      %p140 = por %p138, %p139
      %p141 = scmp.ne.s32.totalorder %s132, %s133
      %p142 = scmp.eq.s32.totalorder %s17, 0
      %p143 = por %p141, %p142
      %p144 = scmp.ne.s32.totalorder %s132, %s133
      %p145 = scmp.eq.s32.totalorder %s18, 1
      %p146 = por %p144, %p145
      %p148 = scmp.ne.s32.totalorder %s133, %s147
      %p149 = scmp.eq.s32.totalorder %s18, 0
      %p150 = por %p148, %p149
      %s151 = ssub.s32 %s12, %s19
      %p152 = scmp.eq.s32.totalorder %s151, 0
      %s154 = sadd.s32 %s153, 1
      %s155 = scalar_select %p152, %s153, %s154
      %p158 = pneg %p152
      %p159 = scmp.eq.s32.totalorder %s12, 1
      %p160 = por %p158, %p159
      %p161 = scmp.ne.s32.totalorder %s153, %s156
      %p162 = scmp.eq.s32.totalorder %s12, 0
      %p163 = por %p161, %p162
      %p164 = scmp.ne.s32.totalorder %s153, %s156
      %p165 = scmp.eq.s32.totalorder %s17, 1
      %p166 = por %p164, %p165
      %p167 = scmp.ne.s32.totalorder %s156, %s157
      %p168 = scmp.eq.s32.totalorder %s17, 0
      %p169 = por %p167, %p168
      %p170 = scmp.ne.s32.totalorder %s156, %s157
      %p171 = scmp.eq.s32.totalorder %s18, 1
      %p172 = por %p170, %p171
      %p174 = scmp.ne.s32.totalorder %s157, %s173
      %p175 = scmp.eq.s32.totalorder %s18, 0
      %p176 = por %p174, %p175
      %p177 = scmp.le.s32.totalorder 1, %s12
      %p178 = scmp.lt.s32.totalorder %s12, 3
      %p179 = pnand %p177, %p178
      %p180 = pneg %p179
      // Predicated region
      $region9: #{esim_forward.6} parent=5 // pred_check
        _
      $region10: #{esim_forward.6} parent=5 // pred_check_branch
        %182 = sbr.rel (%p179) target = $region12
      $region11: #{esim_forward.6} parent=5 // pred_region
        %s183 = ssub.s32 %s12, 1
        // Predicated region
        $region13: #{esim_forward.6} parent=11 // pred_check
          %p184 = pneg %p59
        $region14: #{esim_forward.6} parent=11 // pred_check_branch
          %186 = sbr.rel (%p184) target = $region16
        $region15: #{esim_forward.6} parent=11 // pred_region
          _
        $region16: #{esim_forward.6} parent=11 // pred_fallthru
          _
        // Predicated region
        $region17: #{esim_forward.6} parent=11 // pred_check
          %p187 = pneg %p80
        $region18: #{esim_forward.6} parent=11 // pred_check_branch
          %189 = sbr.rel (%p187) target = $region20
        $region19: #{esim_forward.6} parent=11 // pred_region
          _
        $region20: #{esim_forward.6} parent=11 // pred_fallthru
          _
        // Predicated region
        $region21: #{esim_forward.6} parent=11 // pred_check
          %p190 = pneg %p101
        $region22: #{esim_forward.6} parent=11 // pred_check_branch
          %192 = sbr.rel (%p190) target = $region24
        $region23: #{esim_forward.6} parent=11 // pred_region
          _
        $region24: #{esim_forward.6} parent=11 // pred_fallthru
          _
        // Predicated region
        $region25: #{esim_forward.6} parent=11 // pred_check
          %p193 = pneg %p122
        $region26: #{esim_forward.6} parent=11 // pred_check_branch
          %195 = sbr.rel (%p193) target = $region28
        $region27: #{esim_forward.6} parent=11 // pred_region
          _
        $region28: #{esim_forward.6} parent=11 // pred_fallthru
          _
        // Predicated region
        $region29: #{esim_forward.6} parent=11 // pred_check
          %p196 = pneg %p143
        $region30: #{esim_forward.6} parent=11 // pred_check_branch
          %198 = sbr.rel (%p196) target = $region32
        $region31: #{esim_forward.6} parent=11 // pred_region
          _
        $region32: #{esim_forward.6} parent=11 // pred_fallthru
          _
      $region12: #{esim_forward.6} parent=5 // pred_fallthru
        _
      %p199 = scmp.lt.s32.totalorder %s12, 2
      // Predicated region
      $region33: #{esim_forward.6} parent=5 // pred_check
        %p200 = pneg %p199
      $region34: #{esim_forward.6} parent=5 // pred_check_branch
        %202 = sbr.rel (%p200) target = $region36
      $region35: #{esim_forward.6} parent=5 // pred_region
        // Predicated region
        $region37: #{esim_forward.6} parent=35 // pred_check
          %p203 = pneg %p32
        $region38: #{esim_forward.6} parent=35 // pred_check_branch
          %205 = sbr.rel (%p203) target = $region40
        $region39: #{esim_forward.6} parent=35 // pred_region
          %s206 = sand.u32 %s22, 1
          %s207 = sand.u32 %s22, 1
          %s208 = smul.addr %s207, 128
          %s209 = scalar_lea.vmem [#allocation4], %s208
          %s210 = smul.u32 2, %s12
          %s211 = smul.addr %s210, 2
          %s212 = smul.addr %s211, 4
          %s213 = scalar_lea.vmem %s0, %s212
          // Predicated region
          $region41: #{esim_forward.6} parent=39 // pred_check
            _
          $region42: #{esim_forward.6} parent=39 // pred_check_branch
            %215 = sbr.rel (0) target = $region44
          $region43: #{esim_forward.6} parent=39 // pred_region
            // Predicated region
            $region45: #{esim_forward.6} parent=43 // pred_check
              _
            $region46: #{esim_forward.6} parent=43 // pred_check_branch
              %217 = sbr.rel (0) target = $region48
            $region47: #{esim_forward.6} parent=43 // pred_region
              // Predicated region
              $region60: #{esim_forward.6} parent=47 // pred_check
                _
              $region61: #{esim_forward.6} parent=47 // pred_check_branch
                %263 = sbr.rel (0) target = $region63
              $region62: #{esim_forward.6} parent=47 // pred_region
                loop: start=0, step=1, limit=1
                $region64: #{esim_forward.6} parent=62 // loop_pre_header
                  _
                $region65: #{esim_forward.6} parent=62 // loop_header
                  %s265 = sphi 0, %s269
                  %p266 = scmp.ge.s32.totalorder %s265, 1
                  %s270 = sphi %s213, %s213
                  %s271 = sphi %s209, %s209
                $region66: #{esim_forward.6} parent=62 // loop_header_branch
                  %268 = sbr.rel (%p266) target = $region70
                $region67: #{esim_forward.6} parent=62 // loop_body
                  %v272 = vld [vmem:[%s270] sm:$0xff]
                  %273 = vst [vmem:[%s271] sm:$0xff] %v272
                  %v274 = vld [vmem:[%s270 + $0x8] sm:$0xff]
                  %275 = vst [vmem:[%s271 + $0x8] sm:$0xff] %v274
                  %v276 = vld [vmem:[%s270 + $0x20] sm:$0xff]
                  %277 = vst [vmem:[%s271 + $0x10] sm:$0xff] %v276
                  %v278 = vld [vmem:[%s270 + $0x28] sm:$0xff]
                  %279 = vst [vmem:[%s271 + $0x18] sm:$0xff] %v278
                  %v280 = vld [vmem:[%s270 + $0x40] sm:$0xff]
                  %281 = vst [vmem:[%s271 + $0x20] sm:$0xff] %v280
                  %v282 = vld [vmem:[%s270 + $0x48] sm:$0xff]
                  %283 = vst [vmem:[%s271 + $0x28] sm:$0xff] %v282
                  %v284 = vld [vmem:[%s270 + $0x60] sm:$0xff]
                  %285 = vst [vmem:[%s271 + $0x30] sm:$0xff] %v284
                  %v286 = vld [vmem:[%s270 + $0x68] sm:$0xff]
                  %287 = vst [vmem:[%s271 + $0x38] sm:$0xff] %v286
                  %v288 = vld [vmem:[%s270 + $0x80] sm:$0xff]
                  %289 = vst [vmem:[%s271 + $0x40] sm:$0xff] %v288
                  %v290 = vld [vmem:[%s270 + $0x88] sm:$0xff]
                  %291 = vst [vmem:[%s271 + $0x48] sm:$0xff] %v290
                  %v292 = vld [vmem:[%s270 + $0xa0] sm:$0xff]
                  %293 = vst [vmem:[%s271 + $0x50] sm:$0xff] %v292
                  %v294 = vld [vmem:[%s270 + $0xa8] sm:$0xff]
                  %295 = vst [vmem:[%s271 + $0x58] sm:$0xff] %v294
                  %v296 = vld [vmem:[%s270 + $0xc0] sm:$0xff]
                  %297 = vst [vmem:[%s271 + $0x60] sm:$0xff] %v296
                  %v298 = vld [vmem:[%s270 + $0xc8] sm:$0xff]
                  %299 = vst [vmem:[%s271 + $0x68] sm:$0xff] %v298
                  %v300 = vld [vmem:[%s270 + $0xe0] sm:$0xff]
                  %301 = vst [vmem:[%s271 + $0x70] sm:$0xff] %v300
                  %v302 = vld [vmem:[%s270 + $0xe8] sm:$0xff]
                  %303 = vst [vmem:[%s271 + $0x78] sm:$0xff] %v302
                $region68: #{esim_forward.6} parent=62 // loop_footer
                  %s269 = sadd.s32 1, %s265
                $region69: #{esim_forward.6} parent=62 // loop_footer_branch
                  %264 = sbr.rel target = $region65
                $region70: #{esim_forward.6} parent=62 // loop_exit
                  _
              $region63: #{esim_forward.6} parent=47 // pred_fallthru
                _
              // Predicated region
              $region71: #{esim_forward.6} parent=47 // pred_check
                _
              $region72: #{esim_forward.6} parent=47 // pred_check_branch
                %305 = sbr.rel target = $region74
              $region73: #{esim_forward.6} parent=47 // pred_region
                _
              $region74: #{esim_forward.6} parent=47 // pred_fallthru
                _
            $region48: #{esim_forward.6} parent=43 // pred_fallthru
              _
            // Predicated region
            $region49: #{esim_forward.6} parent=43 // pred_check
              _
            $region50: #{esim_forward.6} parent=43 // pred_check_branch
              %219 = sbr.rel target = $region52
            $region51: #{esim_forward.6} parent=43 // pred_region
              %s221 = ssub.s32 256, 1
              loop: start=0, step=1, limit=1
              $region53: #{esim_forward.6} parent=51 // loop_pre_header
                _
              $region54: #{esim_forward.6} parent=51 // loop_header
                %s223 = sphi 0, %s227
                %p224 = scmp.ge.s32.totalorder %s223, 1
                %s228 = sphi %s213, %s213
                %s229 = sphi %s209, %s209
              $region55: #{esim_forward.6} parent=51 // loop_header_branch
                %226 = sbr.rel (%p224) target = $region59
              $region56: #{esim_forward.6} parent=51 // loop_body
                %v230 = vld [vmem:[%s228] sm:%s221]
                %231 = vst [vmem:[%s229] sm:%s221] %v230
                %v232 = vld [vmem:[%s228 + $0x8] sm:%s221]
                %233 = vst [vmem:[%s229 + $0x8] sm:%s221] %v232
                %v234 = vld [vmem:[%s228 + $0x20] sm:%s221]
                %235 = vst [vmem:[%s229 + $0x10] sm:%s221] %v234
                %v236 = vld [vmem:[%s228 + $0x28] sm:%s221]
                %237 = vst [vmem:[%s229 + $0x18] sm:%s221] %v236
                %v238 = vld [vmem:[%s228 + $0x40] sm:%s221]
                %239 = vst [vmem:[%s229 + $0x20] sm:%s221] %v238
                %v240 = vld [vmem:[%s228 + $0x48] sm:%s221]
                %241 = vst [vmem:[%s229 + $0x28] sm:%s221] %v240
                %v242 = vld [vmem:[%s228 + $0x60] sm:%s221]
                %243 = vst [vmem:[%s229 + $0x30] sm:%s221] %v242
                %v244 = vld [vmem:[%s228 + $0x68] sm:%s221]
                %245 = vst [vmem:[%s229 + $0x38] sm:%s221] %v244
                %v246 = vld [vmem:[%s228 + $0x80] sm:%s221]
                %247 = vst [vmem:[%s229 + $0x40] sm:%s221] %v246
                %v248 = vld [vmem:[%s228 + $0x88] sm:%s221]
                %249 = vst [vmem:[%s229 + $0x48] sm:%s221] %v248
                %v250 = vld [vmem:[%s228 + $0xa0] sm:%s221]
                %251 = vst [vmem:[%s229 + $0x50] sm:%s221] %v250
                %v252 = vld [vmem:[%s228 + $0xa8] sm:%s221]
                %253 = vst [vmem:[%s229 + $0x58] sm:%s221] %v252
                %v254 = vld [vmem:[%s228 + $0xc0] sm:%s221]
                %255 = vst [vmem:[%s229 + $0x60] sm:%s221] %v254
                %v256 = vld [vmem:[%s228 + $0xc8] sm:%s221]
                %257 = vst [vmem:[%s229 + $0x68] sm:%s221] %v256
                %v258 = vld [vmem:[%s228 + $0xe0] sm:%s221]
                %259 = vst [vmem:[%s229 + $0x70] sm:%s221] %v258
                %v260 = vld [vmem:[%s228 + $0xe8] sm:%s221]
                %261 = vst [vmem:[%s229 + $0x78] sm:%s221] %v260
              $region57: #{esim_forward.6} parent=51 // loop_footer
                %s227 = sadd.s32 1, %s223
              $region58: #{esim_forward.6} parent=51 // loop_footer_branch
                %222 = sbr.rel target = $region54
              $region59: #{esim_forward.6} parent=51 // loop_exit
                _
            $region52: #{esim_forward.6} parent=43 // pred_fallthru
              _
          $region44: #{esim_forward.6} parent=39 // pred_fallthru
            _
          %306 = vnop
        $region40: #{esim_forward.6} parent=35 // pred_fallthru
          _
      $region36: #{esim_forward.6} parent=5 // pred_fallthru
        _
      %p307 = scmp.le.s32.totalorder 1, %s12
      %p308 = scmp.lt.s32.totalorder %s12, 3
      %p309 = pnand %p307, %p308
      %p310 = pneg %p309
      // Predicated region
      $region75: #{esim_forward.6} parent=5 // pred_check
        _
      $region76: #{esim_forward.6} parent=5 // pred_check_branch
        %312 = sbr.rel (%p309) target = $region78
      $region77: #{esim_forward.6} parent=5 // pred_region
        %s313 = ssub.s32 %s12, 1
        %s314 = sand.u32 %s25, 1
        %s315 = sand.u32 %s25, 1
        %s316 = smul.addr %s315, 128
        %s317 = scalar_lea.vmem [#allocation4], %s316
        // Predicated region
        $region79: #{esim_forward.6} parent=77 // pred_check
          %p318 = pneg %p38
        $region80: #{esim_forward.6} parent=77 // pred_check_branch
          %320 = sbr.rel (%p318) target = $region82
        $region81: #{esim_forward.6} parent=77 // pred_region
          _
        $region82: #{esim_forward.6} parent=77 // pred_fallthru
          _
        %s321 = sand.u32 %s25, 1
        %s322 = sand.u32 %s25, 1
        %s323 = smul.addr %s322, 128
        %s324 = scalar_lea.vmem [#allocation4], %s323
        %p325 = pneg %p38
        %p326 = pneg %p35
        %p327 = pneg %p59
        %p328 = pneg %p56
        %p329 = pneg %p80
        %p330 = pneg %p77
        %p331 = pneg %p101
        %p332 = pneg %p98
        %p333 = pneg %p122
        %p334 = pneg %p119
        %p335 = pneg %p143
        %p336 = pneg %p140
        %p337 = pneg %p169
        %p338 = pneg %p166
        %s339 = sand.u32 %s156, 1
        %s340 = sand.u32 %s156, 1
        %s341 = smul.addr %s340, 256
        %s342 = scalar_lea.vmem [#allocation5], %s341
        %s343 = smul.u32 2, %s17
        %s344 = smul.u32 2, %s17
        %v346 = vld [vmem:[%s317] sm:$0xff]
        %v347 = vld [vmem:[%s317 + $0x8] sm:$0xff]
        %v348 = vld [vmem:[%s317 + $0x10] sm:$0xff]
        %v349 = vld [vmem:[%s317 + $0x18] sm:$0xff]
        %v350 = vld [vmem:[%s317 + $0x20] sm:$0xff]
        %v351 = vld [vmem:[%s317 + $0x28] sm:$0xff]
        %v352 = vld [vmem:[%s317 + $0x30] sm:$0xff]
        %v353 = vld [vmem:[%s317 + $0x38] sm:$0xff]
        %v354 = vld [vmem:[%s317 + $0x40] sm:$0xff]
        %v355 = vld [vmem:[%s317 + $0x48] sm:$0xff]
        %v356 = vld [vmem:[%s317 + $0x50] sm:$0xff]
        %v357 = vld [vmem:[%s317 + $0x58] sm:$0xff]
        %v358 = vld [vmem:[%s317 + $0x60] sm:$0xff]
        %v359 = vld [vmem:[%s317 + $0x68] sm:$0xff]
        %v360 = vld [vmem:[%s317 + $0x70] sm:$0xff]
        %v361 = vld [vmem:[%s317 + $0x78] sm:$0xff]
        %v362 = vld [vmem:[%s1] sm:$0xf]
        %v363 = vld [vmem:[%s1 + $0x4] sm:$0xf]
        %v364 = vld [vmem:[%s1 + $0x8] sm:$0xf]
        %v365 = vld [vmem:[%s1 + $0xc] sm:$0xf]
        %v366 = vld [vmem:[%s1 + $0x10] sm:$0xf]
        %v367 = vld [vmem:[%s1 + $0x14] sm:$0xf]
        %v368 = vld [vmem:[%s1 + $0x18] sm:$0xf]
        %v369 = vld [vmem:[%s1 + $0x1c] sm:$0xf]
        %v370 = vld [vmem:[%s1 + $0x20] sm:$0xf]
        %v371 = vld [vmem:[%s1 + $0x24] sm:$0xf]
        %v372 = vld [vmem:[%s1 + $0x28] sm:$0xf]
        %v373 = vld [vmem:[%s1 + $0x2c] sm:$0xf]
        %v374 = vld [vmem:[%s1 + $0x30] sm:$0xf]
        %v375 = vld [vmem:[%s1 + $0x34] sm:$0xf]
        %v376 = vld [vmem:[%s1 + $0x38] sm:$0xf]
        %v377 = vld [vmem:[%s1 + $0x3c] sm:$0xf]
        %v378 = vld [vmem:[%s1 + $0x40] sm:$0xf]
        %v379 = vld [vmem:[%s1 + $0x44] sm:$0xf]
        %v380 = vld [vmem:[%s1 + $0x48] sm:$0xf]
        %v381 = vld [vmem:[%s1 + $0x4c] sm:$0xf]
        %v382 = vld [vmem:[%s1 + $0x50] sm:$0xf]
        %v383 = vld [vmem:[%s1 + $0x54] sm:$0xf]
        %v384 = vld [vmem:[%s1 + $0x58] sm:$0xf]
        %v385 = vld [vmem:[%s1 + $0x5c] sm:$0xf]
        %v386 = vld [vmem:[%s1 + $0x60] sm:$0xf]
        %v387 = vld [vmem:[%s1 + $0x64] sm:$0xf]
        %v388 = vld [vmem:[%s1 + $0x68] sm:$0xf]
        %v389 = vld [vmem:[%s1 + $0x6c] sm:$0xf]
        %v390 = vld [vmem:[%s1 + $0x70] sm:$0xf]
        %v391 = vld [vmem:[%s1 + $0x74] sm:$0xf]
        %v392 = vld [vmem:[%s1 + $0x78] sm:$0xf]
        %v393 = vld [vmem:[%s1 + $0x7c] sm:$0xf]
        %v394 = vld [vmem:[%s3] sm:$0x1]
        %v396 = vperm.slane %v394, 0
        %v414 = vunpack.c.l.b16 %v346
        %v415 = vunpack.c.h.b16 %v346
        %v416 = vunpack.c.l.b16 %v347
        %v417 = vunpack.c.h.b16 %v347
        %v418 = vunpack.c.l.b16 %v348
        %v419 = vunpack.c.h.b16 %v348
        %v420 = vunpack.c.l.b16 %v349
        %v421 = vunpack.c.h.b16 %v349
        %v422 = vunpack.c.l.b16 %v350
        %v423 = vunpack.c.h.b16 %v350
        %v424 = vunpack.c.l.b16 %v351
        %v425 = vunpack.c.h.b16 %v351
        %v426 = vunpack.c.l.b16 %v352
        %v427 = vunpack.c.h.b16 %v352
        %v428 = vunpack.c.l.b16 %v353
        %v429 = vunpack.c.h.b16 %v353
        %v430 = vunpack.c.l.b16 %v354
        %v431 = vunpack.c.h.b16 %v354
        %v432 = vunpack.c.l.b16 %v355
        %v433 = vunpack.c.h.b16 %v355
        %v434 = vunpack.c.l.b16 %v356
        %v435 = vunpack.c.h.b16 %v356
        %v436 = vunpack.c.l.b16 %v357
        %v437 = vunpack.c.h.b16 %v357
        %v438 = vunpack.c.l.b16 %v358
        %v439 = vunpack.c.h.b16 %v358
        %v440 = vunpack.c.l.b16 %v359
        %v441 = vunpack.c.h.b16 %v359
        %v442 = vunpack.c.l.b16 %v360
        %v443 = vunpack.c.h.b16 %v360
        %v444 = vunpack.c.l.b16 %v361
        %v445 = vunpack.c.h.b16 %v361
        %v446 = vpack.c.b16 %v416, %v414
        %v447 = vpack.c.b16 %v417, %v415
        %v448 = vpack.c.b16 %v420, %v418
        %v449 = vpack.c.b16 %v421, %v419
        %v450 = vpack.c.b16 %v424, %v422
        %v451 = vpack.c.b16 %v425, %v423
        %v452 = vpack.c.b16 %v428, %v426
        %v453 = vpack.c.b16 %v429, %v427
        %v454 = vpack.c.b16 %v432, %v430
        %v455 = vpack.c.b16 %v433, %v431
        %v456 = vpack.c.b16 %v436, %v434
        %v457 = vpack.c.b16 %v437, %v435
        %v458 = vpack.c.b16 %v440, %v438
        %v459 = vpack.c.b16 %v441, %v439
        %v460 = vpack.c.b16 %v444, %v442
        %v461 = vpack.c.b16 %v445, %v443
        %v510 = vunpack.c.l.b16 %v362
        %v511 = vunpack.c.l.b16 %v363
        %v512 = vunpack.c.l.b16 %v364
        %v513 = vunpack.c.l.b16 %v365
        %v514 = vunpack.c.l.b16 %v366
        %v515 = vunpack.c.l.b16 %v367
        %v516 = vunpack.c.l.b16 %v368
        %v517 = vunpack.c.l.b16 %v369
        %v518 = vunpack.c.l.b16 %v370
        %v519 = vunpack.c.l.b16 %v371
        %v520 = vunpack.c.l.b16 %v372
        %v521 = vunpack.c.l.b16 %v373
        %v522 = vunpack.c.l.b16 %v374
        %v523 = vunpack.c.l.b16 %v375
        %v524 = vunpack.c.l.b16 %v376
        %v525 = vunpack.c.l.b16 %v377
        %v526 = vunpack.c.l.b16 %v378
        %v527 = vunpack.c.l.b16 %v379
        %v528 = vunpack.c.l.b16 %v380
        %v529 = vunpack.c.l.b16 %v381
        %v530 = vunpack.c.l.b16 %v382
        %v531 = vunpack.c.l.b16 %v383
        %v532 = vunpack.c.l.b16 %v384
        %v533 = vunpack.c.l.b16 %v385
        %v534 = vunpack.c.l.b16 %v386
        %v535 = vunpack.c.l.b16 %v387
        %v536 = vunpack.c.l.b16 %v388
        %v537 = vunpack.c.l.b16 %v389
        %v538 = vunpack.c.l.b16 %v390
        %v539 = vunpack.c.l.b16 %v391
        %v540 = vunpack.c.l.b16 %v392
        %v541 = vunpack.c.l.b16 %v393
        %v542 = vpack.c.b16 %v511, %v510
        %v543 = vpack.c.b16 %v513, %v512
        %v544 = vpack.c.b16 %v515, %v514
        %v545 = vpack.c.b16 %v517, %v516
        %v546 = vpack.c.b16 %v519, %v518
        %v547 = vpack.c.b16 %v521, %v520
        %v548 = vpack.c.b16 %v523, %v522
        %v549 = vpack.c.b16 %v525, %v524
        %v550 = vpack.c.b16 %v527, %v526
        %v551 = vpack.c.b16 %v529, %v528
        %v552 = vpack.c.b16 %v531, %v530
        %v553 = vpack.c.b16 %v533, %v532
        %v554 = vpack.c.b16 %v535, %v534
        %v555 = vpack.c.b16 %v537, %v536
        %v556 = vpack.c.b16 %v539, %v538
        %v557 = vpack.c.b16 %v541, %v540
        %574 = vmatpush.bf16.msra.mxu0 %v549
        %575 = vmatpush.bf16.msra.mxu0 %v548
        %576 = vmatpush.bf16.msra.mxu0 %v547
        %577 = vmatpush.bf16.msra.mxu0 %v546
        %578 = vmatpush.bf16.msra.mxu0 %v545
        %579 = vmatpush.bf16.msra.mxu0 %v544
        %580 = vmatpush.bf16.msra.mxu0 %v543
        %581 = vmatpush.bf16.msra.mxu0 %v542
        %582 = vmatmul.bf16.gmra.mxu0 %v446
        %v583 = vpop.f32.mrf.mxu0
        %v584 = vadd.f32 %v396, %v583
        %v585 = vpop.f32.mrf.mxu0
        %v586 = vadd.f32 %v396, %v585
        %587 = vmatmul.bf16.gmra.mxu0 %v448
        %v588 = vpop.f32.mrf.mxu0
        %v589 = vadd.f32 %v396, %v588
        %v590 = vpop.f32.mrf.mxu0
        %v591 = vadd.f32 %v396, %v590
        %592 = vmatmul.bf16.gmra.mxu0 %v450
        %v593 = vpop.f32.mrf.mxu0
        %v594 = vadd.f32 %v396, %v593
        %v595 = vpop.f32.mrf.mxu0
        %v596 = vadd.f32 %v396, %v595
        %597 = vmatmul.bf16.gmra.mxu0 %v452
        %v598 = vpop.f32.mrf.mxu0
        %v599 = vadd.f32 %v396, %v598
        %v600 = vpop.f32.mrf.mxu0
        %v601 = vadd.f32 %v396, %v600
        %602 = vmatmul.bf16.gmra.mxu0 %v454
        %v603 = vpop.f32.mrf.mxu0
        %v604 = vadd.f32 %v396, %v603
        %v605 = vpop.f32.mrf.mxu0
        %v606 = vadd.f32 %v396, %v605
        %607 = vmatmul.bf16.gmra.mxu0 %v456
        %v608 = vpop.f32.mrf.mxu0
        %v609 = vadd.f32 %v396, %v608
        %v610 = vpop.f32.mrf.mxu0
        %v611 = vadd.f32 %v396, %v610
        %612 = vmatmul.bf16.gmra.mxu0 %v458
        %v613 = vpop.f32.mrf.mxu0
        %v614 = vadd.f32 %v396, %v613
        %v615 = vpop.f32.mrf.mxu0
        %v616 = vadd.f32 %v396, %v615
        %617 = vmatmul.bf16.gmra.mxu0 %v460
        %v618 = vpop.f32.mrf.mxu0
        %v619 = vadd.f32 %v396, %v618
        %v620 = vpop.f32.mrf.mxu0
        %v621 = vadd.f32 %v396, %v620
        %622 = vdwg.mxu0
        %623 = vmatpush.bf16.msra.mxu0 %v557
        %624 = vmatpush.bf16.msra.mxu0 %v556
        %625 = vmatpush.bf16.msra.mxu0 %v555
        %626 = vmatpush.bf16.msra.mxu0 %v554
        %627 = vmatpush.bf16.msra.mxu0 %v553
        %628 = vmatpush.bf16.msra.mxu0 %v552
        %629 = vmatpush.bf16.msra.mxu0 %v551
        %630 = vmatpush.bf16.msra.mxu0 %v550
        %631 = vmatmul.bf16.gmra.mxu0 %v447
        %v632 = vpop.f32.mrf.mxu0
        %v633 = vadd.f32 %v584, %v632
        %v634 = vpop.f32.mrf.mxu0
        %v635 = vadd.f32 %v586, %v634
        %636 = vmatmul.bf16.gmra.mxu0 %v449
        %v637 = vpop.f32.mrf.mxu0
        %v638 = vadd.f32 %v589, %v637
        %v639 = vpop.f32.mrf.mxu0
        %v640 = vadd.f32 %v591, %v639
        %641 = vmatmul.bf16.gmra.mxu0 %v451
        %v642 = vpop.f32.mrf.mxu0
        %v643 = vadd.f32 %v594, %v642
        %v644 = vpop.f32.mrf.mxu0
        %v645 = vadd.f32 %v596, %v644
        %646 = vmatmul.bf16.gmra.mxu0 %v453
        %v647 = vpop.f32.mrf.mxu0
        %v648 = vadd.f32 %v599, %v647
        %v649 = vpop.f32.mrf.mxu0
        %v650 = vadd.f32 %v601, %v649
        %651 = vmatmul.bf16.gmra.mxu0 %v455
        %v652 = vpop.f32.mrf.mxu0
        %v653 = vadd.f32 %v604, %v652
        %v654 = vpop.f32.mrf.mxu0
        %v655 = vadd.f32 %v606, %v654
        %656 = vmatmul.bf16.gmra.mxu0 %v457
        %v657 = vpop.f32.mrf.mxu0
        %v658 = vadd.f32 %v609, %v657
        %v659 = vpop.f32.mrf.mxu0
        %v660 = vadd.f32 %v611, %v659
        %661 = vmatmul.bf16.gmra.mxu0 %v459
        %v662 = vpop.f32.mrf.mxu0
        %v663 = vadd.f32 %v614, %v662
        %v664 = vpop.f32.mrf.mxu0
        %v665 = vadd.f32 %v616, %v664
        %666 = vmatmul.bf16.gmra.mxu0 %v461
        %v667 = vpop.f32.mrf.mxu0
        %v668 = vadd.f32 %v619, %v667
        %v669 = vpop.f32.mrf.mxu0
        %v670 = vadd.f32 %v621, %v669
        %671 = vdwg.mxu0
        %672 = vst [vmem:[#allocation2] sm:$0xff] %v633
        %673 = vst [vmem:[#allocation2 + $0x8] sm:$0xff] %v635
        %674 = vst [vmem:[#allocation2 + $0x10] sm:$0xff] %v638
        %675 = vst [vmem:[#allocation2 + $0x18] sm:$0xff] %v640
        %676 = vst [vmem:[#allocation2 + $0x20] sm:$0xff] %v643
        %677 = vst [vmem:[#allocation2 + $0x28] sm:$0xff] %v645
        %678 = vst [vmem:[#allocation2 + $0x30] sm:$0xff] %v648
        %679 = vst [vmem:[#allocation2 + $0x38] sm:$0xff] %v650
        %680 = vst [vmem:[#allocation2 + $0x40] sm:$0xff] %v653
        %681 = vst [vmem:[#allocation2 + $0x48] sm:$0xff] %v655
        %682 = vst [vmem:[#allocation2 + $0x50] sm:$0xff] %v658
        %683 = vst [vmem:[#allocation2 + $0x58] sm:$0xff] %v660
        %684 = vst [vmem:[#allocation2 + $0x60] sm:$0xff] %v663
        %685 = vst [vmem:[#allocation2 + $0x68] sm:$0xff] %v665
        %686 = vst [vmem:[#allocation2 + $0x70] sm:$0xff] %v668
        %687 = vst [vmem:[#allocation2 + $0x78] sm:$0xff] %v670
        %v688 = vld [vmem:[%s2] sm:$0xf]
        %v689 = vld [vmem:[%s2 + $0x4] sm:$0xf]
        %v690 = vld [vmem:[%s2 + $0x8] sm:$0xf]
        %v691 = vld [vmem:[%s2 + $0xc] sm:$0xf]
        %v692 = vld [vmem:[%s2 + $0x10] sm:$0xf]
        %v693 = vld [vmem:[%s2 + $0x14] sm:$0xf]
        %v694 = vld [vmem:[%s2 + $0x18] sm:$0xf]
        %v695 = vld [vmem:[%s2 + $0x1c] sm:$0xf]
        %v696 = vld [vmem:[%s2 + $0x20] sm:$0xf]
        %v697 = vld [vmem:[%s2 + $0x24] sm:$0xf]
        %v698 = vld [vmem:[%s2 + $0x28] sm:$0xf]
        %v699 = vld [vmem:[%s2 + $0x2c] sm:$0xf]
        %v700 = vld [vmem:[%s2 + $0x30] sm:$0xf]
        %v701 = vld [vmem:[%s2 + $0x34] sm:$0xf]
        %v702 = vld [vmem:[%s2 + $0x38] sm:$0xf]
        %v703 = vld [vmem:[%s2 + $0x3c] sm:$0xf]
        %v704 = vld [vmem:[%s2 + $0x40] sm:$0xf]
        %v705 = vld [vmem:[%s2 + $0x44] sm:$0xf]
        %v706 = vld [vmem:[%s2 + $0x48] sm:$0xf]
        %v707 = vld [vmem:[%s2 + $0x4c] sm:$0xf]
        %v708 = vld [vmem:[%s2 + $0x50] sm:$0xf]
        %v709 = vld [vmem:[%s2 + $0x54] sm:$0xf]
        %v710 = vld [vmem:[%s2 + $0x58] sm:$0xf]
        %v711 = vld [vmem:[%s2 + $0x5c] sm:$0xf]
        %v712 = vld [vmem:[%s2 + $0x60] sm:$0xf]
        %v713 = vld [vmem:[%s2 + $0x64] sm:$0xf]
        %v714 = vld [vmem:[%s2 + $0x68] sm:$0xf]
        %v715 = vld [vmem:[%s2 + $0x6c] sm:$0xf]
        %v716 = vld [vmem:[%s2 + $0x70] sm:$0xf]
        %v717 = vld [vmem:[%s2 + $0x74] sm:$0xf]
        %v718 = vld [vmem:[%s2 + $0x78] sm:$0xf]
        %v719 = vld [vmem:[%s2 + $0x7c] sm:$0xf]
        %v720 = vld [vmem:[%s4] sm:$0x1]
        %v722 = vperm.slane %v720, 0
        %v756 = vunpack.c.l.b16 %v688
        %v757 = vunpack.c.l.b16 %v689
        %v758 = vunpack.c.l.b16 %v690
        %v759 = vunpack.c.l.b16 %v691
        %v760 = vunpack.c.l.b16 %v692
        %v761 = vunpack.c.l.b16 %v693
        %v762 = vunpack.c.l.b16 %v694
        %v763 = vunpack.c.l.b16 %v695
        %v764 = vunpack.c.l.b16 %v696
        %v765 = vunpack.c.l.b16 %v697
        %v766 = vunpack.c.l.b16 %v698
        %v767 = vunpack.c.l.b16 %v699
        %v768 = vunpack.c.l.b16 %v700
        %v769 = vunpack.c.l.b16 %v701
        %v770 = vunpack.c.l.b16 %v702
        %v771 = vunpack.c.l.b16 %v703
        %v772 = vunpack.c.l.b16 %v704
        %v773 = vunpack.c.l.b16 %v705
        %v774 = vunpack.c.l.b16 %v706
        %v775 = vunpack.c.l.b16 %v707
        %v776 = vunpack.c.l.b16 %v708
        %v777 = vunpack.c.l.b16 %v709
        %v778 = vunpack.c.l.b16 %v710
        %v779 = vunpack.c.l.b16 %v711
        %v780 = vunpack.c.l.b16 %v712
        %v781 = vunpack.c.l.b16 %v713
        %v782 = vunpack.c.l.b16 %v714
        %v783 = vunpack.c.l.b16 %v715
        %v784 = vunpack.c.l.b16 %v716
        %v785 = vunpack.c.l.b16 %v717
        %v786 = vunpack.c.l.b16 %v718
        %v787 = vunpack.c.l.b16 %v719
        %v788 = vpack.c.b16 %v757, %v756
        %v789 = vpack.c.b16 %v759, %v758
        %v790 = vpack.c.b16 %v761, %v760
        %v791 = vpack.c.b16 %v763, %v762
        %v792 = vpack.c.b16 %v765, %v764
        %v793 = vpack.c.b16 %v767, %v766
        %v794 = vpack.c.b16 %v769, %v768
        %v795 = vpack.c.b16 %v771, %v770
        %v796 = vpack.c.b16 %v773, %v772
        %v797 = vpack.c.b16 %v775, %v774
        %v798 = vpack.c.b16 %v777, %v776
        %v799 = vpack.c.b16 %v779, %v778
        %v800 = vpack.c.b16 %v781, %v780
        %v801 = vpack.c.b16 %v783, %v782
        %v802 = vpack.c.b16 %v785, %v784
        %v803 = vpack.c.b16 %v787, %v786
        %820 = vmatpush.bf16.msra.mxu0 %v795
        %821 = vmatpush.bf16.msra.mxu0 %v794
        %822 = vmatpush.bf16.msra.mxu0 %v793
        %823 = vmatpush.bf16.msra.mxu0 %v792
        %824 = vmatpush.bf16.msra.mxu0 %v791
        %825 = vmatpush.bf16.msra.mxu0 %v790
        %826 = vmatpush.bf16.msra.mxu0 %v789
        %827 = vmatpush.bf16.msra.mxu0 %v788
        %828 = vmatmul.bf16.gmra.mxu0 %v446
        %v829 = vpop.f32.mrf.mxu0
        %v830 = vadd.f32 %v722, %v829
        %v831 = vpop.f32.mrf.mxu0
        %v832 = vadd.f32 %v722, %v831
        %833 = vmatmul.bf16.gmra.mxu0 %v448
        %v834 = vpop.f32.mrf.mxu0
        %v835 = vadd.f32 %v722, %v834
        %v836 = vpop.f32.mrf.mxu0
        %v837 = vadd.f32 %v722, %v836
        %838 = vmatmul.bf16.gmra.mxu0 %v450
        %v839 = vpop.f32.mrf.mxu0
        %v840 = vadd.f32 %v722, %v839
        %v841 = vpop.f32.mrf.mxu0
        %v842 = vadd.f32 %v722, %v841
        %843 = vmatmul.bf16.gmra.mxu0 %v452
        %v844 = vpop.f32.mrf.mxu0
        %v845 = vadd.f32 %v722, %v844
        %v846 = vpop.f32.mrf.mxu0
        %v847 = vadd.f32 %v722, %v846
        %848 = vmatmul.bf16.gmra.mxu0 %v454
        %v849 = vpop.f32.mrf.mxu0
        %v850 = vadd.f32 %v722, %v849
        %v851 = vpop.f32.mrf.mxu0
        %v852 = vadd.f32 %v722, %v851
        %853 = vmatmul.bf16.gmra.mxu0 %v456
        %v854 = vpop.f32.mrf.mxu0
        %v855 = vadd.f32 %v722, %v854
        %v856 = vpop.f32.mrf.mxu0
        %v857 = vadd.f32 %v722, %v856
        %858 = vmatmul.bf16.gmra.mxu0 %v458
        %v859 = vpop.f32.mrf.mxu0
        %v860 = vadd.f32 %v722, %v859
        %v861 = vpop.f32.mrf.mxu0
        %v862 = vadd.f32 %v722, %v861
        %863 = vmatmul.bf16.gmra.mxu0 %v460
        %v864 = vpop.f32.mrf.mxu0
        %v865 = vadd.f32 %v722, %v864
        %v866 = vpop.f32.mrf.mxu0
        %v867 = vadd.f32 %v722, %v866
        %868 = vdwg.mxu0
        %869 = vmatpush.bf16.msra.mxu0 %v803
        %870 = vmatpush.bf16.msra.mxu0 %v802
        %871 = vmatpush.bf16.msra.mxu0 %v801
        %872 = vmatpush.bf16.msra.mxu0 %v800
        %873 = vmatpush.bf16.msra.mxu0 %v799
        %874 = vmatpush.bf16.msra.mxu0 %v798
        %875 = vmatpush.bf16.msra.mxu0 %v797
        %876 = vmatpush.bf16.msra.mxu0 %v796
        %877 = vmatmul.bf16.gmra.mxu0 %v447
        %v878 = vpop.f32.mrf.mxu0
        %v879 = vadd.f32 %v830, %v878
        %v880 = vpop.f32.mrf.mxu0
        %v881 = vadd.f32 %v832, %v880
        %882 = vmatmul.bf16.gmra.mxu0 %v449
        %v883 = vpop.f32.mrf.mxu0
        %v884 = vadd.f32 %v835, %v883
        %v885 = vpop.f32.mrf.mxu0
        %v886 = vadd.f32 %v837, %v885
        %887 = vmatmul.bf16.gmra.mxu0 %v451
        %v888 = vpop.f32.mrf.mxu0
        %v889 = vadd.f32 %v840, %v888
        %v890 = vpop.f32.mrf.mxu0
        %v891 = vadd.f32 %v842, %v890
        %892 = vmatmul.bf16.gmra.mxu0 %v453
        %v893 = vpop.f32.mrf.mxu0
        %v894 = vadd.f32 %v845, %v893
        %v895 = vpop.f32.mrf.mxu0
        %v896 = vadd.f32 %v847, %v895
        %897 = vmatmul.bf16.gmra.mxu0 %v455
        %v898 = vpop.f32.mrf.mxu0
        %v899 = vadd.f32 %v850, %v898
        %v900 = vpop.f32.mrf.mxu0
        %v901 = vadd.f32 %v852, %v900
        %902 = vmatmul.bf16.gmra.mxu0 %v457
        %v903 = vpop.f32.mrf.mxu0
        %v904 = vadd.f32 %v855, %v903
        %v905 = vpop.f32.mrf.mxu0
        %v906 = vadd.f32 %v857, %v905
        %907 = vmatmul.bf16.gmra.mxu0 %v459
        %v908 = vpop.f32.mrf.mxu0
        %v909 = vadd.f32 %v860, %v908
        %v910 = vpop.f32.mrf.mxu0
        %v911 = vadd.f32 %v862, %v910
        %912 = vmatmul.bf16.gmra.mxu0 %v461
        %v913 = vpop.f32.mrf.mxu0
        %v914 = vadd.f32 %v865, %v913
        %v915 = vpop.f32.mrf.mxu0
        %v916 = vadd.f32 %v867, %v915
        %917 = vdwg.mxu0
        %918 = vst [vmem:[#allocation3] sm:$0xff] %v879
        %919 = vst [vmem:[#allocation3 + $0x8] sm:$0xff] %v881
        %920 = vst [vmem:[#allocation3 + $0x10] sm:$0xff] %v884
        %921 = vst [vmem:[#allocation3 + $0x18] sm:$0xff] %v886
        %922 = vst [vmem:[#allocation3 + $0x20] sm:$0xff] %v889
        %923 = vst [vmem:[#allocation3 + $0x28] sm:$0xff] %v891
        %924 = vst [vmem:[#allocation3 + $0x30] sm:$0xff] %v894
        %925 = vst [vmem:[#allocation3 + $0x38] sm:$0xff] %v896
        %926 = vst [vmem:[#allocation3 + $0x40] sm:$0xff] %v899
        %927 = vst [vmem:[#allocation3 + $0x48] sm:$0xff] %v901
        %928 = vst [vmem:[#allocation3 + $0x50] sm:$0xff] %v904
        %929 = vst [vmem:[#allocation3 + $0x58] sm:$0xff] %v906
        %930 = vst [vmem:[#allocation3 + $0x60] sm:$0xff] %v909
        %931 = vst [vmem:[#allocation3 + $0x68] sm:$0xff] %v911
        %932 = vst [vmem:[#allocation3 + $0x70] sm:$0xff] %v914
        %933 = vst [vmem:[#allocation3 + $0x78] sm:$0xff] %v916
        %v934 = vld [vmem:[%s5] sm:$0xf]
        %v935 = vld [vmem:[%s5 + $0x4] sm:$0xf]
        %v936 = vld [vmem:[%s5 + $0x8] sm:$0xf]
        %v937 = vld [vmem:[%s5 + $0xc] sm:$0xf]
        %v938 = vld [vmem:[%s5 + $0x10] sm:$0xf]
        %v939 = vld [vmem:[%s5 + $0x14] sm:$0xf]
        %v940 = vld [vmem:[%s5 + $0x18] sm:$0xf]
        %v941 = vld [vmem:[%s5 + $0x1c] sm:$0xf]
        %v942 = vlaneseq
        %v943 = vshrl.u32 %v942, 7
        %v944 = vadd.s32 %v943, 8
        %v945 = vadd.s32 %v943, 16
        %v946 = vadd.s32 %v943, 24
        %v947 = vlaneseq
        %v948 = vand.u32 %v947, 127
        %vm949 = vcmp.lt.s32.totalorder %v943, 16
        %vm950 = vcmp.lt.s32.totalorder %v944, 16
        %vm951 = vcmp.lt.s32.totalorder %v945, 16
        %vm952 = vcmp.lt.s32.totalorder %v946, 16
        %vm953 = vcmp.lt.s32.totalorder %v948, 32
        %vm954 = vmxor %vm949, %vm953
        %vm955 = vmxor %vm950, %vm953
        %vm956 = vmxor %vm951, %vm953
        %vm957 = vmxor %vm952, %vm953
        %vm958 = vmxor %vm954, 1
        %vm959 = vmxor %vm955, 1
        %vm960 = vmxor %vm956, 1
        %vm961 = vmxor %vm957, 1
        %v962 = vsel %vm958, 1.0, 0.0
        %v963 = vsel %vm959, 1.0, 0.0
        %v964 = vsel %vm960, 1.0, 0.0
        %v965 = vsel %vm961, 1.0, 0.0
        %v966 = vld [vmem:[#allocation2] sm:$0xff]
        %v967 = vld [vmem:[#allocation2 + $0x8] sm:$0xff]
        %s968 = scalar_lea.vmem [#allocation3], 112
        %v969 = vld [vmem:[%s968] sm:$0xff]
        %v970 = vld [vmem:[%s968 + $0x8] sm:$0xff]
        %v979 = vunpack.c.l.b16 %v934
        %v980 = vunpack.c.l.b16 %v935
        %v981 = vunpack.c.l.b16 %v936
        %v982 = vunpack.c.l.b16 %v937
        %v983 = vunpack.c.l.b16 %v938
        %v984 = vunpack.c.l.b16 %v939
        %v985 = vunpack.c.l.b16 %v940
        %v986 = vunpack.c.l.b16 %v941
        %v987 = vpack.c.b16 %v980, %v979
        %v988 = vpack.c.b16 %v982, %v981
        %v989 = vpack.c.b16 %v984, %v983
        %v990 = vpack.c.b16 %v986, %v985
        %vm995 = vcmask 523264
        %v997 = vsel %vm995, 0, 0
        %999 = vmatpush.bf16.msra.mxu0 0
        %1000 = vmatpush.bf16.msra.mxu0 0
        %1001 = vmatpush.bf16.msra.mxu0 0
        %1002 = vmatpush.bf16.msra.mxu0 0
        %1003 = vmatpush.bf16.msra.mxu0 %v990
        %1004 = vmatpush.bf16.msra.mxu0 %v989
        %1005 = vmatpush.bf16.msra.mxu0 %v988
        %1006 = vmatpush.bf16.msra.mxu0 %v987
        %1007 = vmatmul.bf16.gmra.mxu0 %v997
        %v1008 = vpop.f32.mrf.mxu0
        %v1009 = vadd.f32 0.0, %v1008
        %v1010 = vpop.f32.mrf.mxu0
        %v1011 = vadd.f32 0.0, %v1010
        %1012 = vmatmul.bf16.gmra.mxu0 %v997
        %v1013 = vpop.f32.mrf.mxu0
        %v1014 = vadd.f32 0.0, %v1013
        %v1015 = vpop.f32.mrf.mxu0
        %v1016 = vadd.f32 0.0, %v1015
        %1017 = vdwg.mxu0
        %v1018 = vadd.f32 %v966, %v1009
        %v1019 = vadd.f32 %v967, %v1011
        %v1020 = vadd.f32 %v969, %v1014
        %v1021 = vadd.f32 %v970, %v1016
        %v1022 = vxor.u32 %v1018, 2147483648
        %v1023 = vxor.u32 %v1019, 2147483648
        %v1024 = vxor.u32 %v1020, 2147483648
        %v1025 = vxor.u32 %v1021, 2147483648
        %v1026 = vmul.f32 %v1022, 1.442695
        %v1027 = vpow.pop %v1026
        %v1028 = vmul.f32 %v1023, 1.442695
        %v1029 = vpow.pop %v1028
        %v1030 = vmul.f32 %v1024, 1.442695
        %v1031 = vpow.pop %v1030
        %v1032 = vmul.f32 %v1025, 1.442695
        %v1033 = vpow.pop %v1032
        %v1034 = vadd.f32 %v1027, 1.0
        %v1035 = vadd.f32 %v1029, 1.0
        %v1036 = vadd.f32 %v1031, 1.0
        %v1037 = vadd.f32 %v1033, 1.0
        %v1038 = vrcp.pop %v1034
        %v1039 = vmul.f32 %v1034, %v1038
        %v1040 = vsub.f32 1.0, %v1039
        %v1041 = vmul.f32 %v1038, %v1040
        %v1042 = vadd.f32 %v1038, %v1041
        %vm1043 = vweird.f32 %v1034
        %vm1044 = vweird.f32 %v1038
        %vm1045 = vmor %vm1043, %vm1044
        %v1046 = vsel %vm1045, %v1038, %v1042
        %v1047 = vand.u32 2147483647, %v1034
        %vm1048 = vcmp.eq.f32.partialorder %v1047, 8.507059e+37
        %v1049 = vand.u32 %v1034, 2147483648
        %v1050 = vor.u32 1.1754944e-38, %v1049
        %v1051 = vsel %vm1048, %v1050, %v1046
        %v1052 = vmul.f32 1.0, %v1051
        %v1053 = vrcp.pop %v1035
        %v1054 = vmul.f32 %v1035, %v1053
        %v1055 = vsub.f32 1.0, %v1054
        %v1056 = vmul.f32 %v1053, %v1055
        %v1057 = vadd.f32 %v1053, %v1056
        %vm1058 = vweird.f32 %v1035
        %vm1059 = vweird.f32 %v1053
        %vm1060 = vmor %vm1058, %vm1059
        %v1061 = vsel %vm1060, %v1053, %v1057
        %v1062 = vand.u32 2147483647, %v1035
        %vm1063 = vcmp.eq.f32.partialorder %v1062, 8.507059e+37
        %v1064 = vand.u32 %v1035, 2147483648
        %v1065 = vor.u32 1.1754944e-38, %v1064
        %v1066 = vsel %vm1063, %v1065, %v1061
        %v1067 = vmul.f32 1.0, %v1066
        %v1068 = vrcp.pop %v1036
        %v1069 = vmul.f32 %v1036, %v1068
        %v1070 = vsub.f32 1.0, %v1069
        %v1071 = vmul.f32 %v1068, %v1070
        %v1072 = vadd.f32 %v1068, %v1071
        %vm1073 = vweird.f32 %v1036
        %vm1074 = vweird.f32 %v1068
        %vm1075 = vmor %vm1073, %vm1074
        %v1076 = vsel %vm1075, %v1068, %v1072
        %v1077 = vand.u32 2147483647, %v1036
        %vm1078 = vcmp.eq.f32.partialorder %v1077, 8.507059e+37
        %v1079 = vand.u32 %v1036, 2147483648
        %v1080 = vor.u32 1.1754944e-38, %v1079
        %v1081 = vsel %vm1078, %v1080, %v1076
        %v1082 = vmul.f32 1.0, %v1081
        %v1083 = vrcp.pop %v1037
        %v1084 = vmul.f32 %v1037, %v1083
        %v1085 = vsub.f32 1.0, %v1084
        %v1086 = vmul.f32 %v1083, %v1085
        %v1087 = vadd.f32 %v1083, %v1086
        %vm1088 = vweird.f32 %v1037
        %vm1089 = vweird.f32 %v1083
        %vm1090 = vmor %vm1088, %vm1089
        %v1091 = vsel %vm1090, %v1083, %v1087
        %v1092 = vand.u32 2147483647, %v1037
        %vm1093 = vcmp.eq.f32.partialorder %v1092, 8.507059e+37
        %v1094 = vand.u32 %v1037, 2147483648
        %v1095 = vor.u32 1.1754944e-38, %v1094
        %v1096 = vsel %vm1093, %v1095, %v1091
        %v1097 = vmul.f32 1.0, %v1096
        %v1098 = vtanh.pop %v1018
        %v1099 = vtanh.pop %v1019
        %v1100 = vtanh.pop %v1020
        %v1101 = vtanh.pop %v1021
        %v1102 = vmul.f32 %v1052, 0.0
        %v1103 = vmul.f32 %v1067, 0.0
        %v1104 = vmul.f32 %v1082, 0.0
        %v1105 = vmul.f32 %v1097, 0.0
        %1110 = vrot.lane.b32.xlu0 %v1098, 32
        %v1111 = vpop.permute.xlu0 %1110
        %1112 = vrot.lane.b32.xlu0 %v1099, 32
        %v1113 = vpop.permute.xlu0 %1112
        %1114 = vrot.lane.b32.xlu0 %v1100, 32
        %v1115 = vpop.permute.xlu0 %1114
        %1116 = vrot.lane.b32.xlu0 %v1101, 32
        %v1117 = vpop.permute.xlu0 %1116
        %v1122 = vmul.f32 %v1052, %v1111
        %v1123 = vmul.f32 %v1067, %v1113
        %v1124 = vmul.f32 %v1082, %v1115
        %v1125 = vmul.f32 %v1097, %v1117
        %1130 = vrot.lane.b32.xlu0 %v1122, 32
        %v1131 = vpop.permute.xlu0 %1130
        %1132 = vrot.lane.b32.xlu0 %v1123, 32
        %v1133 = vpop.permute.xlu0 %1132
        %1134 = vrot.lane.b32.xlu0 %v1124, 32
        %v1135 = vpop.permute.xlu0 %1134
        %1136 = vrot.lane.b32.xlu0 %v1125, 32
        %v1137 = vpop.permute.xlu0 %1136
        %v1142 = vadd.f32 %v1102, %v1131
        %v1143 = vadd.f32 %v1103, %v1133
        %v1144 = vadd.f32 %v1104, %v1135
        %v1145 = vadd.f32 %v1105, %v1137
        %v1146 = vtanh.pop %v1142
        %v1147 = vtanh.pop %v1143
        %v1148 = vtanh.pop %v1144
        %v1149 = vtanh.pop %v1145
        %1154 = vrot.lane.b32.xlu0 %v1146, 32
        %v1155 = vpop.permute.xlu0 %1154
        %1156 = vrot.lane.b32.xlu0 %v1147, 32
        %v1157 = vpop.permute.xlu0 %1156
        %1158 = vrot.lane.b32.xlu0 %v1148, 32
        %v1159 = vpop.permute.xlu0 %1158
        %1160 = vrot.lane.b32.xlu0 %v1149, 32
        %v1161 = vpop.permute.xlu0 %1160
        %v1166 = vmul.f32 %v1052, %v1155
        %v1167 = vmul.f32 %v1067, %v1157
        %v1168 = vmul.f32 %v1082, %v1159
        %v1169 = vmul.f32 %v1097, %v1161
        %1172 = vrot.lane.b32.xlu0 %v1166, 64
        %v1173 = vpop.permute.xlu0 %1172
        %1174 = vrot.lane.b32.xlu0 %v1167, 64
        %v1175 = vpop.permute.xlu0 %1174
        %vm1178 = vcmask 261120
        %1179 = vst.msk [vmem:[%s342] sm:$0xff] %vm1178, %v1173
        %1180 = vst.msk [vmem:[%s342 + $0x8] sm:$0xff] %vm1178, %v1175
        %1183 = vrot.lane.b32.xlu0 %v1168, 64
        %v1184 = vpop.permute.xlu0 %1183
        %1185 = vrot.lane.b32.xlu0 %v1169, 64
        %v1186 = vpop.permute.xlu0 %1185
        %s1189 = scalar_lea.vmem %s342, 240 [#allocation5]
        %1190 = vst.msk [vmem:[%s1189] sm:$0xff] %vm1178, %v1184
        %1191 = vst.msk [vmem:[%s1189 + $0x8] sm:$0xff] %vm1178, %v1186
        %1192 = vrot.lane.b32.xlu0 %v1166, 96
        %v1193 = vpop.permute.xlu0 %1192
        %1194 = vrot.lane.b32.xlu0 %v1167, 96
        %v1195 = vpop.permute.xlu0 %1194
        %1196 = vrot.lane.b32.xlu0 %v1168, 96
        %v1197 = vpop.permute.xlu0 %1196
        %1198 = vrot.lane.b32.xlu0 %v1169, 96
        %v1199 = vpop.permute.xlu0 %1198
        %v1204 = vsel %vm1178, %v1173, %v1193
        %v1205 = vsel %vm1178, %v1175, %v1195
        %v1206 = vsel %vm1178, %v1184, %v1197
        %v1207 = vsel %vm1178, %v1186, %v1199
        %v1208 = vmul.f32 %v1204, %v962
        %v1209 = vmul.f32 %v1205, %v963
        %v1210 = vmul.f32 %v1206, %v964
        %v1211 = vmul.f32 %v1207, %v965
        %s1212 = scalar_lea.vmem [#allocation2], 16
        %v1213 = vld [vmem:[%s1212] sm:$0xff]
        %v1214 = vld [vmem:[%s1212 + $0x8] sm:$0xff]
        %s1215 = scalar_lea.vmem [#allocation3], 96
        %v1216 = vld [vmem:[%s1215] sm:$0xff]
        %v1217 = vld [vmem:[%s1215 + $0x8] sm:$0xff]
        %v1218 = vpack.c.bf16 %v1209, %v1208
        %v1219 = vpack.c.bf16 %v1211, %v1210
        %v1221 = vsel %vm995, %v1218, 0
        %v1224 = vsel %vm995, %v1219, 0
        %1226 = vmatpush.bf16.msra.mxu0 0
        %1227 = vmatpush.bf16.msra.mxu0 0
        %1228 = vmatpush.bf16.msra.mxu0 0
        %1229 = vmatpush.bf16.msra.mxu0 0
        %1230 = vmatpush.bf16.msra.mxu0 %v990
        %1231 = vmatpush.bf16.msra.mxu0 %v989
        %1232 = vmatpush.bf16.msra.mxu0 %v988
        %1233 = vmatpush.bf16.msra.mxu0 %v987
        %1234 = vmatmul.bf16.gmra.mxu0 %v1221
        %v1235 = vpop.f32.mrf.mxu0
        %v1236 = vadd.f32 0.0, %v1235
        %v1237 = vpop.f32.mrf.mxu0
        %v1238 = vadd.f32 0.0, %v1237
        %1239 = vmatmul.bf16.gmra.mxu0 %v1224
        %v1240 = vpop.f32.mrf.mxu0
        %v1241 = vadd.f32 0.0, %v1240
        %v1242 = vpop.f32.mrf.mxu0
        %v1243 = vadd.f32 0.0, %v1242
        %1244 = vdwg.mxu0
        %v1245 = vadd.f32 %v1213, %v1236
        %v1246 = vadd.f32 %v1214, %v1238
        %v1247 = vadd.f32 %v1216, %v1241
        %v1248 = vadd.f32 %v1217, %v1243
        %v1249 = vxor.u32 %v1245, 2147483648
        %v1250 = vxor.u32 %v1246, 2147483648
        %v1251 = vxor.u32 %v1247, 2147483648
        %v1252 = vxor.u32 %v1248, 2147483648
        %v1253 = vmul.f32 %v1249, 1.442695
        %v1254 = vpow.pop %v1253
        %v1255 = vmul.f32 %v1250, 1.442695
        %v1256 = vpow.pop %v1255
        %v1257 = vmul.f32 %v1251, 1.442695
        %v1258 = vpow.pop %v1257
        %v1259 = vmul.f32 %v1252, 1.442695
        %v1260 = vpow.pop %v1259
        %v1261 = vadd.f32 %v1254, 1.0
        %v1262 = vadd.f32 %v1256, 1.0
        %v1263 = vadd.f32 %v1258, 1.0
        %v1264 = vadd.f32 %v1260, 1.0
        %v1265 = vrcp.pop %v1261
        %v1266 = vmul.f32 %v1261, %v1265
        %v1267 = vsub.f32 1.0, %v1266
        %v1268 = vmul.f32 %v1265, %v1267
        %v1269 = vadd.f32 %v1265, %v1268
        %vm1270 = vweird.f32 %v1261
        %vm1271 = vweird.f32 %v1265
        %vm1272 = vmor %vm1270, %vm1271
        %v1273 = vsel %vm1272, %v1265, %v1269
        %v1274 = vand.u32 2147483647, %v1261
        %vm1275 = vcmp.eq.f32.partialorder %v1274, 8.507059e+37
        %v1276 = vand.u32 %v1261, 2147483648
        %v1277 = vor.u32 1.1754944e-38, %v1276
        %v1278 = vsel %vm1275, %v1277, %v1273
        %v1279 = vmul.f32 1.0, %v1278
        %v1280 = vrcp.pop %v1262
        %v1281 = vmul.f32 %v1262, %v1280
        %v1282 = vsub.f32 1.0, %v1281
        %v1283 = vmul.f32 %v1280, %v1282
        %v1284 = vadd.f32 %v1280, %v1283
        %vm1285 = vweird.f32 %v1262
        %vm1286 = vweird.f32 %v1280
        %vm1287 = vmor %vm1285, %vm1286
        %v1288 = vsel %vm1287, %v1280, %v1284
        %v1289 = vand.u32 2147483647, %v1262
        %vm1290 = vcmp.eq.f32.partialorder %v1289, 8.507059e+37
        %v1291 = vand.u32 %v1262, 2147483648
        %v1292 = vor.u32 1.1754944e-38, %v1291
        %v1293 = vsel %vm1290, %v1292, %v1288
        %v1294 = vmul.f32 1.0, %v1293
        %v1295 = vrcp.pop %v1263
        %v1296 = vmul.f32 %v1263, %v1295
        %v1297 = vsub.f32 1.0, %v1296
        %v1298 = vmul.f32 %v1295, %v1297
        %v1299 = vadd.f32 %v1295, %v1298
        %vm1300 = vweird.f32 %v1263
        %vm1301 = vweird.f32 %v1295
        %vm1302 = vmor %vm1300, %vm1301
        %v1303 = vsel %vm1302, %v1295, %v1299
        %v1304 = vand.u32 2147483647, %v1263
        %vm1305 = vcmp.eq.f32.partialorder %v1304, 8.507059e+37
        %v1306 = vand.u32 %v1263, 2147483648
        %v1307 = vor.u32 1.1754944e-38, %v1306
        %v1308 = vsel %vm1305, %v1307, %v1303
        %v1309 = vmul.f32 1.0, %v1308
        %v1310 = vrcp.pop %v1264
        %v1311 = vmul.f32 %v1264, %v1310
        %v1312 = vsub.f32 1.0, %v1311
        %v1313 = vmul.f32 %v1310, %v1312
        %v1314 = vadd.f32 %v1310, %v1313
        %vm1315 = vweird.f32 %v1264
        %vm1316 = vweird.f32 %v1310
        %vm1317 = vmor %vm1315, %vm1316
        %v1318 = vsel %vm1317, %v1310, %v1314
        %v1319 = vand.u32 2147483647, %v1264
        %vm1320 = vcmp.eq.f32.partialorder %v1319, 8.507059e+37
        %v1321 = vand.u32 %v1264, 2147483648
        %v1322 = vor.u32 1.1754944e-38, %v1321
        %v1323 = vsel %vm1320, %v1322, %v1318
        %v1324 = vmul.f32 1.0, %v1323
        %v1325 = vtanh.pop %v1245
        %v1326 = vtanh.pop %v1246
        %v1327 = vtanh.pop %v1247
        %v1328 = vtanh.pop %v1248
        %v1329 = vmul.f32 %v1279, %v1142
        %v1330 = vmul.f32 %v1294, %v1143
        %v1331 = vmul.f32 %v1309, %v1144
        %v1332 = vmul.f32 %v1324, %v1145
        %1337 = vrot.lane.b32.xlu0 %v1325, 32
        %v1338 = vpop.permute.xlu0 %1337
        %1339 = vrot.lane.b32.xlu0 %v1326, 32
        %v1340 = vpop.permute.xlu0 %1339
        %1341 = vrot.lane.b32.xlu0 %v1327, 32
        %v1342 = vpop.permute.xlu0 %1341
        %1343 = vrot.lane.b32.xlu0 %v1328, 32
        %v1344 = vpop.permute.xlu0 %1343
        %v1349 = vmul.f32 %v1279, %v1338
        %v1350 = vmul.f32 %v1294, %v1340
        %v1351 = vmul.f32 %v1309, %v1342
        %v1352 = vmul.f32 %v1324, %v1344
        %1357 = vrot.lane.b32.xlu0 %v1349, 32
        %v1358 = vpop.permute.xlu0 %1357
        %1359 = vrot.lane.b32.xlu0 %v1350, 32
        %v1360 = vpop.permute.xlu0 %1359
        %1361 = vrot.lane.b32.xlu0 %v1351, 32
        %v1362 = vpop.permute.xlu0 %1361
        %1363 = vrot.lane.b32.xlu0 %v1352, 32
        %v1364 = vpop.permute.xlu0 %1363
        %v1369 = vadd.f32 %v1329, %v1358
        %v1370 = vadd.f32 %v1330, %v1360
        %v1371 = vadd.f32 %v1331, %v1362
        %v1372 = vadd.f32 %v1332, %v1364
        %v1373 = vtanh.pop %v1369
        %v1374 = vtanh.pop %v1370
        %v1375 = vtanh.pop %v1371
        %v1376 = vtanh.pop %v1372
        %1381 = vrot.lane.b32.xlu0 %v1373, 32
        %v1382 = vpop.permute.xlu0 %1381
        %1383 = vrot.lane.b32.xlu0 %v1374, 32
        %v1384 = vpop.permute.xlu0 %1383
        %1385 = vrot.lane.b32.xlu0 %v1375, 32
        %v1386 = vpop.permute.xlu0 %1385
        %1387 = vrot.lane.b32.xlu0 %v1376, 32
        %v1388 = vpop.permute.xlu0 %1387
        %v1393 = vmul.f32 %v1279, %v1382
        %v1394 = vmul.f32 %v1294, %v1384
        %v1395 = vmul.f32 %v1309, %v1386
        %v1396 = vmul.f32 %v1324, %v1388
        %1399 = vrot.lane.b32.xlu0 %v1393, 64
        %v1400 = vpop.permute.xlu0 %1399
        %1401 = vrot.lane.b32.xlu0 %v1394, 64
        %v1402 = vpop.permute.xlu0 %1401
        %s1405 = scalar_lea.vmem %s342, 32 [#allocation5]
        %1406 = vst.msk [vmem:[%s1405] sm:$0xff] %vm1178, %v1400
        %1407 = vst.msk [vmem:[%s1405 + $0x8] sm:$0xff] %vm1178, %v1402
        %1410 = vrot.lane.b32.xlu0 %v1395, 64
        %v1411 = vpop.permute.xlu0 %1410
        %1412 = vrot.lane.b32.xlu0 %v1396, 64
        %v1413 = vpop.permute.xlu0 %1412
        %s1416 = scalar_lea.vmem %s342, 208 [#allocation5]
        %1417 = vst.msk [vmem:[%s1416] sm:$0xff] %vm1178, %v1411
        %1418 = vst.msk [vmem:[%s1416 + $0x8] sm:$0xff] %vm1178, %v1413
        %1419 = vrot.lane.b32.xlu0 %v1393, 96
        %v1420 = vpop.permute.xlu0 %1419
        %1421 = vrot.lane.b32.xlu0 %v1394, 96
        %v1422 = vpop.permute.xlu0 %1421
        %1423 = vrot.lane.b32.xlu0 %v1395, 96
        %v1424 = vpop.permute.xlu0 %1423
        %1425 = vrot.lane.b32.xlu0 %v1396, 96
        %v1426 = vpop.permute.xlu0 %1425
        %v1431 = vsel %vm1178, %v1400, %v1420
        %v1432 = vsel %vm1178, %v1402, %v1422
        %v1433 = vsel %vm1178, %v1411, %v1424
        %v1434 = vsel %vm1178, %v1413, %v1426
        %v1435 = vmul.f32 %v1431, %v962
        %v1436 = vmul.f32 %v1432, %v963
        %v1437 = vmul.f32 %v1433, %v964
        %v1438 = vmul.f32 %v1434, %v965
        %s1439 = scalar_lea.vmem [#allocation2], 32
        %v1440 = vld [vmem:[%s1439] sm:$0xff]
        %v1441 = vld [vmem:[%s1439 + $0x8] sm:$0xff]
        %s1442 = scalar_lea.vmem [#allocation3], 80
        %v1443 = vld [vmem:[%s1442] sm:$0xff]
        %v1444 = vld [vmem:[%s1442 + $0x8] sm:$0xff]
        %v1445 = vpack.c.bf16 %v1436, %v1435
        %v1446 = vpack.c.bf16 %v1438, %v1437
        %v1448 = vsel %vm995, %v1445, 0
        %v1451 = vsel %vm995, %v1446, 0
        %1453 = vmatpush.bf16.msra.mxu0 0
        %1454 = vmatpush.bf16.msra.mxu0 0
        %1455 = vmatpush.bf16.msra.mxu0 0
        %1456 = vmatpush.bf16.msra.mxu0 0
        %1457 = vmatpush.bf16.msra.mxu0 %v990
        %1458 = vmatpush.bf16.msra.mxu0 %v989
        %1459 = vmatpush.bf16.msra.mxu0 %v988
        %1460 = vmatpush.bf16.msra.mxu0 %v987
        %1461 = vmatmul.bf16.gmra.mxu0 %v1448
        %v1462 = vpop.f32.mrf.mxu0
        %v1463 = vadd.f32 0.0, %v1462
        %v1464 = vpop.f32.mrf.mxu0
        %v1465 = vadd.f32 0.0, %v1464
        %1466 = vmatmul.bf16.gmra.mxu0 %v1451
        %v1467 = vpop.f32.mrf.mxu0
        %v1468 = vadd.f32 0.0, %v1467
        %v1469 = vpop.f32.mrf.mxu0
        %v1470 = vadd.f32 0.0, %v1469
        %1471 = vdwg.mxu0
        %v1472 = vadd.f32 %v1440, %v1463
        %v1473 = vadd.f32 %v1441, %v1465
        %v1474 = vadd.f32 %v1443, %v1468
        %v1475 = vadd.f32 %v1444, %v1470
        %v1476 = vxor.u32 %v1472, 2147483648
        %v1477 = vxor.u32 %v1473, 2147483648
        %v1478 = vxor.u32 %v1474, 2147483648
        %v1479 = vxor.u32 %v1475, 2147483648
        %v1480 = vmul.f32 %v1476, 1.442695
        %v1481 = vpow.pop %v1480
        %v1482 = vmul.f32 %v1477, 1.442695
        %v1483 = vpow.pop %v1482
        %v1484 = vmul.f32 %v1478, 1.442695
        %v1485 = vpow.pop %v1484
        %v1486 = vmul.f32 %v1479, 1.442695
        %v1487 = vpow.pop %v1486
        %v1488 = vadd.f32 %v1481, 1.0
        %v1489 = vadd.f32 %v1483, 1.0
        %v1490 = vadd.f32 %v1485, 1.0
        %v1491 = vadd.f32 %v1487, 1.0
        %v1492 = vrcp.pop %v1488
        %v1493 = vmul.f32 %v1488, %v1492
        %v1494 = vsub.f32 1.0, %v1493
        %v1495 = vmul.f32 %v1492, %v1494
        %v1496 = vadd.f32 %v1492, %v1495
        %vm1497 = vweird.f32 %v1488
        %vm1498 = vweird.f32 %v1492
        %vm1499 = vmor %vm1497, %vm1498
        %v1500 = vsel %vm1499, %v1492, %v1496
        %v1501 = vand.u32 2147483647, %v1488
        %vm1502 = vcmp.eq.f32.partialorder %v1501, 8.507059e+37
        %v1503 = vand.u32 %v1488, 2147483648
        %v1504 = vor.u32 1.1754944e-38, %v1503
        %v1505 = vsel %vm1502, %v1504, %v1500
        %v1506 = vmul.f32 1.0, %v1505
        %v1507 = vrcp.pop %v1489
        %v1508 = vmul.f32 %v1489, %v1507
        %v1509 = vsub.f32 1.0, %v1508
        %v1510 = vmul.f32 %v1507, %v1509
        %v1511 = vadd.f32 %v1507, %v1510
        %vm1512 = vweird.f32 %v1489
        %vm1513 = vweird.f32 %v1507
        %vm1514 = vmor %vm1512, %vm1513
        %v1515 = vsel %vm1514, %v1507, %v1511
        %v1516 = vand.u32 2147483647, %v1489
        %vm1517 = vcmp.eq.f32.partialorder %v1516, 8.507059e+37
        %v1518 = vand.u32 %v1489, 2147483648
        %v1519 = vor.u32 1.1754944e-38, %v1518
        %v1520 = vsel %vm1517, %v1519, %v1515
        %v1521 = vmul.f32 1.0, %v1520
        %v1522 = vrcp.pop %v1490
        %v1523 = vmul.f32 %v1490, %v1522
        %v1524 = vsub.f32 1.0, %v1523
        %v1525 = vmul.f32 %v1522, %v1524
        %v1526 = vadd.f32 %v1522, %v1525
        %vm1527 = vweird.f32 %v1490
        %vm1528 = vweird.f32 %v1522
        %vm1529 = vmor %vm1527, %vm1528
        %v1530 = vsel %vm1529, %v1522, %v1526
        %v1531 = vand.u32 2147483647, %v1490
        %vm1532 = vcmp.eq.f32.partialorder %v1531, 8.507059e+37
        %v1533 = vand.u32 %v1490, 2147483648
        %v1534 = vor.u32 1.1754944e-38, %v1533
        %v1535 = vsel %vm1532, %v1534, %v1530
        %v1536 = vmul.f32 1.0, %v1535
        %v1537 = vrcp.pop %v1491
        %v1538 = vmul.f32 %v1491, %v1537
        %v1539 = vsub.f32 1.0, %v1538
        %v1540 = vmul.f32 %v1537, %v1539
        %v1541 = vadd.f32 %v1537, %v1540
        %vm1542 = vweird.f32 %v1491
        %vm1543 = vweird.f32 %v1537
        %vm1544 = vmor %vm1542, %vm1543
        %v1545 = vsel %vm1544, %v1537, %v1541
        %v1546 = vand.u32 2147483647, %v1491
        %vm1547 = vcmp.eq.f32.partialorder %v1546, 8.507059e+37
        %v1548 = vand.u32 %v1491, 2147483648
        %v1549 = vor.u32 1.1754944e-38, %v1548
        %v1550 = vsel %vm1547, %v1549, %v1545
        %v1551 = vmul.f32 1.0, %v1550
        %v1552 = vtanh.pop %v1472
        %v1553 = vtanh.pop %v1473
        %v1554 = vtanh.pop %v1474
        %v1555 = vtanh.pop %v1475
        %v1556 = vmul.f32 %v1506, %v1369
        %v1557 = vmul.f32 %v1521, %v1370
        %v1558 = vmul.f32 %v1536, %v1371
        %v1559 = vmul.f32 %v1551, %v1372
        %1564 = vrot.lane.b32.xlu0 %v1552, 32
        %v1565 = vpop.permute.xlu0 %1564
        %1566 = vrot.lane.b32.xlu0 %v1553, 32
        %v1567 = vpop.permute.xlu0 %1566
        %1568 = vrot.lane.b32.xlu0 %v1554, 32
        %v1569 = vpop.permute.xlu0 %1568
        %1570 = vrot.lane.b32.xlu0 %v1555, 32
        %v1571 = vpop.permute.xlu0 %1570
        %v1576 = vmul.f32 %v1506, %v1565
        %v1577 = vmul.f32 %v1521, %v1567
        %v1578 = vmul.f32 %v1536, %v1569
        %v1579 = vmul.f32 %v1551, %v1571
        %1584 = vrot.lane.b32.xlu0 %v1576, 32
        %v1585 = vpop.permute.xlu0 %1584
        %1586 = vrot.lane.b32.xlu0 %v1577, 32
        %v1587 = vpop.permute.xlu0 %1586
        %1588 = vrot.lane.b32.xlu0 %v1578, 32
        %v1589 = vpop.permute.xlu0 %1588
        %1590 = vrot.lane.b32.xlu0 %v1579, 32
        %v1591 = vpop.permute.xlu0 %1590
        %v1596 = vadd.f32 %v1556, %v1585
        %v1597 = vadd.f32 %v1557, %v1587
        %v1598 = vadd.f32 %v1558, %v1589
        %v1599 = vadd.f32 %v1559, %v1591
        %v1600 = vtanh.pop %v1596
        %v1601 = vtanh.pop %v1597
        %v1602 = vtanh.pop %v1598
        %v1603 = vtanh.pop %v1599
        %1608 = vrot.lane.b32.xlu0 %v1600, 32
        %v1609 = vpop.permute.xlu0 %1608
        %1610 = vrot.lane.b32.xlu0 %v1601, 32
        %v1611 = vpop.permute.xlu0 %1610
        %1612 = vrot.lane.b32.xlu0 %v1602, 32
        %v1613 = vpop.permute.xlu0 %1612
        %1614 = vrot.lane.b32.xlu0 %v1603, 32
        %v1615 = vpop.permute.xlu0 %1614
        %v1620 = vmul.f32 %v1506, %v1609
        %v1621 = vmul.f32 %v1521, %v1611
        %v1622 = vmul.f32 %v1536, %v1613
        %v1623 = vmul.f32 %v1551, %v1615
        %1626 = vrot.lane.b32.xlu0 %v1620, 64
        %v1627 = vpop.permute.xlu0 %1626
        %1628 = vrot.lane.b32.xlu0 %v1621, 64
        %v1629 = vpop.permute.xlu0 %1628
        %s1632 = scalar_lea.vmem %s342, 64 [#allocation5]
        %1633 = vst.msk [vmem:[%s1632] sm:$0xff] %vm1178, %v1627
        %1634 = vst.msk [vmem:[%s1632 + $0x8] sm:$0xff] %vm1178, %v1629
        %1637 = vrot.lane.b32.xlu0 %v1622, 64
        %v1638 = vpop.permute.xlu0 %1637
        %1639 = vrot.lane.b32.xlu0 %v1623, 64
        %v1640 = vpop.permute.xlu0 %1639
        %s1643 = scalar_lea.vmem %s342, 176 [#allocation5]
        %1644 = vst.msk [vmem:[%s1643] sm:$0xff] %vm1178, %v1638
        %1645 = vst.msk [vmem:[%s1643 + $0x8] sm:$0xff] %vm1178, %v1640
        %1646 = vrot.lane.b32.xlu0 %v1620, 96
        %v1647 = vpop.permute.xlu0 %1646
        %1648 = vrot.lane.b32.xlu0 %v1621, 96
        %v1649 = vpop.permute.xlu0 %1648
        %1650 = vrot.lane.b32.xlu0 %v1622, 96
        %v1651 = vpop.permute.xlu0 %1650
        %1652 = vrot.lane.b32.xlu0 %v1623, 96
        %v1653 = vpop.permute.xlu0 %1652
        %v1658 = vsel %vm1178, %v1627, %v1647
        %v1659 = vsel %vm1178, %v1629, %v1649
        %v1660 = vsel %vm1178, %v1638, %v1651
        %v1661 = vsel %vm1178, %v1640, %v1653
        %v1662 = vmul.f32 %v1658, %v962
        %v1663 = vmul.f32 %v1659, %v963
        %v1664 = vmul.f32 %v1660, %v964
        %v1665 = vmul.f32 %v1661, %v965
        %s1666 = scalar_lea.vmem [#allocation2], 48
        %v1667 = vld [vmem:[%s1666] sm:$0xff]
        %v1668 = vld [vmem:[%s1666 + $0x8] sm:$0xff]
        %s1669 = scalar_lea.vmem [#allocation3], 64
        %v1670 = vld [vmem:[%s1669] sm:$0xff]
        %v1671 = vld [vmem:[%s1669 + $0x8] sm:$0xff]
        %v1672 = vpack.c.bf16 %v1663, %v1662
        %v1673 = vpack.c.bf16 %v1665, %v1664
        %v1675 = vsel %vm995, %v1672, 0
        %v1678 = vsel %vm995, %v1673, 0
        %1680 = vmatpush.bf16.msra.mxu0 0
        %1681 = vmatpush.bf16.msra.mxu0 0
        %1682 = vmatpush.bf16.msra.mxu0 0
        %1683 = vmatpush.bf16.msra.mxu0 0
        %1684 = vmatpush.bf16.msra.mxu0 %v990
        %1685 = vmatpush.bf16.msra.mxu0 %v989
        %1686 = vmatpush.bf16.msra.mxu0 %v988
        %1687 = vmatpush.bf16.msra.mxu0 %v987
        %1688 = vmatmul.bf16.gmra.mxu0 %v1675
        %v1689 = vpop.f32.mrf.mxu0
        %v1690 = vadd.f32 0.0, %v1689
        %v1691 = vpop.f32.mrf.mxu0
        %v1692 = vadd.f32 0.0, %v1691
        %1693 = vmatmul.bf16.gmra.mxu0 %v1678
        %v1694 = vpop.f32.mrf.mxu0
        %v1695 = vadd.f32 0.0, %v1694
        %v1696 = vpop.f32.mrf.mxu0
        %v1697 = vadd.f32 0.0, %v1696
        %1698 = vdwg.mxu0
        %v1699 = vadd.f32 %v1667, %v1690
        %v1700 = vadd.f32 %v1668, %v1692
        %v1701 = vadd.f32 %v1670, %v1695
        %v1702 = vadd.f32 %v1671, %v1697
        %v1703 = vxor.u32 %v1699, 2147483648
        %v1704 = vxor.u32 %v1700, 2147483648
        %v1705 = vxor.u32 %v1701, 2147483648
        %v1706 = vxor.u32 %v1702, 2147483648
        %v1707 = vmul.f32 %v1703, 1.442695
        %v1708 = vpow.pop %v1707
        %v1709 = vmul.f32 %v1704, 1.442695
        %v1710 = vpow.pop %v1709
        %v1711 = vmul.f32 %v1705, 1.442695
        %v1712 = vpow.pop %v1711
        %v1713 = vmul.f32 %v1706, 1.442695
        %v1714 = vpow.pop %v1713
        %v1715 = vadd.f32 %v1708, 1.0
        %v1716 = vadd.f32 %v1710, 1.0
        %v1717 = vadd.f32 %v1712, 1.0
        %v1718 = vadd.f32 %v1714, 1.0
        %v1719 = vrcp.pop %v1715
        %v1720 = vmul.f32 %v1715, %v1719
        %v1721 = vsub.f32 1.0, %v1720
        %v1722 = vmul.f32 %v1719, %v1721
        %v1723 = vadd.f32 %v1719, %v1722
        %vm1724 = vweird.f32 %v1715
        %vm1725 = vweird.f32 %v1719
        %vm1726 = vmor %vm1724, %vm1725
        %v1727 = vsel %vm1726, %v1719, %v1723
        %v1728 = vand.u32 2147483647, %v1715
        %vm1729 = vcmp.eq.f32.partialorder %v1728, 8.507059e+37
        %v1730 = vand.u32 %v1715, 2147483648
        %v1731 = vor.u32 1.1754944e-38, %v1730
        %v1732 = vsel %vm1729, %v1731, %v1727
        %v1733 = vmul.f32 1.0, %v1732
        %v1734 = vrcp.pop %v1716
        %v1735 = vmul.f32 %v1716, %v1734
        %v1736 = vsub.f32 1.0, %v1735
        %v1737 = vmul.f32 %v1734, %v1736
        %v1738 = vadd.f32 %v1734, %v1737
        %vm1739 = vweird.f32 %v1716
        %vm1740 = vweird.f32 %v1734
        %vm1741 = vmor %vm1739, %vm1740
        %v1742 = vsel %vm1741, %v1734, %v1738
        %v1743 = vand.u32 2147483647, %v1716
        %vm1744 = vcmp.eq.f32.partialorder %v1743, 8.507059e+37
        %v1745 = vand.u32 %v1716, 2147483648
        %v1746 = vor.u32 1.1754944e-38, %v1745
        %v1747 = vsel %vm1744, %v1746, %v1742
        %v1748 = vmul.f32 1.0, %v1747
        %v1749 = vrcp.pop %v1717
        %v1750 = vmul.f32 %v1717, %v1749
        %v1751 = vsub.f32 1.0, %v1750
        %v1752 = vmul.f32 %v1749, %v1751
        %v1753 = vadd.f32 %v1749, %v1752
        %vm1754 = vweird.f32 %v1717
        %vm1755 = vweird.f32 %v1749
        %vm1756 = vmor %vm1754, %vm1755
        %v1757 = vsel %vm1756, %v1749, %v1753
        %v1758 = vand.u32 2147483647, %v1717
        %vm1759 = vcmp.eq.f32.partialorder %v1758, 8.507059e+37
        %v1760 = vand.u32 %v1717, 2147483648
        %v1761 = vor.u32 1.1754944e-38, %v1760
        %v1762 = vsel %vm1759, %v1761, %v1757
        %v1763 = vmul.f32 1.0, %v1762
        %v1764 = vrcp.pop %v1718
        %v1765 = vmul.f32 %v1718, %v1764
        %v1766 = vsub.f32 1.0, %v1765
        %v1767 = vmul.f32 %v1764, %v1766
        %v1768 = vadd.f32 %v1764, %v1767
        %vm1769 = vweird.f32 %v1718
        %vm1770 = vweird.f32 %v1764
        %vm1771 = vmor %vm1769, %vm1770
        %v1772 = vsel %vm1771, %v1764, %v1768
        %v1773 = vand.u32 2147483647, %v1718
        %vm1774 = vcmp.eq.f32.partialorder %v1773, 8.507059e+37
        %v1775 = vand.u32 %v1718, 2147483648
        %v1776 = vor.u32 1.1754944e-38, %v1775
        %v1777 = vsel %vm1774, %v1776, %v1772
        %v1778 = vmul.f32 1.0, %v1777
        %v1779 = vtanh.pop %v1699
        %v1780 = vtanh.pop %v1700
        %v1781 = vtanh.pop %v1701
        %v1782 = vtanh.pop %v1702
        %v1783 = vmul.f32 %v1733, %v1596
        %v1784 = vmul.f32 %v1748, %v1597
        %v1785 = vmul.f32 %v1763, %v1598
        %v1786 = vmul.f32 %v1778, %v1599
        %1791 = vrot.lane.b32.xlu0 %v1779, 32
        %v1792 = vpop.permute.xlu0 %1791
        %1793 = vrot.lane.b32.xlu0 %v1780, 32
        %v1794 = vpop.permute.xlu0 %1793
        %1795 = vrot.lane.b32.xlu0 %v1781, 32
        %v1796 = vpop.permute.xlu0 %1795
        %1797 = vrot.lane.b32.xlu0 %v1782, 32
        %v1798 = vpop.permute.xlu0 %1797
        %v1803 = vmul.f32 %v1733, %v1792
        %v1804 = vmul.f32 %v1748, %v1794
        %v1805 = vmul.f32 %v1763, %v1796
        %v1806 = vmul.f32 %v1778, %v1798
        %1811 = vrot.lane.b32.xlu0 %v1803, 32
        %v1812 = vpop.permute.xlu0 %1811
        %1813 = vrot.lane.b32.xlu0 %v1804, 32
        %v1814 = vpop.permute.xlu0 %1813
        %1815 = vrot.lane.b32.xlu0 %v1805, 32
        %v1816 = vpop.permute.xlu0 %1815
        %1817 = vrot.lane.b32.xlu0 %v1806, 32
        %v1818 = vpop.permute.xlu0 %1817
        %v1823 = vadd.f32 %v1783, %v1812
        %v1824 = vadd.f32 %v1784, %v1814
        %v1825 = vadd.f32 %v1785, %v1816
        %v1826 = vadd.f32 %v1786, %v1818
        %v1827 = vtanh.pop %v1823
        %v1828 = vtanh.pop %v1824
        %v1829 = vtanh.pop %v1825
        %v1830 = vtanh.pop %v1826
        %1835 = vrot.lane.b32.xlu0 %v1827, 32
        %v1836 = vpop.permute.xlu0 %1835
        %1837 = vrot.lane.b32.xlu0 %v1828, 32
        %v1838 = vpop.permute.xlu0 %1837
        %1839 = vrot.lane.b32.xlu0 %v1829, 32
        %v1840 = vpop.permute.xlu0 %1839
        %1841 = vrot.lane.b32.xlu0 %v1830, 32
        %v1842 = vpop.permute.xlu0 %1841
        %v1847 = vmul.f32 %v1733, %v1836
        %v1848 = vmul.f32 %v1748, %v1838
        %v1849 = vmul.f32 %v1763, %v1840
        %v1850 = vmul.f32 %v1778, %v1842
        %1853 = vrot.lane.b32.xlu0 %v1847, 64
        %v1854 = vpop.permute.xlu0 %1853
        %1855 = vrot.lane.b32.xlu0 %v1848, 64
        %v1856 = vpop.permute.xlu0 %1855
        %s1859 = scalar_lea.vmem %s342, 96 [#allocation5]
        %1860 = vst.msk [vmem:[%s1859] sm:$0xff] %vm1178, %v1854
        %1861 = vst.msk [vmem:[%s1859 + $0x8] sm:$0xff] %vm1178, %v1856
        %1864 = vrot.lane.b32.xlu0 %v1849, 64
        %v1865 = vpop.permute.xlu0 %1864
        %1866 = vrot.lane.b32.xlu0 %v1850, 64
        %v1867 = vpop.permute.xlu0 %1866
        %s1870 = scalar_lea.vmem %s342, 144 [#allocation5]
        %1871 = vst.msk [vmem:[%s1870] sm:$0xff] %vm1178, %v1865
        %1872 = vst.msk [vmem:[%s1870 + $0x8] sm:$0xff] %vm1178, %v1867
        %1873 = vrot.lane.b32.xlu0 %v1847, 96
        %v1874 = vpop.permute.xlu0 %1873
        %1875 = vrot.lane.b32.xlu0 %v1848, 96
        %v1876 = vpop.permute.xlu0 %1875
        %1877 = vrot.lane.b32.xlu0 %v1849, 96
        %v1878 = vpop.permute.xlu0 %1877
        %1879 = vrot.lane.b32.xlu0 %v1850, 96
        %v1880 = vpop.permute.xlu0 %1879
        %v1885 = vsel %vm1178, %v1854, %v1874
        %v1886 = vsel %vm1178, %v1856, %v1876
        %v1887 = vsel %vm1178, %v1865, %v1878
        %v1888 = vsel %vm1178, %v1867, %v1880
        %v1889 = vmul.f32 %v1885, %v962
        %v1890 = vmul.f32 %v1886, %v963
        %v1891 = vmul.f32 %v1887, %v964
        %v1892 = vmul.f32 %v1888, %v965
        %s1893 = scalar_lea.vmem [#allocation2], 64
        %v1894 = vld [vmem:[%s1893] sm:$0xff]
        %v1895 = vld [vmem:[%s1893 + $0x8] sm:$0xff]
        %s1896 = scalar_lea.vmem [#allocation3], 48
        %v1897 = vld [vmem:[%s1896] sm:$0xff]
        %v1898 = vld [vmem:[%s1896 + $0x8] sm:$0xff]
        %v1899 = vpack.c.bf16 %v1890, %v1889
        %v1900 = vpack.c.bf16 %v1892, %v1891
        %v1902 = vsel %vm995, %v1899, 0
        %v1905 = vsel %vm995, %v1900, 0
        %1907 = vmatpush.bf16.msra.mxu0 0
        %1908 = vmatpush.bf16.msra.mxu0 0
        %1909 = vmatpush.bf16.msra.mxu0 0
        %1910 = vmatpush.bf16.msra.mxu0 0
        %1911 = vmatpush.bf16.msra.mxu0 %v990
        %1912 = vmatpush.bf16.msra.mxu0 %v989
        %1913 = vmatpush.bf16.msra.mxu0 %v988
        %1914 = vmatpush.bf16.msra.mxu0 %v987
        %1915 = vmatmul.bf16.gmra.mxu0 %v1902
        %v1916 = vpop.f32.mrf.mxu0
        %v1917 = vadd.f32 0.0, %v1916
        %v1918 = vpop.f32.mrf.mxu0
        %v1919 = vadd.f32 0.0, %v1918
        %1920 = vmatmul.bf16.gmra.mxu0 %v1905
        %v1921 = vpop.f32.mrf.mxu0
        %v1922 = vadd.f32 0.0, %v1921
        %v1923 = vpop.f32.mrf.mxu0
        %v1924 = vadd.f32 0.0, %v1923
        %1925 = vdwg.mxu0
        %v1926 = vadd.f32 %v1894, %v1917
        %v1927 = vadd.f32 %v1895, %v1919
        %v1928 = vadd.f32 %v1897, %v1922
        %v1929 = vadd.f32 %v1898, %v1924
        %v1930 = vxor.u32 %v1926, 2147483648
        %v1931 = vxor.u32 %v1927, 2147483648
        %v1932 = vxor.u32 %v1928, 2147483648
        %v1933 = vxor.u32 %v1929, 2147483648
        %v1934 = vmul.f32 %v1930, 1.442695
        %v1935 = vpow.pop %v1934
        %v1936 = vmul.f32 %v1931, 1.442695
        %v1937 = vpow.pop %v1936
        %v1938 = vmul.f32 %v1932, 1.442695
        %v1939 = vpow.pop %v1938
        %v1940 = vmul.f32 %v1933, 1.442695
        %v1941 = vpow.pop %v1940
        %v1942 = vadd.f32 %v1935, 1.0
        %v1943 = vadd.f32 %v1937, 1.0
        %v1944 = vadd.f32 %v1939, 1.0
        %v1945 = vadd.f32 %v1941, 1.0
        %v1946 = vrcp.pop %v1942
        %v1947 = vmul.f32 %v1942, %v1946
        %v1948 = vsub.f32 1.0, %v1947
        %v1949 = vmul.f32 %v1946, %v1948
        %v1950 = vadd.f32 %v1946, %v1949
        %vm1951 = vweird.f32 %v1942
        %vm1952 = vweird.f32 %v1946
        %vm1953 = vmor %vm1951, %vm1952
        %v1954 = vsel %vm1953, %v1946, %v1950
        %v1955 = vand.u32 2147483647, %v1942
        %vm1956 = vcmp.eq.f32.partialorder %v1955, 8.507059e+37
        %v1957 = vand.u32 %v1942, 2147483648
        %v1958 = vor.u32 1.1754944e-38, %v1957
        %v1959 = vsel %vm1956, %v1958, %v1954
        %v1960 = vmul.f32 1.0, %v1959
        %v1961 = vrcp.pop %v1943
        %v1962 = vmul.f32 %v1943, %v1961
        %v1963 = vsub.f32 1.0, %v1962
        %v1964 = vmul.f32 %v1961, %v1963
        %v1965 = vadd.f32 %v1961, %v1964
        %vm1966 = vweird.f32 %v1943
        %vm1967 = vweird.f32 %v1961
        %vm1968 = vmor %vm1966, %vm1967
        %v1969 = vsel %vm1968, %v1961, %v1965
        %v1970 = vand.u32 2147483647, %v1943
        %vm1971 = vcmp.eq.f32.partialorder %v1970, 8.507059e+37
        %v1972 = vand.u32 %v1943, 2147483648
        %v1973 = vor.u32 1.1754944e-38, %v1972
        %v1974 = vsel %vm1971, %v1973, %v1969
        %v1975 = vmul.f32 1.0, %v1974
        %v1976 = vrcp.pop %v1944
        %v1977 = vmul.f32 %v1944, %v1976
        %v1978 = vsub.f32 1.0, %v1977
        %v1979 = vmul.f32 %v1976, %v1978
        %v1980 = vadd.f32 %v1976, %v1979
        %vm1981 = vweird.f32 %v1944
        %vm1982 = vweird.f32 %v1976
        %vm1983 = vmor %vm1981, %vm1982
        %v1984 = vsel %vm1983, %v1976, %v1980
        %v1985 = vand.u32 2147483647, %v1944
        %vm1986 = vcmp.eq.f32.partialorder %v1985, 8.507059e+37
        %v1987 = vand.u32 %v1944, 2147483648
        %v1988 = vor.u32 1.1754944e-38, %v1987
        %v1989 = vsel %vm1986, %v1988, %v1984
        %v1990 = vmul.f32 1.0, %v1989
        %v1991 = vrcp.pop %v1945
        %v1992 = vmul.f32 %v1945, %v1991
        %v1993 = vsub.f32 1.0, %v1992
        %v1994 = vmul.f32 %v1991, %v1993
        %v1995 = vadd.f32 %v1991, %v1994
        %vm1996 = vweird.f32 %v1945
        %vm1997 = vweird.f32 %v1991
        %vm1998 = vmor %vm1996, %vm1997
        %v1999 = vsel %vm1998, %v1991, %v1995
        %v2000 = vand.u32 2147483647, %v1945
        %vm2001 = vcmp.eq.f32.partialorder %v2000, 8.507059e+37
        %v2002 = vand.u32 %v1945, 2147483648
        %v2003 = vor.u32 1.1754944e-38, %v2002
        %v2004 = vsel %vm2001, %v2003, %v1999
        %v2005 = vmul.f32 1.0, %v2004
        %v2006 = vtanh.pop %v1926
        %v2007 = vtanh.pop %v1927
        %v2008 = vtanh.pop %v1928
        %v2009 = vtanh.pop %v1929
        %v2010 = vmul.f32 %v1960, %v1823
        %v2011 = vmul.f32 %v1975, %v1824
        %v2012 = vmul.f32 %v1990, %v1825
        %v2013 = vmul.f32 %v2005, %v1826
        %2018 = vrot.lane.b32.xlu0 %v2006, 32
        %v2019 = vpop.permute.xlu0 %2018
        %2020 = vrot.lane.b32.xlu0 %v2007, 32
        %v2021 = vpop.permute.xlu0 %2020
        %2022 = vrot.lane.b32.xlu0 %v2008, 32
        %v2023 = vpop.permute.xlu0 %2022
        %2024 = vrot.lane.b32.xlu0 %v2009, 32
        %v2025 = vpop.permute.xlu0 %2024
        %v2030 = vmul.f32 %v1960, %v2019
        %v2031 = vmul.f32 %v1975, %v2021
        %v2032 = vmul.f32 %v1990, %v2023
        %v2033 = vmul.f32 %v2005, %v2025
        %2038 = vrot.lane.b32.xlu0 %v2030, 32
        %v2039 = vpop.permute.xlu0 %2038
        %2040 = vrot.lane.b32.xlu0 %v2031, 32
        %v2041 = vpop.permute.xlu0 %2040
        %2042 = vrot.lane.b32.xlu0 %v2032, 32
        %v2043 = vpop.permute.xlu0 %2042
        %2044 = vrot.lane.b32.xlu0 %v2033, 32
        %v2045 = vpop.permute.xlu0 %2044
        %v2050 = vadd.f32 %v2010, %v2039
        %v2051 = vadd.f32 %v2011, %v2041
        %v2052 = vadd.f32 %v2012, %v2043
        %v2053 = vadd.f32 %v2013, %v2045
        %v2054 = vtanh.pop %v2050
        %v2055 = vtanh.pop %v2051
        %v2056 = vtanh.pop %v2052
        %v2057 = vtanh.pop %v2053
        %2062 = vrot.lane.b32.xlu0 %v2054, 32
        %v2063 = vpop.permute.xlu0 %2062
        %2064 = vrot.lane.b32.xlu0 %v2055, 32
        %v2065 = vpop.permute.xlu0 %2064
        %2066 = vrot.lane.b32.xlu0 %v2056, 32
        %v2067 = vpop.permute.xlu0 %2066
        %2068 = vrot.lane.b32.xlu0 %v2057, 32
        %v2069 = vpop.permute.xlu0 %2068
        %v2074 = vmul.f32 %v1960, %v2063
        %v2075 = vmul.f32 %v1975, %v2065
        %v2076 = vmul.f32 %v1990, %v2067
        %v2077 = vmul.f32 %v2005, %v2069
        %2080 = vrot.lane.b32.xlu0 %v2074, 64
        %v2081 = vpop.permute.xlu0 %2080
        %2082 = vrot.lane.b32.xlu0 %v2075, 64
        %v2083 = vpop.permute.xlu0 %2082
        %s2086 = scalar_lea.vmem %s342, 128 [#allocation5]
        %2087 = vst.msk [vmem:[%s2086] sm:$0xff] %vm1178, %v2081
        %2088 = vst.msk [vmem:[%s2086 + $0x8] sm:$0xff] %vm1178, %v2083
        %2091 = vrot.lane.b32.xlu0 %v2076, 64
        %v2092 = vpop.permute.xlu0 %2091
        %2093 = vrot.lane.b32.xlu0 %v2077, 64
        %v2094 = vpop.permute.xlu0 %2093
        %s2097 = scalar_lea.vmem %s342, 112 [#allocation5]
        %2098 = vst.msk [vmem:[%s2097] sm:$0xff] %vm1178, %v2092
        %2099 = vst.msk [vmem:[%s2097 + $0x8] sm:$0xff] %vm1178, %v2094
        %2100 = vrot.lane.b32.xlu0 %v2074, 96
        %v2101 = vpop.permute.xlu0 %2100
        %2102 = vrot.lane.b32.xlu0 %v2075, 96
        %v2103 = vpop.permute.xlu0 %2102
        %2104 = vrot.lane.b32.xlu0 %v2076, 96
        %v2105 = vpop.permute.xlu0 %2104
        %2106 = vrot.lane.b32.xlu0 %v2077, 96
        %v2107 = vpop.permute.xlu0 %2106
        %v2112 = vsel %vm1178, %v2081, %v2101
        %v2113 = vsel %vm1178, %v2083, %v2103
        %v2114 = vsel %vm1178, %v2092, %v2105
        %v2115 = vsel %vm1178, %v2094, %v2107
        %v2116 = vmul.f32 %v2112, %v962
        %v2117 = vmul.f32 %v2113, %v963
        %v2118 = vmul.f32 %v2114, %v964
        %v2119 = vmul.f32 %v2115, %v965
        %s2120 = scalar_lea.vmem [#allocation2], 80
        %v2121 = vld [vmem:[%s2120] sm:$0xff]
        %v2122 = vld [vmem:[%s2120 + $0x8] sm:$0xff]
        %s2123 = scalar_lea.vmem [#allocation3], 32
        %v2124 = vld [vmem:[%s2123] sm:$0xff]
        %v2125 = vld [vmem:[%s2123 + $0x8] sm:$0xff]
        %v2126 = vpack.c.bf16 %v2117, %v2116
        %v2127 = vpack.c.bf16 %v2119, %v2118
        %v2129 = vsel %vm995, %v2126, 0
        %v2132 = vsel %vm995, %v2127, 0
        %2134 = vmatpush.bf16.msra.mxu0 0
        %2135 = vmatpush.bf16.msra.mxu0 0
        %2136 = vmatpush.bf16.msra.mxu0 0
        %2137 = vmatpush.bf16.msra.mxu0 0
        %2138 = vmatpush.bf16.msra.mxu0 %v990
        %2139 = vmatpush.bf16.msra.mxu0 %v989
        %2140 = vmatpush.bf16.msra.mxu0 %v988
        %2141 = vmatpush.bf16.msra.mxu0 %v987
        %2142 = vmatmul.bf16.gmra.mxu0 %v2129
        %v2143 = vpop.f32.mrf.mxu0
        %v2144 = vadd.f32 0.0, %v2143
        %v2145 = vpop.f32.mrf.mxu0
        %v2146 = vadd.f32 0.0, %v2145
        %2147 = vmatmul.bf16.gmra.mxu0 %v2132
        %v2148 = vpop.f32.mrf.mxu0
        %v2149 = vadd.f32 0.0, %v2148
        %v2150 = vpop.f32.mrf.mxu0
        %v2151 = vadd.f32 0.0, %v2150
        %2152 = vdwg.mxu0
        %v2153 = vadd.f32 %v2121, %v2144
        %v2154 = vadd.f32 %v2122, %v2146
        %v2155 = vadd.f32 %v2124, %v2149
        %v2156 = vadd.f32 %v2125, %v2151
        %v2157 = vxor.u32 %v2153, 2147483648
        %v2158 = vxor.u32 %v2154, 2147483648
        %v2159 = vxor.u32 %v2155, 2147483648
        %v2160 = vxor.u32 %v2156, 2147483648
        %v2161 = vmul.f32 %v2157, 1.442695
        %v2162 = vpow.pop %v2161
        %v2163 = vmul.f32 %v2158, 1.442695
        %v2164 = vpow.pop %v2163
        %v2165 = vmul.f32 %v2159, 1.442695
        %v2166 = vpow.pop %v2165
        %v2167 = vmul.f32 %v2160, 1.442695
        %v2168 = vpow.pop %v2167
        %v2169 = vadd.f32 %v2162, 1.0
        %v2170 = vadd.f32 %v2164, 1.0
        %v2171 = vadd.f32 %v2166, 1.0
        %v2172 = vadd.f32 %v2168, 1.0
        %v2173 = vrcp.pop %v2169
        %v2174 = vmul.f32 %v2169, %v2173
        %v2175 = vsub.f32 1.0, %v2174
        %v2176 = vmul.f32 %v2173, %v2175
        %v2177 = vadd.f32 %v2173, %v2176
        %vm2178 = vweird.f32 %v2169
        %vm2179 = vweird.f32 %v2173
        %vm2180 = vmor %vm2178, %vm2179
        %v2181 = vsel %vm2180, %v2173, %v2177
        %v2182 = vand.u32 2147483647, %v2169
        %vm2183 = vcmp.eq.f32.partialorder %v2182, 8.507059e+37
        %v2184 = vand.u32 %v2169, 2147483648
        %v2185 = vor.u32 1.1754944e-38, %v2184
        %v2186 = vsel %vm2183, %v2185, %v2181
        %v2187 = vmul.f32 1.0, %v2186
        %v2188 = vrcp.pop %v2170
        %v2189 = vmul.f32 %v2170, %v2188
        %v2190 = vsub.f32 1.0, %v2189
        %v2191 = vmul.f32 %v2188, %v2190
        %v2192 = vadd.f32 %v2188, %v2191
        %vm2193 = vweird.f32 %v2170
        %vm2194 = vweird.f32 %v2188
        %vm2195 = vmor %vm2193, %vm2194
        %v2196 = vsel %vm2195, %v2188, %v2192
        %v2197 = vand.u32 2147483647, %v2170
        %vm2198 = vcmp.eq.f32.partialorder %v2197, 8.507059e+37
        %v2199 = vand.u32 %v2170, 2147483648
        %v2200 = vor.u32 1.1754944e-38, %v2199
        %v2201 = vsel %vm2198, %v2200, %v2196
        %v2202 = vmul.f32 1.0, %v2201
        %v2203 = vrcp.pop %v2171
        %v2204 = vmul.f32 %v2171, %v2203
        %v2205 = vsub.f32 1.0, %v2204
        %v2206 = vmul.f32 %v2203, %v2205
        %v2207 = vadd.f32 %v2203, %v2206
        %vm2208 = vweird.f32 %v2171
        %vm2209 = vweird.f32 %v2203
        %vm2210 = vmor %vm2208, %vm2209
        %v2211 = vsel %vm2210, %v2203, %v2207
        %v2212 = vand.u32 2147483647, %v2171
        %vm2213 = vcmp.eq.f32.partialorder %v2212, 8.507059e+37
        %v2214 = vand.u32 %v2171, 2147483648
        %v2215 = vor.u32 1.1754944e-38, %v2214
        %v2216 = vsel %vm2213, %v2215, %v2211
        %v2217 = vmul.f32 1.0, %v2216
        %v2218 = vrcp.pop %v2172
        %v2219 = vmul.f32 %v2172, %v2218
        %v2220 = vsub.f32 1.0, %v2219
        %v2221 = vmul.f32 %v2218, %v2220
        %v2222 = vadd.f32 %v2218, %v2221
        %vm2223 = vweird.f32 %v2172
        %vm2224 = vweird.f32 %v2218
        %vm2225 = vmor %vm2223, %vm2224
        %v2226 = vsel %vm2225, %v2218, %v2222
        %v2227 = vand.u32 2147483647, %v2172
        %vm2228 = vcmp.eq.f32.partialorder %v2227, 8.507059e+37
        %v2229 = vand.u32 %v2172, 2147483648
        %v2230 = vor.u32 1.1754944e-38, %v2229
        %v2231 = vsel %vm2228, %v2230, %v2226
        %v2232 = vmul.f32 1.0, %v2231
        %v2233 = vtanh.pop %v2153
        %v2234 = vtanh.pop %v2154
        %v2235 = vtanh.pop %v2155
        %v2236 = vtanh.pop %v2156
        %v2237 = vmul.f32 %v2187, %v2050
        %v2238 = vmul.f32 %v2202, %v2051
        %v2239 = vmul.f32 %v2217, %v2052
        %v2240 = vmul.f32 %v2232, %v2053
        %2245 = vrot.lane.b32.xlu0 %v2233, 32
        %v2246 = vpop.permute.xlu0 %2245
        %2247 = vrot.lane.b32.xlu0 %v2234, 32
        %v2248 = vpop.permute.xlu0 %2247
        %2249 = vrot.lane.b32.xlu0 %v2235, 32
        %v2250 = vpop.permute.xlu0 %2249
        %2251 = vrot.lane.b32.xlu0 %v2236, 32
        %v2252 = vpop.permute.xlu0 %2251
        %v2257 = vmul.f32 %v2187, %v2246
        %v2258 = vmul.f32 %v2202, %v2248
        %v2259 = vmul.f32 %v2217, %v2250
        %v2260 = vmul.f32 %v2232, %v2252
        %2265 = vrot.lane.b32.xlu0 %v2257, 32
        %v2266 = vpop.permute.xlu0 %2265
        %2267 = vrot.lane.b32.xlu0 %v2258, 32
        %v2268 = vpop.permute.xlu0 %2267
        %2269 = vrot.lane.b32.xlu0 %v2259, 32
        %v2270 = vpop.permute.xlu0 %2269
        %2271 = vrot.lane.b32.xlu0 %v2260, 32
        %v2272 = vpop.permute.xlu0 %2271
        %v2277 = vadd.f32 %v2237, %v2266
        %v2278 = vadd.f32 %v2238, %v2268
        %v2279 = vadd.f32 %v2239, %v2270
        %v2280 = vadd.f32 %v2240, %v2272
        %v2281 = vtanh.pop %v2277
        %v2282 = vtanh.pop %v2278
        %v2283 = vtanh.pop %v2279
        %v2284 = vtanh.pop %v2280
        %2289 = vrot.lane.b32.xlu0 %v2281, 32
        %v2290 = vpop.permute.xlu0 %2289
        %2291 = vrot.lane.b32.xlu0 %v2282, 32
        %v2292 = vpop.permute.xlu0 %2291
        %2293 = vrot.lane.b32.xlu0 %v2283, 32
        %v2294 = vpop.permute.xlu0 %2293
        %2295 = vrot.lane.b32.xlu0 %v2284, 32
        %v2296 = vpop.permute.xlu0 %2295
        %v2301 = vmul.f32 %v2187, %v2290
        %v2302 = vmul.f32 %v2202, %v2292
        %v2303 = vmul.f32 %v2217, %v2294
        %v2304 = vmul.f32 %v2232, %v2296
        %2307 = vrot.lane.b32.xlu0 %v2301, 64
        %v2308 = vpop.permute.xlu0 %2307
        %2309 = vrot.lane.b32.xlu0 %v2302, 64
        %v2310 = vpop.permute.xlu0 %2309
        %s2313 = scalar_lea.vmem %s342, 160 [#allocation5]
        %2314 = vst.msk [vmem:[%s2313] sm:$0xff] %vm1178, %v2308
        %2315 = vst.msk [vmem:[%s2313 + $0x8] sm:$0xff] %vm1178, %v2310
        %2318 = vrot.lane.b32.xlu0 %v2303, 64
        %v2319 = vpop.permute.xlu0 %2318
        %2320 = vrot.lane.b32.xlu0 %v2304, 64
        %v2321 = vpop.permute.xlu0 %2320
        %s2324 = scalar_lea.vmem %s342, 80 [#allocation5]
        %2325 = vst.msk [vmem:[%s2324] sm:$0xff] %vm1178, %v2319
        %2326 = vst.msk [vmem:[%s2324 + $0x8] sm:$0xff] %vm1178, %v2321
        %2327 = vrot.lane.b32.xlu0 %v2301, 96
        %v2328 = vpop.permute.xlu0 %2327
        %2329 = vrot.lane.b32.xlu0 %v2302, 96
        %v2330 = vpop.permute.xlu0 %2329
        %2331 = vrot.lane.b32.xlu0 %v2303, 96
        %v2332 = vpop.permute.xlu0 %2331
        %2333 = vrot.lane.b32.xlu0 %v2304, 96
        %v2334 = vpop.permute.xlu0 %2333
        %v2339 = vsel %vm1178, %v2308, %v2328
        %v2340 = vsel %vm1178, %v2310, %v2330
        %v2341 = vsel %vm1178, %v2319, %v2332
        %v2342 = vsel %vm1178, %v2321, %v2334
        %v2343 = vmul.f32 %v2339, %v962
        %v2344 = vmul.f32 %v2340, %v963
        %v2345 = vmul.f32 %v2341, %v964
        %v2346 = vmul.f32 %v2342, %v965
        %s2347 = scalar_lea.vmem [#allocation2], 96
        %v2348 = vld [vmem:[%s2347] sm:$0xff]
        %v2349 = vld [vmem:[%s2347 + $0x8] sm:$0xff]
        %s2350 = scalar_lea.vmem [#allocation3], 16
        %v2351 = vld [vmem:[%s2350] sm:$0xff]
        %v2352 = vld [vmem:[%s2350 + $0x8] sm:$0xff]
        %v2353 = vpack.c.bf16 %v2344, %v2343
        %v2354 = vpack.c.bf16 %v2346, %v2345
        %v2356 = vsel %vm995, %v2353, 0
        %v2359 = vsel %vm995, %v2354, 0
        %2361 = vmatpush.bf16.msra.mxu0 0
        %2362 = vmatpush.bf16.msra.mxu0 0
        %2363 = vmatpush.bf16.msra.mxu0 0
        %2364 = vmatpush.bf16.msra.mxu0 0
        %2365 = vmatpush.bf16.msra.mxu0 %v990
        %2366 = vmatpush.bf16.msra.mxu0 %v989
        %2367 = vmatpush.bf16.msra.mxu0 %v988
        %2368 = vmatpush.bf16.msra.mxu0 %v987
        %2369 = vmatmul.bf16.gmra.mxu0 %v2356
        %v2370 = vpop.f32.mrf.mxu0
        %v2371 = vadd.f32 0.0, %v2370
        %v2372 = vpop.f32.mrf.mxu0
        %v2373 = vadd.f32 0.0, %v2372
        %2374 = vmatmul.bf16.gmra.mxu0 %v2359
        %v2375 = vpop.f32.mrf.mxu0
        %v2376 = vadd.f32 0.0, %v2375
        %v2377 = vpop.f32.mrf.mxu0
        %v2378 = vadd.f32 0.0, %v2377
        %2379 = vdwg.mxu0
        %v2380 = vadd.f32 %v2348, %v2371
        %v2381 = vadd.f32 %v2349, %v2373
        %v2382 = vadd.f32 %v2351, %v2376
        %v2383 = vadd.f32 %v2352, %v2378
        %v2384 = vxor.u32 %v2380, 2147483648
        %v2385 = vxor.u32 %v2381, 2147483648
        %v2386 = vxor.u32 %v2382, 2147483648
        %v2387 = vxor.u32 %v2383, 2147483648
        %v2388 = vmul.f32 %v2384, 1.442695
        %v2389 = vpow.pop %v2388
        %v2390 = vmul.f32 %v2385, 1.442695
        %v2391 = vpow.pop %v2390
        %v2392 = vmul.f32 %v2386, 1.442695
        %v2393 = vpow.pop %v2392
        %v2394 = vmul.f32 %v2387, 1.442695
        %v2395 = vpow.pop %v2394
        %v2396 = vadd.f32 %v2389, 1.0
        %v2397 = vadd.f32 %v2391, 1.0
        %v2398 = vadd.f32 %v2393, 1.0
        %v2399 = vadd.f32 %v2395, 1.0
        %v2400 = vrcp.pop %v2396
        %v2401 = vmul.f32 %v2396, %v2400
        %v2402 = vsub.f32 1.0, %v2401
        %v2403 = vmul.f32 %v2400, %v2402
        %v2404 = vadd.f32 %v2400, %v2403
        %vm2405 = vweird.f32 %v2396
        %vm2406 = vweird.f32 %v2400
        %vm2407 = vmor %vm2405, %vm2406
        %v2408 = vsel %vm2407, %v2400, %v2404
        %v2409 = vand.u32 2147483647, %v2396
        %vm2410 = vcmp.eq.f32.partialorder %v2409, 8.507059e+37
        %v2411 = vand.u32 %v2396, 2147483648
        %v2412 = vor.u32 1.1754944e-38, %v2411
        %v2413 = vsel %vm2410, %v2412, %v2408
        %v2414 = vmul.f32 1.0, %v2413
        %v2415 = vrcp.pop %v2397
        %v2416 = vmul.f32 %v2397, %v2415
        %v2417 = vsub.f32 1.0, %v2416
        %v2418 = vmul.f32 %v2415, %v2417
        %v2419 = vadd.f32 %v2415, %v2418
        %vm2420 = vweird.f32 %v2397
        %vm2421 = vweird.f32 %v2415
        %vm2422 = vmor %vm2420, %vm2421
        %v2423 = vsel %vm2422, %v2415, %v2419
        %v2424 = vand.u32 2147483647, %v2397
        %vm2425 = vcmp.eq.f32.partialorder %v2424, 8.507059e+37
        %v2426 = vand.u32 %v2397, 2147483648
        %v2427 = vor.u32 1.1754944e-38, %v2426
        %v2428 = vsel %vm2425, %v2427, %v2423
        %v2429 = vmul.f32 1.0, %v2428
        %v2430 = vrcp.pop %v2398
        %v2431 = vmul.f32 %v2398, %v2430
        %v2432 = vsub.f32 1.0, %v2431
        %v2433 = vmul.f32 %v2430, %v2432
        %v2434 = vadd.f32 %v2430, %v2433
        %vm2435 = vweird.f32 %v2398
        %vm2436 = vweird.f32 %v2430
        %vm2437 = vmor %vm2435, %vm2436
        %v2438 = vsel %vm2437, %v2430, %v2434
        %v2439 = vand.u32 2147483647, %v2398
        %vm2440 = vcmp.eq.f32.partialorder %v2439, 8.507059e+37
        %v2441 = vand.u32 %v2398, 2147483648
        %v2442 = vor.u32 1.1754944e-38, %v2441
        %v2443 = vsel %vm2440, %v2442, %v2438
        %v2444 = vmul.f32 1.0, %v2443
        %v2445 = vrcp.pop %v2399
        %v2446 = vmul.f32 %v2399, %v2445
        %v2447 = vsub.f32 1.0, %v2446
        %v2448 = vmul.f32 %v2445, %v2447
        %v2449 = vadd.f32 %v2445, %v2448
        %vm2450 = vweird.f32 %v2399
        %vm2451 = vweird.f32 %v2445
        %vm2452 = vmor %vm2450, %vm2451
        %v2453 = vsel %vm2452, %v2445, %v2449
        %v2454 = vand.u32 2147483647, %v2399
        %vm2455 = vcmp.eq.f32.partialorder %v2454, 8.507059e+37
        %v2456 = vand.u32 %v2399, 2147483648
        %v2457 = vor.u32 1.1754944e-38, %v2456
        %v2458 = vsel %vm2455, %v2457, %v2453
        %v2459 = vmul.f32 1.0, %v2458
        %v2460 = vtanh.pop %v2380
        %v2461 = vtanh.pop %v2381
        %v2462 = vtanh.pop %v2382
        %v2463 = vtanh.pop %v2383
        %v2464 = vmul.f32 %v2414, %v2277
        %v2465 = vmul.f32 %v2429, %v2278
        %v2466 = vmul.f32 %v2444, %v2279
        %v2467 = vmul.f32 %v2459, %v2280
        %2472 = vrot.lane.b32.xlu0 %v2460, 32
        %v2473 = vpop.permute.xlu0 %2472
        %2474 = vrot.lane.b32.xlu0 %v2461, 32
        %v2475 = vpop.permute.xlu0 %2474
        %2476 = vrot.lane.b32.xlu0 %v2462, 32
        %v2477 = vpop.permute.xlu0 %2476
        %2478 = vrot.lane.b32.xlu0 %v2463, 32
        %v2479 = vpop.permute.xlu0 %2478
        %v2484 = vmul.f32 %v2414, %v2473
        %v2485 = vmul.f32 %v2429, %v2475
        %v2486 = vmul.f32 %v2444, %v2477
        %v2487 = vmul.f32 %v2459, %v2479
        %2492 = vrot.lane.b32.xlu0 %v2484, 32
        %v2493 = vpop.permute.xlu0 %2492
        %2494 = vrot.lane.b32.xlu0 %v2485, 32
        %v2495 = vpop.permute.xlu0 %2494
        %2496 = vrot.lane.b32.xlu0 %v2486, 32
        %v2497 = vpop.permute.xlu0 %2496
        %2498 = vrot.lane.b32.xlu0 %v2487, 32
        %v2499 = vpop.permute.xlu0 %2498
        %v2504 = vadd.f32 %v2464, %v2493
        %v2505 = vadd.f32 %v2465, %v2495
        %v2506 = vadd.f32 %v2466, %v2497
        %v2507 = vadd.f32 %v2467, %v2499
        %v2508 = vtanh.pop %v2504
        %v2509 = vtanh.pop %v2505
        %v2510 = vtanh.pop %v2506
        %v2511 = vtanh.pop %v2507
        %2516 = vrot.lane.b32.xlu0 %v2508, 32
        %v2517 = vpop.permute.xlu0 %2516
        %2518 = vrot.lane.b32.xlu0 %v2509, 32
        %v2519 = vpop.permute.xlu0 %2518
        %2520 = vrot.lane.b32.xlu0 %v2510, 32
        %v2521 = vpop.permute.xlu0 %2520
        %2522 = vrot.lane.b32.xlu0 %v2511, 32
        %v2523 = vpop.permute.xlu0 %2522
        %v2528 = vmul.f32 %v2414, %v2517
        %v2529 = vmul.f32 %v2429, %v2519
        %v2530 = vmul.f32 %v2444, %v2521
        %v2531 = vmul.f32 %v2459, %v2523
        %2534 = vrot.lane.b32.xlu0 %v2528, 64
        %v2535 = vpop.permute.xlu0 %2534
        %2536 = vrot.lane.b32.xlu0 %v2529, 64
        %v2537 = vpop.permute.xlu0 %2536
        %s2540 = scalar_lea.vmem %s342, 192 [#allocation5]
        %2541 = vst.msk [vmem:[%s2540] sm:$0xff] %vm1178, %v2535
        %2542 = vst.msk [vmem:[%s2540 + $0x8] sm:$0xff] %vm1178, %v2537
        %2545 = vrot.lane.b32.xlu0 %v2530, 64
        %v2546 = vpop.permute.xlu0 %2545
        %2547 = vrot.lane.b32.xlu0 %v2531, 64
        %v2548 = vpop.permute.xlu0 %2547
        %s2551 = scalar_lea.vmem %s342, 48 [#allocation5]
        %2552 = vst.msk [vmem:[%s2551] sm:$0xff] %vm1178, %v2546
        %2553 = vst.msk [vmem:[%s2551 + $0x8] sm:$0xff] %vm1178, %v2548
        %2554 = vrot.lane.b32.xlu0 %v2528, 96
        %v2555 = vpop.permute.xlu0 %2554
        %2556 = vrot.lane.b32.xlu0 %v2529, 96
        %v2557 = vpop.permute.xlu0 %2556
        %2558 = vrot.lane.b32.xlu0 %v2530, 96
        %v2559 = vpop.permute.xlu0 %2558
        %2560 = vrot.lane.b32.xlu0 %v2531, 96
        %v2561 = vpop.permute.xlu0 %2560
        %v2566 = vsel %vm1178, %v2535, %v2555
        %v2567 = vsel %vm1178, %v2537, %v2557
        %v2568 = vsel %vm1178, %v2546, %v2559
        %v2569 = vsel %vm1178, %v2548, %v2561
        %v2570 = vmul.f32 %v2566, %v962
        %v2571 = vmul.f32 %v2567, %v963
        %v2572 = vmul.f32 %v2568, %v964
        %v2573 = vmul.f32 %v2569, %v965
        %s2574 = scalar_lea.vmem [#allocation2], 112
        %v2575 = vld [vmem:[%s2574] sm:$0xff]
        %v2576 = vld [vmem:[%s2574 + $0x8] sm:$0xff]
        %v2577 = vld [vmem:[#allocation3] sm:$0xff]
        %v2578 = vld [vmem:[#allocation3 + $0x8] sm:$0xff]
        %v2579 = vpack.c.bf16 %v2571, %v2570
        %v2580 = vpack.c.bf16 %v2573, %v2572
        %v2582 = vsel %vm995, %v2579, 0
        %v2585 = vsel %vm995, %v2580, 0
        %2587 = vmatpush.bf16.msra.mxu0 0
        %2588 = vmatpush.bf16.msra.mxu0 0
        %2589 = vmatpush.bf16.msra.mxu0 0
        %2590 = vmatpush.bf16.msra.mxu0 0
        %2591 = vmatpush.bf16.msra.mxu0 %v990
        %2592 = vmatpush.bf16.msra.mxu0 %v989
        %2593 = vmatpush.bf16.msra.mxu0 %v988
        %2594 = vmatpush.bf16.msra.mxu0 %v987
        %2595 = vmatmul.bf16.gmra.mxu0 %v2582
        %v2596 = vpop.f32.mrf.mxu0
        %v2597 = vadd.f32 0.0, %v2596
        %v2598 = vpop.f32.mrf.mxu0
        %v2599 = vadd.f32 0.0, %v2598
        %2600 = vmatmul.bf16.gmra.mxu0 %v2585
        %v2601 = vpop.f32.mrf.mxu0
        %v2602 = vadd.f32 0.0, %v2601
        %v2603 = vpop.f32.mrf.mxu0
        %v2604 = vadd.f32 0.0, %v2603
        %2605 = vdwg.mxu0
        %v2606 = vadd.f32 %v2575, %v2597
        %v2607 = vadd.f32 %v2576, %v2599
        %v2608 = vadd.f32 %v2577, %v2602
        %v2609 = vadd.f32 %v2578, %v2604
        %v2610 = vxor.u32 %v2606, 2147483648
        %v2611 = vxor.u32 %v2607, 2147483648
        %v2612 = vxor.u32 %v2608, 2147483648
        %v2613 = vxor.u32 %v2609, 2147483648
        %v2614 = vmul.f32 %v2610, 1.442695
        %v2615 = vpow.pop %v2614
        %v2616 = vmul.f32 %v2611, 1.442695
        %v2617 = vpow.pop %v2616
        %v2618 = vmul.f32 %v2612, 1.442695
        %v2619 = vpow.pop %v2618
        %v2620 = vmul.f32 %v2613, 1.442695
        %v2621 = vpow.pop %v2620
        %v2622 = vadd.f32 %v2615, 1.0
        %v2623 = vadd.f32 %v2617, 1.0
        %v2624 = vadd.f32 %v2619, 1.0
        %v2625 = vadd.f32 %v2621, 1.0
        %v2626 = vrcp.pop %v2622
        %v2627 = vmul.f32 %v2622, %v2626
        %v2628 = vsub.f32 1.0, %v2627
        %v2629 = vmul.f32 %v2626, %v2628
        %v2630 = vadd.f32 %v2626, %v2629
        %vm2631 = vweird.f32 %v2622
        %vm2632 = vweird.f32 %v2626
        %vm2633 = vmor %vm2631, %vm2632
        %v2634 = vsel %vm2633, %v2626, %v2630
        %v2635 = vand.u32 2147483647, %v2622
        %vm2636 = vcmp.eq.f32.partialorder %v2635, 8.507059e+37
        %v2637 = vand.u32 %v2622, 2147483648
        %v2638 = vor.u32 1.1754944e-38, %v2637
        %v2639 = vsel %vm2636, %v2638, %v2634
        %v2640 = vmul.f32 1.0, %v2639
        %v2641 = vrcp.pop %v2623
        %v2642 = vmul.f32 %v2623, %v2641
        %v2643 = vsub.f32 1.0, %v2642
        %v2644 = vmul.f32 %v2641, %v2643
        %v2645 = vadd.f32 %v2641, %v2644
        %vm2646 = vweird.f32 %v2623
        %vm2647 = vweird.f32 %v2641
        %vm2648 = vmor %vm2646, %vm2647
        %v2649 = vsel %vm2648, %v2641, %v2645
        %v2650 = vand.u32 2147483647, %v2623
        %vm2651 = vcmp.eq.f32.partialorder %v2650, 8.507059e+37
        %v2652 = vand.u32 %v2623, 2147483648
        %v2653 = vor.u32 1.1754944e-38, %v2652
        %v2654 = vsel %vm2651, %v2653, %v2649
        %v2655 = vmul.f32 1.0, %v2654
        %v2656 = vrcp.pop %v2624
        %v2657 = vmul.f32 %v2624, %v2656
        %v2658 = vsub.f32 1.0, %v2657
        %v2659 = vmul.f32 %v2656, %v2658
        %v2660 = vadd.f32 %v2656, %v2659
        %vm2661 = vweird.f32 %v2624
        %vm2662 = vweird.f32 %v2656
        %vm2663 = vmor %vm2661, %vm2662
        %v2664 = vsel %vm2663, %v2656, %v2660
        %v2665 = vand.u32 2147483647, %v2624
        %vm2666 = vcmp.eq.f32.partialorder %v2665, 8.507059e+37
        %v2667 = vand.u32 %v2624, 2147483648
        %v2668 = vor.u32 1.1754944e-38, %v2667
        %v2669 = vsel %vm2666, %v2668, %v2664
        %v2670 = vmul.f32 1.0, %v2669
        %v2671 = vrcp.pop %v2625
        %v2672 = vmul.f32 %v2625, %v2671
        %v2673 = vsub.f32 1.0, %v2672
        %v2674 = vmul.f32 %v2671, %v2673
        %v2675 = vadd.f32 %v2671, %v2674
        %vm2676 = vweird.f32 %v2625
        %vm2677 = vweird.f32 %v2671
        %vm2678 = vmor %vm2676, %vm2677
        %v2679 = vsel %vm2678, %v2671, %v2675
        %v2680 = vand.u32 2147483647, %v2625
        %vm2681 = vcmp.eq.f32.partialorder %v2680, 8.507059e+37
        %v2682 = vand.u32 %v2625, 2147483648
        %v2683 = vor.u32 1.1754944e-38, %v2682
        %v2684 = vsel %vm2681, %v2683, %v2679
        %v2685 = vmul.f32 1.0, %v2684
        %v2686 = vtanh.pop %v2606
        %v2687 = vtanh.pop %v2607
        %v2688 = vtanh.pop %v2608
        %v2689 = vtanh.pop %v2609
        %v2690 = vmul.f32 %v2640, %v2504
        %v2691 = vmul.f32 %v2655, %v2505
        %v2692 = vmul.f32 %v2670, %v2506
        %v2693 = vmul.f32 %v2685, %v2507
        %2698 = vrot.lane.b32.xlu0 %v2686, 32
        %v2699 = vpop.permute.xlu0 %2698
        %2700 = vrot.lane.b32.xlu0 %v2687, 32
        %v2701 = vpop.permute.xlu0 %2700
        %2702 = vrot.lane.b32.xlu0 %v2688, 32
        %v2703 = vpop.permute.xlu0 %2702
        %2704 = vrot.lane.b32.xlu0 %v2689, 32
        %v2705 = vpop.permute.xlu0 %2704
        %v2710 = vmul.f32 %v2640, %v2699
        %v2711 = vmul.f32 %v2655, %v2701
        %v2712 = vmul.f32 %v2670, %v2703
        %v2713 = vmul.f32 %v2685, %v2705
        %2718 = vrot.lane.b32.xlu0 %v2710, 32
        %v2719 = vpop.permute.xlu0 %2718
        %2720 = vrot.lane.b32.xlu0 %v2711, 32
        %v2721 = vpop.permute.xlu0 %2720
        %2722 = vrot.lane.b32.xlu0 %v2712, 32
        %v2723 = vpop.permute.xlu0 %2722
        %2724 = vrot.lane.b32.xlu0 %v2713, 32
        %v2725 = vpop.permute.xlu0 %2724
        %v2730 = vadd.f32 %v2690, %v2719
        %v2731 = vadd.f32 %v2691, %v2721
        %v2732 = vadd.f32 %v2692, %v2723
        %v2733 = vadd.f32 %v2693, %v2725
        %v2734 = vtanh.pop %v2730
        %v2735 = vtanh.pop %v2731
        %v2736 = vtanh.pop %v2732
        %v2737 = vtanh.pop %v2733
        %2742 = vrot.lane.b32.xlu0 %v2734, 32
        %v2743 = vpop.permute.xlu0 %2742
        %2744 = vrot.lane.b32.xlu0 %v2735, 32
        %v2745 = vpop.permute.xlu0 %2744
        %2746 = vrot.lane.b32.xlu0 %v2736, 32
        %v2747 = vpop.permute.xlu0 %2746
        %2748 = vrot.lane.b32.xlu0 %v2737, 32
        %v2749 = vpop.permute.xlu0 %2748
        %v2754 = vmul.f32 %v2640, %v2743
        %v2755 = vmul.f32 %v2655, %v2745
        %v2756 = vmul.f32 %v2670, %v2747
        %v2757 = vmul.f32 %v2685, %v2749
        %2760 = vrot.lane.b32.xlu0 %v2754, 64
        %v2761 = vpop.permute.xlu0 %2760
        %2762 = vrot.lane.b32.xlu0 %v2755, 64
        %v2763 = vpop.permute.xlu0 %2762
        %s2766 = scalar_lea.vmem %s342, 224 [#allocation5]
        %2767 = vst.msk [vmem:[%s2766] sm:$0xff] %vm1178, %v2761
        %2768 = vst.msk [vmem:[%s2766 + $0x8] sm:$0xff] %vm1178, %v2763
        %2771 = vrot.lane.b32.xlu0 %v2756, 64
        %v2772 = vpop.permute.xlu0 %2771
        %2773 = vrot.lane.b32.xlu0 %v2757, 64
        %v2774 = vpop.permute.xlu0 %2773
        %s2777 = scalar_lea.vmem %s342, 16 [#allocation5]
        %2778 = vst.msk [vmem:[%s2777] sm:$0xff] %vm1178, %v2772
        %2779 = vst.msk [vmem:[%s2777 + $0x8] sm:$0xff] %vm1178, %v2774
        %s2780 = sand.u32 %s156, 1
        %s2781 = sand.u32 %s156, 1
        %s2782 = smul.addr %s2781, 256
        %s2783 = scalar_lea.vmem [#allocation5], %s2782
        // Predicated region
        $region83: #{esim_forward.6} parent=77 // pred_check
          %p2784 = pneg %p166
        $region84: #{esim_forward.6} parent=77 // pred_check_branch
          %2786 = sbr.rel (%p2784) target = $region86
        $region85: #{esim_forward.6} parent=77 // pred_region
          %s2787 = smul.u32 2, %s17
          %s2788 = smul.addr %s2787, 8
          %s2789 = scalar_lea.vmem %s6, %s2788
          // Predicated region
          $region87: #{esim_forward.6} parent=85 // pred_check
            _
          $region88: #{esim_forward.6} parent=85 // pred_check_branch
            %2791 = sbr.rel (0) target = $region90
          $region89: #{esim_forward.6} parent=85 // pred_region
            // Predicated region
            $region91: #{esim_forward.6} parent=89 // pred_check
              _
            $region92: #{esim_forward.6} parent=89 // pred_check_branch
              %2793 = sbr.rel (0) target = $region94
            $region93: #{esim_forward.6} parent=89 // pred_region
              // Predicated region
              $region106: #{esim_forward.6} parent=93 // pred_check
                _
              $region107: #{esim_forward.6} parent=93 // pred_check_branch
                %2871 = sbr.rel (0) target = $region109
              $region108: #{esim_forward.6} parent=93 // pred_region
                loop: start=0, step=1, limit=1
                $region110: #{esim_forward.6} parent=108 // loop_pre_header
                  _
                $region111: #{esim_forward.6} parent=108 // loop_header
                  %s2873 = sphi 0, %s2877
                  %p2874 = scmp.ge.s32.totalorder %s2873, 1
                  %s2878 = sphi %s2783, %s2783
                  %s2879 = sphi %s2789, %s2789
                $region112: #{esim_forward.6} parent=108 // loop_header_branch
                  %2876 = sbr.rel (%p2874) target = $region116
                $region113: #{esim_forward.6} parent=108 // loop_body
                  %v2880 = vld [vmem:[%s2878] sm:$0xff]
                  %2881 = vst [vmem:[%s2879] sm:$0xff] %v2880
                  %v2882 = vld [vmem:[%s2878 + $0x8] sm:$0xff]
                  %2883 = vst [vmem:[%s2879 + $0x8] sm:$0xff] %v2882
                  %v2884 = vld [vmem:[%s2878 + $0x10] sm:$0xff]
                  %2885 = vst [vmem:[%s2879 + $0x20] sm:$0xff] %v2884
                  %v2886 = vld [vmem:[%s2878 + $0x18] sm:$0xff]
                  %2887 = vst [vmem:[%s2879 + $0x28] sm:$0xff] %v2886
                  %v2888 = vld [vmem:[%s2878 + $0x20] sm:$0xff]
                  %2889 = vst [vmem:[%s2879 + $0x40] sm:$0xff] %v2888
                  %v2890 = vld [vmem:[%s2878 + $0x28] sm:$0xff]
                  %2891 = vst [vmem:[%s2879 + $0x48] sm:$0xff] %v2890
                  %v2892 = vld [vmem:[%s2878 + $0x30] sm:$0xff]
                  %2893 = vst [vmem:[%s2879 + $0x60] sm:$0xff] %v2892
                  %v2894 = vld [vmem:[%s2878 + $0x38] sm:$0xff]
                  %2895 = vst [vmem:[%s2879 + $0x68] sm:$0xff] %v2894
                  %v2896 = vld [vmem:[%s2878 + $0x40] sm:$0xff]
                  %2897 = vst [vmem:[%s2879 + $0x80] sm:$0xff] %v2896
                  %v2898 = vld [vmem:[%s2878 + $0x48] sm:$0xff]
                  %2899 = vst [vmem:[%s2879 + $0x88] sm:$0xff] %v2898
                  %v2900 = vld [vmem:[%s2878 + $0x50] sm:$0xff]
                  %2901 = vst [vmem:[%s2879 + $0xa0] sm:$0xff] %v2900
                  %v2902 = vld [vmem:[%s2878 + $0x58] sm:$0xff]
                  %2903 = vst [vmem:[%s2879 + $0xa8] sm:$0xff] %v2902
                  %v2904 = vld [vmem:[%s2878 + $0x60] sm:$0xff]
                  %2905 = vst [vmem:[%s2879 + $0xc0] sm:$0xff] %v2904
                  %v2906 = vld [vmem:[%s2878 + $0x68] sm:$0xff]
                  %2907 = vst [vmem:[%s2879 + $0xc8] sm:$0xff] %v2906
                  %v2908 = vld [vmem:[%s2878 + $0x70] sm:$0xff]
                  %2909 = vst [vmem:[%s2879 + $0xe0] sm:$0xff] %v2908
                  %v2910 = vld [vmem:[%s2878 + $0x78] sm:$0xff]
                  %2911 = vst [vmem:[%s2879 + $0xe8] sm:$0xff] %v2910
                  %v2912 = vld [vmem:[%s2878 + $0x80] sm:$0xff]
                  %2913 = vst [vmem:[%s2879 + $0x100] sm:$0xff] %v2912
                  %v2914 = vld [vmem:[%s2878 + $0x88] sm:$0xff]
                  %2915 = vst [vmem:[%s2879 + $0x108] sm:$0xff] %v2914
                  %v2916 = vld [vmem:[%s2878 + $0x90] sm:$0xff]
                  %2917 = vst [vmem:[%s2879 + $0x120] sm:$0xff] %v2916
                  %v2918 = vld [vmem:[%s2878 + $0x98] sm:$0xff]
                  %2919 = vst [vmem:[%s2879 + $0x128] sm:$0xff] %v2918
                  %v2920 = vld [vmem:[%s2878 + $0xa0] sm:$0xff]
                  %2921 = vst [vmem:[%s2879 + $0x140] sm:$0xff] %v2920
                  %v2922 = vld [vmem:[%s2878 + $0xa8] sm:$0xff]
                  %2923 = vst [vmem:[%s2879 + $0x148] sm:$0xff] %v2922
                  %v2924 = vld [vmem:[%s2878 + $0xb0] sm:$0xff]
                  %2925 = vst [vmem:[%s2879 + $0x160] sm:$0xff] %v2924
                  %v2926 = vld [vmem:[%s2878 + $0xb8] sm:$0xff]
                  %2927 = vst [vmem:[%s2879 + $0x168] sm:$0xff] %v2926
                  %v2928 = vld [vmem:[%s2878 + $0xc0] sm:$0xff]
                  %2929 = vst [vmem:[%s2879 + $0x180] sm:$0xff] %v2928
                  %v2930 = vld [vmem:[%s2878 + $0xc8] sm:$0xff]
                  %2931 = vst [vmem:[%s2879 + $0x188] sm:$0xff] %v2930
                  %v2932 = vld [vmem:[%s2878 + $0xd0] sm:$0xff]
                  %2933 = vst [vmem:[%s2879 + $0x1a0] sm:$0xff] %v2932
                  %v2934 = vld [vmem:[%s2878 + $0xd8] sm:$0xff]
                  %2935 = vst [vmem:[%s2879 + $0x1a8] sm:$0xff] %v2934
                  %v2936 = vld [vmem:[%s2878 + $0xe0] sm:$0xff]
                  %2937 = vst [vmem:[%s2879 + $0x1c0] sm:$0xff] %v2936
                  %v2938 = vld [vmem:[%s2878 + $0xe8] sm:$0xff]
                  %2939 = vst [vmem:[%s2879 + $0x1c8] sm:$0xff] %v2938
                  %v2940 = vld [vmem:[%s2878 + $0xf0] sm:$0xff]
                  %2941 = vst [vmem:[%s2879 + $0x1e0] sm:$0xff] %v2940
                  %v2942 = vld [vmem:[%s2878 + $0xf8] sm:$0xff]
                  %2943 = vst [vmem:[%s2879 + $0x1e8] sm:$0xff] %v2942
                $region114: #{esim_forward.6} parent=108 // loop_footer
                  %s2877 = sadd.s32 1, %s2873
                $region115: #{esim_forward.6} parent=108 // loop_footer_branch
                  %2872 = sbr.rel target = $region111
                $region116: #{esim_forward.6} parent=108 // loop_exit
                  _
              $region109: #{esim_forward.6} parent=93 // pred_fallthru
                _
              // Predicated region
              $region117: #{esim_forward.6} parent=93 // pred_check
                _
              $region118: #{esim_forward.6} parent=93 // pred_check_branch
                %2945 = sbr.rel target = $region120
              $region119: #{esim_forward.6} parent=93 // pred_region
                _
              $region120: #{esim_forward.6} parent=93 // pred_fallthru
                _
            $region94: #{esim_forward.6} parent=89 // pred_fallthru
              _
            // Predicated region
            $region95: #{esim_forward.6} parent=89 // pred_check
              _
            $region96: #{esim_forward.6} parent=89 // pred_check_branch
              %2795 = sbr.rel target = $region98
            $region97: #{esim_forward.6} parent=89 // pred_region
              %s2797 = ssub.s32 256, 1
              loop: start=0, step=1, limit=1
              $region99: #{esim_forward.6} parent=97 // loop_pre_header
                _
              $region100: #{esim_forward.6} parent=97 // loop_header
                %s2799 = sphi 0, %s2803
                %p2800 = scmp.ge.s32.totalorder %s2799, 1
                %s2804 = sphi %s2783, %s2783
                %s2805 = sphi %s2789, %s2789
              $region101: #{esim_forward.6} parent=97 // loop_header_branch
                %2802 = sbr.rel (%p2800) target = $region105
              $region102: #{esim_forward.6} parent=97 // loop_body
                %v2806 = vld [vmem:[%s2804] sm:%s2797]
                %2807 = vst [vmem:[%s2805] sm:%s2797] %v2806
                %v2808 = vld [vmem:[%s2804 + $0x8] sm:%s2797]
                %2809 = vst [vmem:[%s2805 + $0x8] sm:%s2797] %v2808
                %v2810 = vld [vmem:[%s2804 + $0x10] sm:%s2797]
                %2811 = vst [vmem:[%s2805 + $0x20] sm:%s2797] %v2810
                %v2812 = vld [vmem:[%s2804 + $0x18] sm:%s2797]
                %2813 = vst [vmem:[%s2805 + $0x28] sm:%s2797] %v2812
                %v2814 = vld [vmem:[%s2804 + $0x20] sm:%s2797]
                %2815 = vst [vmem:[%s2805 + $0x40] sm:%s2797] %v2814
                %v2816 = vld [vmem:[%s2804 + $0x28] sm:%s2797]
                %2817 = vst [vmem:[%s2805 + $0x48] sm:%s2797] %v2816
                %v2818 = vld [vmem:[%s2804 + $0x30] sm:%s2797]
                %2819 = vst [vmem:[%s2805 + $0x60] sm:%s2797] %v2818
                %v2820 = vld [vmem:[%s2804 + $0x38] sm:%s2797]
                %2821 = vst [vmem:[%s2805 + $0x68] sm:%s2797] %v2820
                %v2822 = vld [vmem:[%s2804 + $0x40] sm:%s2797]
                %2823 = vst [vmem:[%s2805 + $0x80] sm:%s2797] %v2822
                %v2824 = vld [vmem:[%s2804 + $0x48] sm:%s2797]
                %2825 = vst [vmem:[%s2805 + $0x88] sm:%s2797] %v2824
                %v2826 = vld [vmem:[%s2804 + $0x50] sm:%s2797]
                %2827 = vst [vmem:[%s2805 + $0xa0] sm:%s2797] %v2826
                %v2828 = vld [vmem:[%s2804 + $0x58] sm:%s2797]
                %2829 = vst [vmem:[%s2805 + $0xa8] sm:%s2797] %v2828
                %v2830 = vld [vmem:[%s2804 + $0x60] sm:%s2797]
                %2831 = vst [vmem:[%s2805 + $0xc0] sm:%s2797] %v2830
                %v2832 = vld [vmem:[%s2804 + $0x68] sm:%s2797]
                %2833 = vst [vmem:[%s2805 + $0xc8] sm:%s2797] %v2832
                %v2834 = vld [vmem:[%s2804 + $0x70] sm:%s2797]
                %2835 = vst [vmem:[%s2805 + $0xe0] sm:%s2797] %v2834
                %v2836 = vld [vmem:[%s2804 + $0x78] sm:%s2797]
                %2837 = vst [vmem:[%s2805 + $0xe8] sm:%s2797] %v2836
                %v2838 = vld [vmem:[%s2804 + $0x80] sm:%s2797]
                %2839 = vst [vmem:[%s2805 + $0x100] sm:%s2797] %v2838
                %v2840 = vld [vmem:[%s2804 + $0x88] sm:%s2797]
                %2841 = vst [vmem:[%s2805 + $0x108] sm:%s2797] %v2840
                %v2842 = vld [vmem:[%s2804 + $0x90] sm:%s2797]
                %2843 = vst [vmem:[%s2805 + $0x120] sm:%s2797] %v2842
                %v2844 = vld [vmem:[%s2804 + $0x98] sm:%s2797]
                %2845 = vst [vmem:[%s2805 + $0x128] sm:%s2797] %v2844
                %v2846 = vld [vmem:[%s2804 + $0xa0] sm:%s2797]
                %2847 = vst [vmem:[%s2805 + $0x140] sm:%s2797] %v2846
                %v2848 = vld [vmem:[%s2804 + $0xa8] sm:%s2797]
                %2849 = vst [vmem:[%s2805 + $0x148] sm:%s2797] %v2848
                %v2850 = vld [vmem:[%s2804 + $0xb0] sm:%s2797]
                %2851 = vst [vmem:[%s2805 + $0x160] sm:%s2797] %v2850
                %v2852 = vld [vmem:[%s2804 + $0xb8] sm:%s2797]
                %2853 = vst [vmem:[%s2805 + $0x168] sm:%s2797] %v2852
                %v2854 = vld [vmem:[%s2804 + $0xc0] sm:%s2797]
                %2855 = vst [vmem:[%s2805 + $0x180] sm:%s2797] %v2854
                %v2856 = vld [vmem:[%s2804 + $0xc8] sm:%s2797]
                %2857 = vst [vmem:[%s2805 + $0x188] sm:%s2797] %v2856
                %v2858 = vld [vmem:[%s2804 + $0xd0] sm:%s2797]
                %2859 = vst [vmem:[%s2805 + $0x1a0] sm:%s2797] %v2858
                %v2860 = vld [vmem:[%s2804 + $0xd8] sm:%s2797]
                %2861 = vst [vmem:[%s2805 + $0x1a8] sm:%s2797] %v2860
                %v2862 = vld [vmem:[%s2804 + $0xe0] sm:%s2797]
                %2863 = vst [vmem:[%s2805 + $0x1c0] sm:%s2797] %v2862
                %v2864 = vld [vmem:[%s2804 + $0xe8] sm:%s2797]
                %2865 = vst [vmem:[%s2805 + $0x1c8] sm:%s2797] %v2864
                %v2866 = vld [vmem:[%s2804 + $0xf0] sm:%s2797]
                %2867 = vst [vmem:[%s2805 + $0x1e0] sm:%s2797] %v2866
                %v2868 = vld [vmem:[%s2804 + $0xf8] sm:%s2797]
                %2869 = vst [vmem:[%s2805 + $0x1e8] sm:%s2797] %v2868
              $region103: #{esim_forward.6} parent=97 // loop_footer
                %s2803 = sadd.s32 1, %s2799
              $region104: #{esim_forward.6} parent=97 // loop_footer_branch
                %2798 = sbr.rel target = $region100
              $region105: #{esim_forward.6} parent=97 // loop_exit
                _
            $region98: #{esim_forward.6} parent=89 // pred_fallthru
              _
          $region90: #{esim_forward.6} parent=85 // pred_fallthru
            _
          %2946 = vnop
        $region86: #{esim_forward.6} parent=77 // pred_fallthru
          _
      $region78: #{esim_forward.6} parent=5 // pred_fallthru
        _
      %p2947 = scmp.le.s32.totalorder 2, %s12
      // Predicated region
      $region121: #{esim_forward.6} parent=5 // pred_check
        %p2948 = pneg %p2947
      $region122: #{esim_forward.6} parent=5 // pred_check_branch
        %2950 = sbr.rel (%p2948) target = $region124
      $region123: #{esim_forward.6} parent=5 // pred_region
        %s2951 = ssub.s32 %s12, 2
        // Predicated region
        $region125: #{esim_forward.6} parent=123 // pred_check
          %p2952 = pneg %p172
        $region126: #{esim_forward.6} parent=123 // pred_check_branch
          %2954 = sbr.rel (%p2952) target = $region128
        $region127: #{esim_forward.6} parent=123 // pred_region
          %s2955 = sand.u32 %s157, 1
          %s2956 = sand.u32 %s157, 1
          %s2957 = smul.addr %s2956, 256
          %s2958 = scalar_lea.vmem [#allocation5], %s2957
        $region128: #{esim_forward.6} parent=123 // pred_fallthru
          _
      $region124: #{esim_forward.6} parent=5 // pred_fallthru
        _
    $region6: #{esim_forward.6} parent=1 // loop_footer
      %s16 = sadd.s32 1, %s12
    $region7: #{esim_forward.6} parent=1 // loop_footer_branch
      %11 = sbr.rel target = $region3
    $region8: #{esim_forward.6} parent=1 // loop_exit
      _

</llo_original>
